<compile_context>
chip_gen: v5e
topology: v5e:2x2
jax: 0.10.0
libtpu: 0.0.40
codegen_flags: <defaults>
</compile_context>

<pallas_src>
import functools

import jax
import jax.numpy as jnp
from jax.experimental import pallas as pl
from jax.experimental.pallas import tpu as pltpu

VMEM_SPEC = pl.BlockSpec(memory_space=pltpu.MemorySpace.VMEM)
_VMEM_LIMIT = 32 * 1024 * 1024


# ----------------------------- Pallas kernels ------------------------------

def _conv_matmul_kernel(x_ref, w_ref, b_ref, o_ref):
    """relu(x @ w + b): x may be uint8/f32/bf16, w is bf16, f32 accumulation."""
    x = x_ref[...]
    if x.dtype != jnp.bfloat16:
        if jnp.issubdtype(x.dtype, jnp.integer):
            x = x.astype(jnp.int32)          # uint8 frames -> i32 (cheap widen)
        x = x.astype(jnp.float32)
        x = x.astype(jnp.bfloat16)           # feed the MXU in bf16
    acc = jnp.dot(x, w_ref[...], preferred_element_type=jnp.float32)
    acc = jnp.maximum(acc + b_ref[...], 0.0)  # bias + ReLU epilogue in f32
    o_ref[...] = acc.astype(o_ref.dtype)


def conv_matmul(patches, w, b, *, tile_m):
    """relu(patches @ w + b) on the MXU, gridded over patch rows."""
    m, k = patches.shape
    _, n = w.shape
    assert m % tile_m == 0
    return pl.pallas_call(
        _conv_matmul_kernel,
        out_shape=jax.ShapeDtypeStruct((m, n), jnp.bfloat16),
        grid_spec=pltpu.PrefetchScalarGridSpec(
            num_scalar_prefetch=0,
            grid=(m // tile_m,),
            in_specs=[pl.BlockSpec((tile_m, k), lambda i: (i, 0)),
                      pl.BlockSpec((k, n), lambda i: (0, 0)),
                      pl.BlockSpec((1, n), lambda i: (0, 0))],
            out_specs=pl.BlockSpec((tile_m, n), lambda i: (i, 0))),
        compiler_params=pltpu.CompilerParams(
            dimension_semantics=("parallel",),   # v7x: shard row tiles over both TCs
            vmem_limit_bytes=_VMEM_LIMIT),
    )(patches, w, b)


def _tail_kernel(p3_ref, w3_ref, b3_ref, wfc_ref, bfc_ref, wh_ref, bh_ref, o_ref,
                 *, batch, n_pos):
    """Fused conv3 + ReLU -> fc4 + ReLU -> head.

    p3 rows are position-major (row = p * batch + b), so fc4's flatten is a sum
    of per-position (batch, 64) @ (64, 512) matmuls (no in-kernel relayout).
    """
    h3 = jnp.dot(p3_ref[...], w3_ref[...], preferred_element_type=jnp.float32)
    h3 = jnp.maximum(h3 + b3_ref[...], 0.0)                            # (n_pos*batch, 64) f32

    acc = jnp.zeros((batch, wfc_ref.shape[2]), jnp.float32)
    for p in range(n_pos):                                             # static unroll (49)
        blk = h3[p * batch:(p + 1) * batch, :].astype(jnp.bfloat16)    # (batch, 64)
        acc = acc + jnp.dot(blk, wfc_ref[p], preferred_element_type=jnp.float32)
    h4 = jnp.maximum(acc + bfc_ref[...], 0.0).astype(jnp.bfloat16)     # (batch, 512)

    out = jnp.dot(h4, wh_ref[...], preferred_element_type=jnp.float32) + bh_ref[...]
    o_ref[...] = out                                                   # lane-dense (batch, 128)


def fused_tail(p3, w3, b3, wfc, bfc, wh, bh, *, batch, n_pos):
    return pl.pallas_call(
        functools.partial(_tail_kernel, batch=batch, n_pos=n_pos),
        out_shape=jax.ShapeDtypeStruct((batch, wh.shape[1]), jnp.float32),
        in_specs=[VMEM_SPEC] * 7,
        out_specs=VMEM_SPEC,
        compiler_params=pltpu.CompilerParams(vmem_limit_bytes=_VMEM_LIMIT),
    )(p3, w3, b3, wfc, bfc, wh, bh)


# ------------------------------- XLA glue ----------------------------------

def extract_patches(x, kh, kw, stride, *, pos_major=False):
    """im2col on an NHWC image (any dtype): two gathers + one transpose.

    Feature order is (kh, kw, c). Rows are (b, oh, ow)-major by default, or
    (oh, ow, b)-major if pos_major.
    """
    b, h, w, c = x.shape
    oh = (h - kh) // stride + 1
    ow = (w - kw) // stride + 1
    ii = (jnp.arange(oh) * stride)[:, None] + jnp.arange(kh)[None, :]   # (oh, kh)
    jj = (jnp.arange(ow) * stride)[:, None] + jnp.arange(kw)[None, :]   # (ow, kw)
    p = x[:, ii]                     # (b, oh, kh, w, c)
    p = p[:, :, :, jj]               # (b, oh, kh, ow, kw, c)
    if pos_major:
        p = p.transpose(1, 3, 0, 2, 4, 5)        # (oh, ow, b, kh, kw, c)
    else:
        p = p.transpose(0, 1, 3, 2, 4, 5)        # (b, oh, ow, kh, kw, c)
    return p.reshape(-1, kh * kw * c), oh, ow


# --------------------------- parameters / forward ---------------------------

def init_params(key, in_channels=4, n_actions=14):
    """PyTorch-default uniform(+-1/sqrt(fan_in)) init, stored in kernel layouts.

    Layouts (if porting torch weights):
      conv w: torch (cout,cin,kh,kw) -> w.permute(2,3,1,0).reshape(kh*kw*cin, cout)
      fc4  w: torch (512, 64*7*7)    -> wfc[p, c, d] = fc4.weight[d, c*49 + p]
      head w/b: zero-padded from n_actions to 128 output lanes.
    """
    ks = jax.random.split(key, 10)

    def u(k, shape, fan_in):
        bound = 1.0 / jnp.sqrt(jnp.float32(fan_in))
        return jax.random.uniform(k, shape, jnp.float32, -bound, bound)

    n_head = ((n_actions + 127) // 128) * 128
    w_head = jnp.pad(u(ks[8], (512, n_actions), 512), ((0, 0), (0, n_head - n_actions)))
    b_head = jnp.pad(u(ks[9], (1, n_actions), 512), ((0, 0), (0, n_head - n_actions)))

    return {
        # conv1: fold the x/255 input scaling into the weights (bias untouched).
        "w1": (u(ks[0], (8 * 8 * in_channels, 32), in_channels * 64) / 255.0
               ).astype(jnp.bfloat16),
        "b1": u(ks[1], (1, 32), in_channels * 64),
        "w2": u(ks[2], (4 * 4 * 32, 64), 32 * 16).astype(jnp.bfloat16),
        "b2": u(ks[3], (1, 64), 32 * 16),
        "w3": u(ks[4], (3 * 3 * 64, 64), 64 * 9).astype(jnp.bfloat16),
        "b3": u(ks[5], (1, 64), 64 * 9),
        "w_fc": u(ks[6], (49, 64, 512), 7 * 7 * 64).astype(jnp.bfloat16),
        "b_fc": u(ks[7], (1, 512), 7 * 7 * 64),
        "w_head": w_head.astype(jnp.bfloat16),
        "b_head": b_head,
    }


def dqn_forward(x, params, n_actions):
    """x: (B, in_channels, H, W), uint8 (or float) frames in [0, 255]."""
    b = x.shape[0]
    x = jnp.transpose(x, (0, 2, 3, 1))     # NHWC once; stays NHWC (and uint8) from here

    # conv1 (k=8, s=4) + ReLU: /255 folded into w1, uint8 patches cast in-kernel.
    p1, oh1, ow1 = extract_patches(x, 8, 8, 4)
    tile_m = 160 if p1.shape[0] % 160 == 0 else p1.shape[0]
    c1 = conv_matmul(p1, params["w1"], params["b1"], tile_m=tile_m)
    # TODO(synk): conv intermediates keep their true channel width (32/64 < 128
    # lanes); padding them to 128 would make stores lane-dense but 4x the im2col
    # glue bytes, a net loss at these sizes.
    c1 = c1.reshape(b, oh1, ow1, 32)

    # conv2 (k=4, s=2) + ReLU.
    p2, oh2, ow2 = extract_patches(c1, 4, 4, 2)
    c2 = conv_matmul(p2, params["w2"], params["b2"], tile_m=p2.shape[0])
    c2 = c2.reshape(b, oh2, ow2, 64)

    # Fused tail: conv3 (k=3, s=1) + ReLU -> fc4 + ReLU -> head, one pallas_call.
    p3, oh3, ow3 = extract_patches(c2, 3, 3, 1, pos_major=True)
    n_pos = oh3 * ow3
    assert params["w_fc"].shape[:2] == (n_pos, c2.shape[-1])
    out = fused_tail(p3, params["w3"], params["b3"], params["w_fc"], params["b_fc"],
                     params["w_head"], params["b_head"], batch=b, n_pos=n_pos)
    return out[:, :n_actions]


if __name__ == "__main__":
    key = jax.random.PRNGKey(0)
    kx, kp = jax.random.split(key)

    # 84x84 Atari frames: the module's fc4(7*7*64, 512) implies this spatial size.
    B, C, H, W = 2, 4, 84, 84
    N_ACTIONS = 14

    x = jax.random.randint(kx, (B, C, H, W), 0, 256, dtype=jnp.int32).astype(jnp.uint8)
    params = init_params(kp, in_channels=C, n_actions=N_ACTIONS)

    fwd = jax.jit(functools.partial(dqn_forward, n_actions=N_ACTIONS))
    out = jax.block_until_ready(fwd(x, params))
    assert out.shape == (B, N_ACTIONS) and out.dtype == jnp.float32
    print("KERNEL_OK")
</pallas_src>

<mosaic_0001>
module attributes {stable_mosaic.version = 11 : i64} {
  func.func @_conv_matmul_kernel(%arg0: i32, %arg1: memref<160x256xi8, #tpu.memory_space<vmem>>, %arg2: memref<256x32xbf16, #tpu.memory_space<vmem>>, %arg3: memref<1x32xf32, #tpu.memory_space<vmem>>, %arg4: memref<160x32xbf16, #tpu.memory_space<vmem>>) attributes {dimension_semantics = [#tpu.dimension_semantics<parallel>], iteration_bounds = array<i64: 5>, scalar_prefetch = 0 : i64, scratch_operands = 0 : i64, tpu.core_type = #tpu.core_type<tc>, window_params = [{transform_indices = @transform_0, window_bounds = array<i64: 160, 256>}, {pipeline_mode = #tpu.pipeline_mode<synchronous>, transform_indices = @transform_1, window_bounds = array<i64: 256, 32>}, {pipeline_mode = #tpu.pipeline_mode<synchronous>, transform_indices = @transform_2, window_bounds = array<i64: 1, 32>}, {transform_indices = @transform_3, window_bounds = array<i64: 160, 32>}]} {
    %c0 = arith.constant 0 : index
    %c0_0 = arith.constant 0 : index
    %0 = vector.load %arg1[%c0, %c0_0] : memref<160x256xi8, #tpu.memory_space<vmem>>, vector<160x256xi8>
    %1 = arith.extui %0 : vector<160x256xi8> to vector<160x256xi32>
    %2 = arith.sitofp %1 : vector<160x256xi32> to vector<160x256xf32>
    %3 = arith.truncf %2 : vector<160x256xf32> to vector<160x256xbf16>
    %c0_1 = arith.constant 0 : index
    %c0_2 = arith.constant 0 : index
    %4 = vector.load %arg2[%c0_1, %c0_2] : memref<256x32xbf16, #tpu.memory_space<vmem>>, vector<256x32xbf16>
    %cst = arith.constant dense<0.000000e+00> : vector<160x32xf32>
    %5 = tpu.matmul %3, %4, %cst {dimension_numbers = #tpu.dot_dimension_numbers<[1], [0], [0], [1], [0, 0, 1, 1], [], []>} : vector<160x256xbf16>, vector<256x32xbf16>, vector<160x32xf32> -> vector<160x32xf32>
    %c0_3 = arith.constant 0 : index
    %c0_4 = arith.constant 0 : index
    %6 = vector.load %arg3[%c0_3, %c0_4] : memref<1x32xf32, #tpu.memory_space<vmem>>, vector<1x32xf32>
    %7 = vector.broadcast %6 : vector<1x32xf32> to vector<160x32xf32>
    %8 = arith.addf %5, %7 : vector<160x32xf32>
    %cst_5 = arith.constant 0.000000e+00 : f32
    %9 = vector.broadcast %cst_5 : f32 to vector<160x32xf32>
    %10 = arith.maximumf %8, %9 : vector<160x32xf32>
    %11 = arith.truncf %10 : vector<160x32xf32> to vector<160x32xbf16>
    %c0_6 = arith.constant 0 : index
    %c0_7 = arith.constant 0 : index
    %12 = vector.load %arg4[%c0_6, %c0_7] : memref<160x32xbf16, #tpu.memory_space<vmem>>, vector<160x32xbf16>
    tpu.vector_store %arg4[%c0_6, %c0_7], %11 {strides = array<i32>} : memref<160x32xbf16, #tpu.memory_space<vmem>>, vector<160x32xbf16>,
    return
  }
  func.func @transform_0(%arg0: i32) -> (i32, i32) {
    %c0_i32 = arith.constant 0 : i32
    %c0_i32_0 = arith.constant 0 : i32
    return %arg0, %c0_i32 : i32, i32
  }
  func.func @transform_1(%arg0: i32) -> (i32, i32) {
    %c0_i32 = arith.constant 0 : i32
    %c0_i32_0 = arith.constant 0 : i32
    %c0_i32_1 = arith.constant 0 : i32
    return %c0_i32, %c0_i32_0 : i32, i32
  }
  func.func @transform_2(%arg0: i32) -> (i32, i32) {
    %c0_i32 = arith.constant 0 : i32
    %c0_i32_0 = arith.constant 0 : i32
    %c0_i32_1 = arith.constant 0 : i32
    return %c0_i32, %c0_i32_0 : i32, i32
  }
  func.func @transform_3(%arg0: i32) -> (i32, i32) {
    %c0_i32 = arith.constant 0 : i32
    %c0_i32_0 = arith.constant 0 : i32
    return %arg0, %c0_i32 : i32, i32
  }
}

module attributes {stable_mosaic.version = 11 : i64} {
  func.func @_conv_matmul_kernel(%arg0: i32, %arg1: memref<162x512xbf16, #tpu.memory_space<vmem>>, %arg2: memref<512x64xbf16, #tpu.memory_space<vmem>>, %arg3: memref<1x64xf32, #tpu.memory_space<vmem>>, %arg4: memref<162x64xbf16, #tpu.memory_space<vmem>>) attributes {dimension_semantics = [#tpu.dimension_semantics<parallel>], iteration_bounds = array<i64: 1>, scalar_prefetch = 0 : i64, scratch_operands = 0 : i64, tpu.core_type = #tpu.core_type<tc>, window_params = [{transform_indices = @transform_0, window_bounds = array<i64: 162, 512>}, {pipeline_mode = #tpu.pipeline_mode<synchronous>, transform_indices = @transform_1, window_bounds = array<i64: 512, 64>}, {pipeline_mode = #tpu.pipeline_mode<synchronous>, transform_indices = @transform_2, window_bounds = array<i64: 1, 64>}, {transform_indices = @transform_3, window_bounds = array<i64: 162, 64>}]} {
    %c0 = arith.constant 0 : index
    %c0_0 = arith.constant 0 : index
    %0 = vector.load %arg1[%c0, %c0_0] : memref<162x512xbf16, #tpu.memory_space<vmem>>, vector<162x512xbf16>
    %c0_1 = arith.constant 0 : index
    %c0_2 = arith.constant 0 : index
    %1 = vector.load %arg2[%c0_1, %c0_2] : memref<512x64xbf16, #tpu.memory_space<vmem>>, vector<512x64xbf16>
    %cst = arith.constant dense<0.000000e+00> : vector<162x64xf32>
    %2 = tpu.matmul %0, %1, %cst {dimension_numbers = #tpu.dot_dimension_numbers<[1], [0], [0], [1], [0, 0, 1, 1], [], []>} : vector<162x512xbf16>, vector<512x64xbf16>, vector<162x64xf32> -> vector<162x64xf32>
    %c0_3 = arith.constant 0 : index
    %c0_4 = arith.constant 0 : index
    %3 = vector.load %arg3[%c0_3, %c0_4] : memref<1x64xf32, #tpu.memory_space<vmem>>, vector<1x64xf32>
    %4 = vector.broadcast %3 : vector<1x64xf32> to vector<162x64xf32>
    %5 = arith.addf %2, %4 : vector<162x64xf32>
    %cst_5 = arith.constant 0.000000e+00 : f32
    %6 = vector.broadcast %cst_5 : f32 to vector<162x64xf32>
    %7 = arith.maximumf %5, %6 : vector<162x64xf32>
    %8 = arith.truncf %7 : vector<162x64xf32> to vector<162x64xbf16>
    %c0_6 = arith.constant 0 : index
    %c0_7 = arith.constant 0 : index
    %9 = vector.load %arg4[%c0_6, %c0_7] : memref<162x64xbf16, #tpu.memory_space<vmem>>, vector<162x64xbf16>
    tpu.vector_store %arg4[%c0_6, %c0_7], %8 {strides = array<i32>} : memref<162x64xbf16, #tpu.memory_space<vmem>>, vector<162x64xbf16>,
    return
  }
  func.func @transform_0(%arg0: i32) -> (i32, i32) {
    %c0_i32 = arith.constant 0 : i32
    %c0_i32_0 = arith.constant 0 : i32
    return %arg0, %c0_i32 : i32, i32
  }
  func.func @transform_1(%arg0: i32) -> (i32, i32) {
    %c0_i32 = arith.constant 0 : i32
    %c0_i32_0 = arith.constant 0 : i32
    %c0_i32_1 = arith.constant 0 : i32
    return %c0_i32, %c0_i32_0 : i32, i32
  }
  func.func @transform_2(%arg0: i32) -> (i32, i32) {
    %c0_i32 = arith.constant 0 : i32
    %c0_i32_0 = arith.constant 0 : i32
    %c0_i32_1 = arith.constant 0 : i32
    return %c0_i32, %c0_i32_0 : i32, i32
  }
  func.func @transform_3(%arg0: i32) -> (i32, i32) {
    %c0_i32 = arith.constant 0 : i32
    %c0_i32_0 = arith.constant 0 : i32
    return %arg0, %c0_i32 : i32, i32
  }
}

module attributes {stable_mosaic.version = 11 : i64} {
  func.func @_tail_kernel(%arg0: memref<98x576xbf16, #tpu.memory_space<vmem>>, %arg1: memref<576x64xbf16, #tpu.memory_space<vmem>>, %arg2: memref<1x64xf32, #tpu.memory_space<vmem>>, %arg3: memref<49x64x512xbf16, #tpu.memory_space<vmem>>, %arg4: memref<1x512xf32, #tpu.memory_space<vmem>>, %arg5: memref<512x128xbf16, #tpu.memory_space<vmem>>, %arg6: memref<1x128xf32, #tpu.memory_space<vmem>>, %arg7: memref<2x128xf32, #tpu.memory_space<vmem>>) attributes {dimension_semantics = [], scalar_prefetch = 0 : i64, scratch_operands = 0 : i64, tpu.core_type = #tpu.core_type<tc>} {
    %c0 = arith.constant 0 : index
    %c0_0 = arith.constant 0 : index
    %0 = vector.load %arg0[%c0, %c0_0] : memref<98x576xbf16, #tpu.memory_space<vmem>>, vector<98x576xbf16>
    %c0_1 = arith.constant 0 : index
    %c0_2 = arith.constant 0 : index
    %1 = vector.load %arg1[%c0_1, %c0_2] : memref<576x64xbf16, #tpu.memory_space<vmem>>, vector<576x64xbf16>
    %cst = arith.constant dense<0.000000e+00> : vector<98x64xf32>
    %2 = tpu.matmul %0, %1, %cst {dimension_numbers = #tpu.dot_dimension_numbers<[1], [0], [0], [1], [0, 0, 1, 1], [], []>} : vector<98x576xbf16>, vector<576x64xbf16>, vector<98x64xf32> -> vector<98x64xf32>
    %c0_3 = arith.constant 0 : index
    %c0_4 = arith.constant 0 : index
    %3 = vector.load %arg2[%c0_3, %c0_4] : memref<1x64xf32, #tpu.memory_space<vmem>>, vector<1x64xf32>
    %4 = vector.broadcast %3 : vector<1x64xf32> to vector<98x64xf32>
    %5 = arith.addf %2, %4 : vector<98x64xf32>
    %cst_5 = arith.constant 0.000000e+00 : f32
    %6 = vector.broadcast %cst_5 : f32 to vector<98x64xf32>
    %7 = arith.maximumf %5, %6 : vector<98x64xf32>
    %cst_6 = arith.constant 0.000000e+00 : f32
    %8 = vector.broadcast %cst_6 : f32 to vector<2x512xf32>
    %9 = vector.extract_strided_slice %7 {offsets = [0, 0], sizes = [2, 64], strides = [1, 1]} : vector<98x64xf32> to vector<2x64xf32>
    %10 = arith.truncf %9 : vector<2x64xf32> to vector<2x64xbf16>
    %c0_7 = arith.constant 0 : index
    %c0_8 = arith.constant 0 : index
    %c0_9 = arith.constant 0 : index
    %11 = vector.load %arg3[%c0_7, %c0_8, %c0_9] : memref<49x64x512xbf16, #tpu.memory_space<vmem>>, vector<1x64x512xbf16>
    %12 = vector.shape_cast %11 : vector<1x64x512xbf16> to vector<64x512xbf16>
    %cst_10 = arith.constant dense<0.000000e+00> : vector<2x512xf32>
    %13 = tpu.matmul %10, %12, %cst_10 {dimension_numbers = #tpu.dot_dimension_numbers<[1], [0], [0], [1], [0, 0, 1, 1], [], []>} : vector<2x64xbf16>, vector<64x512xbf16>, vector<2x512xf32> -> vector<2x512xf32>
    %14 = arith.addf %8, %13 : vector<2x512xf32>
    %15 = vector.extract_strided_slice %7 {offsets = [2, 0], sizes = [2, 64], strides = [1, 1]} : vector<98x64xf32> to vector<2x64xf32>
    %16 = arith.truncf %15 : vector<2x64xf32> to vector<2x64xbf16>
    %c1 = arith.constant 1 : index
    %c0_11 = arith.constant 0 : index
    %c0_12 = arith.constant 0 : index
    %17 = vector.load %arg3[%c1, %c0_11, %c0_12] : memref<49x64x512xbf16, #tpu.memory_space<vmem>>, vector<1x64x512xbf16>
    %18 = vector.shape_cast %17 : vector<1x64x512xbf16> to vector<64x512xbf16>
    %cst_13 = arith.constant dense<0.000000e+00> : vector<2x512xf32>
    %19 = tpu.matmul %16, %18, %cst_13 {dimension_numbers = #tpu.dot_dimension_numbers<[1], [0], [0], [1], [0, 0, 1, 1], [], []>} : vector<2x64xbf16>, vector<64x512xbf16>, vector<2x512xf32> -> vector<2x512xf32>
    %20 = arith.addf %14, %19 : vector<2x512xf32>
    %21 = vector.extract_strided_slice %7 {offsets = [4, 0], sizes = [2, 64], strides = [1, 1]} : vector<98x64xf32> to vector<2x64xf32>
    %22 = arith.truncf %21 : vector<2x64xf32> to vector<2x64xbf16>
    %c2 = arith.constant 2 : index
    %c0_14 = arith.constant 0 : index
    %c0_15 = arith.constant 0 : index
    %23 = vector.load %arg3[%c2, %c0_14, %c0_15] : memref<49x64x512xbf16, #tpu.memory_space<vmem>>, vector<1x64x512xbf16>
    %24 = vector.shape_cast %23 : vector<1x64x512xbf16> to vector<64x512xbf16>
    %cst_16 = arith.constant dense<0.000000e+00> : vector<2x512xf32>
    %25 = tpu.matmul %22, %24, %cst_16 {dimension_numbers = #tpu.dot_dimension_numbers<[1], [0], [0], [1], [0, 0, 1, 1], [], []>} : vector<2x64xbf16>, vector<64x512xbf16>, vector<2x512xf32> -> vector<2x512xf32>
    %26 = arith.addf %20, %25 : vector<2x512xf32>
    %27 = vector.extract_strided_slice %7 {offsets = [6, 0], sizes = [2, 64], strides = [1, 1]} : vector<98x64xf32> to vector<2x64xf32>
    %28 = arith.truncf %27 : vector<2x64xf32> to vector<2x64xbf16>
    %c3 = arith.constant 3 : index
    %c0_17 = arith.constant 0 : index
    %c0_18 = arith.constant 0 : index
    %29 = vector.load %arg3[%c3, %c0_17, %c0_18] : memref<49x64x512xbf16, #tpu.memory_space<vmem>>, vector<1x64x512xbf16>
    %30 = vector.shape_cast %29 : vector<1x64x512xbf16> to vector<64x512xbf16>
    %cst_19 = arith.constant dense<0.000000e+00> : vector<2x512xf32>
    %31 = tpu.matmul %28, %30, %cst_19 {dimension_numbers = #tpu.dot_dimension_numbers<[1], [0], [0], [1], [0, 0, 1, 1], [], []>} : vector<2x64xbf16>, vector<64x512xbf16>, vector<2x512xf32> -> vector<2x512xf32>
    %32 = arith.addf %26, %31 : vector<2x512xf32>
    %33 = vector.extract_strided_slice %7 {offsets = [8, 0], sizes = [2, 64], strides = [1, 1]} : vector<98x64xf32> to vector<2x64xf32>
    %34 = arith.truncf %33 : vector<2x64xf32> to vector<2x64xbf16>
    %c4 = arith.constant 4 : index
    %c0_20 = arith.constant 0 : index
    %c0_21 = arith.constant 0 : index
    %35 = vector.load %arg3[%c4, %c0_20, %c0_21] : memref<49x64x512xbf16, #tpu.memory_space<vmem>>, vector<1x64x512xbf16>
    %36 = vector.shape_cast %35 : vector<1x64x512xbf16> to vector<64x512xbf16>
    %cst_22 = arith.constant dense<0.000000e+00> : vector<2x512xf32>
    %37 = tpu.matmul %34, %36, %cst_22 {dimension_numbers = #tpu.dot_dimension_numbers<[1], [0], [0], [1], [0, 0, 1, 1], [], []>} : vector<2x64xbf16>, vector<64x512xbf16>, vector<2x512xf32> -> vector<2x512xf32>
    %38 = arith.addf %32, %37 : vector<2x512xf32>
    %39 = vector.extract_strided_slice %7 {offsets = [10, 0], sizes = [2, 64], strides = [1, 1]} : vector<98x64xf32> to vector<2x64xf32>
    %40 = arith.truncf %39 : vector<2x64xf32> to vector<2x64xbf16>
    %c5 = arith.constant 5 : index
    %c0_23 = arith.constant 0 : index
    %c0_24 = arith.constant 0 : index
    %41 = vector.load %arg3[%c5, %c0_23, %c0_24] : memref<49x64x512xbf16, #tpu.memory_space<vmem>>, vector<1x64x512xbf16>
    %42 = vector.shape_cast %41 : vector<1x64x512xbf16> to vector<64x512xbf16>
    %cst_25 = arith.constant dense<0.000000e+00> : vector<2x512xf32>
    %43 = tpu.matmul %40, %42, %cst_25 {dimension_numbers = #tpu.dot_dimension_numbers<[1], [0], [0], [1], [0, 0, 1, 1], [], []>} : vector<2x64xbf16>, vector<64x512xbf16>, vector<2x512xf32> -> vector<2x512xf32>
    %44 = arith.addf %38, %43 : vector<2x512xf32>
    %45 = vector.extract_strided_slice %7 {offsets = [12, 0], sizes = [2, 64], strides = [1, 1]} : vector<98x64xf32> to vector<2x64xf32>
    %46 = arith.truncf %45 : vector<2x64xf32> to vector<2x64xbf16>
    %c6 = arith.constant 6 : index
    %c0_26 = arith.constant 0 : index
    %c0_27 = arith.constant 0 : index
    %47 = vector.load %arg3[%c6, %c0_26, %c0_27] : memref<49x64x512xbf16, #tpu.memory_space<vmem>>, vector<1x64x512xbf16>
    %48 = vector.shape_cast %47 : vector<1x64x512xbf16> to vector<64x512xbf16>
    %cst_28 = arith.constant dense<0.000000e+00> : vector<2x512xf32>
    %49 = tpu.matmul %46, %48, %cst_28 {dimension_numbers = #tpu.dot_dimension_numbers<[1], [0], [0], [1], [0, 0, 1, 1], [], []>} : vector<2x64xbf16>, vector<64x512xbf16>, vector<2x512xf32> -> vector<2x512xf32>
    %50 = arith.addf %44, %49 : vector<2x512xf32>
    %51 = vector.extract_strided_slice %7 {offsets = [14, 0], sizes = [2, 64], strides = [1, 1]} : vector<98x64xf32> to vector<2x64xf32>
    %52 = arith.truncf %51 : vector<2x64xf32> to vector<2x64xbf16>
    %c7 = arith.constant 7 : index
    %c0_29 = arith.constant 0 : index
    %c0_30 = arith.constant 0 : index
    %53 = vector.load %arg3[%c7, %c0_29, %c0_30] : memref<49x64x512xbf16, #tpu.memory_space<vmem>>, vector<1x64x512xbf16>
    %54 = vector.shape_cast %53 : vector<1x64x512xbf16> to vector<64x512xbf16>
    %cst_31 = arith.constant dense<0.000000e+00> : vector<2x512xf32>
    %55 = tpu.matmul %52, %54, %cst_31 {dimension_numbers = #tpu.dot_dimension_numbers<[1], [0], [0], [1], [0, 0, 1, 1], [], []>} : vector<2x64xbf16>, vector<64x512xbf16>, vector<2x512xf32> -> vector<2x512xf32>
    %56 = arith.addf %50, %55 : vector<2x512xf32>
    %57 = vector.extract_strided_slice %7 {offsets = [16, 0], sizes = [2, 64], strides = [1, 1]} : vector<98x64xf32> to vector<2x64xf32>
    %58 = arith.truncf %57 : vector<2x64xf32> to vector<2x64xbf16>
    %c8 = arith.constant 8 : index
    %c0_32 = arith.constant 0 : index
    %c0_33 = arith.constant 0 : index
    %59 = vector.load %arg3[%c8, %c0_32, %c0_33] : memref<49x64x512xbf16, #tpu.memory_space<vmem>>, vector<1x64x512xbf16>
    %60 = vector.shape_cast %59 : vector<1x64x512xbf16> to vector<64x512xbf16>
    %cst_34 = arith.constant dense<0.000000e+00> : vector<2x512xf32>
    %61 = tpu.matmul %58, %60, %cst_34 {dimension_numbers = #tpu.dot_dimension_numbers<[1], [0], [0], [1], [0, 0, 1, 1], [], []>} : vector<2x64xbf16>, vector<64x512xbf16>, vector<2x512xf32> -> vector<2x512xf32>
    %62 = arith.addf %56, %61 : vector<2x512xf32>
    %63 = vector.extract_strided_slice %7 {offsets = [18, 0], sizes = [2, 64], strides = [1, 1]} : vector<98x64xf32> to vector<2x64xf32>
    %64 = arith.truncf %63 : vector<2x64xf32> to vector<2x64xbf16>
    %c9 = arith.constant 9 : index
    %c0_35 = arith.constant 0 : index
    %c0_36 = arith.constant 0 : index
    %65 = vector.load %arg3[%c9, %c0_35, %c0_36] : memref<49x64x512xbf16, #tpu.memory_space<vmem>>, vector<1x64x512xbf16>
    %66 = vector.shape_cast %65 : vector<1x64x512xbf16> to vector<64x512xbf16>
    %cst_37 = arith.constant dense<0.000000e+00> : vector<2x512xf32>
    %67 = tpu.matmul %64, %66, %cst_37 {dimension_numbers = #tpu.dot_dimension_numbers<[1], [0], [0], [1], [0, 0, 1, 1], [], []>} : vector<2x64xbf16>, vector<64x512xbf16>, vector<2x512xf32> -> vector<2x512xf32>
    %68 = arith.addf %62, %67 : vector<2x512xf32>
    %69 = vector.extract_strided_slice %7 {offsets = [20, 0], sizes = [2, 64], strides = [1, 1]} : vector<98x64xf32> to vector<2x64xf32>
    %70 = arith.truncf %69 : vector<2x64xf32> to vector<2x64xbf16>
    %c10 = arith.constant 10 : index
    %c0_38 = arith.constant 0 : index
    %c0_39 = arith.constant 0 : index
    %71 = vector.load %arg3[%c10, %c0_38, %c0_39] : memref<49x64x512xbf16, #tpu.memory_space<vmem>>, vector<1x64x512xbf16>
    %72 = vector.shape_cast %71 : vector<1x64x512xbf16> to vector<64x512xbf16>
    %cst_40 = arith.constant dense<0.000000e+00> : vector<2x512xf32>
    %73 = tpu.matmul %70, %72, %cst_40 {dimension_numbers = #tpu.dot_dimension_numbers<[1], [0], [0], [1], [0, 0, 1, 1], [], []>} : vector<2x64xbf16>, vector<64x512xbf16>, vector<2x512xf32> -> vector<2x512xf32>
    %74 = arith.addf %68, %73 : vector<2x512xf32>
    %75 = vector.extract_strided_slice %7 {offsets = [22, 0], sizes = [2, 64], strides = [1, 1]} : vector<98x64xf32> to vector<2x64xf32>
    %76 = arith.truncf %75 : vector<2x64xf32> to vector<2x64xbf16>
    %c11 = arith.constant 11 : index
    %c0_41 = arith.constant 0 : index
    %c0_42 = arith.constant 0 : index
    %77 = vector.load %arg3[%c11, %c0_41, %c0_42] : memref<49x64x512xbf16, #tpu.memory_space<vmem>>, vector<1x64x512xbf16>
    %78 = vector.shape_cast %77 : vector<1x64x512xbf16> to vector<64x512xbf16>
    %cst_43 = arith.constant dense<0.000000e+00> : vector<2x512xf32>
    %79 = tpu.matmul %76, %78, %cst_43 {dimension_numbers = #tpu.dot_dimension_numbers<[1], [0], [0], [1], [0, 0, 1, 1], [], []>} : vector<2x64xbf16>, vector<64x512xbf16>, vector<2x512xf32> -> vector<2x512xf32>
    %80 = arith.addf %74, %79 : vector<2x512xf32>
    %81 = vector.extract_strided_slice %7 {offsets = [24, 0], sizes = [2, 64], strides = [1, 1]} : vector<98x64xf32> to vector<2x64xf32>
    %82 = arith.truncf %81 : vector<2x64xf32> to vector<2x64xbf16>
    %c12 = arith.constant 12 : index
    %c0_44 = arith.constant 0 : index
    %c0_45 = arith.constant 0 : index
    %83 = vector.load %arg3[%c12, %c0_44, %c0_45] : memref<49x64x512xbf16, #tpu.memory_space<vmem>>, vector<1x64x512xbf16>
    %84 = vector.shape_cast %83 : vector<1x64x512xbf16> to vector<64x512xbf16>
    %cst_46 = arith.constant dense<0.000000e+00> : vector<2x512xf32>
    %85 = tpu.matmul %82, %84, %cst_46 {dimension_numbers = #tpu.dot_dimension_numbers<[1], [0], [0], [1], [0, 0, 1, 1], [], []>} : vector<2x64xbf16>, vector<64x512xbf16>, vector<2x512xf32> -> vector<2x512xf32>
    %86 = arith.addf %80, %85 : vector<2x512xf32>
    %87 = vector.extract_strided_slice %7 {offsets = [26, 0], sizes = [2, 64], strides = [1, 1]} : vector<98x64xf32> to vector<2x64xf32>
    %88 = arith.truncf %87 : vector<2x64xf32> to vector<2x64xbf16>
    %c13 = arith.constant 13 : index
    %c0_47 = arith.constant 0 : index
    %c0_48 = arith.constant 0 : index
    %89 = vector.load %arg3[%c13, %c0_47, %c0_48] : memref<49x64x512xbf16, #tpu.memory_space<vmem>>, vector<1x64x512xbf16>
    %90 = vector.shape_cast %89 : vector<1x64x512xbf16> to vector<64x512xbf16>
    %cst_49 = arith.constant dense<0.000000e+00> : vector<2x512xf32>
    %91 = tpu.matmul %88, %90, %cst_49 {dimension_numbers = #tpu.dot_dimension_numbers<[1], [0], [0], [1], [0, 0, 1, 1], [], []>} : vector<2x64xbf16>, vector<64x512xbf16>, vector<2x512xf32> -> vector<2x512xf32>
    %92 = arith.addf %86, %91 : vector<2x512xf32>
    %93 = vector.extract_strided_slice %7 {offsets = [28, 0], sizes = [2, 64], strides = [1, 1]} : vector<98x64xf32> to vector<2x64xf32>
    %94 = arith.truncf %93 : vector<2x64xf32> to vector<2x64xbf16>
    %c14 = arith.constant 14 : index
    %c0_50 = arith.constant 0 : index
    %c0_51 = arith.constant 0 : index
    %95 = vector.load %arg3[%c14, %c0_50, %c0_51] : memref<49x64x512xbf16, #tpu.memory_space<vmem>>, vector<1x64x512xbf16>
    %96 = vector.shape_cast %95 : vector<1x64x512xbf16> to vector<64x512xbf16>
    %cst_52 = arith.constant dense<0.000000e+00> : vector<2x512xf32>
    %97 = tpu.matmul %94, %96, %cst_52 {dimension_numbers = #tpu.dot_dimension_numbers<[1], [0], [0], [1], [0, 0, 1, 1], [], []>} : vector<2x64xbf16>, vector<64x512xbf16>, vector<2x512xf32> -> vector<2x512xf32>
    %98 = arith.addf %92, %97 : vector<2x512xf32>
    %99 = vector.extract_strided_slice %7 {offsets = [30, 0], sizes = [2, 64], strides = [1, 1]} : vector<98x64xf32> to vector<2x64xf32>
    %100 = arith.truncf %99 : vector<2x64xf32> to vector<2x64xbf16>
    %c15 = arith.constant 15 : index
    %c0_53 = arith.constant 0 : index
    %c0_54 = arith.constant 0 : index
    %101 = vector.load %arg3[%c15, %c0_53, %c0_54] : memref<49x64x512xbf16, #tpu.memory_space<vmem>>, vector<1x64x512xbf16>
    %102 = vector.shape_cast %101 : vector<1x64x512xbf16> to vector<64x512xbf16>
    %cst_55 = arith.constant dense<0.000000e+00> : vector<2x512xf32>
    %103 = tpu.matmul %100, %102, %cst_55 {dimension_numbers = #tpu.dot_dimension_numbers<[1], [0], [0], [1], [0, 0, 1, 1], [], []>} : vector<2x64xbf16>, vector<64x512xbf16>, vector<2x512xf32> -> vector<2x512xf32>
    %104 = arith.addf %98, %103 : vector<2x512xf32>
    %105 = vector.extract_strided_slice %7 {offsets = [32, 0], sizes = [2, 64], strides = [1, 1]} : vector<98x64xf32> to vector<2x64xf32>
    %106 = arith.truncf %105 : vector<2x64xf32> to vector<2x64xbf16>
    %c16 = arith.constant 16 : index
    %c0_56 = arith.constant 0 : index
    %c0_57 = arith.constant 0 : index
    %107 = vector.load %arg3[%c16, %c0_56, %c0_57] : memref<49x64x512xbf16, #tpu.memory_space<vmem>>, vector<1x64x512xbf16>
    %108 = vector.shape_cast %107 : vector<1x64x512xbf16> to vector<64x512xbf16>
    %cst_58 = arith.constant dense<0.000000e+00> : vector<2x512xf32>
    %109 = tpu.matmul %106, %108, %cst_58 {dimension_numbers = #tpu.dot_dimension_numbers<[1], [0], [0], [1], [0, 0, 1, 1], [], []>} : vector<2x64xbf16>, vector<64x512xbf16>, vector<2x512xf32> -> vector<2x512xf32>
    %110 = arith.addf %104, %109 : vector<2x512xf32>
    %111 = vector.extract_strided_slice %7 {offsets = [34, 0], sizes = [2, 64], strides = [1, 1]} : vector<98x64xf32> to vector<2x64xf32>
    %112 = arith.truncf %111 : vector<2x64xf32> to vector<2x64xbf16>
    %c17 = arith.constant 17 : index
    %c0_59 = arith.constant 0 : index
    %c0_60 = arith.constant 0 : index
    %113 = vector.load %arg3[%c17, %c0_59, %c0_60] : memref<49x64x512xbf16, #tpu.memory_space<vmem>>, vector<1x64x512xbf16>
    %114 = vector.shape_cast %113 : vector<1x64x512xbf16> to vector<64x512xbf16>
    %cst_61 = arith.constant dense<0.000000e+00> : vector<2x512xf32>
    %115 = tpu.matmul %112, %114, %cst_61 {dimension_numbers = #tpu.dot_dimension_numbers<[1], [0], [0], [1], [0, 0, 1, 1], [], []>} : vector<2x64xbf16>, vector<64x512xbf16>, vector<2x512xf32> -> vector<2x512xf32>
    %116 = arith.addf %110, %115 : vector<2x512xf32>
    %117 = vector.extract_strided_slice %7 {offsets = [36, 0], sizes = [2, 64], strides = [1, 1]} : vector<98x64xf32> to vector<2x64xf32>
    %118 = arith.truncf %117 : vector<2x64xf32> to vector<2x64xbf16>
    %c18 = arith.constant 18 : index
    %c0_62 = arith.constant 0 : index
    %c0_63 = arith.constant 0 : index
    %119 = vector.load %arg3[%c18, %c0_62, %c0_63] : memref<49x64x512xbf16, #tpu.memory_space<vmem>>, vector<1x64x512xbf16>
    %120 = vector.shape_cast %119 : vector<1x64x512xbf16> to vector<64x512xbf16>
    %cst_64 = arith.constant dense<0.000000e+00> : vector<2x512xf32>
    %121 = tpu.matmul %118, %120, %cst_64 {dimension_numbers = #tpu.dot_dimension_numbers<[1], [0], [0], [1], [0, 0, 1, 1], [], []>} : vector<2x64xbf16>, vector<64x512xbf16>, vector<2x512xf32> -> vector<2x512xf32>
    %122 = arith.addf %116, %121 : vector<2x512xf32>
    %123 = vector.extract_strided_slice %7 {offsets = [38, 0], sizes = [2, 64], strides = [1, 1]} : vector<98x64xf32> to vector<2x64xf32>
    %124 = arith.truncf %123 : vector<2x64xf32> to vector<2x64xbf16>
    %c19 = arith.constant 19 : index
    %c0_65 = arith.constant 0 : index
    %c0_66 = arith.constant 0 : index
    %125 = vector.load %arg3[%c19, %c0_65, %c0_66] : memref<49x64x512xbf16, #tpu.memory_space<vmem>>, vector<1x64x512xbf16>
    %126 = vector.shape_cast %125 : vector<1x64x512xbf16> to vector<64x512xbf16>
    %cst_67 = arith.constant dense<0.000000e+00> : vector<2x512xf32>
    %127 = tpu.matmul %124, %126, %cst_67 {dimension_numbers = #tpu.dot_dimension_numbers<[1], [0], [0], [1], [0, 0, 1, 1], [], []>} : vector<2x64xbf16>, vector<64x512xbf16>, vector<2x512xf32> -> vector<2x512xf32>
    %128 = arith.addf %122, %127 : vector<2x512xf32>
    %129 = vector.extract_strided_slice %7 {offsets = [40, 0], sizes = [2, 64], strides = [1, 1]} : vector<98x64xf32> to vector<2x64xf32>
    %130 = arith.truncf %129 : vector<2x64xf32> to vector<2x64xbf16>
    %c20 = arith.constant 20 : index
    %c0_68 = arith.constant 0 : index
    %c0_69 = arith.constant 0 : index
    %131 = vector.load %arg3[%c20, %c0_68, %c0_69] : memref<49x64x512xbf16, #tpu.memory_space<vmem>>, vector<1x64x512xbf16>
    %132 = vector.shape_cast %131 : vector<1x64x512xbf16> to vector<64x512xbf16>
    %cst_70 = arith.constant dense<0.000000e+00> : vector<2x512xf32>
    %133 = tpu.matmul %130, %132, %cst_70 {dimension_numbers = #tpu.dot_dimension_numbers<[1], [0], [0], [1], [0, 0, 1, 1], [], []>} : vector<2x64xbf16>, vector<64x512xbf16>, vector<2x512xf32> -> vector<2x512xf32>
    %134 = arith.addf %128, %133 : vector<2x512xf32>
    %135 = vector.extract_strided_slice %7 {offsets = [42, 0], sizes = [2, 64], strides = [1, 1]} : vector<98x64xf32> to vector<2x64xf32>
    %136 = arith.truncf %135 : vector<2x64xf32> to vector<2x64xbf16>
    %c21 = arith.constant 21 : index
    %c0_71 = arith.constant 0 : index
    %c0_72 = arith.constant 0 : index
    %137 = vector.load %arg3[%c21, %c0_71, %c0_72] : memref<49x64x512xbf16, #tpu.memory_space<vmem>>, vector<1x64x512xbf16>
    %138 = vector.shape_cast %137 : vector<1x64x512xbf16> to vector<64x512xbf16>
    %cst_73 = arith.constant dense<0.000000e+00> : vector<2x512xf32>
    %139 = tpu.matmul %136, %138, %cst_73 {dimension_numbers = #tpu.dot_dimension_numbers<[1], [0], [0], [1], [0, 0, 1, 1], [], []>} : vector<2x64xbf16>, vector<64x512xbf16>, vector<2x512xf32> -> vector<2x512xf32>
    %140 = arith.addf %134, %139 : vector<2x512xf32>
    %141 = vector.extract_strided_slice %7 {offsets = [44, 0], sizes = [2, 64], strides = [1, 1]} : vector<98x64xf32> to vector<2x64xf32>
    %142 = arith.truncf %141 : vector<2x64xf32> to vector<2x64xbf16>
    %c22 = arith.constant 22 : index
    %c0_74 = arith.constant 0 : index
    %c0_75 = arith.constant 0 : index
    %143 = vector.load %arg3[%c22, %c0_74, %c0_75] : memref<49x64x512xbf16, #tpu.memory_space<vmem>>, vector<1x64x512xbf16>
    %144 = vector.shape_cast %143 : vector<1x64x512xbf16> to vector<64x512xbf16>
    %cst_76 = arith.constant dense<0.000000e+00> : vector<2x512xf32>
    %145 = tpu.matmul %142, %144, %cst_76 {dimension_numbers = #tpu.dot_dimension_numbers<[1], [0], [0], [1], [0, 0, 1, 1], [], []>} : vector<2x64xbf16>, vector<64x512xbf16>, vector<2x512xf32> -> vector<2x512xf32>
    %146 = arith.addf %140, %145 : vector<2x512xf32>
    %147 = vector.extract_strided_slice %7 {offsets = [46, 0], sizes = [2, 64], strides = [1, 1]} : vector<98x64xf32> to vector<2x64xf32>
    %148 = arith.truncf %147 : vector<2x64xf32> to vector<2x64xbf16>
    %c23 = arith.constant 23 : index
    %c0_77 = arith.constant 0 : index
    %c0_78 = arith.constant 0 : index
    %149 = vector.load %arg3[%c23, %c0_77, %c0_78] : memref<49x64x512xbf16, #tpu.memory_space<vmem>>, vector<1x64x512xbf16>
    %150 = vector.shape_cast %149 : vector<1x64x512xbf16> to vector<64x512xbf16>
    %cst_79 = arith.constant dense<0.000000e+00> : vector<2x512xf32>
    %151 = tpu.matmul %148, %150, %cst_79 {dimension_numbers = #tpu.dot_dimension_numbers<[1], [0], [0], [1], [0, 0, 1, 1], [], []>} : vector<2x64xbf16>, vector<64x512xbf16>, vector<2x512xf32> -> vector<2x512xf32>
    %152 = arith.addf %146, %151 : vector<2x512xf32>
    %153 = vector.extract_strided_slice %7 {offsets = [48, 0], sizes = [2, 64], strides = [1, 1]} : vector<98x64xf32> to vector<2x64xf32>
    %154 = arith.truncf %153 : vector<2x64xf32> to vector<2x64xbf16>
    %c24 = arith.constant 24 : index
    %c0_80 = arith.constant 0 : index
    %c0_81 = arith.constant 0 : index
    %155 = vector.load %arg3[%c24, %c0_80, %c0_81] : memref<49x64x512xbf16, #tpu.memory_space<vmem>>, vector<1x64x512xbf16>
    %156 = vector.shape_cast %155 : vector<1x64x512xbf16> to vector<64x512xbf16>
    %cst_82 = arith.constant dense<0.000000e+00> : vector<2x512xf32>
    %157 = tpu.matmul %154, %156, %cst_82 {dimension_numbers = #tpu.dot_dimension_numbers<[1], [0], [0], [1], [0, 0, 1, 1], [], []>} : vector<2x64xbf16>, vector<64x512xbf16>, vector<2x512xf32> -> vector<2x512xf32>
    %158 = arith.addf %152, %157 : vector<2x512xf32>
    %159 = vector.extract_strided_slice %7 {offsets = [50, 0], sizes = [2, 64], strides = [1, 1]} : vector<98x64xf32> to vector<2x64xf32>
    %160 = arith.truncf %159 : vector<2x64xf32> to vector<2x64xbf16>
    %c25 = arith.constant 25 : index
    %c0_83 = arith.constant 0 : index
    %c0_84 = arith.constant 0 : index
    %161 = vector.load %arg3[%c25, %c0_83, %c0_84] : memref<49x64x512xbf16, #tpu.memory_space<vmem>>, vector<1x64x512xbf16>
    %162 = vector.shape_cast %161 : vector<1x64x512xbf16> to vector<64x512xbf16>
    %cst_85 = arith.constant dense<0.000000e+00> : vector<2x512xf32>
    %163 = tpu.matmul %160, %162, %cst_85 {dimension_numbers = #tpu.dot_dimension_numbers<[1], [0], [0], [1], [0, 0, 1, 1], [], []>} : vector<2x64xbf16>, vector<64x512xbf16>, vector<2x512xf32> -> vector<2x512xf32>
    %164 = arith.addf %158, %163 : vector<2x512xf32>
    %165 = vector.extract_strided_slice %7 {offsets = [52, 0], sizes = [2, 64], strides = [1, 1]} : vector<98x64xf32> to vector<2x64xf32>
    %166 = arith.truncf %165 : vector<2x64xf32> to vector<2x64xbf16>
    %c26 = arith.constant 26 : index
    %c0_86 = arith.constant 0 : index
    %c0_87 = arith.constant 0 : index
    %167 = vector.load %arg3[%c26, %c0_86, %c0_87] : memref<49x64x512xbf16, #tpu.memory_space<vmem>>, vector<1x64x512xbf16>
    %168 = vector.shape_cast %167 : vector<1x64x512xbf16> to vector<64x512xbf16>
    %cst_88 = arith.constant dense<0.000000e+00> : vector<2x512xf32>
    %169 = tpu.matmul %166, %168, %cst_88 {dimension_numbers = #tpu.dot_dimension_numbers<[1], [0], [0], [1], [0, 0, 1, 1], [], []>} : vector<2x64xbf16>, vector<64x512xbf16>, vector<2x512xf32> -> vector<2x512xf32>
    %170 = arith.addf %164, %169 : vector<2x512xf32>
    %171 = vector.extract_strided_slice %7 {offsets = [54, 0], sizes = [2, 64], strides = [1, 1]} : vector<98x64xf32> to vector<2x64xf32>
    %172 = arith.truncf %171 : vector<2x64xf32> to vector<2x64xbf16>
    %c27 = arith.constant 27 : index
    %c0_89 = arith.constant 0 : index
    %c0_90 = arith.constant 0 : index
    %173 = vector.load %arg3[%c27, %c0_89, %c0_90] : memref<49x64x512xbf16, #tpu.memory_space<vmem>>, vector<1x64x512xbf16>
    %174 = vector.shape_cast %173 : vector<1x64x512xbf16> to vector<64x512xbf16>
    %cst_91 = arith.constant dense<0.000000e+00> : vector<2x512xf32>
    %175 = tpu.matmul %172, %174, %cst_91 {dimension_numbers = #tpu.dot_dimension_numbers<[1], [0], [0], [1], [0, 0, 1, 1], [], []>} : vector<2x64xbf16>, vector<64x512xbf16>, vector<2x512xf32> -> vector<2x512xf32>
    %176 = arith.addf %170, %175 : vector<2x512xf32>
    %177 = vector.extract_strided_slice %7 {offsets = [56, 0], sizes = [2, 64], strides = [1, 1]} : vector<98x64xf32> to vector<2x64xf32>
    %178 = arith.truncf %177 : vector<2x64xf32> to vector<2x64xbf16>
    %c28 = arith.constant 28 : index
    %c0_92 = arith.constant 0 : index
    %c0_93 = arith.constant 0 : index
    %179 = vector.load %arg3[%c28, %c0_92, %c0_93] : memref<49x64x512xbf16, #tpu.memory_space<vmem>>, vector<1x64x512xbf16>
    %180 = vector.shape_cast %179 : vector<1x64x512xbf16> to vector<64x512xbf16>
    %cst_94 = arith.constant dense<0.000000e+00> : vector<2x512xf32>
    %181 = tpu.matmul %178, %180, %cst_94 {dimension_numbers = #tpu.dot_dimension_numbers<[1], [0], [0], [1], [0, 0, 1, 1], [], []>} : vector<2x64xbf16>, vector<64x512xbf16>, vector<2x512xf32> -> vector<2x512xf32>
    %182 = arith.addf %176, %181 : vector<2x512xf32>
    %183 = vector.extract_strided_slice %7 {offsets = [58, 0], sizes = [2, 64], strides = [1, 1]} : vector<98x64xf32> to vector<2x64xf32>
    %184 = arith.truncf %183 : vector<2x64xf32> to vector<2x64xbf16>
    %c29 = arith.constant 29 : index
    %c0_95 = arith.constant 0 : index
    %c0_96 = arith.constant 0 : index
    %185 = vector.load %arg3[%c29, %c0_95, %c0_96] : memref<49x64x512xbf16, #tpu.memory_space<vmem>>, vector<1x64x512xbf16>
    %186 = vector.shape_cast %185 : vector<1x64x512xbf16> to vector<64x512xbf16>
    %cst_97 = arith.constant dense<0.000000e+00> : vector<2x512xf32>
    %187 = tpu.matmul %184, %186, %cst_97 {dimension_numbers = #tpu.dot_dimension_numbers<[1], [0], [0], [1], [0, 0, 1, 1], [], []>} : vector<2x64xbf16>, vector<64x512xbf16>, vector<2x512xf32> -> vector<2x512xf32>
    %188 = arith.addf %182, %187 : vector<2x512xf32>
    %189 = vector.extract_strided_slice %7 {offsets = [60, 0], sizes = [2, 64], strides = [1, 1]} : vector<98x64xf32> to vector<2x64xf32>
    %190 = arith.truncf %189 : vector<2x64xf32> to vector<2x64xbf16>
    %c30 = arith.constant 30 : index
    %c0_98 = arith.constant 0 : index
    %c0_99 = arith.constant 0 : index
    %191 = vector.load %arg3[%c30, %c0_98, %c0_99] : memref<49x64x512xbf16, #tpu.memory_space<vmem>>, vector<1x64x512xbf16>
    %192 = vector.shape_cast %191 : vector<1x64x512xbf16> to vector<64x512xbf16>
    %cst_100 = arith.constant dense<0.000000e+00> : vector<2x512xf32>
    %193 = tpu.matmul %190, %192, %cst_100 {dimension_numbers = #tpu.dot_dimension_numbers<[1], [0], [0], [1], [0, 0, 1, 1], [], []>} : vector<2x64xbf16>, vector<64x512xbf16>, vector<2x512xf32> -> vector<2x512xf32>
    %194 = arith.addf %188, %193 : vector<2x512xf32>
    %195 = vector.extract_strided_slice %7 {offsets = [62, 0], sizes = [2, 64], strides = [1, 1]} : vector<98x64xf32> to vector<2x64xf32>
    %196 = arith.truncf %195 : vector<2x64xf32> to vector<2x64xbf16>
    %c31 = arith.constant 31 : index
    %c0_101 = arith.constant 0 : index
    %c0_102 = arith.constant 0 : index
    %197 = vector.load %arg3[%c31, %c0_101, %c0_102] : memref<49x64x512xbf16, #tpu.memory_space<vmem>>, vector<1x64x512xbf16>
    %198 = vector.shape_cast %197 : vector<1x64x512xbf16> to vector<64x512xbf16>
    %cst_103 = arith.constant dense<0.000000e+00> : vector<2x512xf32>
    %199 = tpu.matmul %196, %198, %cst_103 {dimension_numbers = #tpu.dot_dimension_numbers<[1], [0], [0], [1], [0, 0, 1, 1], [], []>} : vector<2x64xbf16>, vector<64x512xbf16>, vector<2x512xf32> -> vector<2x512xf32>
    %200 = arith.addf %194, %199 : vector<2x512xf32>
    %201 = vector.extract_strided_slice %7 {offsets = [64, 0], sizes = [2, 64], strides = [1, 1]} : vector<98x64xf32> to vector<2x64xf32>
    %202 = arith.truncf %201 : vector<2x64xf32> to vector<2x64xbf16>
    %c32 = arith.constant 32 : index
    %c0_104 = arith.constant 0 : index
    %c0_105 = arith.constant 0 : index
    %203 = vector.load %arg3[%c32, %c0_104, %c0_105] : memref<49x64x512xbf16, #tpu.memory_space<vmem>>, vector<1x64x512xbf16>
    %204 = vector.shape_cast %203 : vector<1x64x512xbf16> to vector<64x512xbf16>
    %cst_106 = arith.constant dense<0.000000e+00> : vector<2x512xf32>
    %205 = tpu.matmul %202, %204, %cst_106 {dimension_numbers = #tpu.dot_dimension_numbers<[1], [0], [0], [1], [0, 0, 1, 1], [], []>} : vector<2x64xbf16>, vector<64x512xbf16>, vector<2x512xf32> -> vector<2x512xf32>
    %206 = arith.addf %200, %205 : vector<2x512xf32>
    %207 = vector.extract_strided_slice %7 {offsets = [66, 0], sizes = [2, 64], strides = [1, 1]} : vector<98x64xf32> to vector<2x64xf32>
    %208 = arith.truncf %207 : vector<2x64xf32> to vector<2x64xbf16>
    %c33 = arith.constant 33 : index
    %c0_107 = arith.constant 0 : index
    %c0_108 = arith.constant 0 : index
    %209 = vector.load %arg3[%c33, %c0_107, %c0_108] : memref<49x64x512xbf16, #tpu.memory_space<vmem>>, vector<1x64x512xbf16>
    %210 = vector.shape_cast %209 : vector<1x64x512xbf16> to vector<64x512xbf16>
    %cst_109 = arith.constant dense<0.000000e+00> : vector<2x512xf32>
    %211 = tpu.matmul %208, %210, %cst_109 {dimension_numbers = #tpu.dot_dimension_numbers<[1], [0], [0], [1], [0, 0, 1, 1], [], []>} : vector<2x64xbf16>, vector<64x512xbf16>, vector<2x512xf32> -> vector<2x512xf32>
    %212 = arith.addf %206, %211 : vector<2x512xf32>
    %213 = vector.extract_strided_slice %7 {offsets = [68, 0], sizes = [2, 64], strides = [1, 1]} : vector<98x64xf32> to vector<2x64xf32>
    %214 = arith.truncf %213 : vector<2x64xf32> to vector<2x64xbf16>
    %c34 = arith.constant 34 : index
    %c0_110 = arith.constant 0 : index
    %c0_111 = arith.constant 0 : index
    %215 = vector.load %arg3[%c34, %c0_110, %c0_111] : memref<49x64x512xbf16, #tpu.memory_space<vmem>>, vector<1x64x512xbf16>
    %216 = vector.shape_cast %215 : vector<1x64x512xbf16> to vector<64x512xbf16>
    %cst_112 = arith.constant dense<0.000000e+00> : vector<2x512xf32>
    %217 = tpu.matmul %214, %216, %cst_112 {dimension_numbers = #tpu.dot_dimension_numbers<[1], [0], [0], [1], [0, 0, 1, 1], [], []>} : vector<2x64xbf16>, vector<64x512xbf16>, vector<2x512xf32> -> vector<2x512xf32>
    %218 = arith.addf %212, %217 : vector<2x512xf32>
    %219 = vector.extract_strided_slice %7 {offsets = [70, 0], sizes = [2, 64], strides = [1, 1]} : vector<98x64xf32> to vector<2x64xf32>
    %220 = arith.truncf %219 : vector<2x64xf32> to vector<2x64xbf16>
    %c35 = arith.constant 35 : index
    %c0_113 = arith.constant 0 : index
    %c0_114 = arith.constant 0 : index
    %221 = vector.load %arg3[%c35, %c0_113, %c0_114] : memref<49x64x512xbf16, #tpu.memory_space<vmem>>, vector<1x64x512xbf16>
    %222 = vector.shape_cast %221 : vector<1x64x512xbf16> to vector<64x512xbf16>
    %cst_115 = arith.constant dense<0.000000e+00> : vector<2x512xf32>
    %223 = tpu.matmul %220, %222, %cst_115 {dimension_numbers = #tpu.dot_dimension_numbers<[1], [0], [0], [1], [0, 0, 1, 1], [], []>} : vector<2x64xbf16>, vector<64x512xbf16>, vector<2x512xf32> -> vector<2x512xf32>
    %224 = arith.addf %218, %223 : vector<2x512xf32>
    %225 = vector.extract_strided_slice %7 {offsets = [72, 0], sizes = [2, 64], strides = [1, 1]} : vector<98x64xf32> to vector<2x64xf32>
    %226 = arith.truncf %225 : vector<2x64xf32> to vector<2x64xbf16>
    %c36 = arith.constant 36 : index
    %c0_116 = arith.constant 0 : index
    %c0_117 = arith.constant 0 : index
    %227 = vector.load %arg3[%c36, %c0_116, %c0_117] : memref<49x64x512xbf16, #tpu.memory_space<vmem>>, vector<1x64x512xbf16>
    %228 = vector.shape_cast %227 : vector<1x64x512xbf16> to vector<64x512xbf16>
    %cst_118 = arith.constant dense<0.000000e+00> : vector<2x512xf32>
    %229 = tpu.matmul %226, %228, %cst_118 {dimension_numbers = #tpu.dot_dimension_numbers<[1], [0], [0], [1], [0, 0, 1, 1], [], []>} : vector<2x64xbf16>, vector<64x512xbf16>, vector<2x512xf32> -> vector<2x512xf32>
    %230 = arith.addf %224, %229 : vector<2x512xf32>
    %231 = vector.extract_strided_slice %7 {offsets = [74, 0], sizes = [2, 64], strides = [1, 1]} : vector<98x64xf32> to vector<2x64xf32>
    %232 = arith.truncf %231 : vector<2x64xf32> to vector<2x64xbf16>
    %c37 = arith.constant 37 : index
    %c0_119 = arith.constant 0 : index
    %c0_120 = arith.constant 0 : index
    %233 = vector.load %arg3[%c37, %c0_119, %c0_120] : memref<49x64x512xbf16, #tpu.memory_space<vmem>>, vector<1x64x512xbf16>
    %234 = vector.shape_cast %233 : vector<1x64x512xbf16> to vector<64x512xbf16>
    %cst_121 = arith.constant dense<0.000000e+00> : vector<2x512xf32>
    %235 = tpu.matmul %232, %234, %cst_121 {dimension_numbers = #tpu.dot_dimension_numbers<[1], [0], [0], [1], [0, 0, 1, 1], [], []>} : vector<2x64xbf16>, vector<64x512xbf16>, vector<2x512xf32> -> vector<2x512xf32>
    %236 = arith.addf %230, %235 : vector<2x512xf32>
    %237 = vector.extract_strided_slice %7 {offsets = [76, 0], sizes = [2, 64], strides = [1, 1]} : vector<98x64xf32> to vector<2x64xf32>
    %238 = arith.truncf %237 : vector<2x64xf32> to vector<2x64xbf16>
    %c38 = arith.constant 38 : index
    %c0_122 = arith.constant 0 : index
    %c0_123 = arith.constant 0 : index
    %239 = vector.load %arg3[%c38, %c0_122, %c0_123] : memref<49x64x512xbf16, #tpu.memory_space<vmem>>, vector<1x64x512xbf16>
    %240 = vector.shape_cast %239 : vector<1x64x512xbf16> to vector<64x512xbf16>
    %cst_124 = arith.constant dense<0.000000e+00> : vector<2x512xf32>
    %241 = tpu.matmul %238, %240, %cst_124 {dimension_numbers = #tpu.dot_dimension_numbers<[1], [0], [0], [1], [0, 0, 1, 1], [], []>} : vector<2x64xbf16>, vector<64x512xbf16>, vector<2x512xf32> -> vector<2x512xf32>
    %242 = arith.addf %236, %241 : vector<2x512xf32>
    %243 = vector.extract_strided_slice %7 {offsets = [78, 0], sizes = [2, 64], strides = [1, 1]} : vector<98x64xf32> to vector<2x64xf32>
    %244 = arith.truncf %243 : vector<2x64xf32> to vector<2x64xbf16>
    %c39 = arith.constant 39 : index
    %c0_125 = arith.constant 0 : index
    %c0_126 = arith.constant 0 : index
    %245 = vector.load %arg3[%c39, %c0_125, %c0_126] : memref<49x64x512xbf16, #tpu.memory_space<vmem>>, vector<1x64x512xbf16>
    %246 = vector.shape_cast %245 : vector<1x64x512xbf16> to vector<64x512xbf16>
    %cst_127 = arith.constant dense<0.000000e+00> : vector<2x512xf32>
    %247 = tpu.matmul %244, %246, %cst_127 {dimension_numbers = #tpu.dot_dimension_numbers<[1], [0], [0], [1], [0, 0, 1, 1], [], []>} : vector<2x64xbf16>, vector<64x512xbf16>, vector<2x512xf32> -> vector<2x512xf32>
    %248 = arith.addf %242, %247 : vector<2x512xf32>
    %249 = vector.extract_strided_slice %7 {offsets = [80, 0], sizes = [2, 64], strides = [1, 1]} : vector<98x64xf32> to vector<2x64xf32>
    %250 = arith.truncf %249 : vector<2x64xf32> to vector<2x64xbf16>
    %c40 = arith.constant 40 : index
    %c0_128 = arith.constant 0 : index
    %c0_129 = arith.constant 0 : index
    %251 = vector.load %arg3[%c40, %c0_128, %c0_129] : memref<49x64x512xbf16, #tpu.memory_space<vmem>>, vector<1x64x512xbf16>
    %252 = vector.shape_cast %251 : vector<1x64x512xbf16> to vector<64x512xbf16>
    %cst_130 = arith.constant dense<0.000000e+00> : vector<2x512xf32>
    %253 = tpu.matmul %250, %252, %cst_130 {dimension_numbers = #tpu.dot_dimension_numbers<[1], [0], [0], [1], [0, 0, 1, 1], [], []>} : vector<2x64xbf16>, vector<64x512xbf16>, vector<2x512xf32> -> vector<2x512xf32>
    %254 = arith.addf %248, %253 : vector<2x512xf32>
    %255 = vector.extract_strided_slice %7 {offsets = [82, 0], sizes = [2, 64], strides = [1, 1]} : vector<98x64xf32> to vector<2x64xf32>
    %256 = arith.truncf %255 : vector<2x64xf32> to vector<2x64xbf16>
    %c41 = arith.constant 41 : index
    %c0_131 = arith.constant 0 : index
    %c0_132 = arith.constant 0 : index
    %257 = vector.load %arg3[%c41, %c0_131, %c0_132] : memref<49x64x512xbf16, #tpu.memory_space<vmem>>, vector<1x64x512xbf16>
    %258 = vector.shape_cast %257 : vector<1x64x512xbf16> to vector<64x512xbf16>
    %cst_133 = arith.constant dense<0.000000e+00> : vector<2x512xf32>
    %259 = tpu.matmul %256, %258, %cst_133 {dimension_numbers = #tpu.dot_dimension_numbers<[1], [0], [0], [1], [0, 0, 1, 1], [], []>} : vector<2x64xbf16>, vector<64x512xbf16>, vector<2x512xf32> -> vector<2x512xf32>
    %260 = arith.addf %254, %259 : vector<2x512xf32>
    %261 = vector.extract_strided_slice %7 {offsets = [84, 0], sizes = [2, 64], strides = [1, 1]} : vector<98x64xf32> to vector<2x64xf32>
    %262 = arith.truncf %261 : vector<2x64xf32> to vector<2x64xbf16>
    %c42 = arith.constant 42 : index
    %c0_134 = arith.constant 0 : index
    %c0_135 = arith.constant 0 : index
    %263 = vector.load %arg3[%c42, %c0_134, %c0_135] : memref<49x64x512xbf16, #tpu.memory_space<vmem>>, vector<1x64x512xbf16>
    %264 = vector.shape_cast %263 : vector<1x64x512xbf16> to vector<64x512xbf16>
    %cst_136 = arith.constant dense<0.000000e+00> : vector<2x512xf32>
    %265 = tpu.matmul %262, %264, %cst_136 {dimension_numbers = #tpu.dot_dimension_numbers<[1], [0], [0], [1], [0, 0, 1, 1], [], []>} : vector<2x64xbf16>, vector<64x512xbf16>, vector<2x512xf32> -> vector<2x512xf32>
    %266 = arith.addf %260, %265 : vector<2x512xf32>
    %267 = vector.extract_strided_slice %7 {offsets = [86, 0], sizes = [2, 64], strides = [1, 1]} : vector<98x64xf32> to vector<2x64xf32>
    %268 = arith.truncf %267 : vector<2x64xf32> to vector<2x64xbf16>
    %c43 = arith.constant 43 : index
    %c0_137 = arith.constant 0 : index
    %c0_138 = arith.constant 0 : index
    %269 = vector.load %arg3[%c43, %c0_137, %c0_138] : memref<49x64x512xbf16, #tpu.memory_space<vmem>>, vector<1x64x512xbf16>
    %270 = vector.shape_cast %269 : vector<1x64x512xbf16> to vector<64x512xbf16>
    %cst_139 = arith.constant dense<0.000000e+00> : vector<2x512xf32>
    %271 = tpu.matmul %268, %270, %cst_139 {dimension_numbers = #tpu.dot_dimension_numbers<[1], [0], [0], [1], [0, 0, 1, 1], [], []>} : vector<2x64xbf16>, vector<64x512xbf16>, vector<2x512xf32> -> vector<2x512xf32>
    %272 = arith.addf %266, %271 : vector<2x512xf32>
    %273 = vector.extract_strided_slice %7 {offsets = [88, 0], sizes = [2, 64], strides = [1, 1]} : vector<98x64xf32> to vector<2x64xf32>
    %274 = arith.truncf %273 : vector<2x64xf32> to vector<2x64xbf16>
    %c44 = arith.constant 44 : index
    %c0_140 = arith.constant 0 : index
    %c0_141 = arith.constant 0 : index
    %275 = vector.load %arg3[%c44, %c0_140, %c0_141] : memref<49x64x512xbf16, #tpu.memory_space<vmem>>, vector<1x64x512xbf16>
    %276 = vector.shape_cast %275 : vector<1x64x512xbf16> to vector<64x512xbf16>
    %cst_142 = arith.constant dense<0.000000e+00> : vector<2x512xf32>
    %277 = tpu.matmul %274, %276, %cst_142 {dimension_numbers = #tpu.dot_dimension_numbers<[1], [0], [0], [1], [0, 0, 1, 1], [], []>} : vector<2x64xbf16>, vector<64x512xbf16>, vector<2x512xf32> -> vector<2x512xf32>
    %278 = arith.addf %272, %277 : vector<2x512xf32>
    %279 = vector.extract_strided_slice %7 {offsets = [90, 0], sizes = [2, 64], strides = [1, 1]} : vector<98x64xf32> to vector<2x64xf32>
    %280 = arith.truncf %279 : vector<2x64xf32> to vector<2x64xbf16>
    %c45 = arith.constant 45 : index
    %c0_143 = arith.constant 0 : index
    %c0_144 = arith.constant 0 : index
    %281 = vector.load %arg3[%c45, %c0_143, %c0_144] : memref<49x64x512xbf16, #tpu.memory_space<vmem>>, vector<1x64x512xbf16>
    %282 = vector.shape_cast %281 : vector<1x64x512xbf16> to vector<64x512xbf16>
    %cst_145 = arith.constant dense<0.000000e+00> : vector<2x512xf32>
    %283 = tpu.matmul %280, %282, %cst_145 {dimension_numbers = #tpu.dot_dimension_numbers<[1], [0], [0], [1], [0, 0, 1, 1], [], []>} : vector<2x64xbf16>, vector<64x512xbf16>, vector<2x512xf32> -> vector<2x512xf32>
    %284 = arith.addf %278, %283 : vector<2x512xf32>
    %285 = vector.extract_strided_slice %7 {offsets = [92, 0], sizes = [2, 64], strides = [1, 1]} : vector<98x64xf32> to vector<2x64xf32>
    %286 = arith.truncf %285 : vector<2x64xf32> to vector<2x64xbf16>
    %c46 = arith.constant 46 : index
    %c0_146 = arith.constant 0 : index
    %c0_147 = arith.constant 0 : index
    %287 = vector.load %arg3[%c46, %c0_146, %c0_147] : memref<49x64x512xbf16, #tpu.memory_space<vmem>>, vector<1x64x512xbf16>
    %288 = vector.shape_cast %287 : vector<1x64x512xbf16> to vector<64x512xbf16>
    %cst_148 = arith.constant dense<0.000000e+00> : vector<2x512xf32>
    %289 = tpu.matmul %286, %288, %cst_148 {dimension_numbers = #tpu.dot_dimension_numbers<[1], [0], [0], [1], [0, 0, 1, 1], [], []>} : vector<2x64xbf16>, vector<64x512xbf16>, vector<2x512xf32> -> vector<2x512xf32>
    %290 = arith.addf %284, %289 : vector<2x512xf32>
    %291 = vector.extract_strided_slice %7 {offsets = [94, 0], sizes = [2, 64], strides = [1, 1]} : vector<98x64xf32> to vector<2x64xf32>
    %292 = arith.truncf %291 : vector<2x64xf32> to vector<2x64xbf16>
    %c47 = arith.constant 47 : index
    %c0_149 = arith.constant 0 : index
    %c0_150 = arith.constant 0 : index
    %293 = vector.load %arg3[%c47, %c0_149, %c0_150] : memref<49x64x512xbf16, #tpu.memory_space<vmem>>, vector<1x64x512xbf16>
    %294 = vector.shape_cast %293 : vector<1x64x512xbf16> to vector<64x512xbf16>
    %cst_151 = arith.constant dense<0.000000e+00> : vector<2x512xf32>
    %295 = tpu.matmul %292, %294, %cst_151 {dimension_numbers = #tpu.dot_dimension_numbers<[1], [0], [0], [1], [0, 0, 1, 1], [], []>} : vector<2x64xbf16>, vector<64x512xbf16>, vector<2x512xf32> -> vector<2x512xf32>
    %296 = arith.addf %290, %295 : vector<2x512xf32>
    %297 = vector.extract_strided_slice %7 {offsets = [96, 0], sizes = [2, 64], strides = [1, 1]} : vector<98x64xf32> to vector<2x64xf32>
    %298 = arith.truncf %297 : vector<2x64xf32> to vector<2x64xbf16>
    %c48 = arith.constant 48 : index
    %c0_152 = arith.constant 0 : index
    %c0_153 = arith.constant 0 : index
    %299 = vector.load %arg3[%c48, %c0_152, %c0_153] : memref<49x64x512xbf16, #tpu.memory_space<vmem>>, vector<1x64x512xbf16>
    %300 = vector.shape_cast %299 : vector<1x64x512xbf16> to vector<64x512xbf16>
    %cst_154 = arith.constant dense<0.000000e+00> : vector<2x512xf32>
    %301 = tpu.matmul %298, %300, %cst_154 {dimension_numbers = #tpu.dot_dimension_numbers<[1], [0], [0], [1], [0, 0, 1, 1], [], []>} : vector<2x64xbf16>, vector<64x512xbf16>, vector<2x512xf32> -> vector<2x512xf32>
    %302 = arith.addf %296, %301 : vector<2x512xf32>
    %c0_155 = arith.constant 0 : index
    %c0_156 = arith.constant 0 : index
    %303 = vector.load %arg4[%c0_155, %c0_156] : memref<1x512xf32, #tpu.memory_space<vmem>>, vector<1x512xf32>
    %304 = vector.broadcast %303 : vector<1x512xf32> to vector<2x512xf32>
    %305 = arith.addf %302, %304 : vector<2x512xf32>
    %cst_157 = arith.constant 0.000000e+00 : f32
    %306 = vector.broadcast %cst_157 : f32 to vector<2x512xf32>
    %307 = arith.maximumf %305, %306 : vector<2x512xf32>
    %308 = arith.truncf %307 : vector<2x512xf32> to vector<2x512xbf16>
    %c0_158 = arith.constant 0 : index
    %c0_159 = arith.constant 0 : index
    %309 = vector.load %arg5[%c0_158, %c0_159] : memref<512x128xbf16, #tpu.memory_space<vmem>>, vector<512x128xbf16>
    %cst_160 = arith.constant dense<0.000000e+00> : vector<2x128xf32>
    %310 = tpu.matmul %308, %309, %cst_160 {dimension_numbers = #tpu.dot_dimension_numbers<[1], [0], [0], [1], [0, 0, 1, 1], [], []>} : vector<2x512xbf16>, vector<512x128xbf16>, vector<2x128xf32> -> vector<2x128xf32>
    %c0_161 = arith.constant 0 : index
    %c0_162 = arith.constant 0 : index
    %311 = vector.load %arg6[%c0_161, %c0_162] : memref<1x128xf32, #tpu.memory_space<vmem>>, vector<1x128xf32>
    %312 = vector.broadcast %311 : vector<1x128xf32> to vector<2x128xf32>
    %313 = arith.addf %310, %312 : vector<2x128xf32>
    %c0_163 = arith.constant 0 : index
    %c0_164 = arith.constant 0 : index
    %314 = vector.load %arg7[%c0_163, %c0_164] : memref<2x128xf32, #tpu.memory_space<vmem>>, vector<2x128xf32>
    tpu.vector_store %arg7[%c0_163, %c0_164], %313 {strides = array<i32>} : memref<2x128xf32, #tpu.memory_space<vmem>>, vector<2x128xf32>,
    return
  }
}

</mosaic_0001>

<llo_original>
// kernel: dqn_forward.3
$region0: #{dqn_forward.3}
  #allocation0 [shape = 'u32[]', space=smem, size = 0x4, offset = 0x4, fixed_abs, tag = 'smem constant byte address 0x4 - core index']
  #allocation1 [shape = 'u32[72,128]{1,0:T(1,128)}', space=vmem, size = 0x9000, scoped, tag = 'internal scratch']
  %s0 = inlined_call_operand.vmem [shape: u8[800,256], index: 0, kind: input, shape index: {}]
  %s1 = inlined_call_operand.vmem [shape: bf16[256,32], index: 1, kind: input, shape index: {}]
  %s2 = inlined_call_operand.vmem [shape: f32[1,32], index: 2, kind: input, shape index: {}]
  %s3 = inlined_call_operand.vmem [shape: bf16[800,32], index: 3, kind: output, shape index: {}]
  %s4 = sld [smem:[#allocation0]]
  $region45: #{dqn_forward.3} parent=0
    _
  %s6 = ssub.s32 1, %s4
  %s7 = scalar_select 0, %s6, %s4
  loop: start=0, step=1, limit=7
  $region2: #{dqn_forward.3} parent=0 // loop_pre_header
    _
  $region3: #{dqn_forward.3} parent=0 // loop_header
    %s9 = sphi 0, %s13
    %p10 = scmp.ge.s32.totalorder %s9, 7
    %s19 = sphi 0, %s21
    %s22 = sphi 0, %s19
    %s23 = sphi 0, %s22
    %s39 = sphi 0, %s23
    %s43 = sphi 0, %s43
    %s45 = sphi 0, %s43
    %s46 = sphi 0, %s45
    %s60 = sphi 0, %s46
    %s64 = sphi 0, %s64
    %s66 = sphi 0, %s64
    %s67 = sphi 0, %s66
    %s81 = sphi 0, %s67
    %s87 = sphi 0, %s89
    %s90 = sphi 0, %s87
    %s91 = sphi 0, %s90
    %s107 = sphi 0, %s91
  $region4: #{dqn_forward.3} parent=0 // loop_header_branch
    %12 = sbr.rel (%p10) target = $region8
  $region5: #{dqn_forward.3} parent=0 // loop_body
    %s14 = ssub.s32 %s9, 1
    %s15 = ssub.s32 %s9, 2
    %s16 = sadd.s32 %s9, 1
    %s17 = ssub.s32 %s9, %s16
    %p18 = scmp.eq.s32.totalorder %s17, 0
    %s20 = sadd.s32 %s19, 1
    %s21 = scalar_select %p18, %s19, %s20
    %p24 = pneg %p18
    %p25 = scmp.eq.s32.totalorder %s9, 4
    %p26 = por %p24, %p25
    %p27 = scmp.ne.s32.totalorder %s19, %s22
    %p28 = scmp.eq.s32.totalorder %s9, 0
    %p29 = por %p27, %p28
    %p30 = scmp.ne.s32.totalorder %s19, %s22
    %p31 = scmp.eq.s32.totalorder %s14, 4
    %p32 = por %p30, %p31
    %p33 = scmp.ne.s32.totalorder %s22, %s23
    %p34 = scmp.eq.s32.totalorder %s14, 0
    %p35 = por %p33, %p34
    %p36 = scmp.ne.s32.totalorder %s22, %s23
    %p37 = scmp.eq.s32.totalorder %s15, 4
    %p38 = por %p36, %p37
    %p40 = scmp.ne.s32.totalorder %s23, %s39
    %p41 = scmp.eq.s32.totalorder %s15, 0
    %p42 = por %p40, %p41
    %s44 = sadd.s32 %s43, 1
    %p47 = scmp.eq.s32.totalorder %s9, 4
    %p48 = scmp.ne.s32.totalorder %s43, %s45
    %p49 = scmp.eq.s32.totalorder %s9, 0
    %p50 = por %p48, %p49
    %p51 = scmp.ne.s32.totalorder %s43, %s45
    %p52 = scmp.eq.s32.totalorder %s14, 4
    %p53 = por %p51, %p52
    %p54 = scmp.ne.s32.totalorder %s45, %s46
    %p55 = scmp.eq.s32.totalorder %s14, 0
    %p56 = por %p54, %p55
    %p57 = scmp.ne.s32.totalorder %s45, %s46
    %p58 = scmp.eq.s32.totalorder %s15, 4
    %p59 = por %p57, %p58
    %p61 = scmp.ne.s32.totalorder %s46, %s60
    %p62 = scmp.eq.s32.totalorder %s15, 0
    %p63 = por %p61, %p62
    %s65 = sadd.s32 %s64, 1
    %p68 = scmp.eq.s32.totalorder %s9, 4
    %p69 = scmp.ne.s32.totalorder %s64, %s66
    %p70 = scmp.eq.s32.totalorder %s9, 0
    %p71 = por %p69, %p70
    %p72 = scmp.ne.s32.totalorder %s64, %s66
    %p73 = scmp.eq.s32.totalorder %s14, 4
    %p74 = por %p72, %p73
    %p75 = scmp.ne.s32.totalorder %s66, %s67
    %p76 = scmp.eq.s32.totalorder %s14, 0
    %p77 = por %p75, %p76
    %p78 = scmp.ne.s32.totalorder %s66, %s67
    %p79 = scmp.eq.s32.totalorder %s15, 4
    %p80 = por %p78, %p79
    %p82 = scmp.ne.s32.totalorder %s67, %s81
    %p83 = scmp.eq.s32.totalorder %s15, 0
    %p84 = por %p82, %p83
    %s85 = ssub.s32 %s9, %s16
    %p86 = scmp.eq.s32.totalorder %s85, 0
    %s88 = sadd.s32 %s87, 1
    %s89 = scalar_select %p86, %s87, %s88
    %p92 = pneg %p86
    %p93 = scmp.eq.s32.totalorder %s9, 4
    %p94 = por %p92, %p93
    %p95 = scmp.ne.s32.totalorder %s87, %s90
    %p96 = scmp.eq.s32.totalorder %s9, 0
    %p97 = por %p95, %p96
    %p98 = scmp.ne.s32.totalorder %s87, %s90
    %p99 = scmp.eq.s32.totalorder %s14, 4
    %p100 = por %p98, %p99
    %p101 = scmp.ne.s32.totalorder %s90, %s91
    %p102 = scmp.eq.s32.totalorder %s14, 0
    %p103 = por %p101, %p102
    %p104 = scmp.ne.s32.totalorder %s90, %s91
    %p105 = scmp.eq.s32.totalorder %s15, 4
    %p106 = por %p104, %p105
    %p108 = scmp.ne.s32.totalorder %s91, %s107
    %p109 = scmp.eq.s32.totalorder %s15, 0
    %p110 = por %p108, %p109
    %p111 = scmp.le.s32.totalorder 1, %s9
    %p112 = scmp.lt.s32.totalorder %s9, 6
    %p113 = pnand %p111, %p112
    %p114 = pneg %p113
    // Predicated region
    $region9: #{dqn_forward.3} parent=5 // pred_check
      _
    $region10: #{dqn_forward.3} parent=5 // pred_check_branch
      %116 = sbr.rel (%p113) target = $region12
    $region11: #{dqn_forward.3} parent=5 // pred_region
      %s117 = ssub.s32 %s9, 1
      // Predicated region
      $region13: #{dqn_forward.3} parent=11 // pred_check
        %p118 = pneg %p56
      $region14: #{dqn_forward.3} parent=11 // pred_check_branch
        %120 = sbr.rel (%p118) target = $region16
      $region15: #{dqn_forward.3} parent=11 // pred_region
        _
      $region16: #{dqn_forward.3} parent=11 // pred_fallthru
        _
      // Predicated region
      $region17: #{dqn_forward.3} parent=11 // pred_check
        %p121 = pneg %p77
      $region18: #{dqn_forward.3} parent=11 // pred_check_branch
        %123 = sbr.rel (%p121) target = $region20
      $region19: #{dqn_forward.3} parent=11 // pred_region
        _
      $region20: #{dqn_forward.3} parent=11 // pred_fallthru
        _
    $region12: #{dqn_forward.3} parent=5 // pred_fallthru
      _
    %p124 = scmp.lt.s32.totalorder %s9, 5
    // Predicated region
    $region21: #{dqn_forward.3} parent=5 // pred_check
      %p125 = pneg %p124
    $region22: #{dqn_forward.3} parent=5 // pred_check_branch
      %127 = sbr.rel (%p125) target = $region24
    $region23: #{dqn_forward.3} parent=5 // pred_region
      // Predicated region
      $region25: #{dqn_forward.3} parent=23 // pred_check
        %p128 = pneg %p29
      $region26: #{dqn_forward.3} parent=23 // pred_check_branch
        %130 = sbr.rel (%p128) target = $region28
      $region27: #{dqn_forward.3} parent=23 // pred_region
        %s131 = smul.u32 5, %s9
        %p132 = scmp.lt.s32.totalorder %s131, 24
        %s133 = scalar_select %p132, %s131, 24
        %s134 = smul.addr %s133, 2
        %s135 = smul.addr %s134, 8
        %s136 = scalar_lea.vmem %s0, %s135
        %s137 = smul.u32 5, %s9
      $region28: #{dqn_forward.3} parent=23 // pred_fallthru
        _
    $region24: #{dqn_forward.3} parent=5 // pred_fallthru
      _
    %p138 = scmp.le.s32.totalorder 1, %s9
    %p139 = scmp.lt.s32.totalorder %s9, 6
    %p140 = pnand %p138, %p139
    %p141 = pneg %p140
    // Predicated region
    $region29: #{dqn_forward.3} parent=5 // pred_check
      _
    $region30: #{dqn_forward.3} parent=5 // pred_check_branch
      %143 = sbr.rel (%p140) target = $region32
    $region31: #{dqn_forward.3} parent=5 // pred_region
      %s144 = ssub.s32 %s9, 1
      %s145 = smul.u32 5, %s14
      %p146 = scmp.lt.s32.totalorder %s145, 24
      %s147 = scalar_select %p146, %s145, 24
      %s148 = smul.addr %s147, 2
      %s149 = smul.addr %s148, 8
      %s150 = scalar_lea.vmem %s0, %s149
      %p151 = pneg %p35
      %p152 = pneg %p32
      %p153 = pneg %p56
      %p154 = pneg %p53
      %p155 = pneg %p77
      %p156 = pneg %p74
      %p157 = pneg %p103
      %p158 = pneg %p100
      %s159 = smul.u32 20, %s14
      %p160 = scmp.lt.s32.totalorder %s159, 99
      %s161 = scalar_select %p160, %s159, 99
      %s162 = smul.addr %s161, 4
      %s163 = scalar_lea.vmem %s3, %s162
      %s164 = smul.u32 5, %s14
      %p165 = scmp.lt.s32.totalorder %s164, 24
      %s166 = scalar_select %p165, %s164, 24
      %s167 = smul.addr %s166, 2
      %s168 = smul.addr %s167, 8
      %s169 = scalar_lea.vmem %s0, %s168
      %s170 = smul.u32 5, %s14
      %s171 = smul.u32 20, %s14
      %p172 = scmp.lt.s32.totalorder %s171, 99
      %s173 = scalar_select %p172, %s171, 99
      %s174 = smul.addr %s173, 4
      %s175 = scalar_lea.vmem %s3, %s174
      %s176 = smul.u32 20, %s14
      %v177 = vld [vmem:[%s169] sm:$0xff]
      %v178 = vld [vmem:[%s169 + $0x8] sm:$0xff]
      %v179 = vld [vmem:[%s169 + $0x10] sm:$0xff]
      %v180 = vld [vmem:[%s169 + $0x18] sm:$0xff]
      %v181 = vld [vmem:[%s169 + $0x20] sm:$0xff]
      %v182 = vld [vmem:[%s169 + $0x28] sm:$0xff]
      %v183 = vld [vmem:[%s169 + $0x30] sm:$0xff]
      %v184 = vld [vmem:[%s169 + $0x38] sm:$0xff]
      %v185 = vld [vmem:[%s169 + $0x40] sm:$0xff]
      %v186 = vld [vmem:[%s169 + $0x48] sm:$0xff]
      %v187 = vunpack.c.0.s8 %v177
      %v188 = vunpack.c.0.s8 %v178
      %v189 = vunpack.c.1.s8 %v177
      %v190 = vunpack.c.1.s8 %v178
      %v191 = vunpack.c.2.s8 %v177
      %v192 = vunpack.c.2.s8 %v178
      %v193 = vunpack.c.3.s8 %v177
      %v194 = vunpack.c.3.s8 %v178
      %v195 = vunpack.c.0.s8 %v179
      %v196 = vunpack.c.0.s8 %v180
      %v197 = vunpack.c.1.s8 %v179
      %v198 = vunpack.c.1.s8 %v180
      %v199 = vunpack.c.2.s8 %v179
      %v200 = vunpack.c.2.s8 %v180
      %v201 = vunpack.c.3.s8 %v179
      %v202 = vunpack.c.3.s8 %v180
      %v203 = vunpack.c.0.s8 %v181
      %v204 = vunpack.c.0.s8 %v182
      %v205 = vunpack.c.1.s8 %v181
      %v206 = vunpack.c.1.s8 %v182
      %v207 = vunpack.c.2.s8 %v181
      %v208 = vunpack.c.2.s8 %v182
      %v209 = vunpack.c.3.s8 %v181
      %v210 = vunpack.c.3.s8 %v182
      %v211 = vunpack.c.0.s8 %v183
      %v212 = vunpack.c.0.s8 %v184
      %v213 = vunpack.c.1.s8 %v183
      %v214 = vunpack.c.1.s8 %v184
      %v215 = vunpack.c.2.s8 %v183
      %v216 = vunpack.c.2.s8 %v184
      %v217 = vunpack.c.3.s8 %v183
      %v218 = vunpack.c.3.s8 %v184
      %v219 = vunpack.c.0.s8 %v185
      %v220 = vunpack.c.0.s8 %v186
      %v221 = vunpack.c.1.s8 %v185
      %v222 = vunpack.c.1.s8 %v186
      %v223 = vunpack.c.2.s8 %v185
      %v224 = vunpack.c.2.s8 %v186
      %v225 = vunpack.c.3.s8 %v185
      %v226 = vunpack.c.3.s8 %v186
      %v227 = vand.u32 %v187, 255
      %v228 = vand.u32 %v188, 255
      %v229 = vand.u32 %v189, 255
      %v230 = vand.u32 %v190, 255
      %v231 = vand.u32 %v191, 255
      %v232 = vand.u32 %v192, 255
      %v233 = vand.u32 %v193, 255
      %v234 = vand.u32 %v194, 255
      %v235 = vand.u32 %v195, 255
      %v236 = vand.u32 %v196, 255
      %v237 = vand.u32 %v197, 255
      %v238 = vand.u32 %v198, 255
      %v239 = vand.u32 %v199, 255
      %v240 = vand.u32 %v200, 255
      %v241 = vand.u32 %v201, 255
      %v242 = vand.u32 %v202, 255
      %v243 = vand.u32 %v203, 255
      %v244 = vand.u32 %v204, 255
      %v245 = vand.u32 %v205, 255
      %v246 = vand.u32 %v206, 255
      %v247 = vand.u32 %v207, 255
      %v248 = vand.u32 %v208, 255
      %v249 = vand.u32 %v209, 255
      %v250 = vand.u32 %v210, 255
      %v251 = vand.u32 %v211, 255
      %v252 = vand.u32 %v212, 255
      %v253 = vand.u32 %v213, 255
      %v254 = vand.u32 %v214, 255
      %v255 = vand.u32 %v215, 255
      %v256 = vand.u32 %v216, 255
      %v257 = vand.u32 %v217, 255
      %v258 = vand.u32 %v218, 255
      %v259 = vand.u32 %v219, 255
      %v260 = vand.u32 %v220, 255
      %v261 = vand.u32 %v221, 255
      %v262 = vand.u32 %v222, 255
      %v263 = vand.u32 %v223, 255
      %v264 = vand.u32 %v224, 255
      %v265 = vand.u32 %v225, 255
      %v266 = vand.u32 %v226, 255
      %v267 = vcvt.s32.f32 %v227
      %v268 = vcvt.s32.f32 %v228
      %v269 = vcvt.s32.f32 %v229
      %v270 = vcvt.s32.f32 %v230
      %v271 = vcvt.s32.f32 %v231
      %v272 = vcvt.s32.f32 %v232
      %v273 = vcvt.s32.f32 %v233
      %v274 = vcvt.s32.f32 %v234
      %v275 = vcvt.s32.f32 %v235
      %v276 = vcvt.s32.f32 %v236
      %v277 = vcvt.s32.f32 %v237
      %v278 = vcvt.s32.f32 %v238
      %v279 = vcvt.s32.f32 %v239
      %v280 = vcvt.s32.f32 %v240
      %v281 = vcvt.s32.f32 %v241
      %v282 = vcvt.s32.f32 %v242
      %v283 = vcvt.s32.f32 %v243
      %v284 = vcvt.s32.f32 %v244
      %v285 = vcvt.s32.f32 %v245
      %v286 = vcvt.s32.f32 %v246
      %v287 = vcvt.s32.f32 %v247
      %v288 = vcvt.s32.f32 %v248
      %v289 = vcvt.s32.f32 %v249
      %v290 = vcvt.s32.f32 %v250
      %v291 = vcvt.s32.f32 %v251
      %v292 = vcvt.s32.f32 %v252
      %v293 = vcvt.s32.f32 %v253
      %v294 = vcvt.s32.f32 %v254
      %v295 = vcvt.s32.f32 %v255
      %v296 = vcvt.s32.f32 %v256
      %v297 = vcvt.s32.f32 %v257
      %v298 = vcvt.s32.f32 %v258
      %v299 = vcvt.s32.f32 %v259
      %v300 = vcvt.s32.f32 %v260
      %v301 = vcvt.s32.f32 %v261
      %v302 = vcvt.s32.f32 %v262
      %v303 = vcvt.s32.f32 %v263
      %v304 = vcvt.s32.f32 %v264
      %v305 = vcvt.s32.f32 %v265
      %v306 = vcvt.s32.f32 %v266
      %v307 = vpack.c.bf16 %v269, %v267
      %v308 = vpack.c.bf16 %v270, %v268
      %v309 = vpack.c.bf16 %v273, %v271
      %v310 = vpack.c.bf16 %v274, %v272
      %v311 = vpack.c.bf16 %v277, %v275
      %v312 = vpack.c.bf16 %v278, %v276
      %v313 = vpack.c.bf16 %v281, %v279
      %v314 = vpack.c.bf16 %v282, %v280
      %v315 = vpack.c.bf16 %v285, %v283
      %v316 = vpack.c.bf16 %v286, %v284
      %v317 = vpack.c.bf16 %v289, %v287
      %v318 = vpack.c.bf16 %v290, %v288
      %v319 = vpack.c.bf16 %v293, %v291
      %v320 = vpack.c.bf16 %v294, %v292
      %v321 = vpack.c.bf16 %v297, %v295
      %v322 = vpack.c.bf16 %v298, %v296
      %v323 = vpack.c.bf16 %v301, %v299
      %v324 = vpack.c.bf16 %v302, %v300
      %v325 = vpack.c.bf16 %v305, %v303
      %v326 = vpack.c.bf16 %v306, %v304
      %v327 = vld [vmem:[%s1] sm:$0xf]
      %v328 = vld [vmem:[%s1 + $0x4] sm:$0xf]
      %v329 = vld [vmem:[%s1 + $0x8] sm:$0xf]
      %v330 = vld [vmem:[%s1 + $0xc] sm:$0xf]
      %v331 = vld [vmem:[%s1 + $0x10] sm:$0xf]
      %v332 = vld [vmem:[%s1 + $0x14] sm:$0xf]
      %v333 = vld [vmem:[%s1 + $0x18] sm:$0xf]
      %v334 = vld [vmem:[%s1 + $0x1c] sm:$0xf]
      %v335 = vld [vmem:[%s1 + $0x20] sm:$0xf]
      %v336 = vld [vmem:[%s1 + $0x24] sm:$0xf]
      %v337 = vld [vmem:[%s1 + $0x28] sm:$0xf]
      %v338 = vld [vmem:[%s1 + $0x2c] sm:$0xf]
      %v339 = vld [vmem:[%s1 + $0x30] sm:$0xf]
      %v340 = vld [vmem:[%s1 + $0x34] sm:$0xf]
      %v341 = vld [vmem:[%s1 + $0x38] sm:$0xf]
      %v342 = vld [vmem:[%s1 + $0x3c] sm:$0xf]
      %v343 = vld [vmem:[%s1 + $0x40] sm:$0xf]
      %v344 = vld [vmem:[%s1 + $0x44] sm:$0xf]
      %v345 = vld [vmem:[%s1 + $0x48] sm:$0xf]
      %v346 = vld [vmem:[%s1 + $0x4c] sm:$0xf]
      %v347 = vld [vmem:[%s1 + $0x50] sm:$0xf]
      %v348 = vld [vmem:[%s1 + $0x54] sm:$0xf]
      %v349 = vld [vmem:[%s1 + $0x58] sm:$0xf]
      %v350 = vld [vmem:[%s1 + $0x5c] sm:$0xf]
      %v351 = vld [vmem:[%s1 + $0x60] sm:$0xf]
      %v352 = vld [vmem:[%s1 + $0x64] sm:$0xf]
      %v353 = vld [vmem:[%s1 + $0x68] sm:$0xf]
      %v354 = vld [vmem:[%s1 + $0x6c] sm:$0xf]
      %v355 = vld [vmem:[%s1 + $0x70] sm:$0xf]
      %v356 = vld [vmem:[%s1 + $0x74] sm:$0xf]
      %v357 = vld [vmem:[%s1 + $0x78] sm:$0xf]
      %v358 = vld [vmem:[%s1 + $0x7c] sm:$0xf]
      %v359 = vld [vmem:[%s2] sm:$0x1]
      %v361 = vperm.slane %v359, 0
      %v395 = vunpack.c.l.b16 %v327
      %v396 = vunpack.c.l.b16 %v328
      %v397 = vunpack.c.l.b16 %v329
      %v398 = vunpack.c.l.b16 %v330
      %v399 = vunpack.c.l.b16 %v331
      %v400 = vunpack.c.l.b16 %v332
      %v401 = vunpack.c.l.b16 %v333
      %v402 = vunpack.c.l.b16 %v334
      %v403 = vunpack.c.l.b16 %v335
      %v404 = vunpack.c.l.b16 %v336
      %v405 = vunpack.c.l.b16 %v337
      %v406 = vunpack.c.l.b16 %v338
      %v407 = vunpack.c.l.b16 %v339
      %v408 = vunpack.c.l.b16 %v340
      %v409 = vunpack.c.l.b16 %v341
      %v410 = vunpack.c.l.b16 %v342
      %v411 = vunpack.c.l.b16 %v343
      %v412 = vunpack.c.l.b16 %v344
      %v413 = vunpack.c.l.b16 %v345
      %v414 = vunpack.c.l.b16 %v346
      %v415 = vunpack.c.l.b16 %v347
      %v416 = vunpack.c.l.b16 %v348
      %v417 = vunpack.c.l.b16 %v349
      %v418 = vunpack.c.l.b16 %v350
      %v419 = vunpack.c.l.b16 %v351
      %v420 = vunpack.c.l.b16 %v352
      %v421 = vunpack.c.l.b16 %v353
      %v422 = vunpack.c.l.b16 %v354
      %v423 = vunpack.c.l.b16 %v355
      %v424 = vunpack.c.l.b16 %v356
      %v425 = vunpack.c.l.b16 %v357
      %v426 = vunpack.c.l.b16 %v358
      %v427 = vpack.c.b16 %v396, %v395
      %v428 = vpack.c.b16 %v398, %v397
      %v429 = vpack.c.b16 %v400, %v399
      %v430 = vpack.c.b16 %v402, %v401
      %v431 = vpack.c.b16 %v404, %v403
      %v432 = vpack.c.b16 %v406, %v405
      %v433 = vpack.c.b16 %v408, %v407
      %v434 = vpack.c.b16 %v410, %v409
      %v435 = vpack.c.b16 %v412, %v411
      %v436 = vpack.c.b16 %v414, %v413
      %v437 = vpack.c.b16 %v416, %v415
      %v438 = vpack.c.b16 %v418, %v417
      %v439 = vpack.c.b16 %v420, %v419
      %v440 = vpack.c.b16 %v422, %v421
      %v441 = vpack.c.b16 %v424, %v423
      %v442 = vpack.c.b16 %v426, %v425
      %459 = vmatpush.bf16.msra.mxu0 %v434
      %460 = vmatpush.bf16.msra.mxu0 %v433
      %461 = vmatpush.bf16.msra.mxu0 %v432
      %462 = vmatpush.bf16.msra.mxu0 %v431
      %463 = vmatpush.bf16.msra.mxu0 %v430
      %464 = vmatpush.bf16.msra.mxu0 %v429
      %465 = vmatpush.bf16.msra.mxu0 %v428
      %466 = vmatpush.bf16.msra.mxu0 %v427
      %467 = vmatmul.bf16.gmra.mxu0 %v307
      %v468 = vpop.f32.mrf.mxu0
      %v469 = vadd.f32 %v361, %v468
      %v470 = vpop.f32.mrf.mxu0
      %v471 = vadd.f32 %v361, %v470
      %472 = vmatmul.bf16.gmra.mxu0 %v309
      %v473 = vpop.f32.mrf.mxu0
      %v474 = vadd.f32 %v361, %v473
      %v475 = vpop.f32.mrf.mxu0
      %v476 = vadd.f32 %v361, %v475
      %477 = vmatmul.bf16.gmra.mxu0 %v311
      %v478 = vpop.f32.mrf.mxu0
      %v479 = vadd.f32 %v361, %v478
      %v480 = vpop.f32.mrf.mxu0
      %v481 = vadd.f32 %v361, %v480
      %482 = vmatmul.bf16.gmra.mxu0 %v313
      %v483 = vpop.f32.mrf.mxu0
      %v484 = vadd.f32 %v361, %v483
      %v485 = vpop.f32.mrf.mxu0
      %v486 = vadd.f32 %v361, %v485
      %487 = vmatmul.bf16.gmra.mxu0 %v315
      %v488 = vpop.f32.mrf.mxu0
      %v489 = vadd.f32 %v361, %v488
      %v490 = vpop.f32.mrf.mxu0
      %v491 = vadd.f32 %v361, %v490
      %492 = vmatmul.bf16.gmra.mxu0 %v317
      %v493 = vpop.f32.mrf.mxu0
      %v494 = vadd.f32 %v361, %v493
      %v495 = vpop.f32.mrf.mxu0
      %v496 = vadd.f32 %v361, %v495
      %497 = vmatmul.bf16.gmra.mxu0 %v319
      %v498 = vpop.f32.mrf.mxu0
      %v499 = vadd.f32 %v361, %v498
      %v500 = vpop.f32.mrf.mxu0
      %v501 = vadd.f32 %v361, %v500
      %502 = vmatmul.bf16.gmra.mxu0 %v321
      %v503 = vpop.f32.mrf.mxu0
      %v504 = vadd.f32 %v361, %v503
      %v505 = vpop.f32.mrf.mxu0
      %v506 = vadd.f32 %v361, %v505
      %507 = vmatmul.bf16.gmra.mxu0 %v323
      %v508 = vpop.f32.mrf.mxu0
      %v509 = vadd.f32 %v361, %v508
      %v510 = vpop.f32.mrf.mxu0
      %v511 = vadd.f32 %v361, %v510
      %512 = vmatmul.bf16.gmra.mxu0 %v325
      %v513 = vpop.f32.mrf.mxu0
      %v514 = vadd.f32 %v361, %v513
      %v515 = vpop.f32.mrf.mxu0
      %v516 = vadd.f32 %v361, %v515
      %517 = vdwg.mxu0
      %518 = vmatpush.bf16.msra.mxu0 %v442
      %519 = vmatpush.bf16.msra.mxu0 %v441
      %520 = vmatpush.bf16.msra.mxu0 %v440
      %521 = vmatpush.bf16.msra.mxu0 %v439
      %522 = vmatpush.bf16.msra.mxu0 %v438
      %523 = vmatpush.bf16.msra.mxu0 %v437
      %524 = vmatpush.bf16.msra.mxu0 %v436
      %525 = vmatpush.bf16.msra.mxu0 %v435
      %526 = vmatmul.bf16.gmra.mxu0 %v308
      %v527 = vpop.f32.mrf.mxu0
      %v528 = vadd.f32 %v469, %v527
      %v529 = vpop.f32.mrf.mxu0
      %v530 = vadd.f32 %v471, %v529
      %531 = vmatmul.bf16.gmra.mxu0 %v310
      %v532 = vpop.f32.mrf.mxu0
      %v533 = vadd.f32 %v474, %v532
      %v534 = vpop.f32.mrf.mxu0
      %v535 = vadd.f32 %v476, %v534
      %536 = vmatmul.bf16.gmra.mxu0 %v312
      %v537 = vpop.f32.mrf.mxu0
      %v538 = vadd.f32 %v479, %v537
      %v539 = vpop.f32.mrf.mxu0
      %v540 = vadd.f32 %v481, %v539
      %541 = vmatmul.bf16.gmra.mxu0 %v314
      %v542 = vpop.f32.mrf.mxu0
      %v543 = vadd.f32 %v484, %v542
      %v544 = vpop.f32.mrf.mxu0
      %v545 = vadd.f32 %v486, %v544
      %546 = vmatmul.bf16.gmra.mxu0 %v316
      %v547 = vpop.f32.mrf.mxu0
      %v548 = vadd.f32 %v489, %v547
      %v549 = vpop.f32.mrf.mxu0
      %v550 = vadd.f32 %v491, %v549
      %551 = vmatmul.bf16.gmra.mxu0 %v318
      %v552 = vpop.f32.mrf.mxu0
      %v553 = vadd.f32 %v494, %v552
      %v554 = vpop.f32.mrf.mxu0
      %v555 = vadd.f32 %v496, %v554
      %556 = vmatmul.bf16.gmra.mxu0 %v320
      %v557 = vpop.f32.mrf.mxu0
      %v558 = vadd.f32 %v499, %v557
      %v559 = vpop.f32.mrf.mxu0
      %v560 = vadd.f32 %v501, %v559
      %561 = vmatmul.bf16.gmra.mxu0 %v322
      %v562 = vpop.f32.mrf.mxu0
      %v563 = vadd.f32 %v504, %v562
      %v564 = vpop.f32.mrf.mxu0
      %v565 = vadd.f32 %v506, %v564
      %566 = vmatmul.bf16.gmra.mxu0 %v324
      %v567 = vpop.f32.mrf.mxu0
      %v568 = vadd.f32 %v509, %v567
      %v569 = vpop.f32.mrf.mxu0
      %v570 = vadd.f32 %v511, %v569
      %571 = vmatmul.bf16.gmra.mxu0 %v326
      %v572 = vpop.f32.mrf.mxu0
      %v573 = vadd.f32 %v514, %v572
      %v574 = vpop.f32.mrf.mxu0
      %v575 = vadd.f32 %v516, %v574
      %576 = vdwg.mxu0
      %v577 = vmax.f32 %v528, 0.0
      %v578 = vmax.f32 %v530, 0.0
      %v579 = vmax.f32 %v533, 0.0
      %v580 = vmax.f32 %v535, 0.0
      %v581 = vmax.f32 %v538, 0.0
      %v582 = vmax.f32 %v540, 0.0
      %v583 = vmax.f32 %v543, 0.0
      %v584 = vmax.f32 %v545, 0.0
      %v585 = vmax.f32 %v548, 0.0
      %v586 = vmax.f32 %v550, 0.0
      %v587 = vmax.f32 %v553, 0.0
      %v588 = vmax.f32 %v555, 0.0
      %v589 = vmax.f32 %v558, 0.0
      %v590 = vmax.f32 %v560, 0.0
      %v591 = vmax.f32 %v563, 0.0
      %v592 = vmax.f32 %v565, 0.0
      %v593 = vmax.f32 %v568, 0.0
      %v594 = vmax.f32 %v570, 0.0
      %v595 = vmax.f32 %v573, 0.0
      %v596 = vmax.f32 %v575, 0.0
      %v597 = vpack.c.bf16 %v577, %v577
      %v598 = vpack.c.bf16 %v578, %v578
      %v599 = vpack.c.bf16 %v579, %v579
      %v600 = vpack.c.bf16 %v580, %v580
      %v601 = vpack.c.bf16 %v581, %v581
      %v602 = vpack.c.bf16 %v582, %v582
      %v603 = vpack.c.bf16 %v583, %v583
      %v604 = vpack.c.bf16 %v584, %v584
      %v605 = vpack.c.bf16 %v585, %v585
      %v606 = vpack.c.bf16 %v586, %v586
      %v607 = vpack.c.bf16 %v587, %v587
      %v608 = vpack.c.bf16 %v588, %v588
      %v609 = vpack.c.bf16 %v589, %v589
      %v610 = vpack.c.bf16 %v590, %v590
      %v611 = vpack.c.bf16 %v591, %v591
      %v612 = vpack.c.bf16 %v592, %v592
      %v613 = vpack.c.bf16 %v593, %v593
      %v614 = vpack.c.bf16 %v594, %v594
      %v615 = vpack.c.bf16 %v595, %v595
      %v616 = vpack.c.bf16 %v596, %v596
      %vm617 = vcmask 257024
      %618 = vst.msk [vmem:[%s175] sm:$0xf] %vm617, %v597
      %619 = vst.msk [vmem:[%s175 + $0x4] sm:$0xf] %vm617, %v598
      %620 = vst.msk [vmem:[%s175 + $0x8] sm:$0xf] %vm617, %v599
      %621 = vst.msk [vmem:[%s175 + $0xc] sm:$0xf] %vm617, %v600
      %622 = vst.msk [vmem:[%s175 + $0x10] sm:$0xf] %vm617, %v601
      %623 = vst.msk [vmem:[%s175 + $0x14] sm:$0xf] %vm617, %v602
      %624 = vst.msk [vmem:[%s175 + $0x18] sm:$0xf] %vm617, %v603
      %625 = vst.msk [vmem:[%s175 + $0x1c] sm:$0xf] %vm617, %v604
      %626 = vst.msk [vmem:[%s175 + $0x20] sm:$0xf] %vm617, %v605
      %627 = vst.msk [vmem:[%s175 + $0x24] sm:$0xf] %vm617, %v606
      %628 = vst.msk [vmem:[%s175 + $0x28] sm:$0xf] %vm617, %v607
      %629 = vst.msk [vmem:[%s175 + $0x2c] sm:$0xf] %vm617, %v608
      %630 = vst.msk [vmem:[%s175 + $0x30] sm:$0xf] %vm617, %v609
      %631 = vst.msk [vmem:[%s175 + $0x34] sm:$0xf] %vm617, %v610
      %632 = vst.msk [vmem:[%s175 + $0x38] sm:$0xf] %vm617, %v611
      %633 = vst.msk [vmem:[%s175 + $0x3c] sm:$0xf] %vm617, %v612
      %634 = vst.msk [vmem:[%s175 + $0x40] sm:$0xf] %vm617, %v613
      %635 = vst.msk [vmem:[%s175 + $0x44] sm:$0xf] %vm617, %v614
      %636 = vst.msk [vmem:[%s175 + $0x48] sm:$0xf] %vm617, %v615
      %637 = vst.msk [vmem:[%s175 + $0x4c] sm:$0xf] %vm617, %v616
      %s638 = smul.u32 20, %s14
      %p639 = scmp.lt.s32.totalorder %s638, 99
      %s640 = scalar_select %p639, %s638, 99
      %s641 = smul.addr %s640, 4
      %s642 = scalar_lea.vmem %s3, %s641
      // Predicated region
      $region33: #{dqn_forward.3} parent=31 // pred_check
        %p643 = pneg %p100
      $region34: #{dqn_forward.3} parent=31 // pred_check_branch
        %645 = sbr.rel (%p643) target = $region36
      $region35: #{dqn_forward.3} parent=31 // pred_region
        %s646 = smul.u32 20, %s14
      $region36: #{dqn_forward.3} parent=31 // pred_fallthru
        _
    $region32: #{dqn_forward.3} parent=5 // pred_fallthru
      _
    %p647 = scmp.le.s32.totalorder 2, %s9
    // Predicated region
    $region37: #{dqn_forward.3} parent=5 // pred_check
      %p648 = pneg %p647
    $region38: #{dqn_forward.3} parent=5 // pred_check_branch
      %650 = sbr.rel (%p648) target = $region40
    $region39: #{dqn_forward.3} parent=5 // pred_region
      %s651 = ssub.s32 %s9, 2
      // Predicated region
      $region41: #{dqn_forward.3} parent=39 // pred_check
        %p652 = pneg %p106
      $region42: #{dqn_forward.3} parent=39 // pred_check_branch
        %654 = sbr.rel (%p652) target = $region44
      $region43: #{dqn_forward.3} parent=39 // pred_region
        %s655 = smul.u32 20, %s15
        %p656 = scmp.lt.s32.totalorder %s655, 99
        %s657 = scalar_select %p656, %s655, 99
        %s658 = smul.addr %s657, 4
        %s659 = scalar_lea.vmem %s3, %s658
      $region44: #{dqn_forward.3} parent=39 // pred_fallthru
        _
    $region40: #{dqn_forward.3} parent=5 // pred_fallthru
      _
  $region6: #{dqn_forward.3} parent=0 // loop_footer
    %s13 = sadd.s32 1, %s9
  $region7: #{dqn_forward.3} parent=0 // loop_footer_branch
    %8 = sbr.rel target = $region3
  $region8: #{dqn_forward.3} parent=0 // loop_exit
    _

// kernel: dqn_forward.4
$region0: #{dqn_forward.4}
  #allocation0 [shape = 'u32[]', space=smem, size = 0x4, offset = 0x4, fixed_abs, tag = 'smem constant byte address 0x4 - core index']
  #allocation1 [shape = 'u32[72,128]{1,0:T(1,128)}', space=vmem, size = 0x9000, scoped, tag = 'internal scratch']
  %s0 = inlined_call_operand.vmem [shape: bf16[162,512], index: 0, kind: input, shape index: {}]
  %s1 = inlined_call_operand.vmem [shape: bf16[512,64], index: 1, kind: input, shape index: {}]
  %s2 = inlined_call_operand.vmem [shape: f32[1,64], index: 2, kind: input, shape index: {}]
  %s3 = inlined_call_operand.vmem [shape: bf16[162,64], index: 3, kind: output, shape index: {}]
  %s4 = sld [smem:[#allocation0]]
  $region22: #{dqn_forward.4} parent=0
    _
  %s6 = ssub.s32 1, %s4
  %s7 = scalar_select 0, %s6, %s4
  // Predicated region
  $region2: #{dqn_forward.4} parent=0 // pred_check
    _
  $region3: #{dqn_forward.4} parent=0 // pred_check_branch
    %9 = sbr.rel (0) target = $region5
  $region4: #{dqn_forward.4} parent=0 // pred_region
    _
  $region5: #{dqn_forward.4} parent=0 // pred_fallthru
    _
  // Predicated region
  $region6: #{dqn_forward.4} parent=0 // pred_check
    _
  $region7: #{dqn_forward.4} parent=0 // pred_check_branch
    %11 = sbr.rel (0) target = $region9
  $region8: #{dqn_forward.4} parent=0 // pred_region
    _
  $region9: #{dqn_forward.4} parent=0 // pred_fallthru
    _
  // Predicated region
  $region10: #{dqn_forward.4} parent=0 // pred_check
    _
  $region11: #{dqn_forward.4} parent=0 // pred_check_branch
    %13 = sbr.rel (0) target = $region13
  $region12: #{dqn_forward.4} parent=0 // pred_region
    _
  $region13: #{dqn_forward.4} parent=0 // pred_fallthru
    _
  %v14 = vld [vmem:[%s0] sm:$0xff]
  %v15 = vld [vmem:[%s0 + $0x8] sm:$0xff]
  %v16 = vld [vmem:[%s0 + $0x10] sm:$0xff]
  %v17 = vld [vmem:[%s0 + $0x18] sm:$0xff]
  %v18 = vld [vmem:[%s0 + $0x20] sm:$0xff]
  %v19 = vld [vmem:[%s0 + $0x28] sm:$0xff]
  %v20 = vld [vmem:[%s0 + $0x30] sm:$0xff]
  %v21 = vld [vmem:[%s0 + $0x38] sm:$0xff]
  %v22 = vld [vmem:[%s0 + $0x40] sm:$0xff]
  %v23 = vld [vmem:[%s0 + $0x48] sm:$0xff]
  %v24 = vld [vmem:[%s0 + $0x50] sm:$0xff]
  %v25 = vld [vmem:[%s0 + $0x58] sm:$0xff]
  %v26 = vld [vmem:[%s0 + $0x60] sm:$0xff]
  %v27 = vld [vmem:[%s0 + $0x68] sm:$0xff]
  %v28 = vld [vmem:[%s0 + $0x70] sm:$0xff]
  %v29 = vld [vmem:[%s0 + $0x78] sm:$0xff]
  %v30 = vld [vmem:[%s0 + $0x80] sm:$0xff]
  %v31 = vld [vmem:[%s0 + $0x88] sm:$0xff]
  %v32 = vld [vmem:[%s0 + $0x90] sm:$0xff]
  %v33 = vld [vmem:[%s0 + $0x98] sm:$0xff]
  %v34 = vld [vmem:[%s0 + $0xa0] sm:$0xff]
  %v35 = vld [vmem:[%s0 + $0xa8] sm:$0xff]
  %v36 = vld [vmem:[%s0 + $0xb0] sm:$0xff]
  %v37 = vld [vmem:[%s0 + $0xb8] sm:$0xff]
  %v38 = vld [vmem:[%s0 + $0xc0] sm:$0xff]
  %v39 = vld [vmem:[%s0 + $0xc8] sm:$0xff]
  %v40 = vld [vmem:[%s0 + $0xd0] sm:$0xff]
  %v41 = vld [vmem:[%s0 + $0xd8] sm:$0xff]
  %v42 = vld [vmem:[%s0 + $0xe0] sm:$0xff]
  %v43 = vld [vmem:[%s0 + $0xe8] sm:$0xff]
  %v44 = vld [vmem:[%s0 + $0xf0] sm:$0xff]
  %v45 = vld [vmem:[%s0 + $0xf8] sm:$0xff]
  %v46 = vld [vmem:[%s0 + $0x100] sm:$0xff]
  %v47 = vld [vmem:[%s0 + $0x108] sm:$0xff]
  %v48 = vld [vmem:[%s0 + $0x110] sm:$0xff]
  %v49 = vld [vmem:[%s0 + $0x118] sm:$0xff]
  %v50 = vld [vmem:[%s0 + $0x120] sm:$0xff]
  %v51 = vld [vmem:[%s0 + $0x128] sm:$0xff]
  %v52 = vld [vmem:[%s0 + $0x130] sm:$0xff]
  %v53 = vld [vmem:[%s0 + $0x138] sm:$0xff]
  %v54 = vld [vmem:[%s0 + $0x140] sm:$0x11]
  %v55 = vld [vmem:[%s0 + $0x148] sm:$0x11]
  %v56 = vld [vmem:[%s1] sm:$0xf]
  %v57 = vld [vmem:[%s1 + $0x4] sm:$0xf]
  %v58 = vld [vmem:[%s1 + $0x8] sm:$0xf]
  %v59 = vld [vmem:[%s1 + $0xc] sm:$0xf]
  %v60 = vld [vmem:[%s1 + $0x10] sm:$0xf]
  %v61 = vld [vmem:[%s1 + $0x14] sm:$0xf]
  %v62 = vld [vmem:[%s1 + $0x18] sm:$0xf]
  %v63 = vld [vmem:[%s1 + $0x1c] sm:$0xf]
  %v64 = vld [vmem:[%s1 + $0x20] sm:$0xf]
  %v65 = vld [vmem:[%s1 + $0x24] sm:$0xf]
  %v66 = vld [vmem:[%s1 + $0x28] sm:$0xf]
  %v67 = vld [vmem:[%s1 + $0x2c] sm:$0xf]
  %v68 = vld [vmem:[%s1 + $0x30] sm:$0xf]
  %v69 = vld [vmem:[%s1 + $0x34] sm:$0xf]
  %v70 = vld [vmem:[%s1 + $0x38] sm:$0xf]
  %v71 = vld [vmem:[%s1 + $0x3c] sm:$0xf]
  %v72 = vld [vmem:[%s1 + $0x40] sm:$0xf]
  %v73 = vld [vmem:[%s1 + $0x44] sm:$0xf]
  %v74 = vld [vmem:[%s1 + $0x48] sm:$0xf]
  %v75 = vld [vmem:[%s1 + $0x4c] sm:$0xf]
  %v76 = vld [vmem:[%s1 + $0x50] sm:$0xf]
  %v77 = vld [vmem:[%s1 + $0x54] sm:$0xf]
  %v78 = vld [vmem:[%s1 + $0x58] sm:$0xf]
  %v79 = vld [vmem:[%s1 + $0x5c] sm:$0xf]
  %v80 = vld [vmem:[%s1 + $0x60] sm:$0xf]
  %v81 = vld [vmem:[%s1 + $0x64] sm:$0xf]
  %v82 = vld [vmem:[%s1 + $0x68] sm:$0xf]
  %v83 = vld [vmem:[%s1 + $0x6c] sm:$0xf]
  %v84 = vld [vmem:[%s1 + $0x70] sm:$0xf]
  %v85 = vld [vmem:[%s1 + $0x74] sm:$0xf]
  %v86 = vld [vmem:[%s1 + $0x78] sm:$0xf]
  %v87 = vld [vmem:[%s1 + $0x7c] sm:$0xf]
  %v88 = vld [vmem:[%s1 + $0x80] sm:$0xf]
  %v89 = vld [vmem:[%s1 + $0x84] sm:$0xf]
  %v90 = vld [vmem:[%s1 + $0x88] sm:$0xf]
  %v91 = vld [vmem:[%s1 + $0x8c] sm:$0xf]
  %v92 = vld [vmem:[%s1 + $0x90] sm:$0xf]
  %v93 = vld [vmem:[%s1 + $0x94] sm:$0xf]
  %v94 = vld [vmem:[%s1 + $0x98] sm:$0xf]
  %v95 = vld [vmem:[%s1 + $0x9c] sm:$0xf]
  %v96 = vld [vmem:[%s1 + $0xa0] sm:$0xf]
  %v97 = vld [vmem:[%s1 + $0xa4] sm:$0xf]
  %v98 = vld [vmem:[%s1 + $0xa8] sm:$0xf]
  %v99 = vld [vmem:[%s1 + $0xac] sm:$0xf]
  %v100 = vld [vmem:[%s1 + $0xb0] sm:$0xf]
  %v101 = vld [vmem:[%s1 + $0xb4] sm:$0xf]
  %v102 = vld [vmem:[%s1 + $0xb8] sm:$0xf]
  %v103 = vld [vmem:[%s1 + $0xbc] sm:$0xf]
  %v104 = vld [vmem:[%s1 + $0xc0] sm:$0xf]
  %v105 = vld [vmem:[%s1 + $0xc4] sm:$0xf]
  %v106 = vld [vmem:[%s1 + $0xc8] sm:$0xf]
  %v107 = vld [vmem:[%s1 + $0xcc] sm:$0xf]
  %v108 = vld [vmem:[%s1 + $0xd0] sm:$0xf]
  %v109 = vld [vmem:[%s1 + $0xd4] sm:$0xf]
  %v110 = vld [vmem:[%s1 + $0xd8] sm:$0xf]
  %v111 = vld [vmem:[%s1 + $0xdc] sm:$0xf]
  %v112 = vld [vmem:[%s1 + $0xe0] sm:$0xf]
  %v113 = vld [vmem:[%s1 + $0xe4] sm:$0xf]
  %v114 = vld [vmem:[%s1 + $0xe8] sm:$0xf]
  %v115 = vld [vmem:[%s1 + $0xec] sm:$0xf]
  %v116 = vld [vmem:[%s1 + $0xf0] sm:$0xf]
  %v117 = vld [vmem:[%s1 + $0xf4] sm:$0xf]
  %v118 = vld [vmem:[%s1 + $0xf8] sm:$0xf]
  %v119 = vld [vmem:[%s1 + $0xfc] sm:$0xf]
  %v120 = vld [vmem:[%s2] sm:$0x1]
  %v122 = vperm.slane %v120, 0
  %v166 = vunpack.c.l.b16 %v14
  %v167 = vunpack.c.h.b16 %v14
  %v168 = vunpack.c.l.b16 %v15
  %v169 = vunpack.c.h.b16 %v15
  %v170 = vunpack.c.l.b16 %v16
  %v171 = vunpack.c.h.b16 %v16
  %v172 = vunpack.c.l.b16 %v17
  %v173 = vunpack.c.h.b16 %v17
  %v174 = vunpack.c.l.b16 %v18
  %v175 = vunpack.c.h.b16 %v18
  %v176 = vunpack.c.l.b16 %v19
  %v177 = vunpack.c.h.b16 %v19
  %v178 = vunpack.c.l.b16 %v20
  %v179 = vunpack.c.h.b16 %v20
  %v180 = vunpack.c.l.b16 %v21
  %v181 = vunpack.c.h.b16 %v21
  %v182 = vunpack.c.l.b16 %v22
  %v183 = vunpack.c.h.b16 %v22
  %v184 = vunpack.c.l.b16 %v23
  %v185 = vunpack.c.h.b16 %v23
  %v186 = vunpack.c.l.b16 %v24
  %v187 = vunpack.c.h.b16 %v24
  %v188 = vunpack.c.l.b16 %v25
  %v189 = vunpack.c.h.b16 %v25
  %v190 = vunpack.c.l.b16 %v26
  %v191 = vunpack.c.h.b16 %v26
  %v192 = vunpack.c.l.b16 %v27
  %v193 = vunpack.c.h.b16 %v27
  %v194 = vunpack.c.l.b16 %v28
  %v195 = vunpack.c.h.b16 %v28
  %v196 = vunpack.c.l.b16 %v29
  %v197 = vunpack.c.h.b16 %v29
  %v198 = vunpack.c.l.b16 %v30
  %v199 = vunpack.c.h.b16 %v30
  %v200 = vunpack.c.l.b16 %v31
  %v201 = vunpack.c.h.b16 %v31
  %v202 = vunpack.c.l.b16 %v32
  %v203 = vunpack.c.h.b16 %v32
  %v204 = vunpack.c.l.b16 %v33
  %v205 = vunpack.c.h.b16 %v33
  %v206 = vunpack.c.l.b16 %v34
  %v207 = vunpack.c.h.b16 %v34
  %v208 = vunpack.c.l.b16 %v35
  %v209 = vunpack.c.h.b16 %v35
  %v210 = vunpack.c.l.b16 %v36
  %v211 = vunpack.c.h.b16 %v36
  %v212 = vunpack.c.l.b16 %v37
  %v213 = vunpack.c.h.b16 %v37
  %v214 = vunpack.c.l.b16 %v38
  %v215 = vunpack.c.h.b16 %v38
  %v216 = vunpack.c.l.b16 %v39
  %v217 = vunpack.c.h.b16 %v39
  %v218 = vunpack.c.l.b16 %v40
  %v219 = vunpack.c.h.b16 %v40
  %v220 = vunpack.c.l.b16 %v41
  %v221 = vunpack.c.h.b16 %v41
  %v222 = vunpack.c.l.b16 %v42
  %v223 = vunpack.c.h.b16 %v42
  %v224 = vunpack.c.l.b16 %v43
  %v225 = vunpack.c.h.b16 %v43
  %v226 = vunpack.c.l.b16 %v44
  %v227 = vunpack.c.h.b16 %v44
  %v228 = vunpack.c.l.b16 %v45
  %v229 = vunpack.c.h.b16 %v45
  %v230 = vunpack.c.l.b16 %v46
  %v231 = vunpack.c.h.b16 %v46
  %v232 = vunpack.c.l.b16 %v47
  %v233 = vunpack.c.h.b16 %v47
  %v234 = vunpack.c.l.b16 %v48
  %v235 = vunpack.c.h.b16 %v48
  %v236 = vunpack.c.l.b16 %v49
  %v237 = vunpack.c.h.b16 %v49
  %v238 = vunpack.c.l.b16 %v50
  %v239 = vunpack.c.h.b16 %v50
  %v240 = vunpack.c.l.b16 %v51
  %v241 = vunpack.c.h.b16 %v51
  %v242 = vunpack.c.l.b16 %v52
  %v243 = vunpack.c.h.b16 %v52
  %v244 = vunpack.c.l.b16 %v53
  %v245 = vunpack.c.h.b16 %v53
  %v246 = vunpack.c.l.b16 %v54
  %v247 = vunpack.c.h.b16 %v54
  %v248 = vunpack.c.l.b16 %v55
  %v249 = vunpack.c.h.b16 %v55
  %v250 = vpack.c.b16 %v170, %v166
  %v251 = vpack.c.b16 %v171, %v167
  %v252 = vpack.c.b16 %v172, %v168
  %v253 = vpack.c.b16 %v173, %v169
  %v254 = vpack.c.b16 %v178, %v174
  %v255 = vpack.c.b16 %v179, %v175
  %v256 = vpack.c.b16 %v180, %v176
  %v257 = vpack.c.b16 %v181, %v177
  %v258 = vpack.c.b16 %v186, %v182
  %v259 = vpack.c.b16 %v187, %v183
  %v260 = vpack.c.b16 %v188, %v184
  %v261 = vpack.c.b16 %v189, %v185
  %v262 = vpack.c.b16 %v194, %v190
  %v263 = vpack.c.b16 %v195, %v191
  %v264 = vpack.c.b16 %v196, %v192
  %v265 = vpack.c.b16 %v197, %v193
  %v266 = vpack.c.b16 %v202, %v198
  %v267 = vpack.c.b16 %v203, %v199
  %v268 = vpack.c.b16 %v204, %v200
  %v269 = vpack.c.b16 %v205, %v201
  %v270 = vpack.c.b16 %v210, %v206
  %v271 = vpack.c.b16 %v211, %v207
  %v272 = vpack.c.b16 %v212, %v208
  %v273 = vpack.c.b16 %v213, %v209
  %v274 = vpack.c.b16 %v218, %v214
  %v275 = vpack.c.b16 %v219, %v215
  %v276 = vpack.c.b16 %v220, %v216
  %v277 = vpack.c.b16 %v221, %v217
  %v278 = vpack.c.b16 %v226, %v222
  %v279 = vpack.c.b16 %v227, %v223
  %v280 = vpack.c.b16 %v228, %v224
  %v281 = vpack.c.b16 %v229, %v225
  %v282 = vpack.c.b16 %v234, %v230
  %v283 = vpack.c.b16 %v235, %v231
  %v284 = vpack.c.b16 %v236, %v232
  %v285 = vpack.c.b16 %v237, %v233
  %v286 = vpack.c.b16 %v242, %v238
  %v287 = vpack.c.b16 %v243, %v239
  %v288 = vpack.c.b16 %v244, %v240
  %v289 = vpack.c.b16 %v245, %v241
  %v290 = vpack.c.b16 %v246, %v246
  %v291 = vpack.c.b16 %v247, %v247
  %v292 = vpack.c.b16 %v248, %v248
  %v293 = vpack.c.b16 %v249, %v249
  %v402 = vunpack.c.l.b16 %v56
  %v403 = vunpack.c.l.b16 %v57
  %v404 = vunpack.c.l.b16 %v58
  %v405 = vunpack.c.l.b16 %v59
  %v406 = vunpack.c.l.b16 %v60
  %v407 = vunpack.c.l.b16 %v61
  %v408 = vunpack.c.l.b16 %v62
  %v409 = vunpack.c.l.b16 %v63
  %v410 = vunpack.c.l.b16 %v64
  %v411 = vunpack.c.l.b16 %v65
  %v412 = vunpack.c.l.b16 %v66
  %v413 = vunpack.c.l.b16 %v67
  %v414 = vunpack.c.l.b16 %v68
  %v415 = vunpack.c.l.b16 %v69
  %v416 = vunpack.c.l.b16 %v70
  %v417 = vunpack.c.l.b16 %v71
  %v418 = vunpack.c.l.b16 %v72
  %v419 = vunpack.c.l.b16 %v73
  %v420 = vunpack.c.l.b16 %v74
  %v421 = vunpack.c.l.b16 %v75
  %v422 = vunpack.c.l.b16 %v76
  %v423 = vunpack.c.l.b16 %v77
  %v424 = vunpack.c.l.b16 %v78
  %v425 = vunpack.c.l.b16 %v79
  %v426 = vunpack.c.l.b16 %v80
  %v427 = vunpack.c.l.b16 %v81
  %v428 = vunpack.c.l.b16 %v82
  %v429 = vunpack.c.l.b16 %v83
  %v430 = vunpack.c.l.b16 %v84
  %v431 = vunpack.c.l.b16 %v85
  %v432 = vunpack.c.l.b16 %v86
  %v433 = vunpack.c.l.b16 %v87
  %v434 = vunpack.c.l.b16 %v88
  %v435 = vunpack.c.l.b16 %v89
  %v436 = vunpack.c.l.b16 %v90
  %v437 = vunpack.c.l.b16 %v91
  %v438 = vunpack.c.l.b16 %v92
  %v439 = vunpack.c.l.b16 %v93
  %v440 = vunpack.c.l.b16 %v94
  %v441 = vunpack.c.l.b16 %v95
  %v442 = vunpack.c.l.b16 %v96
  %v443 = vunpack.c.l.b16 %v97
  %v444 = vunpack.c.l.b16 %v98
  %v445 = vunpack.c.l.b16 %v99
  %v446 = vunpack.c.l.b16 %v100
  %v447 = vunpack.c.l.b16 %v101
  %v448 = vunpack.c.l.b16 %v102
  %v449 = vunpack.c.l.b16 %v103
  %v450 = vunpack.c.l.b16 %v104
  %v451 = vunpack.c.l.b16 %v105
  %v452 = vunpack.c.l.b16 %v106
  %v453 = vunpack.c.l.b16 %v107
  %v454 = vunpack.c.l.b16 %v108
  %v455 = vunpack.c.l.b16 %v109
  %v456 = vunpack.c.l.b16 %v110
  %v457 = vunpack.c.l.b16 %v111
  %v458 = vunpack.c.l.b16 %v112
  %v459 = vunpack.c.l.b16 %v113
  %v460 = vunpack.c.l.b16 %v114
  %v461 = vunpack.c.l.b16 %v115
  %v462 = vunpack.c.l.b16 %v116
  %v463 = vunpack.c.l.b16 %v117
  %v464 = vunpack.c.l.b16 %v118
  %v465 = vunpack.c.l.b16 %v119
  %v466 = vpack.c.b16 %v403, %v402
  %v467 = vpack.c.b16 %v405, %v404
  %v468 = vpack.c.b16 %v407, %v406
  %v469 = vpack.c.b16 %v409, %v408
  %v470 = vpack.c.b16 %v411, %v410
  %v471 = vpack.c.b16 %v413, %v412
  %v472 = vpack.c.b16 %v415, %v414
  %v473 = vpack.c.b16 %v417, %v416
  %v474 = vpack.c.b16 %v419, %v418
  %v475 = vpack.c.b16 %v421, %v420
  %v476 = vpack.c.b16 %v423, %v422
  %v477 = vpack.c.b16 %v425, %v424
  %v478 = vpack.c.b16 %v427, %v426
  %v479 = vpack.c.b16 %v429, %v428
  %v480 = vpack.c.b16 %v431, %v430
  %v481 = vpack.c.b16 %v433, %v432
  %v482 = vpack.c.b16 %v435, %v434
  %v483 = vpack.c.b16 %v437, %v436
  %v484 = vpack.c.b16 %v439, %v438
  %v485 = vpack.c.b16 %v441, %v440
  %v486 = vpack.c.b16 %v443, %v442
  %v487 = vpack.c.b16 %v445, %v444
  %v488 = vpack.c.b16 %v447, %v446
  %v489 = vpack.c.b16 %v449, %v448
  %v490 = vpack.c.b16 %v451, %v450
  %v491 = vpack.c.b16 %v453, %v452
  %v492 = vpack.c.b16 %v455, %v454
  %v493 = vpack.c.b16 %v457, %v456
  %v494 = vpack.c.b16 %v459, %v458
  %v495 = vpack.c.b16 %v461, %v460
  %v496 = vpack.c.b16 %v463, %v462
  %v497 = vpack.c.b16 %v465, %v464
  %530 = vmatpush.bf16.msra.mxu0 %v473
  %531 = vmatpush.bf16.msra.mxu0 %v472
  %532 = vmatpush.bf16.msra.mxu0 %v471
  %533 = vmatpush.bf16.msra.mxu0 %v470
  %534 = vmatpush.bf16.msra.mxu0 %v469
  %535 = vmatpush.bf16.msra.mxu0 %v468
  %536 = vmatpush.bf16.msra.mxu0 %v467
  %537 = vmatpush.bf16.msra.mxu0 %v466
  %538 = vmatmul.bf16.gmra.mxu0 %v250
  %v539 = vpop.f32.mrf.mxu0
  %v540 = vadd.f32 %v122, %v539
  %v541 = vpop.f32.mrf.mxu0
  %v542 = vadd.f32 %v122, %v541
  %543 = vmatmul.bf16.gmra.mxu0 %v254
  %v544 = vpop.f32.mrf.mxu0
  %v545 = vadd.f32 %v122, %v544
  %v546 = vpop.f32.mrf.mxu0
  %v547 = vadd.f32 %v122, %v546
  %548 = vmatmul.bf16.gmra.mxu0 %v258
  %v549 = vpop.f32.mrf.mxu0
  %v550 = vadd.f32 %v122, %v549
  %v551 = vpop.f32.mrf.mxu0
  %v552 = vadd.f32 %v122, %v551
  %553 = vmatmul.bf16.gmra.mxu0 %v262
  %v554 = vpop.f32.mrf.mxu0
  %v555 = vadd.f32 %v122, %v554
  %v556 = vpop.f32.mrf.mxu0
  %v557 = vadd.f32 %v122, %v556
  %558 = vmatmul.bf16.gmra.mxu0 %v266
  %v559 = vpop.f32.mrf.mxu0
  %v560 = vadd.f32 %v122, %v559
  %v561 = vpop.f32.mrf.mxu0
  %v562 = vadd.f32 %v122, %v561
  %563 = vmatmul.bf16.gmra.mxu0 %v270
  %v564 = vpop.f32.mrf.mxu0
  %v565 = vadd.f32 %v122, %v564
  %v566 = vpop.f32.mrf.mxu0
  %v567 = vadd.f32 %v122, %v566
  %568 = vmatmul.bf16.gmra.mxu0 %v274
  %v569 = vpop.f32.mrf.mxu0
  %v570 = vadd.f32 %v122, %v569
  %v571 = vpop.f32.mrf.mxu0
  %v572 = vadd.f32 %v122, %v571
  %573 = vmatmul.bf16.gmra.mxu0 %v278
  %v574 = vpop.f32.mrf.mxu0
  %v575 = vadd.f32 %v122, %v574
  %v576 = vpop.f32.mrf.mxu0
  %v577 = vadd.f32 %v122, %v576
  %578 = vmatmul.bf16.gmra.mxu0 %v282
  %v579 = vpop.f32.mrf.mxu0
  %v580 = vadd.f32 %v122, %v579
  %v581 = vpop.f32.mrf.mxu0
  %v582 = vadd.f32 %v122, %v581
  %583 = vmatmul.bf16.gmra.mxu0 %v286
  %v584 = vpop.f32.mrf.mxu0
  %v585 = vadd.f32 %v122, %v584
  %v586 = vpop.f32.mrf.mxu0
  %v587 = vadd.f32 %v122, %v586
  %588 = vmatmul.bf16.gmra.mxu0 %v290
  %v589 = vpop.f32.mrf.mxu0
  %v590 = vadd.f32 %v122, %v589
  %v591 = vpop.f32.mrf.mxu0
  %592 = vdwg.mxu0
  %593 = vmatpush.bf16.msra.mxu0 %v481
  %594 = vmatpush.bf16.msra.mxu0 %v480
  %595 = vmatpush.bf16.msra.mxu0 %v479
  %596 = vmatpush.bf16.msra.mxu0 %v478
  %597 = vmatpush.bf16.msra.mxu0 %v477
  %598 = vmatpush.bf16.msra.mxu0 %v476
  %599 = vmatpush.bf16.msra.mxu0 %v475
  %600 = vmatpush.bf16.msra.mxu0 %v474
  %601 = vmatmul.bf16.gmra.mxu0 %v251
  %v602 = vpop.f32.mrf.mxu0
  %v603 = vadd.f32 %v540, %v602
  %v604 = vpop.f32.mrf.mxu0
  %v605 = vadd.f32 %v542, %v604
  %606 = vmatmul.bf16.gmra.mxu0 %v255
  %v607 = vpop.f32.mrf.mxu0
  %v608 = vadd.f32 %v545, %v607
  %v609 = vpop.f32.mrf.mxu0
  %v610 = vadd.f32 %v547, %v609
  %611 = vmatmul.bf16.gmra.mxu0 %v259
  %v612 = vpop.f32.mrf.mxu0
  %v613 = vadd.f32 %v550, %v612
  %v614 = vpop.f32.mrf.mxu0
  %v615 = vadd.f32 %v552, %v614
  %616 = vmatmul.bf16.gmra.mxu0 %v263
  %v617 = vpop.f32.mrf.mxu0
  %v618 = vadd.f32 %v555, %v617
  %v619 = vpop.f32.mrf.mxu0
  %v620 = vadd.f32 %v557, %v619
  %621 = vmatmul.bf16.gmra.mxu0 %v267
  %v622 = vpop.f32.mrf.mxu0
  %v623 = vadd.f32 %v560, %v622
  %v624 = vpop.f32.mrf.mxu0
  %v625 = vadd.f32 %v562, %v624
  %626 = vmatmul.bf16.gmra.mxu0 %v271
  %v627 = vpop.f32.mrf.mxu0
  %v628 = vadd.f32 %v565, %v627
  %v629 = vpop.f32.mrf.mxu0
  %v630 = vadd.f32 %v567, %v629
  %631 = vmatmul.bf16.gmra.mxu0 %v275
  %v632 = vpop.f32.mrf.mxu0
  %v633 = vadd.f32 %v570, %v632
  %v634 = vpop.f32.mrf.mxu0
  %v635 = vadd.f32 %v572, %v634
  %636 = vmatmul.bf16.gmra.mxu0 %v279
  %v637 = vpop.f32.mrf.mxu0
  %v638 = vadd.f32 %v575, %v637
  %v639 = vpop.f32.mrf.mxu0
  %v640 = vadd.f32 %v577, %v639
  %641 = vmatmul.bf16.gmra.mxu0 %v283
  %v642 = vpop.f32.mrf.mxu0
  %v643 = vadd.f32 %v580, %v642
  %v644 = vpop.f32.mrf.mxu0
  %v645 = vadd.f32 %v582, %v644
  %646 = vmatmul.bf16.gmra.mxu0 %v287
  %v647 = vpop.f32.mrf.mxu0
  %v648 = vadd.f32 %v585, %v647
  %v649 = vpop.f32.mrf.mxu0
  %v650 = vadd.f32 %v587, %v649
  %651 = vmatmul.bf16.gmra.mxu0 %v291
  %v652 = vpop.f32.mrf.mxu0
  %v653 = vadd.f32 %v590, %v652
  %v654 = vpop.f32.mrf.mxu0
  %655 = vdwg.mxu0
  %656 = vmatpush.bf16.msra.mxu0 %v489
  %657 = vmatpush.bf16.msra.mxu0 %v488
  %658 = vmatpush.bf16.msra.mxu0 %v487
  %659 = vmatpush.bf16.msra.mxu0 %v486
  %660 = vmatpush.bf16.msra.mxu0 %v485
  %661 = vmatpush.bf16.msra.mxu0 %v484
  %662 = vmatpush.bf16.msra.mxu0 %v483
  %663 = vmatpush.bf16.msra.mxu0 %v482
  %664 = vmatmul.bf16.gmra.mxu0 %v252
  %v665 = vpop.f32.mrf.mxu0
  %v666 = vadd.f32 %v603, %v665
  %v667 = vpop.f32.mrf.mxu0
  %v668 = vadd.f32 %v605, %v667
  %669 = vmatmul.bf16.gmra.mxu0 %v256
  %v670 = vpop.f32.mrf.mxu0
  %v671 = vadd.f32 %v608, %v670
  %v672 = vpop.f32.mrf.mxu0
  %v673 = vadd.f32 %v610, %v672
  %674 = vmatmul.bf16.gmra.mxu0 %v260
  %v675 = vpop.f32.mrf.mxu0
  %v676 = vadd.f32 %v613, %v675
  %v677 = vpop.f32.mrf.mxu0
  %v678 = vadd.f32 %v615, %v677
  %679 = vmatmul.bf16.gmra.mxu0 %v264
  %v680 = vpop.f32.mrf.mxu0
  %v681 = vadd.f32 %v618, %v680
  %v682 = vpop.f32.mrf.mxu0
  %v683 = vadd.f32 %v620, %v682
  %684 = vmatmul.bf16.gmra.mxu0 %v268
  %v685 = vpop.f32.mrf.mxu0
  %v686 = vadd.f32 %v623, %v685
  %v687 = vpop.f32.mrf.mxu0
  %v688 = vadd.f32 %v625, %v687
  %689 = vmatmul.bf16.gmra.mxu0 %v272
  %v690 = vpop.f32.mrf.mxu0
  %v691 = vadd.f32 %v628, %v690
  %v692 = vpop.f32.mrf.mxu0
  %v693 = vadd.f32 %v630, %v692
  %694 = vmatmul.bf16.gmra.mxu0 %v276
  %v695 = vpop.f32.mrf.mxu0
  %v696 = vadd.f32 %v633, %v695
  %v697 = vpop.f32.mrf.mxu0
  %v698 = vadd.f32 %v635, %v697
  %699 = vmatmul.bf16.gmra.mxu0 %v280
  %v700 = vpop.f32.mrf.mxu0
  %v701 = vadd.f32 %v638, %v700
  %v702 = vpop.f32.mrf.mxu0
  %v703 = vadd.f32 %v640, %v702
  %704 = vmatmul.bf16.gmra.mxu0 %v284
  %v705 = vpop.f32.mrf.mxu0
  %v706 = vadd.f32 %v643, %v705
  %v707 = vpop.f32.mrf.mxu0
  %v708 = vadd.f32 %v645, %v707
  %709 = vmatmul.bf16.gmra.mxu0 %v288
  %v710 = vpop.f32.mrf.mxu0
  %v711 = vadd.f32 %v648, %v710
  %v712 = vpop.f32.mrf.mxu0
  %v713 = vadd.f32 %v650, %v712
  %714 = vmatmul.bf16.gmra.mxu0 %v292
  %v715 = vpop.f32.mrf.mxu0
  %v716 = vadd.f32 %v653, %v715
  %v717 = vpop.f32.mrf.mxu0
  %718 = vdwg.mxu0
  %719 = vmatpush.bf16.msra.mxu0 %v497
  %720 = vmatpush.bf16.msra.mxu0 %v496
  %721 = vmatpush.bf16.msra.mxu0 %v495
  %722 = vmatpush.bf16.msra.mxu0 %v494
  %723 = vmatpush.bf16.msra.mxu0 %v493
  %724 = vmatpush.bf16.msra.mxu0 %v492
  %725 = vmatpush.bf16.msra.mxu0 %v491
  %726 = vmatpush.bf16.msra.mxu0 %v490
  %727 = vmatmul.bf16.gmra.mxu0 %v253
  %v728 = vpop.f32.mrf.mxu0
  %v729 = vadd.f32 %v666, %v728
  %v730 = vpop.f32.mrf.mxu0
  %v731 = vadd.f32 %v668, %v730
  %732 = vmatmul.bf16.gmra.mxu0 %v257
  %v733 = vpop.f32.mrf.mxu0
  %v734 = vadd.f32 %v671, %v733
  %v735 = vpop.f32.mrf.mxu0
  %v736 = vadd.f32 %v673, %v735
  %737 = vmatmul.bf16.gmra.mxu0 %v261
  %v738 = vpop.f32.mrf.mxu0
  %v739 = vadd.f32 %v676, %v738
  %v740 = vpop.f32.mrf.mxu0
  %v741 = vadd.f32 %v678, %v740
  %742 = vmatmul.bf16.gmra.mxu0 %v265
  %v743 = vpop.f32.mrf.mxu0
  %v744 = vadd.f32 %v681, %v743
  %v745 = vpop.f32.mrf.mxu0
  %v746 = vadd.f32 %v683, %v745
  %747 = vmatmul.bf16.gmra.mxu0 %v269
  %v748 = vpop.f32.mrf.mxu0
  %v749 = vadd.f32 %v686, %v748
  %v750 = vpop.f32.mrf.mxu0
  %v751 = vadd.f32 %v688, %v750
  %752 = vmatmul.bf16.gmra.mxu0 %v273
  %v753 = vpop.f32.mrf.mxu0
  %v754 = vadd.f32 %v691, %v753
  %v755 = vpop.f32.mrf.mxu0
  %v756 = vadd.f32 %v693, %v755
  %757 = vmatmul.bf16.gmra.mxu0 %v277
  %v758 = vpop.f32.mrf.mxu0
  %v759 = vadd.f32 %v696, %v758
  %v760 = vpop.f32.mrf.mxu0
  %v761 = vadd.f32 %v698, %v760
  %762 = vmatmul.bf16.gmra.mxu0 %v281
  %v763 = vpop.f32.mrf.mxu0
  %v764 = vadd.f32 %v701, %v763
  %v765 = vpop.f32.mrf.mxu0
  %v766 = vadd.f32 %v703, %v765
  %767 = vmatmul.bf16.gmra.mxu0 %v285
  %v768 = vpop.f32.mrf.mxu0
  %v769 = vadd.f32 %v706, %v768
  %v770 = vpop.f32.mrf.mxu0
  %v771 = vadd.f32 %v708, %v770
  %772 = vmatmul.bf16.gmra.mxu0 %v289
  %v773 = vpop.f32.mrf.mxu0
  %v774 = vadd.f32 %v711, %v773
  %v775 = vpop.f32.mrf.mxu0
  %v776 = vadd.f32 %v713, %v775
  %777 = vmatmul.bf16.gmra.mxu0 %v293
  %v778 = vpop.f32.mrf.mxu0
  %v779 = vadd.f32 %v716, %v778
  %v780 = vpop.f32.mrf.mxu0
  %781 = vdwg.mxu0
  %v782 = vmax.f32 %v729, 0.0
  %v783 = vmax.f32 %v731, 0.0
  %v784 = vmax.f32 %v734, 0.0
  %v785 = vmax.f32 %v736, 0.0
  %v786 = vmax.f32 %v739, 0.0
  %v787 = vmax.f32 %v741, 0.0
  %v788 = vmax.f32 %v744, 0.0
  %v789 = vmax.f32 %v746, 0.0
  %v790 = vmax.f32 %v749, 0.0
  %v791 = vmax.f32 %v751, 0.0
  %v792 = vmax.f32 %v754, 0.0
  %v793 = vmax.f32 %v756, 0.0
  %v794 = vmax.f32 %v759, 0.0
  %v795 = vmax.f32 %v761, 0.0
  %v796 = vmax.f32 %v764, 0.0
  %v797 = vmax.f32 %v766, 0.0
  %v798 = vmax.f32 %v769, 0.0
  %v799 = vmax.f32 %v771, 0.0
  %v800 = vmax.f32 %v774, 0.0
  %v801 = vmax.f32 %v776, 0.0
  %v802 = vmax.f32 %v779, 0.0
  %v803 = vpack.c.bf16 %v782, %v782
  %v804 = vpack.c.bf16 %v783, %v783
  %v805 = vpack.c.bf16 %v784, %v784
  %v806 = vpack.c.bf16 %v785, %v785
  %v807 = vpack.c.bf16 %v786, %v786
  %v808 = vpack.c.bf16 %v787, %v787
  %v809 = vpack.c.bf16 %v788, %v788
  %v810 = vpack.c.bf16 %v789, %v789
  %v811 = vpack.c.bf16 %v790, %v790
  %v812 = vpack.c.bf16 %v791, %v791
  %v813 = vpack.c.bf16 %v792, %v792
  %v814 = vpack.c.bf16 %v793, %v793
  %v815 = vpack.c.bf16 %v794, %v794
  %v816 = vpack.c.bf16 %v795, %v795
  %v817 = vpack.c.bf16 %v796, %v796
  %v818 = vpack.c.bf16 %v797, %v797
  %v819 = vpack.c.bf16 %v798, %v798
  %v820 = vpack.c.bf16 %v799, %v799
  %v821 = vpack.c.bf16 %v800, %v800
  %v822 = vpack.c.bf16 %v801, %v801
  %v823 = vpack.c.bf16 %v802, %v802
  %vm824 = vcmask 519168
  %825 = vst.msk [vmem:[%s3] sm:$0xf] %vm824, %v803
  %826 = vst.msk [vmem:[%s3 + $0x4] sm:$0xf] %vm824, %v804
  %827 = vst.msk [vmem:[%s3 + $0x8] sm:$0xf] %vm824, %v805
  %828 = vst.msk [vmem:[%s3 + $0xc] sm:$0xf] %vm824, %v806
  %829 = vst.msk [vmem:[%s3 + $0x10] sm:$0xf] %vm824, %v807
  %830 = vst.msk [vmem:[%s3 + $0x14] sm:$0xf] %vm824, %v808
  %831 = vst.msk [vmem:[%s3 + $0x18] sm:$0xf] %vm824, %v809
  %832 = vst.msk [vmem:[%s3 + $0x1c] sm:$0xf] %vm824, %v810
  %833 = vst.msk [vmem:[%s3 + $0x20] sm:$0xf] %vm824, %v811
  %834 = vst.msk [vmem:[%s3 + $0x24] sm:$0xf] %vm824, %v812
  %835 = vst.msk [vmem:[%s3 + $0x28] sm:$0xf] %vm824, %v813
  %836 = vst.msk [vmem:[%s3 + $0x2c] sm:$0xf] %vm824, %v814
  %837 = vst.msk [vmem:[%s3 + $0x30] sm:$0xf] %vm824, %v815
  %838 = vst.msk [vmem:[%s3 + $0x34] sm:$0xf] %vm824, %v816
  %839 = vst.msk [vmem:[%s3 + $0x38] sm:$0xf] %vm824, %v817
  %840 = vst.msk [vmem:[%s3 + $0x3c] sm:$0xf] %vm824, %v818
  %841 = vst.msk [vmem:[%s3 + $0x40] sm:$0xf] %vm824, %v819
  %842 = vst.msk [vmem:[%s3 + $0x44] sm:$0xf] %vm824, %v820
  %843 = vst.msk [vmem:[%s3 + $0x48] sm:$0xf] %vm824, %v821
  %844 = vst.msk [vmem:[%s3 + $0x4c] sm:$0xf] %vm824, %v822
  %vm845 = vcmask 516096
  %846 = vst.msk [vmem:[%s3 + $0x50] sm:$0x1] %vm845, %v823
  // Predicated region
  $region14: #{dqn_forward.4} parent=0 // pred_check
    _
  $region15: #{dqn_forward.4} parent=0 // pred_check_branch
    %848 = sbr.rel (0) target = $region17
  $region16: #{dqn_forward.4} parent=0 // pred_region
    _
  $region17: #{dqn_forward.4} parent=0 // pred_fallthru
    _
  // Predicated region
  $region18: #{dqn_forward.4} parent=0 // pred_check
    _
  $region19: #{dqn_forward.4} parent=0 // pred_check_branch
    %850 = sbr.rel (0) target = $region21
  $region20: #{dqn_forward.4} parent=0 // pred_region
    _
  $region21: #{dqn_forward.4} parent=0 // pred_fallthru
    _

// kernel: dqn_forward.5
$region0: #{dqn_forward.5}
  #allocation0 [shape = 'u32[]', space=smem, size = 0x4, offset = 0x4, fixed_abs, tag = 'smem constant byte address 0x4 - core index']
  #allocation1 [shape = 'u32[72,128]{1,0:T(1,128)}', space=vmem, size = 0x9000, scoped, tag = 'internal scratch']
  %s0 = inlined_call_operand.vmem [shape: bf16[98,576], index: 0, kind: input, shape index: {}]
  %s1 = inlined_call_operand.vmem [shape: bf16[576,64], index: 1, kind: input, shape index: {}]
  %s2 = inlined_call_operand.vmem [shape: f32[1,64], index: 2, kind: input, shape index: {}]
  %s3 = inlined_call_operand.vmem [shape: bf16[49,64,512], index: 3, kind: input, shape index: {}]
  %s4 = inlined_call_operand.vmem [shape: f32[1,512], index: 4, kind: input, shape index: {}]
  %s5 = inlined_call_operand.vmem [shape: bf16[512,128], index: 5, kind: input, shape index: {}]
  %s6 = inlined_call_operand.vmem [shape: f32[1,128], index: 6, kind: input, shape index: {}]
  %s7 = inlined_call_operand.hbm [shape: f32[2,128], index: 7, kind: output, shape index: {}]
  %s8 = sld [smem:[#allocation0]]
  $region38: #{dqn_forward.5} parent=0
    _
  %s10 = ssub.s32 1, %s8
  %s11 = scalar_select 0, %s10, %s8
  $region1: #{dqn_forward.5} parent=0
    #allocation2 [shape = 'u8[1024]{0}', space=vmem, size = 0x400, scoped, tag = 'output window, operand 0, single buffered']
    #allocation3 [shape = 's32[1]{0}', space=sflag, size = 0x4, scoped, tag = 'scoped memory for dqn_forward.5']
    %12 = vsyncpa [#allocation3], 0
    // Predicated region
    $region2: #{dqn_forward.5} parent=1 // pred_check
      _
    $region3: #{dqn_forward.5} parent=1 // pred_check_branch
      %14 = sbr.rel (0) target = $region5
    $region4: #{dqn_forward.5} parent=1 // pred_region
      _
    $region5: #{dqn_forward.5} parent=1 // pred_fallthru
      _
    // Predicated region
    $region6: #{dqn_forward.5} parent=1 // pred_check
      _
    $region7: #{dqn_forward.5} parent=1 // pred_check_branch
      %16 = sbr.rel (0) target = $region9
    $region8: #{dqn_forward.5} parent=1 // pred_region
      _
    $region9: #{dqn_forward.5} parent=1 // pred_fallthru
      _
    // Predicated region
    $region10: #{dqn_forward.5} parent=1 // pred_check
      _
    $region11: #{dqn_forward.5} parent=1 // pred_check_branch
      %18 = sbr.rel (0) target = $region13
    $region12: #{dqn_forward.5} parent=1 // pred_region
      _
    $region13: #{dqn_forward.5} parent=1 // pred_fallthru
      _
    // Predicated region
    $region14: #{dqn_forward.5} parent=1 // pred_check
      _
    $region15: #{dqn_forward.5} parent=1 // pred_check_branch
      %20 = sbr.rel (0) target = $region17
    $region16: #{dqn_forward.5} parent=1 // pred_region
      _
    $region17: #{dqn_forward.5} parent=1 // pred_fallthru
      _
    // Predicated region
    $region18: #{dqn_forward.5} parent=1 // pred_check
      _
    $region19: #{dqn_forward.5} parent=1 // pred_check_branch
      %22 = sbr.rel (0) target = $region21
    $region20: #{dqn_forward.5} parent=1 // pred_region
      _
    $region21: #{dqn_forward.5} parent=1 // pred_fallthru
      _
    // Predicated region
    $region22: #{dqn_forward.5} parent=1 // pred_check
      _
    $region23: #{dqn_forward.5} parent=1 // pred_check_branch
      %24 = sbr.rel (0) target = $region25
    $region24: #{dqn_forward.5} parent=1 // pred_region
      _
    $region25: #{dqn_forward.5} parent=1 // pred_fallthru
      _
    // Predicated region
    $region26: #{dqn_forward.5} parent=1 // pred_check
      _
    $region27: #{dqn_forward.5} parent=1 // pred_check_branch
      %26 = sbr.rel (0) target = $region29
    $region28: #{dqn_forward.5} parent=1 // pred_region
      _
    $region29: #{dqn_forward.5} parent=1 // pred_fallthru
      _
    %v28 = vld [vmem:[%s0] sm:$0xff]
    %v29 = vld [vmem:[%s0 + $0x8] sm:$0xff]
    %v30 = vld [vmem:[%s0 + $0x10] sm:$0xf]
    %v31 = vld [vmem:[%s0 + $0x14] sm:$0xff]
    %v32 = vld [vmem:[%s0 + $0x1c] sm:$0xff]
    %v33 = vld [vmem:[%s0 + $0x24] sm:$0xf]
    %v34 = vld [vmem:[%s0 + $0x28] sm:$0xff]
    %v35 = vld [vmem:[%s0 + $0x30] sm:$0xff]
    %v36 = vld [vmem:[%s0 + $0x38] sm:$0xf]
    %v37 = vld [vmem:[%s0 + $0x3c] sm:$0xff]
    %v38 = vld [vmem:[%s0 + $0x44] sm:$0xff]
    %v39 = vld [vmem:[%s0 + $0x4c] sm:$0xf]
    %v40 = vld [vmem:[%s0 + $0x50] sm:$0xff]
    %v41 = vld [vmem:[%s0 + $0x58] sm:$0xff]
    %v42 = vld [vmem:[%s0 + $0x60] sm:$0xf]
    %v43 = vld [vmem:[%s0 + $0x64] sm:$0xff]
    %v44 = vld [vmem:[%s0 + $0x6c] sm:$0xff]
    %v45 = vld [vmem:[%s0 + $0x74] sm:$0xf]
    %v46 = vld [vmem:[%s0 + $0x78] sm:$0xff]
    %v47 = vld [vmem:[%s0 + $0x80] sm:$0xff]
    %v48 = vld [vmem:[%s0 + $0x88] sm:$0xf]
    %v49 = vld [vmem:[%s0 + $0x8c] sm:$0xff]
    %v50 = vld [vmem:[%s0 + $0x94] sm:$0xff]
    %v51 = vld [vmem:[%s0 + $0x9c] sm:$0xf]
    %v52 = vld [vmem:[%s0 + $0xa0] sm:$0xff]
    %v53 = vld [vmem:[%s0 + $0xa8] sm:$0xff]
    %v54 = vld [vmem:[%s0 + $0xb0] sm:$0xf]
    %v55 = vld [vmem:[%s0 + $0xb4] sm:$0xff]
    %v56 = vld [vmem:[%s0 + $0xbc] sm:$0xff]
    %v57 = vld [vmem:[%s0 + $0xc4] sm:$0xf]
    %v58 = vld [vmem:[%s0 + $0xc8] sm:$0xff]
    %v59 = vld [vmem:[%s0 + $0xd0] sm:$0xff]
    %v60 = vld [vmem:[%s0 + $0xd8] sm:$0xf]
    %v61 = vld [vmem:[%s0 + $0xdc] sm:$0xff]
    %v62 = vld [vmem:[%s0 + $0xe4] sm:$0xff]
    %v63 = vld [vmem:[%s0 + $0xec] sm:$0xf]
    %v64 = vld [vmem:[%s0 + $0xf0] sm:$0x11]
    %v65 = vld [vmem:[%s0 + $0xf8] sm:$0x11]
    %v66 = vld [vmem:[%s0 + $0x100] sm:$0x1]
    %v67 = vld [vmem:[%s1] sm:$0xf]
    %v68 = vld [vmem:[%s1 + $0x4] sm:$0xf]
    %v69 = vld [vmem:[%s1 + $0x8] sm:$0xf]
    %v70 = vld [vmem:[%s1 + $0xc] sm:$0xf]
    %v71 = vld [vmem:[%s1 + $0x10] sm:$0xf]
    %v72 = vld [vmem:[%s1 + $0x14] sm:$0xf]
    %v73 = vld [vmem:[%s1 + $0x18] sm:$0xf]
    %v74 = vld [vmem:[%s1 + $0x1c] sm:$0xf]
    %v75 = vld [vmem:[%s1 + $0x20] sm:$0xf]
    %v76 = vld [vmem:[%s1 + $0x24] sm:$0xf]
    %v77 = vld [vmem:[%s1 + $0x28] sm:$0xf]
    %v78 = vld [vmem:[%s1 + $0x2c] sm:$0xf]
    %v79 = vld [vmem:[%s1 + $0x30] sm:$0xf]
    %v80 = vld [vmem:[%s1 + $0x34] sm:$0xf]
    %v81 = vld [vmem:[%s1 + $0x38] sm:$0xf]
    %v82 = vld [vmem:[%s1 + $0x3c] sm:$0xf]
    %v83 = vld [vmem:[%s1 + $0x40] sm:$0xf]
    %v84 = vld [vmem:[%s1 + $0x44] sm:$0xf]
    %v85 = vld [vmem:[%s1 + $0x48] sm:$0xf]
    %v86 = vld [vmem:[%s1 + $0x4c] sm:$0xf]
    %v87 = vld [vmem:[%s1 + $0x50] sm:$0xf]
    %v88 = vld [vmem:[%s1 + $0x54] sm:$0xf]
    %v89 = vld [vmem:[%s1 + $0x58] sm:$0xf]
    %v90 = vld [vmem:[%s1 + $0x5c] sm:$0xf]
    %v91 = vld [vmem:[%s1 + $0x60] sm:$0xf]
    %v92 = vld [vmem:[%s1 + $0x64] sm:$0xf]
    %v93 = vld [vmem:[%s1 + $0x68] sm:$0xf]
    %v94 = vld [vmem:[%s1 + $0x6c] sm:$0xf]
    %v95 = vld [vmem:[%s1 + $0x70] sm:$0xf]
    %v96 = vld [vmem:[%s1 + $0x74] sm:$0xf]
    %v97 = vld [vmem:[%s1 + $0x78] sm:$0xf]
    %v98 = vld [vmem:[%s1 + $0x7c] sm:$0xf]
    %v99 = vld [vmem:[%s1 + $0x80] sm:$0xf]
    %v100 = vld [vmem:[%s1 + $0x84] sm:$0xf]
    %v101 = vld [vmem:[%s1 + $0x88] sm:$0xf]
    %v102 = vld [vmem:[%s1 + $0x8c] sm:$0xf]
    %v103 = vld [vmem:[%s1 + $0x90] sm:$0xf]
    %v104 = vld [vmem:[%s1 + $0x94] sm:$0xf]
    %v105 = vld [vmem:[%s1 + $0x98] sm:$0xf]
    %v106 = vld [vmem:[%s1 + $0x9c] sm:$0xf]
    %v107 = vld [vmem:[%s1 + $0xa0] sm:$0xf]
    %v108 = vld [vmem:[%s1 + $0xa4] sm:$0xf]
    %v109 = vld [vmem:[%s1 + $0xa8] sm:$0xf]
    %v110 = vld [vmem:[%s1 + $0xac] sm:$0xf]
    %v111 = vld [vmem:[%s1 + $0xb0] sm:$0xf]
    %v112 = vld [vmem:[%s1 + $0xb4] sm:$0xf]
    %v113 = vld [vmem:[%s1 + $0xb8] sm:$0xf]
    %v114 = vld [vmem:[%s1 + $0xbc] sm:$0xf]
    %v115 = vld [vmem:[%s1 + $0xc0] sm:$0xf]
    %v116 = vld [vmem:[%s1 + $0xc4] sm:$0xf]
    %v117 = vld [vmem:[%s1 + $0xc8] sm:$0xf]
    %v118 = vld [vmem:[%s1 + $0xcc] sm:$0xf]
    %v119 = vld [vmem:[%s1 + $0xd0] sm:$0xf]
    %v120 = vld [vmem:[%s1 + $0xd4] sm:$0xf]
    %v121 = vld [vmem:[%s1 + $0xd8] sm:$0xf]
    %v122 = vld [vmem:[%s1 + $0xdc] sm:$0xf]
    %v123 = vld [vmem:[%s1 + $0xe0] sm:$0xf]
    %v124 = vld [vmem:[%s1 + $0xe4] sm:$0xf]
    %v125 = vld [vmem:[%s1 + $0xe8] sm:$0xf]
    %v126 = vld [vmem:[%s1 + $0xec] sm:$0xf]
    %v127 = vld [vmem:[%s1 + $0xf0] sm:$0xf]
    %v128 = vld [vmem:[%s1 + $0xf4] sm:$0xf]
    %v129 = vld [vmem:[%s1 + $0xf8] sm:$0xf]
    %v130 = vld [vmem:[%s1 + $0xfc] sm:$0xf]
    %v131 = vld [vmem:[%s1 + $0x100] sm:$0xf]
    %v132 = vld [vmem:[%s1 + $0x104] sm:$0xf]
    %v133 = vld [vmem:[%s1 + $0x108] sm:$0xf]
    %v134 = vld [vmem:[%s1 + $0x10c] sm:$0xf]
    %v135 = vld [vmem:[%s1 + $0x110] sm:$0xf]
    %v136 = vld [vmem:[%s1 + $0x114] sm:$0xf]
    %v137 = vld [vmem:[%s1 + $0x118] sm:$0xf]
    %v138 = vld [vmem:[%s1 + $0x11c] sm:$0xf]
    %v139 = vld [vmem:[%s2] sm:$0x1]
    %v141 = vperm.slane %v139, 0
    %v182 = vunpack.c.l.b16 %v28
    %v183 = vunpack.c.h.b16 %v28
    %v184 = vunpack.c.l.b16 %v29
    %v185 = vunpack.c.h.b16 %v29
    %v186 = vunpack.c.l.b16 %v30
    %v187 = vunpack.c.l.b16 %v31
    %v188 = vunpack.c.h.b16 %v31
    %v189 = vunpack.c.l.b16 %v32
    %v190 = vunpack.c.h.b16 %v32
    %v191 = vunpack.c.l.b16 %v33
    %v192 = vunpack.c.l.b16 %v34
    %v193 = vunpack.c.h.b16 %v34
    %v194 = vunpack.c.l.b16 %v35
    %v195 = vunpack.c.h.b16 %v35
    %v196 = vunpack.c.l.b16 %v36
    %v197 = vunpack.c.l.b16 %v37
    %v198 = vunpack.c.h.b16 %v37
    %v199 = vunpack.c.l.b16 %v38
    %v200 = vunpack.c.h.b16 %v38
    %v201 = vunpack.c.l.b16 %v39
    %v202 = vunpack.c.l.b16 %v40
    %v203 = vunpack.c.h.b16 %v40
    %v204 = vunpack.c.l.b16 %v41
    %v205 = vunpack.c.h.b16 %v41
    %v206 = vunpack.c.l.b16 %v42
    %v207 = vunpack.c.l.b16 %v43
    %v208 = vunpack.c.h.b16 %v43
    %v209 = vunpack.c.l.b16 %v44
    %v210 = vunpack.c.h.b16 %v44
    %v211 = vunpack.c.l.b16 %v45
    %v212 = vunpack.c.l.b16 %v46
    %v213 = vunpack.c.h.b16 %v46
    %v214 = vunpack.c.l.b16 %v47
    %v215 = vunpack.c.h.b16 %v47
    %v216 = vunpack.c.l.b16 %v48
    %v217 = vunpack.c.l.b16 %v49
    %v218 = vunpack.c.h.b16 %v49
    %v219 = vunpack.c.l.b16 %v50
    %v220 = vunpack.c.h.b16 %v50
    %v221 = vunpack.c.l.b16 %v51
    %v222 = vunpack.c.l.b16 %v52
    %v223 = vunpack.c.h.b16 %v52
    %v224 = vunpack.c.l.b16 %v53
    %v225 = vunpack.c.h.b16 %v53
    %v226 = vunpack.c.l.b16 %v54
    %v227 = vunpack.c.l.b16 %v55
    %v228 = vunpack.c.h.b16 %v55
    %v229 = vunpack.c.l.b16 %v56
    %v230 = vunpack.c.h.b16 %v56
    %v231 = vunpack.c.l.b16 %v57
    %v232 = vunpack.c.l.b16 %v58
    %v233 = vunpack.c.h.b16 %v58
    %v234 = vunpack.c.l.b16 %v59
    %v235 = vunpack.c.h.b16 %v59
    %v236 = vunpack.c.l.b16 %v60
    %v237 = vunpack.c.l.b16 %v61
    %v238 = vunpack.c.h.b16 %v61
    %v239 = vunpack.c.l.b16 %v62
    %v240 = vunpack.c.h.b16 %v62
    %v241 = vunpack.c.l.b16 %v63
    %v242 = vunpack.c.l.b16 %v64
    %v243 = vunpack.c.h.b16 %v64
    %v244 = vunpack.c.l.b16 %v65
    %v245 = vunpack.c.h.b16 %v65
    %v246 = vunpack.c.l.b16 %v66
    %v247 = vpack.c.b16 %v187, %v182
    %v248 = vpack.c.b16 %v188, %v183
    %v249 = vpack.c.b16 %v189, %v184
    %v250 = vpack.c.b16 %v190, %v185
    %v251 = vpack.c.b16 %v191, %v186
    %v252 = vpack.c.b16 %v197, %v192
    %v253 = vpack.c.b16 %v198, %v193
    %v254 = vpack.c.b16 %v199, %v194
    %v255 = vpack.c.b16 %v200, %v195
    %v256 = vpack.c.b16 %v201, %v196
    %v257 = vpack.c.b16 %v207, %v202
    %v258 = vpack.c.b16 %v208, %v203
    %v259 = vpack.c.b16 %v209, %v204
    %v260 = vpack.c.b16 %v210, %v205
    %v261 = vpack.c.b16 %v211, %v206
    %v262 = vpack.c.b16 %v217, %v212
    %v263 = vpack.c.b16 %v218, %v213
    %v264 = vpack.c.b16 %v219, %v214
    %v265 = vpack.c.b16 %v220, %v215
    %v266 = vpack.c.b16 %v221, %v216
    %v267 = vpack.c.b16 %v227, %v222
    %v268 = vpack.c.b16 %v228, %v223
    %v269 = vpack.c.b16 %v229, %v224
    %v270 = vpack.c.b16 %v230, %v225
    %v271 = vpack.c.b16 %v231, %v226
    %v272 = vpack.c.b16 %v237, %v232
    %v273 = vpack.c.b16 %v238, %v233
    %v274 = vpack.c.b16 %v239, %v234
    %v275 = vpack.c.b16 %v240, %v235
    %v276 = vpack.c.b16 %v241, %v236
    %v277 = vpack.c.b16 %v242, %v242
    %v278 = vpack.c.b16 %v243, %v243
    %v279 = vpack.c.b16 %v244, %v244
    %v280 = vpack.c.b16 %v245, %v245
    %v281 = vpack.c.b16 %v246, %v246
    %v382 = vunpack.c.l.b16 %v67
    %v383 = vunpack.c.l.b16 %v68
    %v384 = vunpack.c.l.b16 %v69
    %v385 = vunpack.c.l.b16 %v70
    %v386 = vunpack.c.l.b16 %v71
    %v387 = vunpack.c.l.b16 %v72
    %v388 = vunpack.c.l.b16 %v73
    %v389 = vunpack.c.l.b16 %v74
    %v390 = vunpack.c.l.b16 %v75
    %v391 = vunpack.c.l.b16 %v76
    %v392 = vunpack.c.l.b16 %v77
    %v393 = vunpack.c.l.b16 %v78
    %v394 = vunpack.c.l.b16 %v79
    %v395 = vunpack.c.l.b16 %v80
    %v396 = vunpack.c.l.b16 %v81
    %v397 = vunpack.c.l.b16 %v82
    %v398 = vunpack.c.l.b16 %v83
    %v399 = vunpack.c.l.b16 %v84
    %v400 = vunpack.c.l.b16 %v85
    %v401 = vunpack.c.l.b16 %v86
    %v402 = vunpack.c.l.b16 %v87
    %v403 = vunpack.c.l.b16 %v88
    %v404 = vunpack.c.l.b16 %v89
    %v405 = vunpack.c.l.b16 %v90
    %v406 = vunpack.c.l.b16 %v91
    %v407 = vunpack.c.l.b16 %v92
    %v408 = vunpack.c.l.b16 %v93
    %v409 = vunpack.c.l.b16 %v94
    %v410 = vunpack.c.l.b16 %v95
    %v411 = vunpack.c.l.b16 %v96
    %v412 = vunpack.c.l.b16 %v97
    %v413 = vunpack.c.l.b16 %v98
    %v414 = vunpack.c.l.b16 %v99
    %v415 = vunpack.c.l.b16 %v100
    %v416 = vunpack.c.l.b16 %v101
    %v417 = vunpack.c.l.b16 %v102
    %v418 = vunpack.c.l.b16 %v103
    %v419 = vunpack.c.l.b16 %v104
    %v420 = vunpack.c.l.b16 %v105
    %v421 = vunpack.c.l.b16 %v106
    %v422 = vunpack.c.l.b16 %v107
    %v423 = vunpack.c.l.b16 %v108
    %v424 = vunpack.c.l.b16 %v109
    %v425 = vunpack.c.l.b16 %v110
    %v426 = vunpack.c.l.b16 %v111
    %v427 = vunpack.c.l.b16 %v112
    %v428 = vunpack.c.l.b16 %v113
    %v429 = vunpack.c.l.b16 %v114
    %v430 = vunpack.c.l.b16 %v115
    %v431 = vunpack.c.l.b16 %v116
    %v432 = vunpack.c.l.b16 %v117
    %v433 = vunpack.c.l.b16 %v118
    %v434 = vunpack.c.l.b16 %v119
    %v435 = vunpack.c.l.b16 %v120
    %v436 = vunpack.c.l.b16 %v121
    %v437 = vunpack.c.l.b16 %v122
    %v438 = vunpack.c.l.b16 %v123
    %v439 = vunpack.c.l.b16 %v124
    %v440 = vunpack.c.l.b16 %v125
    %v441 = vunpack.c.l.b16 %v126
    %v442 = vunpack.c.l.b16 %v127
    %v443 = vunpack.c.l.b16 %v128
    %v444 = vunpack.c.l.b16 %v129
    %v445 = vunpack.c.l.b16 %v130
    %v446 = vunpack.c.l.b16 %v131
    %v447 = vunpack.c.l.b16 %v132
    %v448 = vunpack.c.l.b16 %v133
    %v449 = vunpack.c.l.b16 %v134
    %v450 = vunpack.c.l.b16 %v135
    %v451 = vunpack.c.l.b16 %v136
    %v452 = vunpack.c.l.b16 %v137
    %v453 = vunpack.c.l.b16 %v138
    %v454 = vpack.c.b16 %v383, %v382
    %v455 = vpack.c.b16 %v385, %v384
    %v456 = vpack.c.b16 %v387, %v386
    %v457 = vpack.c.b16 %v389, %v388
    %v458 = vpack.c.b16 %v391, %v390
    %v459 = vpack.c.b16 %v393, %v392
    %v460 = vpack.c.b16 %v395, %v394
    %v461 = vpack.c.b16 %v397, %v396
    %v462 = vpack.c.b16 %v399, %v398
    %v463 = vpack.c.b16 %v401, %v400
    %v464 = vpack.c.b16 %v403, %v402
    %v465 = vpack.c.b16 %v405, %v404
    %v466 = vpack.c.b16 %v407, %v406
    %v467 = vpack.c.b16 %v409, %v408
    %v468 = vpack.c.b16 %v411, %v410
    %v469 = vpack.c.b16 %v413, %v412
    %v470 = vpack.c.b16 %v415, %v414
    %v471 = vpack.c.b16 %v417, %v416
    %v472 = vpack.c.b16 %v419, %v418
    %v473 = vpack.c.b16 %v421, %v420
    %v474 = vpack.c.b16 %v423, %v422
    %v475 = vpack.c.b16 %v425, %v424
    %v476 = vpack.c.b16 %v427, %v426
    %v477 = vpack.c.b16 %v429, %v428
    %v478 = vpack.c.b16 %v431, %v430
    %v479 = vpack.c.b16 %v433, %v432
    %v480 = vpack.c.b16 %v435, %v434
    %v481 = vpack.c.b16 %v437, %v436
    %v482 = vpack.c.b16 %v439, %v438
    %v483 = vpack.c.b16 %v441, %v440
    %v484 = vpack.c.b16 %v443, %v442
    %v485 = vpack.c.b16 %v445, %v444
    %v486 = vpack.c.b16 %v447, %v446
    %v487 = vpack.c.b16 %v449, %v448
    %v488 = vpack.c.b16 %v451, %v450
    %v489 = vpack.c.b16 %v453, %v452
    %vm526 = vcmask 523264
    %v528 = vsel %vm526, %v251, 0
    %v531 = vsel %vm526, %v256, 0
    %v534 = vsel %vm526, %v261, 0
    %v537 = vsel %vm526, %v266, 0
    %v540 = vsel %vm526, %v271, 0
    %v543 = vsel %vm526, %v276, 0
    %v546 = vsel %vm526, %v281, 0
    %548 = vmatpush.bf16.msra.mxu0 %v461
    %549 = vmatpush.bf16.msra.mxu0 %v460
    %550 = vmatpush.bf16.msra.mxu0 %v459
    %551 = vmatpush.bf16.msra.mxu0 %v458
    %552 = vmatpush.bf16.msra.mxu0 %v457
    %553 = vmatpush.bf16.msra.mxu0 %v456
    %554 = vmatpush.bf16.msra.mxu0 %v455
    %555 = vmatpush.bf16.msra.mxu0 %v454
    %556 = vmatmul.bf16.gmra.mxu0 %v247
    %v557 = vpop.f32.mrf.mxu0
    %v558 = vadd.f32 %v141, %v557
    %v559 = vpop.f32.mrf.mxu0
    %v560 = vadd.f32 %v141, %v559
    %561 = vmatmul.bf16.gmra.mxu0 %v252
    %v562 = vpop.f32.mrf.mxu0
    %v563 = vadd.f32 %v141, %v562
    %v564 = vpop.f32.mrf.mxu0
    %v565 = vadd.f32 %v141, %v564
    %566 = vmatmul.bf16.gmra.mxu0 %v257
    %v567 = vpop.f32.mrf.mxu0
    %v568 = vadd.f32 %v141, %v567
    %v569 = vpop.f32.mrf.mxu0
    %v570 = vadd.f32 %v141, %v569
    %571 = vmatmul.bf16.gmra.mxu0 %v262
    %v572 = vpop.f32.mrf.mxu0
    %v573 = vadd.f32 %v141, %v572
    %v574 = vpop.f32.mrf.mxu0
    %v575 = vadd.f32 %v141, %v574
    %576 = vmatmul.bf16.gmra.mxu0 %v267
    %v577 = vpop.f32.mrf.mxu0
    %v578 = vadd.f32 %v141, %v577
    %v579 = vpop.f32.mrf.mxu0
    %v580 = vadd.f32 %v141, %v579
    %581 = vmatmul.bf16.gmra.mxu0 %v272
    %v582 = vpop.f32.mrf.mxu0
    %v583 = vadd.f32 %v141, %v582
    %v584 = vpop.f32.mrf.mxu0
    %v585 = vadd.f32 %v141, %v584
    %586 = vmatmul.bf16.gmra.mxu0 %v277
    %v587 = vpop.f32.mrf.mxu0
    %v588 = vadd.f32 %v141, %v587
    %v589 = vpop.f32.mrf.mxu0
    %590 = vdwg.mxu0
    %591 = vmatpush.bf16.msra.mxu0 %v469
    %592 = vmatpush.bf16.msra.mxu0 %v468
    %593 = vmatpush.bf16.msra.mxu0 %v467
    %594 = vmatpush.bf16.msra.mxu0 %v466
    %595 = vmatpush.bf16.msra.mxu0 %v465
    %596 = vmatpush.bf16.msra.mxu0 %v464
    %597 = vmatpush.bf16.msra.mxu0 %v463
    %598 = vmatpush.bf16.msra.mxu0 %v462
    %599 = vmatmul.bf16.gmra.mxu0 %v248
    %v600 = vpop.f32.mrf.mxu0
    %v601 = vadd.f32 %v558, %v600
    %v602 = vpop.f32.mrf.mxu0
    %v603 = vadd.f32 %v560, %v602
    %604 = vmatmul.bf16.gmra.mxu0 %v253
    %v605 = vpop.f32.mrf.mxu0
    %v606 = vadd.f32 %v563, %v605
    %v607 = vpop.f32.mrf.mxu0
    %v608 = vadd.f32 %v565, %v607
    %609 = vmatmul.bf16.gmra.mxu0 %v258
    %v610 = vpop.f32.mrf.mxu0
    %v611 = vadd.f32 %v568, %v610
    %v612 = vpop.f32.mrf.mxu0
    %v613 = vadd.f32 %v570, %v612
    %614 = vmatmul.bf16.gmra.mxu0 %v263
    %v615 = vpop.f32.mrf.mxu0
    %v616 = vadd.f32 %v573, %v615
    %v617 = vpop.f32.mrf.mxu0
    %v618 = vadd.f32 %v575, %v617
    %619 = vmatmul.bf16.gmra.mxu0 %v268
    %v620 = vpop.f32.mrf.mxu0
    %v621 = vadd.f32 %v578, %v620
    %v622 = vpop.f32.mrf.mxu0
    %v623 = vadd.f32 %v580, %v622
    %624 = vmatmul.bf16.gmra.mxu0 %v273
    %v625 = vpop.f32.mrf.mxu0
    %v626 = vadd.f32 %v583, %v625
    %v627 = vpop.f32.mrf.mxu0
    %v628 = vadd.f32 %v585, %v627
    %629 = vmatmul.bf16.gmra.mxu0 %v278
    %v630 = vpop.f32.mrf.mxu0
    %v631 = vadd.f32 %v588, %v630
    %v632 = vpop.f32.mrf.mxu0
    %633 = vdwg.mxu0
    %634 = vmatpush.bf16.msra.mxu0 %v477
    %635 = vmatpush.bf16.msra.mxu0 %v476
    %636 = vmatpush.bf16.msra.mxu0 %v475
    %637 = vmatpush.bf16.msra.mxu0 %v474
    %638 = vmatpush.bf16.msra.mxu0 %v473
    %639 = vmatpush.bf16.msra.mxu0 %v472
    %640 = vmatpush.bf16.msra.mxu0 %v471
    %641 = vmatpush.bf16.msra.mxu0 %v470
    %642 = vmatmul.bf16.gmra.mxu0 %v249
    %v643 = vpop.f32.mrf.mxu0
    %v644 = vadd.f32 %v601, %v643
    %v645 = vpop.f32.mrf.mxu0
    %v646 = vadd.f32 %v603, %v645
    %647 = vmatmul.bf16.gmra.mxu0 %v254
    %v648 = vpop.f32.mrf.mxu0
    %v649 = vadd.f32 %v606, %v648
    %v650 = vpop.f32.mrf.mxu0
    %v651 = vadd.f32 %v608, %v650
    %652 = vmatmul.bf16.gmra.mxu0 %v259
    %v653 = vpop.f32.mrf.mxu0
    %v654 = vadd.f32 %v611, %v653
    %v655 = vpop.f32.mrf.mxu0
    %v656 = vadd.f32 %v613, %v655
    %657 = vmatmul.bf16.gmra.mxu0 %v264
    %v658 = vpop.f32.mrf.mxu0
    %v659 = vadd.f32 %v616, %v658
    %v660 = vpop.f32.mrf.mxu0
    %v661 = vadd.f32 %v618, %v660
    %662 = vmatmul.bf16.gmra.mxu0 %v269
    %v663 = vpop.f32.mrf.mxu0
    %v664 = vadd.f32 %v621, %v663
    %v665 = vpop.f32.mrf.mxu0
    %v666 = vadd.f32 %v623, %v665
    %667 = vmatmul.bf16.gmra.mxu0 %v274
    %v668 = vpop.f32.mrf.mxu0
    %v669 = vadd.f32 %v626, %v668
    %v670 = vpop.f32.mrf.mxu0
    %v671 = vadd.f32 %v628, %v670
    %672 = vmatmul.bf16.gmra.mxu0 %v279
    %v673 = vpop.f32.mrf.mxu0
    %v674 = vadd.f32 %v631, %v673
    %v675 = vpop.f32.mrf.mxu0
    %676 = vdwg.mxu0
    %677 = vmatpush.bf16.msra.mxu0 %v485
    %678 = vmatpush.bf16.msra.mxu0 %v484
    %679 = vmatpush.bf16.msra.mxu0 %v483
    %680 = vmatpush.bf16.msra.mxu0 %v482
    %681 = vmatpush.bf16.msra.mxu0 %v481
    %682 = vmatpush.bf16.msra.mxu0 %v480
    %683 = vmatpush.bf16.msra.mxu0 %v479
    %684 = vmatpush.bf16.msra.mxu0 %v478
    %685 = vmatmul.bf16.gmra.mxu0 %v250
    %v686 = vpop.f32.mrf.mxu0
    %v687 = vadd.f32 %v644, %v686
    %v688 = vpop.f32.mrf.mxu0
    %v689 = vadd.f32 %v646, %v688
    %690 = vmatmul.bf16.gmra.mxu0 %v255
    %v691 = vpop.f32.mrf.mxu0
    %v692 = vadd.f32 %v649, %v691
    %v693 = vpop.f32.mrf.mxu0
    %v694 = vadd.f32 %v651, %v693
    %695 = vmatmul.bf16.gmra.mxu0 %v260
    %v696 = vpop.f32.mrf.mxu0
    %v697 = vadd.f32 %v654, %v696
    %v698 = vpop.f32.mrf.mxu0
    %v699 = vadd.f32 %v656, %v698
    %700 = vmatmul.bf16.gmra.mxu0 %v265
    %v701 = vpop.f32.mrf.mxu0
    %v702 = vadd.f32 %v659, %v701
    %v703 = vpop.f32.mrf.mxu0
    %v704 = vadd.f32 %v661, %v703
    %705 = vmatmul.bf16.gmra.mxu0 %v270
    %v706 = vpop.f32.mrf.mxu0
    %v707 = vadd.f32 %v664, %v706
    %v708 = vpop.f32.mrf.mxu0
    %v709 = vadd.f32 %v666, %v708
    %710 = vmatmul.bf16.gmra.mxu0 %v275
    %v711 = vpop.f32.mrf.mxu0
    %v712 = vadd.f32 %v669, %v711
    %v713 = vpop.f32.mrf.mxu0
    %v714 = vadd.f32 %v671, %v713
    %715 = vmatmul.bf16.gmra.mxu0 %v280
    %v716 = vpop.f32.mrf.mxu0
    %v717 = vadd.f32 %v674, %v716
    %v718 = vpop.f32.mrf.mxu0
    %719 = vdwg.mxu0
    %720 = vmatpush.bf16.msra.mxu0 0
    %721 = vmatpush.bf16.msra.mxu0 0
    %722 = vmatpush.bf16.msra.mxu0 0
    %723 = vmatpush.bf16.msra.mxu0 0
    %724 = vmatpush.bf16.msra.mxu0 %v489
    %725 = vmatpush.bf16.msra.mxu0 %v488
    %726 = vmatpush.bf16.msra.mxu0 %v487
    %727 = vmatpush.bf16.msra.mxu0 %v486
    %728 = vmatmul.bf16.gmra.mxu0 %v528
    %v729 = vpop.f32.mrf.mxu0
    %v730 = vadd.f32 %v687, %v729
    %v731 = vpop.f32.mrf.mxu0
    %v732 = vadd.f32 %v689, %v731
    %733 = vmatmul.bf16.gmra.mxu0 %v531
    %v734 = vpop.f32.mrf.mxu0
    %v735 = vadd.f32 %v692, %v734
    %v736 = vpop.f32.mrf.mxu0
    %v737 = vadd.f32 %v694, %v736
    %738 = vmatmul.bf16.gmra.mxu0 %v534
    %v739 = vpop.f32.mrf.mxu0
    %v740 = vadd.f32 %v697, %v739
    %v741 = vpop.f32.mrf.mxu0
    %v742 = vadd.f32 %v699, %v741
    %743 = vmatmul.bf16.gmra.mxu0 %v537
    %v744 = vpop.f32.mrf.mxu0
    %v745 = vadd.f32 %v702, %v744
    %v746 = vpop.f32.mrf.mxu0
    %v747 = vadd.f32 %v704, %v746
    %748 = vmatmul.bf16.gmra.mxu0 %v540
    %v749 = vpop.f32.mrf.mxu0
    %v750 = vadd.f32 %v707, %v749
    %v751 = vpop.f32.mrf.mxu0
    %v752 = vadd.f32 %v709, %v751
    %753 = vmatmul.bf16.gmra.mxu0 %v543
    %v754 = vpop.f32.mrf.mxu0
    %v755 = vadd.f32 %v712, %v754
    %v756 = vpop.f32.mrf.mxu0
    %v757 = vadd.f32 %v714, %v756
    %758 = vmatmul.bf16.gmra.mxu0 %v546
    %v759 = vpop.f32.mrf.mxu0
    %v760 = vadd.f32 %v717, %v759
    %v761 = vpop.f32.mrf.mxu0
    %762 = vdwg.mxu0
    %v763 = vmax.f32 %v730, 0.0
    %v764 = vmax.f32 %v732, 0.0
    %v765 = vmax.f32 %v735, 0.0
    %v766 = vmax.f32 %v737, 0.0
    %v767 = vmax.f32 %v740, 0.0
    %v768 = vmax.f32 %v742, 0.0
    %v769 = vmax.f32 %v745, 0.0
    %v770 = vmax.f32 %v747, 0.0
    %v771 = vmax.f32 %v750, 0.0
    %v772 = vmax.f32 %v752, 0.0
    %v773 = vmax.f32 %v755, 0.0
    %v774 = vmax.f32 %v757, 0.0
    %v775 = vmax.f32 %v760, 0.0
    %v776 = vpack.c.bf16 %v763, %v763
    %v777 = vld [vmem:[%s3] sm:$0xff]
    %v778 = vld [vmem:[%s3 + $0x8] sm:$0xff]
    %v779 = vld [vmem:[%s3 + $0x10] sm:$0xff]
    %v780 = vld [vmem:[%s3 + $0x18] sm:$0xff]
    %v781 = vld [vmem:[%s3 + $0x20] sm:$0xff]
    %v782 = vld [vmem:[%s3 + $0x28] sm:$0xff]
    %v783 = vld [vmem:[%s3 + $0x30] sm:$0xff]
    %v784 = vld [vmem:[%s3 + $0x38] sm:$0xff]
    %v785 = vld [vmem:[%s3 + $0x40] sm:$0xff]
    %v786 = vld [vmem:[%s3 + $0x48] sm:$0xff]
    %v787 = vld [vmem:[%s3 + $0x50] sm:$0xff]
    %v788 = vld [vmem:[%s3 + $0x58] sm:$0xff]
    %v789 = vld [vmem:[%s3 + $0x60] sm:$0xff]
    %v790 = vld [vmem:[%s3 + $0x68] sm:$0xff]
    %v791 = vld [vmem:[%s3 + $0x70] sm:$0xff]
    %v792 = vld [vmem:[%s3 + $0x78] sm:$0xff]
    %s793 = scalar_lea.vmem %s3, 128
    %v794 = vld [vmem:[%s793] sm:$0xff]
    %v795 = vld [vmem:[%s793 + $0x8] sm:$0xff]
    %v796 = vld [vmem:[%s793 + $0x10] sm:$0xff]
    %v797 = vld [vmem:[%s793 + $0x18] sm:$0xff]
    %v798 = vld [vmem:[%s793 + $0x20] sm:$0xff]
    %v799 = vld [vmem:[%s793 + $0x28] sm:$0xff]
    %v800 = vld [vmem:[%s793 + $0x30] sm:$0xff]
    %v801 = vld [vmem:[%s793 + $0x38] sm:$0xff]
    %v802 = vld [vmem:[%s793 + $0x40] sm:$0xff]
    %v803 = vld [vmem:[%s793 + $0x48] sm:$0xff]
    %v804 = vld [vmem:[%s793 + $0x50] sm:$0xff]
    %v805 = vld [vmem:[%s793 + $0x58] sm:$0xff]
    %v806 = vld [vmem:[%s793 + $0x60] sm:$0xff]
    %v807 = vld [vmem:[%s793 + $0x68] sm:$0xff]
    %v808 = vld [vmem:[%s793 + $0x70] sm:$0xff]
    %v809 = vld [vmem:[%s793 + $0x78] sm:$0xff]
    %v811 = vrot.slane %v776, 1
    %v828 = vunpack.c.l.b16 %v794
    %v829 = vunpack.c.h.b16 %v794
    %v830 = vunpack.c.l.b16 %v795
    %v831 = vunpack.c.h.b16 %v795
    %v832 = vunpack.c.l.b16 %v796
    %v833 = vunpack.c.h.b16 %v796
    %v834 = vunpack.c.l.b16 %v797
    %v835 = vunpack.c.h.b16 %v797
    %v836 = vunpack.c.l.b16 %v798
    %v837 = vunpack.c.h.b16 %v798
    %v838 = vunpack.c.l.b16 %v799
    %v839 = vunpack.c.h.b16 %v799
    %v840 = vunpack.c.l.b16 %v800
    %v841 = vunpack.c.h.b16 %v800
    %v842 = vunpack.c.l.b16 %v801
    %v843 = vunpack.c.h.b16 %v801
    %v844 = vunpack.c.l.b16 %v802
    %v845 = vunpack.c.h.b16 %v802
    %v846 = vunpack.c.l.b16 %v803
    %v847 = vunpack.c.h.b16 %v803
    %v848 = vunpack.c.l.b16 %v804
    %v849 = vunpack.c.h.b16 %v804
    %v850 = vunpack.c.l.b16 %v805
    %v851 = vunpack.c.h.b16 %v805
    %v852 = vunpack.c.l.b16 %v806
    %v853 = vunpack.c.h.b16 %v806
    %v854 = vunpack.c.l.b16 %v807
    %v855 = vunpack.c.h.b16 %v807
    %v856 = vunpack.c.l.b16 %v808
    %v857 = vunpack.c.h.b16 %v808
    %v858 = vunpack.c.l.b16 %v809
    %v859 = vunpack.c.h.b16 %v809
    %v860 = vpack.c.b16 %v832, %v828
    %v861 = vpack.c.b16 %v833, %v829
    %v862 = vpack.c.b16 %v834, %v830
    %v863 = vpack.c.b16 %v835, %v831
    %v864 = vpack.c.b16 %v840, %v836
    %v865 = vpack.c.b16 %v841, %v837
    %v866 = vpack.c.b16 %v842, %v838
    %v867 = vpack.c.b16 %v843, %v839
    %v868 = vpack.c.b16 %v848, %v844
    %v869 = vpack.c.b16 %v849, %v845
    %v870 = vpack.c.b16 %v850, %v846
    %v871 = vpack.c.b16 %v851, %v847
    %v872 = vpack.c.b16 %v856, %v852
    %v873 = vpack.c.b16 %v857, %v853
    %v874 = vpack.c.b16 %v858, %v854
    %v875 = vpack.c.b16 %v859, %v855
    %v893 = vsel %vm526, %v811, 0
    %895 = vmatpush.bf16.msra.mxu0 0
    %896 = vmatpush.bf16.msra.mxu0 0
    %897 = vmatpush.bf16.msra.mxu0 0
    %898 = vmatpush.bf16.msra.mxu0 0
    %899 = vmatpush.bf16.msra.mxu0 %v872
    %900 = vmatpush.bf16.msra.mxu0 %v868
    %901 = vmatpush.bf16.msra.mxu0 %v864
    %902 = vmatpush.bf16.msra.mxu0 %v860
    %903 = vmatmul.bf16.gmra.mxu0 %v893
    %v904 = vpop.f32.mrf.mxu0
    %v905 = vadd.f32 0.0, %v904
    %v906 = vpop.f32.mrf.mxu0
    %907 = vdwg.mxu0
    %908 = vmatpush.bf16.msra.mxu0 0
    %909 = vmatpush.bf16.msra.mxu0 0
    %910 = vmatpush.bf16.msra.mxu0 0
    %911 = vmatpush.bf16.msra.mxu0 0
    %912 = vmatpush.bf16.msra.mxu0 %v873
    %913 = vmatpush.bf16.msra.mxu0 %v869
    %914 = vmatpush.bf16.msra.mxu0 %v865
    %915 = vmatpush.bf16.msra.mxu0 %v861
    %916 = vmatmul.bf16.gmra.mxu0 %v893
    %v917 = vpop.f32.mrf.mxu0
    %v918 = vadd.f32 0.0, %v917
    %v919 = vpop.f32.mrf.mxu0
    %920 = vdwg.mxu0
    %921 = vmatpush.bf16.msra.mxu0 0
    %922 = vmatpush.bf16.msra.mxu0 0
    %923 = vmatpush.bf16.msra.mxu0 0
    %924 = vmatpush.bf16.msra.mxu0 0
    %925 = vmatpush.bf16.msra.mxu0 %v874
    %926 = vmatpush.bf16.msra.mxu0 %v870
    %927 = vmatpush.bf16.msra.mxu0 %v866
    %928 = vmatpush.bf16.msra.mxu0 %v862
    %929 = vmatmul.bf16.gmra.mxu0 %v893
    %v930 = vpop.f32.mrf.mxu0
    %v931 = vadd.f32 0.0, %v930
    %v932 = vpop.f32.mrf.mxu0
    %933 = vdwg.mxu0
    %934 = vmatpush.bf16.msra.mxu0 0
    %935 = vmatpush.bf16.msra.mxu0 0
    %936 = vmatpush.bf16.msra.mxu0 0
    %937 = vmatpush.bf16.msra.mxu0 0
    %938 = vmatpush.bf16.msra.mxu0 %v875
    %939 = vmatpush.bf16.msra.mxu0 %v871
    %940 = vmatpush.bf16.msra.mxu0 %v867
    %941 = vmatpush.bf16.msra.mxu0 %v863
    %942 = vmatmul.bf16.gmra.mxu0 %v893
    %v943 = vpop.f32.mrf.mxu0
    %v944 = vadd.f32 0.0, %v943
    %v945 = vpop.f32.mrf.mxu0
    %946 = vdwg.mxu0
    %v963 = vunpack.c.l.b16 %v777
    %v964 = vunpack.c.h.b16 %v777
    %v965 = vunpack.c.l.b16 %v778
    %v966 = vunpack.c.h.b16 %v778
    %v967 = vunpack.c.l.b16 %v779
    %v968 = vunpack.c.h.b16 %v779
    %v969 = vunpack.c.l.b16 %v780
    %v970 = vunpack.c.h.b16 %v780
    %v971 = vunpack.c.l.b16 %v781
    %v972 = vunpack.c.h.b16 %v781
    %v973 = vunpack.c.l.b16 %v782
    %v974 = vunpack.c.h.b16 %v782
    %v975 = vunpack.c.l.b16 %v783
    %v976 = vunpack.c.h.b16 %v783
    %v977 = vunpack.c.l.b16 %v784
    %v978 = vunpack.c.h.b16 %v784
    %v979 = vunpack.c.l.b16 %v785
    %v980 = vunpack.c.h.b16 %v785
    %v981 = vunpack.c.l.b16 %v786
    %v982 = vunpack.c.h.b16 %v786
    %v983 = vunpack.c.l.b16 %v787
    %v984 = vunpack.c.h.b16 %v787
    %v985 = vunpack.c.l.b16 %v788
    %v986 = vunpack.c.h.b16 %v788
    %v987 = vunpack.c.l.b16 %v789
    %v988 = vunpack.c.h.b16 %v789
    %v989 = vunpack.c.l.b16 %v790
    %v990 = vunpack.c.h.b16 %v790
    %v991 = vunpack.c.l.b16 %v791
    %v992 = vunpack.c.h.b16 %v791
    %v993 = vunpack.c.l.b16 %v792
    %v994 = vunpack.c.h.b16 %v792
    %v995 = vpack.c.b16 %v967, %v963
    %v996 = vpack.c.b16 %v968, %v964
    %v997 = vpack.c.b16 %v969, %v965
    %v998 = vpack.c.b16 %v970, %v966
    %v999 = vpack.c.b16 %v975, %v971
    %v1000 = vpack.c.b16 %v976, %v972
    %v1001 = vpack.c.b16 %v977, %v973
    %v1002 = vpack.c.b16 %v978, %v974
    %v1003 = vpack.c.b16 %v983, %v979
    %v1004 = vpack.c.b16 %v984, %v980
    %v1005 = vpack.c.b16 %v985, %v981
    %v1006 = vpack.c.b16 %v986, %v982
    %v1007 = vpack.c.b16 %v991, %v987
    %v1008 = vpack.c.b16 %v992, %v988
    %v1009 = vpack.c.b16 %v993, %v989
    %v1010 = vpack.c.b16 %v994, %v990
    %v1028 = vsel %vm526, %v776, 0
    %1030 = vmatpush.bf16.msra.mxu0 0
    %1031 = vmatpush.bf16.msra.mxu0 0
    %1032 = vmatpush.bf16.msra.mxu0 0
    %1033 = vmatpush.bf16.msra.mxu0 0
    %1034 = vmatpush.bf16.msra.mxu0 %v1007
    %1035 = vmatpush.bf16.msra.mxu0 %v1003
    %1036 = vmatpush.bf16.msra.mxu0 %v999
    %1037 = vmatpush.bf16.msra.mxu0 %v995
    %1038 = vmatmul.bf16.gmra.mxu0 %v1028
    %v1039 = vpop.f32.mrf.mxu0
    %v1040 = vadd.f32 %v905, %v1039
    %v1041 = vpop.f32.mrf.mxu0
    %1042 = vdwg.mxu0
    %1043 = vmatpush.bf16.msra.mxu0 0
    %1044 = vmatpush.bf16.msra.mxu0 0
    %1045 = vmatpush.bf16.msra.mxu0 0
    %1046 = vmatpush.bf16.msra.mxu0 0
    %1047 = vmatpush.bf16.msra.mxu0 %v1008
    %1048 = vmatpush.bf16.msra.mxu0 %v1004
    %1049 = vmatpush.bf16.msra.mxu0 %v1000
    %1050 = vmatpush.bf16.msra.mxu0 %v996
    %1051 = vmatmul.bf16.gmra.mxu0 %v1028
    %v1052 = vpop.f32.mrf.mxu0
    %v1053 = vadd.f32 %v918, %v1052
    %v1054 = vpop.f32.mrf.mxu0
    %1055 = vdwg.mxu0
    %1056 = vmatpush.bf16.msra.mxu0 0
    %1057 = vmatpush.bf16.msra.mxu0 0
    %1058 = vmatpush.bf16.msra.mxu0 0
    %1059 = vmatpush.bf16.msra.mxu0 0
    %1060 = vmatpush.bf16.msra.mxu0 %v1009
    %1061 = vmatpush.bf16.msra.mxu0 %v1005
    %1062 = vmatpush.bf16.msra.mxu0 %v1001
    %1063 = vmatpush.bf16.msra.mxu0 %v997
    %1064 = vmatmul.bf16.gmra.mxu0 %v1028
    %v1065 = vpop.f32.mrf.mxu0
    %v1066 = vadd.f32 %v931, %v1065
    %v1067 = vpop.f32.mrf.mxu0
    %1068 = vdwg.mxu0
    %1069 = vmatpush.bf16.msra.mxu0 0
    %1070 = vmatpush.bf16.msra.mxu0 0
    %1071 = vmatpush.bf16.msra.mxu0 0
    %1072 = vmatpush.bf16.msra.mxu0 0
    %1073 = vmatpush.bf16.msra.mxu0 %v1010
    %1074 = vmatpush.bf16.msra.mxu0 %v1006
    %1075 = vmatpush.bf16.msra.mxu0 %v1002
    %1076 = vmatpush.bf16.msra.mxu0 %v998
    %1077 = vmatmul.bf16.gmra.mxu0 %v1028
    %v1078 = vpop.f32.mrf.mxu0
    %v1079 = vadd.f32 %v944, %v1078
    %v1080 = vpop.f32.mrf.mxu0
    %1081 = vdwg.mxu0
    %s1082 = scalar_lea.vmem %s3, 256
    %v1083 = vld [vmem:[%s1082] sm:$0xff]
    %v1084 = vld [vmem:[%s1082 + $0x8] sm:$0xff]
    %v1085 = vld [vmem:[%s1082 + $0x10] sm:$0xff]
    %v1086 = vld [vmem:[%s1082 + $0x18] sm:$0xff]
    %v1087 = vld [vmem:[%s1082 + $0x20] sm:$0xff]
    %v1088 = vld [vmem:[%s1082 + $0x28] sm:$0xff]
    %v1089 = vld [vmem:[%s1082 + $0x30] sm:$0xff]
    %v1090 = vld [vmem:[%s1082 + $0x38] sm:$0xff]
    %v1091 = vld [vmem:[%s1082 + $0x40] sm:$0xff]
    %v1092 = vld [vmem:[%s1082 + $0x48] sm:$0xff]
    %v1093 = vld [vmem:[%s1082 + $0x50] sm:$0xff]
    %v1094 = vld [vmem:[%s1082 + $0x58] sm:$0xff]
    %v1095 = vld [vmem:[%s1082 + $0x60] sm:$0xff]
    %v1096 = vld [vmem:[%s1082 + $0x68] sm:$0xff]
    %v1097 = vld [vmem:[%s1082 + $0x70] sm:$0xff]
    %v1098 = vld [vmem:[%s1082 + $0x78] sm:$0xff]
    %v1099 = vrot.slane %v776, 2
    %v1116 = vunpack.c.l.b16 %v1083
    %v1117 = vunpack.c.h.b16 %v1083
    %v1118 = vunpack.c.l.b16 %v1084
    %v1119 = vunpack.c.h.b16 %v1084
    %v1120 = vunpack.c.l.b16 %v1085
    %v1121 = vunpack.c.h.b16 %v1085
    %v1122 = vunpack.c.l.b16 %v1086
    %v1123 = vunpack.c.h.b16 %v1086
    %v1124 = vunpack.c.l.b16 %v1087
    %v1125 = vunpack.c.h.b16 %v1087
    %v1126 = vunpack.c.l.b16 %v1088
    %v1127 = vunpack.c.h.b16 %v1088
    %v1128 = vunpack.c.l.b16 %v1089
    %v1129 = vunpack.c.h.b16 %v1089
    %v1130 = vunpack.c.l.b16 %v1090
    %v1131 = vunpack.c.h.b16 %v1090
    %v1132 = vunpack.c.l.b16 %v1091
    %v1133 = vunpack.c.h.b16 %v1091
    %v1134 = vunpack.c.l.b16 %v1092
    %v1135 = vunpack.c.h.b16 %v1092
    %v1136 = vunpack.c.l.b16 %v1093
    %v1137 = vunpack.c.h.b16 %v1093
    %v1138 = vunpack.c.l.b16 %v1094
    %v1139 = vunpack.c.h.b16 %v1094
    %v1140 = vunpack.c.l.b16 %v1095
    %v1141 = vunpack.c.h.b16 %v1095
    %v1142 = vunpack.c.l.b16 %v1096
    %v1143 = vunpack.c.h.b16 %v1096
    %v1144 = vunpack.c.l.b16 %v1097
    %v1145 = vunpack.c.h.b16 %v1097
    %v1146 = vunpack.c.l.b16 %v1098
    %v1147 = vunpack.c.h.b16 %v1098
    %v1148 = vpack.c.b16 %v1120, %v1116
    %v1149 = vpack.c.b16 %v1121, %v1117
    %v1150 = vpack.c.b16 %v1122, %v1118
    %v1151 = vpack.c.b16 %v1123, %v1119
    %v1152 = vpack.c.b16 %v1128, %v1124
    %v1153 = vpack.c.b16 %v1129, %v1125
    %v1154 = vpack.c.b16 %v1130, %v1126
    %v1155 = vpack.c.b16 %v1131, %v1127
    %v1156 = vpack.c.b16 %v1136, %v1132
    %v1157 = vpack.c.b16 %v1137, %v1133
    %v1158 = vpack.c.b16 %v1138, %v1134
    %v1159 = vpack.c.b16 %v1139, %v1135
    %v1160 = vpack.c.b16 %v1144, %v1140
    %v1161 = vpack.c.b16 %v1145, %v1141
    %v1162 = vpack.c.b16 %v1146, %v1142
    %v1163 = vpack.c.b16 %v1147, %v1143
    %v1181 = vsel %vm526, %v1099, 0
    %1183 = vmatpush.bf16.msra.mxu0 0
    %1184 = vmatpush.bf16.msra.mxu0 0
    %1185 = vmatpush.bf16.msra.mxu0 0
    %1186 = vmatpush.bf16.msra.mxu0 0
    %1187 = vmatpush.bf16.msra.mxu0 %v1160
    %1188 = vmatpush.bf16.msra.mxu0 %v1156
    %1189 = vmatpush.bf16.msra.mxu0 %v1152
    %1190 = vmatpush.bf16.msra.mxu0 %v1148
    %1191 = vmatmul.bf16.gmra.mxu0 %v1181
    %v1192 = vpop.f32.mrf.mxu0
    %v1193 = vadd.f32 0.0, %v1192
    %v1194 = vpop.f32.mrf.mxu0
    %1195 = vdwg.mxu0
    %1196 = vmatpush.bf16.msra.mxu0 0
    %1197 = vmatpush.bf16.msra.mxu0 0
    %1198 = vmatpush.bf16.msra.mxu0 0
    %1199 = vmatpush.bf16.msra.mxu0 0
    %1200 = vmatpush.bf16.msra.mxu0 %v1161
    %1201 = vmatpush.bf16.msra.mxu0 %v1157
    %1202 = vmatpush.bf16.msra.mxu0 %v1153
    %1203 = vmatpush.bf16.msra.mxu0 %v1149
    %1204 = vmatmul.bf16.gmra.mxu0 %v1181
    %v1205 = vpop.f32.mrf.mxu0
    %v1206 = vadd.f32 0.0, %v1205
    %v1207 = vpop.f32.mrf.mxu0
    %1208 = vdwg.mxu0
    %1209 = vmatpush.bf16.msra.mxu0 0
    %1210 = vmatpush.bf16.msra.mxu0 0
    %1211 = vmatpush.bf16.msra.mxu0 0
    %1212 = vmatpush.bf16.msra.mxu0 0
    %1213 = vmatpush.bf16.msra.mxu0 %v1162
    %1214 = vmatpush.bf16.msra.mxu0 %v1158
    %1215 = vmatpush.bf16.msra.mxu0 %v1154
    %1216 = vmatpush.bf16.msra.mxu0 %v1150
    %1217 = vmatmul.bf16.gmra.mxu0 %v1181
    %v1218 = vpop.f32.mrf.mxu0
    %v1219 = vadd.f32 0.0, %v1218
    %v1220 = vpop.f32.mrf.mxu0
    %1221 = vdwg.mxu0
    %1222 = vmatpush.bf16.msra.mxu0 0
    %1223 = vmatpush.bf16.msra.mxu0 0
    %1224 = vmatpush.bf16.msra.mxu0 0
    %1225 = vmatpush.bf16.msra.mxu0 0
    %1226 = vmatpush.bf16.msra.mxu0 %v1163
    %1227 = vmatpush.bf16.msra.mxu0 %v1159
    %1228 = vmatpush.bf16.msra.mxu0 %v1155
    %1229 = vmatpush.bf16.msra.mxu0 %v1151
    %1230 = vmatmul.bf16.gmra.mxu0 %v1181
    %v1231 = vpop.f32.mrf.mxu0
    %v1232 = vadd.f32 0.0, %v1231
    %v1233 = vpop.f32.mrf.mxu0
    %1234 = vdwg.mxu0
    %v1235 = vadd.f32 %v1040, %v1193
    %v1236 = vadd.f32 %v1053, %v1206
    %v1237 = vadd.f32 %v1066, %v1219
    %v1238 = vadd.f32 %v1079, %v1232
    %s1239 = scalar_lea.vmem %s3, 384
    %v1240 = vld [vmem:[%s1239] sm:$0xff]
    %v1241 = vld [vmem:[%s1239 + $0x8] sm:$0xff]
    %v1242 = vld [vmem:[%s1239 + $0x10] sm:$0xff]
    %v1243 = vld [vmem:[%s1239 + $0x18] sm:$0xff]
    %v1244 = vld [vmem:[%s1239 + $0x20] sm:$0xff]
    %v1245 = vld [vmem:[%s1239 + $0x28] sm:$0xff]
    %v1246 = vld [vmem:[%s1239 + $0x30] sm:$0xff]
    %v1247 = vld [vmem:[%s1239 + $0x38] sm:$0xff]
    %v1248 = vld [vmem:[%s1239 + $0x40] sm:$0xff]
    %v1249 = vld [vmem:[%s1239 + $0x48] sm:$0xff]
    %v1250 = vld [vmem:[%s1239 + $0x50] sm:$0xff]
    %v1251 = vld [vmem:[%s1239 + $0x58] sm:$0xff]
    %v1252 = vld [vmem:[%s1239 + $0x60] sm:$0xff]
    %v1253 = vld [vmem:[%s1239 + $0x68] sm:$0xff]
    %v1254 = vld [vmem:[%s1239 + $0x70] sm:$0xff]
    %v1255 = vld [vmem:[%s1239 + $0x78] sm:$0xff]
    %v1256 = vrot.slane %v776, 3
    %v1273 = vunpack.c.l.b16 %v1240
    %v1274 = vunpack.c.h.b16 %v1240
    %v1275 = vunpack.c.l.b16 %v1241
    %v1276 = vunpack.c.h.b16 %v1241
    %v1277 = vunpack.c.l.b16 %v1242
    %v1278 = vunpack.c.h.b16 %v1242
    %v1279 = vunpack.c.l.b16 %v1243
    %v1280 = vunpack.c.h.b16 %v1243
    %v1281 = vunpack.c.l.b16 %v1244
    %v1282 = vunpack.c.h.b16 %v1244
    %v1283 = vunpack.c.l.b16 %v1245
    %v1284 = vunpack.c.h.b16 %v1245
    %v1285 = vunpack.c.l.b16 %v1246
    %v1286 = vunpack.c.h.b16 %v1246
    %v1287 = vunpack.c.l.b16 %v1247
    %v1288 = vunpack.c.h.b16 %v1247
    %v1289 = vunpack.c.l.b16 %v1248
    %v1290 = vunpack.c.h.b16 %v1248
    %v1291 = vunpack.c.l.b16 %v1249
    %v1292 = vunpack.c.h.b16 %v1249
    %v1293 = vunpack.c.l.b16 %v1250
    %v1294 = vunpack.c.h.b16 %v1250
    %v1295 = vunpack.c.l.b16 %v1251
    %v1296 = vunpack.c.h.b16 %v1251
    %v1297 = vunpack.c.l.b16 %v1252
    %v1298 = vunpack.c.h.b16 %v1252
    %v1299 = vunpack.c.l.b16 %v1253
    %v1300 = vunpack.c.h.b16 %v1253
    %v1301 = vunpack.c.l.b16 %v1254
    %v1302 = vunpack.c.h.b16 %v1254
    %v1303 = vunpack.c.l.b16 %v1255
    %v1304 = vunpack.c.h.b16 %v1255
    %v1305 = vpack.c.b16 %v1277, %v1273
    %v1306 = vpack.c.b16 %v1278, %v1274
    %v1307 = vpack.c.b16 %v1279, %v1275
    %v1308 = vpack.c.b16 %v1280, %v1276
    %v1309 = vpack.c.b16 %v1285, %v1281
    %v1310 = vpack.c.b16 %v1286, %v1282
    %v1311 = vpack.c.b16 %v1287, %v1283
    %v1312 = vpack.c.b16 %v1288, %v1284
    %v1313 = vpack.c.b16 %v1293, %v1289
    %v1314 = vpack.c.b16 %v1294, %v1290
    %v1315 = vpack.c.b16 %v1295, %v1291
    %v1316 = vpack.c.b16 %v1296, %v1292
    %v1317 = vpack.c.b16 %v1301, %v1297
    %v1318 = vpack.c.b16 %v1302, %v1298
    %v1319 = vpack.c.b16 %v1303, %v1299
    %v1320 = vpack.c.b16 %v1304, %v1300
    %v1338 = vsel %vm526, %v1256, 0
    %1340 = vmatpush.bf16.msra.mxu0 0
    %1341 = vmatpush.bf16.msra.mxu0 0
    %1342 = vmatpush.bf16.msra.mxu0 0
    %1343 = vmatpush.bf16.msra.mxu0 0
    %1344 = vmatpush.bf16.msra.mxu0 %v1317
    %1345 = vmatpush.bf16.msra.mxu0 %v1313
    %1346 = vmatpush.bf16.msra.mxu0 %v1309
    %1347 = vmatpush.bf16.msra.mxu0 %v1305
    %1348 = vmatmul.bf16.gmra.mxu0 %v1338
    %v1349 = vpop.f32.mrf.mxu0
    %v1350 = vadd.f32 0.0, %v1349
    %v1351 = vpop.f32.mrf.mxu0
    %1352 = vdwg.mxu0
    %1353 = vmatpush.bf16.msra.mxu0 0
    %1354 = vmatpush.bf16.msra.mxu0 0
    %1355 = vmatpush.bf16.msra.mxu0 0
    %1356 = vmatpush.bf16.msra.mxu0 0
    %1357 = vmatpush.bf16.msra.mxu0 %v1318
    %1358 = vmatpush.bf16.msra.mxu0 %v1314
    %1359 = vmatpush.bf16.msra.mxu0 %v1310
    %1360 = vmatpush.bf16.msra.mxu0 %v1306
    %1361 = vmatmul.bf16.gmra.mxu0 %v1338
    %v1362 = vpop.f32.mrf.mxu0
    %v1363 = vadd.f32 0.0, %v1362
    %v1364 = vpop.f32.mrf.mxu0
    %1365 = vdwg.mxu0
    %1366 = vmatpush.bf16.msra.mxu0 0
    %1367 = vmatpush.bf16.msra.mxu0 0
    %1368 = vmatpush.bf16.msra.mxu0 0
    %1369 = vmatpush.bf16.msra.mxu0 0
    %1370 = vmatpush.bf16.msra.mxu0 %v1319
    %1371 = vmatpush.bf16.msra.mxu0 %v1315
    %1372 = vmatpush.bf16.msra.mxu0 %v1311
    %1373 = vmatpush.bf16.msra.mxu0 %v1307
    %1374 = vmatmul.bf16.gmra.mxu0 %v1338
    %v1375 = vpop.f32.mrf.mxu0
    %v1376 = vadd.f32 0.0, %v1375
    %v1377 = vpop.f32.mrf.mxu0
    %1378 = vdwg.mxu0
    %1379 = vmatpush.bf16.msra.mxu0 0
    %1380 = vmatpush.bf16.msra.mxu0 0
    %1381 = vmatpush.bf16.msra.mxu0 0
    %1382 = vmatpush.bf16.msra.mxu0 0
    %1383 = vmatpush.bf16.msra.mxu0 %v1320
    %1384 = vmatpush.bf16.msra.mxu0 %v1316
    %1385 = vmatpush.bf16.msra.mxu0 %v1312
    %1386 = vmatpush.bf16.msra.mxu0 %v1308
    %1387 = vmatmul.bf16.gmra.mxu0 %v1338
    %v1388 = vpop.f32.mrf.mxu0
    %v1389 = vadd.f32 0.0, %v1388
    %v1390 = vpop.f32.mrf.mxu0
    %1391 = vdwg.mxu0
    %v1392 = vadd.f32 %v1235, %v1350
    %v1393 = vadd.f32 %v1236, %v1363
    %v1394 = vadd.f32 %v1237, %v1376
    %v1395 = vadd.f32 %v1238, %v1389
    %v1396 = vpack.c.bf16 %v764, %v764
    %s1397 = scalar_lea.vmem %s3, 512
    %v1398 = vld [vmem:[%s1397] sm:$0xff]
    %v1399 = vld [vmem:[%s1397 + $0x8] sm:$0xff]
    %v1400 = vld [vmem:[%s1397 + $0x10] sm:$0xff]
    %v1401 = vld [vmem:[%s1397 + $0x18] sm:$0xff]
    %v1402 = vld [vmem:[%s1397 + $0x20] sm:$0xff]
    %v1403 = vld [vmem:[%s1397 + $0x28] sm:$0xff]
    %v1404 = vld [vmem:[%s1397 + $0x30] sm:$0xff]
    %v1405 = vld [vmem:[%s1397 + $0x38] sm:$0xff]
    %v1406 = vld [vmem:[%s1397 + $0x40] sm:$0xff]
    %v1407 = vld [vmem:[%s1397 + $0x48] sm:$0xff]
    %v1408 = vld [vmem:[%s1397 + $0x50] sm:$0xff]
    %v1409 = vld [vmem:[%s1397 + $0x58] sm:$0xff]
    %v1410 = vld [vmem:[%s1397 + $0x60] sm:$0xff]
    %v1411 = vld [vmem:[%s1397 + $0x68] sm:$0xff]
    %v1412 = vld [vmem:[%s1397 + $0x70] sm:$0xff]
    %v1413 = vld [vmem:[%s1397 + $0x78] sm:$0xff]
    %v1430 = vunpack.c.l.b16 %v1398
    %v1431 = vunpack.c.h.b16 %v1398
    %v1432 = vunpack.c.l.b16 %v1399
    %v1433 = vunpack.c.h.b16 %v1399
    %v1434 = vunpack.c.l.b16 %v1400
    %v1435 = vunpack.c.h.b16 %v1400
    %v1436 = vunpack.c.l.b16 %v1401
    %v1437 = vunpack.c.h.b16 %v1401
    %v1438 = vunpack.c.l.b16 %v1402
    %v1439 = vunpack.c.h.b16 %v1402
    %v1440 = vunpack.c.l.b16 %v1403
    %v1441 = vunpack.c.h.b16 %v1403
    %v1442 = vunpack.c.l.b16 %v1404
    %v1443 = vunpack.c.h.b16 %v1404
    %v1444 = vunpack.c.l.b16 %v1405
    %v1445 = vunpack.c.h.b16 %v1405
    %v1446 = vunpack.c.l.b16 %v1406
    %v1447 = vunpack.c.h.b16 %v1406
    %v1448 = vunpack.c.l.b16 %v1407
    %v1449 = vunpack.c.h.b16 %v1407
    %v1450 = vunpack.c.l.b16 %v1408
    %v1451 = vunpack.c.h.b16 %v1408
    %v1452 = vunpack.c.l.b16 %v1409
    %v1453 = vunpack.c.h.b16 %v1409
    %v1454 = vunpack.c.l.b16 %v1410
    %v1455 = vunpack.c.h.b16 %v1410
    %v1456 = vunpack.c.l.b16 %v1411
    %v1457 = vunpack.c.h.b16 %v1411
    %v1458 = vunpack.c.l.b16 %v1412
    %v1459 = vunpack.c.h.b16 %v1412
    %v1460 = vunpack.c.l.b16 %v1413
    %v1461 = vunpack.c.h.b16 %v1413
    %v1462 = vpack.c.b16 %v1434, %v1430
    %v1463 = vpack.c.b16 %v1435, %v1431
    %v1464 = vpack.c.b16 %v1436, %v1432
    %v1465 = vpack.c.b16 %v1437, %v1433
    %v1466 = vpack.c.b16 %v1442, %v1438
    %v1467 = vpack.c.b16 %v1443, %v1439
    %v1468 = vpack.c.b16 %v1444, %v1440
    %v1469 = vpack.c.b16 %v1445, %v1441
    %v1470 = vpack.c.b16 %v1450, %v1446
    %v1471 = vpack.c.b16 %v1451, %v1447
    %v1472 = vpack.c.b16 %v1452, %v1448
    %v1473 = vpack.c.b16 %v1453, %v1449
    %v1474 = vpack.c.b16 %v1458, %v1454
    %v1475 = vpack.c.b16 %v1459, %v1455
    %v1476 = vpack.c.b16 %v1460, %v1456
    %v1477 = vpack.c.b16 %v1461, %v1457
    %v1495 = vsel %vm526, %v1396, 0
    %1497 = vmatpush.bf16.msra.mxu0 0
    %1498 = vmatpush.bf16.msra.mxu0 0
    %1499 = vmatpush.bf16.msra.mxu0 0
    %1500 = vmatpush.bf16.msra.mxu0 0
    %1501 = vmatpush.bf16.msra.mxu0 %v1474
    %1502 = vmatpush.bf16.msra.mxu0 %v1470
    %1503 = vmatpush.bf16.msra.mxu0 %v1466
    %1504 = vmatpush.bf16.msra.mxu0 %v1462
    %1505 = vmatmul.bf16.gmra.mxu0 %v1495
    %v1506 = vpop.f32.mrf.mxu0
    %v1507 = vadd.f32 0.0, %v1506
    %v1508 = vpop.f32.mrf.mxu0
    %1509 = vdwg.mxu0
    %1510 = vmatpush.bf16.msra.mxu0 0
    %1511 = vmatpush.bf16.msra.mxu0 0
    %1512 = vmatpush.bf16.msra.mxu0 0
    %1513 = vmatpush.bf16.msra.mxu0 0
    %1514 = vmatpush.bf16.msra.mxu0 %v1475
    %1515 = vmatpush.bf16.msra.mxu0 %v1471
    %1516 = vmatpush.bf16.msra.mxu0 %v1467
    %1517 = vmatpush.bf16.msra.mxu0 %v1463
    %1518 = vmatmul.bf16.gmra.mxu0 %v1495
    %v1519 = vpop.f32.mrf.mxu0
    %v1520 = vadd.f32 0.0, %v1519
    %v1521 = vpop.f32.mrf.mxu0
    %1522 = vdwg.mxu0
    %1523 = vmatpush.bf16.msra.mxu0 0
    %1524 = vmatpush.bf16.msra.mxu0 0
    %1525 = vmatpush.bf16.msra.mxu0 0
    %1526 = vmatpush.bf16.msra.mxu0 0
    %1527 = vmatpush.bf16.msra.mxu0 %v1476
    %1528 = vmatpush.bf16.msra.mxu0 %v1472
    %1529 = vmatpush.bf16.msra.mxu0 %v1468
    %1530 = vmatpush.bf16.msra.mxu0 %v1464
    %1531 = vmatmul.bf16.gmra.mxu0 %v1495
    %v1532 = vpop.f32.mrf.mxu0
    %v1533 = vadd.f32 0.0, %v1532
    %v1534 = vpop.f32.mrf.mxu0
    %1535 = vdwg.mxu0
    %1536 = vmatpush.bf16.msra.mxu0 0
    %1537 = vmatpush.bf16.msra.mxu0 0
    %1538 = vmatpush.bf16.msra.mxu0 0
    %1539 = vmatpush.bf16.msra.mxu0 0
    %1540 = vmatpush.bf16.msra.mxu0 %v1477
    %1541 = vmatpush.bf16.msra.mxu0 %v1473
    %1542 = vmatpush.bf16.msra.mxu0 %v1469
    %1543 = vmatpush.bf16.msra.mxu0 %v1465
    %1544 = vmatmul.bf16.gmra.mxu0 %v1495
    %v1545 = vpop.f32.mrf.mxu0
    %v1546 = vadd.f32 0.0, %v1545
    %v1547 = vpop.f32.mrf.mxu0
    %1548 = vdwg.mxu0
    %v1549 = vadd.f32 %v1392, %v1507
    %v1550 = vadd.f32 %v1393, %v1520
    %v1551 = vadd.f32 %v1394, %v1533
    %v1552 = vadd.f32 %v1395, %v1546
    %s1553 = scalar_lea.vmem %s3, 640
    %v1554 = vld [vmem:[%s1553] sm:$0xff]
    %v1555 = vld [vmem:[%s1553 + $0x8] sm:$0xff]
    %v1556 = vld [vmem:[%s1553 + $0x10] sm:$0xff]
    %v1557 = vld [vmem:[%s1553 + $0x18] sm:$0xff]
    %v1558 = vld [vmem:[%s1553 + $0x20] sm:$0xff]
    %v1559 = vld [vmem:[%s1553 + $0x28] sm:$0xff]
    %v1560 = vld [vmem:[%s1553 + $0x30] sm:$0xff]
    %v1561 = vld [vmem:[%s1553 + $0x38] sm:$0xff]
    %v1562 = vld [vmem:[%s1553 + $0x40] sm:$0xff]
    %v1563 = vld [vmem:[%s1553 + $0x48] sm:$0xff]
    %v1564 = vld [vmem:[%s1553 + $0x50] sm:$0xff]
    %v1565 = vld [vmem:[%s1553 + $0x58] sm:$0xff]
    %v1566 = vld [vmem:[%s1553 + $0x60] sm:$0xff]
    %v1567 = vld [vmem:[%s1553 + $0x68] sm:$0xff]
    %v1568 = vld [vmem:[%s1553 + $0x70] sm:$0xff]
    %v1569 = vld [vmem:[%s1553 + $0x78] sm:$0xff]
    %v1571 = vrot.slane %v1396, 1
    %v1588 = vunpack.c.l.b16 %v1554
    %v1589 = vunpack.c.h.b16 %v1554
    %v1590 = vunpack.c.l.b16 %v1555
    %v1591 = vunpack.c.h.b16 %v1555
    %v1592 = vunpack.c.l.b16 %v1556
    %v1593 = vunpack.c.h.b16 %v1556
    %v1594 = vunpack.c.l.b16 %v1557
    %v1595 = vunpack.c.h.b16 %v1557
    %v1596 = vunpack.c.l.b16 %v1558
    %v1597 = vunpack.c.h.b16 %v1558
    %v1598 = vunpack.c.l.b16 %v1559
    %v1599 = vunpack.c.h.b16 %v1559
    %v1600 = vunpack.c.l.b16 %v1560
    %v1601 = vunpack.c.h.b16 %v1560
    %v1602 = vunpack.c.l.b16 %v1561
    %v1603 = vunpack.c.h.b16 %v1561
    %v1604 = vunpack.c.l.b16 %v1562
    %v1605 = vunpack.c.h.b16 %v1562
    %v1606 = vunpack.c.l.b16 %v1563
    %v1607 = vunpack.c.h.b16 %v1563
    %v1608 = vunpack.c.l.b16 %v1564
    %v1609 = vunpack.c.h.b16 %v1564
    %v1610 = vunpack.c.l.b16 %v1565
    %v1611 = vunpack.c.h.b16 %v1565
    %v1612 = vunpack.c.l.b16 %v1566
    %v1613 = vunpack.c.h.b16 %v1566
    %v1614 = vunpack.c.l.b16 %v1567
    %v1615 = vunpack.c.h.b16 %v1567
    %v1616 = vunpack.c.l.b16 %v1568
    %v1617 = vunpack.c.h.b16 %v1568
    %v1618 = vunpack.c.l.b16 %v1569
    %v1619 = vunpack.c.h.b16 %v1569
    %v1620 = vpack.c.b16 %v1592, %v1588
    %v1621 = vpack.c.b16 %v1593, %v1589
    %v1622 = vpack.c.b16 %v1594, %v1590
    %v1623 = vpack.c.b16 %v1595, %v1591
    %v1624 = vpack.c.b16 %v1600, %v1596
    %v1625 = vpack.c.b16 %v1601, %v1597
    %v1626 = vpack.c.b16 %v1602, %v1598
    %v1627 = vpack.c.b16 %v1603, %v1599
    %v1628 = vpack.c.b16 %v1608, %v1604
    %v1629 = vpack.c.b16 %v1609, %v1605
    %v1630 = vpack.c.b16 %v1610, %v1606
    %v1631 = vpack.c.b16 %v1611, %v1607
    %v1632 = vpack.c.b16 %v1616, %v1612
    %v1633 = vpack.c.b16 %v1617, %v1613
    %v1634 = vpack.c.b16 %v1618, %v1614
    %v1635 = vpack.c.b16 %v1619, %v1615
    %v1653 = vsel %vm526, %v1571, 0
    %1655 = vmatpush.bf16.msra.mxu0 0
    %1656 = vmatpush.bf16.msra.mxu0 0
    %1657 = vmatpush.bf16.msra.mxu0 0
    %1658 = vmatpush.bf16.msra.mxu0 0
    %1659 = vmatpush.bf16.msra.mxu0 %v1632
    %1660 = vmatpush.bf16.msra.mxu0 %v1628
    %1661 = vmatpush.bf16.msra.mxu0 %v1624
    %1662 = vmatpush.bf16.msra.mxu0 %v1620
    %1663 = vmatmul.bf16.gmra.mxu0 %v1653
    %v1664 = vpop.f32.mrf.mxu0
    %v1665 = vadd.f32 0.0, %v1664
    %v1666 = vpop.f32.mrf.mxu0
    %1667 = vdwg.mxu0
    %1668 = vmatpush.bf16.msra.mxu0 0
    %1669 = vmatpush.bf16.msra.mxu0 0
    %1670 = vmatpush.bf16.msra.mxu0 0
    %1671 = vmatpush.bf16.msra.mxu0 0
    %1672 = vmatpush.bf16.msra.mxu0 %v1633
    %1673 = vmatpush.bf16.msra.mxu0 %v1629
    %1674 = vmatpush.bf16.msra.mxu0 %v1625
    %1675 = vmatpush.bf16.msra.mxu0 %v1621
    %1676 = vmatmul.bf16.gmra.mxu0 %v1653
    %v1677 = vpop.f32.mrf.mxu0
    %v1678 = vadd.f32 0.0, %v1677
    %v1679 = vpop.f32.mrf.mxu0
    %1680 = vdwg.mxu0
    %1681 = vmatpush.bf16.msra.mxu0 0
    %1682 = vmatpush.bf16.msra.mxu0 0
    %1683 = vmatpush.bf16.msra.mxu0 0
    %1684 = vmatpush.bf16.msra.mxu0 0
    %1685 = vmatpush.bf16.msra.mxu0 %v1634
    %1686 = vmatpush.bf16.msra.mxu0 %v1630
    %1687 = vmatpush.bf16.msra.mxu0 %v1626
    %1688 = vmatpush.bf16.msra.mxu0 %v1622
    %1689 = vmatmul.bf16.gmra.mxu0 %v1653
    %v1690 = vpop.f32.mrf.mxu0
    %v1691 = vadd.f32 0.0, %v1690
    %v1692 = vpop.f32.mrf.mxu0
    %1693 = vdwg.mxu0
    %1694 = vmatpush.bf16.msra.mxu0 0
    %1695 = vmatpush.bf16.msra.mxu0 0
    %1696 = vmatpush.bf16.msra.mxu0 0
    %1697 = vmatpush.bf16.msra.mxu0 0
    %1698 = vmatpush.bf16.msra.mxu0 %v1635
    %1699 = vmatpush.bf16.msra.mxu0 %v1631
    %1700 = vmatpush.bf16.msra.mxu0 %v1627
    %1701 = vmatpush.bf16.msra.mxu0 %v1623
    %1702 = vmatmul.bf16.gmra.mxu0 %v1653
    %v1703 = vpop.f32.mrf.mxu0
    %v1704 = vadd.f32 0.0, %v1703
    %v1705 = vpop.f32.mrf.mxu0
    %1706 = vdwg.mxu0
    %v1707 = vadd.f32 %v1549, %v1665
    %v1708 = vadd.f32 %v1550, %v1678
    %v1709 = vadd.f32 %v1551, %v1691
    %v1710 = vadd.f32 %v1552, %v1704
    %s1711 = scalar_lea.vmem %s3, 768
    %v1712 = vld [vmem:[%s1711] sm:$0xff]
    %v1713 = vld [vmem:[%s1711 + $0x8] sm:$0xff]
    %v1714 = vld [vmem:[%s1711 + $0x10] sm:$0xff]
    %v1715 = vld [vmem:[%s1711 + $0x18] sm:$0xff]
    %v1716 = vld [vmem:[%s1711 + $0x20] sm:$0xff]
    %v1717 = vld [vmem:[%s1711 + $0x28] sm:$0xff]
    %v1718 = vld [vmem:[%s1711 + $0x30] sm:$0xff]
    %v1719 = vld [vmem:[%s1711 + $0x38] sm:$0xff]
    %v1720 = vld [vmem:[%s1711 + $0x40] sm:$0xff]
    %v1721 = vld [vmem:[%s1711 + $0x48] sm:$0xff]
    %v1722 = vld [vmem:[%s1711 + $0x50] sm:$0xff]
    %v1723 = vld [vmem:[%s1711 + $0x58] sm:$0xff]
    %v1724 = vld [vmem:[%s1711 + $0x60] sm:$0xff]
    %v1725 = vld [vmem:[%s1711 + $0x68] sm:$0xff]
    %v1726 = vld [vmem:[%s1711 + $0x70] sm:$0xff]
    %v1727 = vld [vmem:[%s1711 + $0x78] sm:$0xff]
    %v1728 = vrot.slane %v1396, 2
    %v1745 = vunpack.c.l.b16 %v1712
    %v1746 = vunpack.c.h.b16 %v1712
    %v1747 = vunpack.c.l.b16 %v1713
    %v1748 = vunpack.c.h.b16 %v1713
    %v1749 = vunpack.c.l.b16 %v1714
    %v1750 = vunpack.c.h.b16 %v1714
    %v1751 = vunpack.c.l.b16 %v1715
    %v1752 = vunpack.c.h.b16 %v1715
    %v1753 = vunpack.c.l.b16 %v1716
    %v1754 = vunpack.c.h.b16 %v1716
    %v1755 = vunpack.c.l.b16 %v1717
    %v1756 = vunpack.c.h.b16 %v1717
    %v1757 = vunpack.c.l.b16 %v1718
    %v1758 = vunpack.c.h.b16 %v1718
    %v1759 = vunpack.c.l.b16 %v1719
    %v1760 = vunpack.c.h.b16 %v1719
    %v1761 = vunpack.c.l.b16 %v1720
    %v1762 = vunpack.c.h.b16 %v1720
    %v1763 = vunpack.c.l.b16 %v1721
    %v1764 = vunpack.c.h.b16 %v1721
    %v1765 = vunpack.c.l.b16 %v1722
    %v1766 = vunpack.c.h.b16 %v1722
    %v1767 = vunpack.c.l.b16 %v1723
    %v1768 = vunpack.c.h.b16 %v1723
    %v1769 = vunpack.c.l.b16 %v1724
    %v1770 = vunpack.c.h.b16 %v1724
    %v1771 = vunpack.c.l.b16 %v1725
    %v1772 = vunpack.c.h.b16 %v1725
    %v1773 = vunpack.c.l.b16 %v1726
    %v1774 = vunpack.c.h.b16 %v1726
    %v1775 = vunpack.c.l.b16 %v1727
    %v1776 = vunpack.c.h.b16 %v1727
    %v1777 = vpack.c.b16 %v1749, %v1745
    %v1778 = vpack.c.b16 %v1750, %v1746
    %v1779 = vpack.c.b16 %v1751, %v1747
    %v1780 = vpack.c.b16 %v1752, %v1748
    %v1781 = vpack.c.b16 %v1757, %v1753
    %v1782 = vpack.c.b16 %v1758, %v1754
    %v1783 = vpack.c.b16 %v1759, %v1755
    %v1784 = vpack.c.b16 %v1760, %v1756
    %v1785 = vpack.c.b16 %v1765, %v1761
    %v1786 = vpack.c.b16 %v1766, %v1762
    %v1787 = vpack.c.b16 %v1767, %v1763
    %v1788 = vpack.c.b16 %v1768, %v1764
    %v1789 = vpack.c.b16 %v1773, %v1769
    %v1790 = vpack.c.b16 %v1774, %v1770
    %v1791 = vpack.c.b16 %v1775, %v1771
    %v1792 = vpack.c.b16 %v1776, %v1772
    %v1810 = vsel %vm526, %v1728, 0
    %1812 = vmatpush.bf16.msra.mxu0 0
    %1813 = vmatpush.bf16.msra.mxu0 0
    %1814 = vmatpush.bf16.msra.mxu0 0
    %1815 = vmatpush.bf16.msra.mxu0 0
    %1816 = vmatpush.bf16.msra.mxu0 %v1789
    %1817 = vmatpush.bf16.msra.mxu0 %v1785
    %1818 = vmatpush.bf16.msra.mxu0 %v1781
    %1819 = vmatpush.bf16.msra.mxu0 %v1777
    %1820 = vmatmul.bf16.gmra.mxu0 %v1810
    %v1821 = vpop.f32.mrf.mxu0
    %v1822 = vadd.f32 0.0, %v1821
    %v1823 = vpop.f32.mrf.mxu0
    %1824 = vdwg.mxu0
    %1825 = vmatpush.bf16.msra.mxu0 0
    %1826 = vmatpush.bf16.msra.mxu0 0
    %1827 = vmatpush.bf16.msra.mxu0 0
    %1828 = vmatpush.bf16.msra.mxu0 0
    %1829 = vmatpush.bf16.msra.mxu0 %v1790
    %1830 = vmatpush.bf16.msra.mxu0 %v1786
    %1831 = vmatpush.bf16.msra.mxu0 %v1782
    %1832 = vmatpush.bf16.msra.mxu0 %v1778
    %1833 = vmatmul.bf16.gmra.mxu0 %v1810
    %v1834 = vpop.f32.mrf.mxu0
    %v1835 = vadd.f32 0.0, %v1834
    %v1836 = vpop.f32.mrf.mxu0
    %1837 = vdwg.mxu0
    %1838 = vmatpush.bf16.msra.mxu0 0
    %1839 = vmatpush.bf16.msra.mxu0 0
    %1840 = vmatpush.bf16.msra.mxu0 0
    %1841 = vmatpush.bf16.msra.mxu0 0
    %1842 = vmatpush.bf16.msra.mxu0 %v1791
    %1843 = vmatpush.bf16.msra.mxu0 %v1787
    %1844 = vmatpush.bf16.msra.mxu0 %v1783
    %1845 = vmatpush.bf16.msra.mxu0 %v1779
    %1846 = vmatmul.bf16.gmra.mxu0 %v1810
    %v1847 = vpop.f32.mrf.mxu0
    %v1848 = vadd.f32 0.0, %v1847
    %v1849 = vpop.f32.mrf.mxu0
    %1850 = vdwg.mxu0
    %1851 = vmatpush.bf16.msra.mxu0 0
    %1852 = vmatpush.bf16.msra.mxu0 0
    %1853 = vmatpush.bf16.msra.mxu0 0
    %1854 = vmatpush.bf16.msra.mxu0 0
    %1855 = vmatpush.bf16.msra.mxu0 %v1792
    %1856 = vmatpush.bf16.msra.mxu0 %v1788
    %1857 = vmatpush.bf16.msra.mxu0 %v1784
    %1858 = vmatpush.bf16.msra.mxu0 %v1780
    %1859 = vmatmul.bf16.gmra.mxu0 %v1810
    %v1860 = vpop.f32.mrf.mxu0
    %v1861 = vadd.f32 0.0, %v1860
    %v1862 = vpop.f32.mrf.mxu0
    %1863 = vdwg.mxu0
    %v1864 = vadd.f32 %v1707, %v1822
    %v1865 = vadd.f32 %v1708, %v1835
    %v1866 = vadd.f32 %v1709, %v1848
    %v1867 = vadd.f32 %v1710, %v1861
    %s1868 = scalar_lea.vmem %s3, 896
    %v1869 = vld [vmem:[%s1868] sm:$0xff]
    %v1870 = vld [vmem:[%s1868 + $0x8] sm:$0xff]
    %v1871 = vld [vmem:[%s1868 + $0x10] sm:$0xff]
    %v1872 = vld [vmem:[%s1868 + $0x18] sm:$0xff]
    %v1873 = vld [vmem:[%s1868 + $0x20] sm:$0xff]
    %v1874 = vld [vmem:[%s1868 + $0x28] sm:$0xff]
    %v1875 = vld [vmem:[%s1868 + $0x30] sm:$0xff]
    %v1876 = vld [vmem:[%s1868 + $0x38] sm:$0xff]
    %v1877 = vld [vmem:[%s1868 + $0x40] sm:$0xff]
    %v1878 = vld [vmem:[%s1868 + $0x48] sm:$0xff]
    %v1879 = vld [vmem:[%s1868 + $0x50] sm:$0xff]
    %v1880 = vld [vmem:[%s1868 + $0x58] sm:$0xff]
    %v1881 = vld [vmem:[%s1868 + $0x60] sm:$0xff]
    %v1882 = vld [vmem:[%s1868 + $0x68] sm:$0xff]
    %v1883 = vld [vmem:[%s1868 + $0x70] sm:$0xff]
    %v1884 = vld [vmem:[%s1868 + $0x78] sm:$0xff]
    %v1885 = vrot.slane %v1396, 3
    %v1902 = vunpack.c.l.b16 %v1869
    %v1903 = vunpack.c.h.b16 %v1869
    %v1904 = vunpack.c.l.b16 %v1870
    %v1905 = vunpack.c.h.b16 %v1870
    %v1906 = vunpack.c.l.b16 %v1871
    %v1907 = vunpack.c.h.b16 %v1871
    %v1908 = vunpack.c.l.b16 %v1872
    %v1909 = vunpack.c.h.b16 %v1872
    %v1910 = vunpack.c.l.b16 %v1873
    %v1911 = vunpack.c.h.b16 %v1873
    %v1912 = vunpack.c.l.b16 %v1874
    %v1913 = vunpack.c.h.b16 %v1874
    %v1914 = vunpack.c.l.b16 %v1875
    %v1915 = vunpack.c.h.b16 %v1875
    %v1916 = vunpack.c.l.b16 %v1876
    %v1917 = vunpack.c.h.b16 %v1876
    %v1918 = vunpack.c.l.b16 %v1877
    %v1919 = vunpack.c.h.b16 %v1877
    %v1920 = vunpack.c.l.b16 %v1878
    %v1921 = vunpack.c.h.b16 %v1878
    %v1922 = vunpack.c.l.b16 %v1879
    %v1923 = vunpack.c.h.b16 %v1879
    %v1924 = vunpack.c.l.b16 %v1880
    %v1925 = vunpack.c.h.b16 %v1880
    %v1926 = vunpack.c.l.b16 %v1881
    %v1927 = vunpack.c.h.b16 %v1881
    %v1928 = vunpack.c.l.b16 %v1882
    %v1929 = vunpack.c.h.b16 %v1882
    %v1930 = vunpack.c.l.b16 %v1883
    %v1931 = vunpack.c.h.b16 %v1883
    %v1932 = vunpack.c.l.b16 %v1884
    %v1933 = vunpack.c.h.b16 %v1884
    %v1934 = vpack.c.b16 %v1906, %v1902
    %v1935 = vpack.c.b16 %v1907, %v1903
    %v1936 = vpack.c.b16 %v1908, %v1904
    %v1937 = vpack.c.b16 %v1909, %v1905
    %v1938 = vpack.c.b16 %v1914, %v1910
    %v1939 = vpack.c.b16 %v1915, %v1911
    %v1940 = vpack.c.b16 %v1916, %v1912
    %v1941 = vpack.c.b16 %v1917, %v1913
    %v1942 = vpack.c.b16 %v1922, %v1918
    %v1943 = vpack.c.b16 %v1923, %v1919
    %v1944 = vpack.c.b16 %v1924, %v1920
    %v1945 = vpack.c.b16 %v1925, %v1921
    %v1946 = vpack.c.b16 %v1930, %v1926
    %v1947 = vpack.c.b16 %v1931, %v1927
    %v1948 = vpack.c.b16 %v1932, %v1928
    %v1949 = vpack.c.b16 %v1933, %v1929
    %v1967 = vsel %vm526, %v1885, 0
    %1969 = vmatpush.bf16.msra.mxu0 0
    %1970 = vmatpush.bf16.msra.mxu0 0
    %1971 = vmatpush.bf16.msra.mxu0 0
    %1972 = vmatpush.bf16.msra.mxu0 0
    %1973 = vmatpush.bf16.msra.mxu0 %v1946
    %1974 = vmatpush.bf16.msra.mxu0 %v1942
    %1975 = vmatpush.bf16.msra.mxu0 %v1938
    %1976 = vmatpush.bf16.msra.mxu0 %v1934
    %1977 = vmatmul.bf16.gmra.mxu0 %v1967
    %v1978 = vpop.f32.mrf.mxu0
    %v1979 = vadd.f32 0.0, %v1978
    %v1980 = vpop.f32.mrf.mxu0
    %1981 = vdwg.mxu0
    %1982 = vmatpush.bf16.msra.mxu0 0
    %1983 = vmatpush.bf16.msra.mxu0 0
    %1984 = vmatpush.bf16.msra.mxu0 0
    %1985 = vmatpush.bf16.msra.mxu0 0
    %1986 = vmatpush.bf16.msra.mxu0 %v1947
    %1987 = vmatpush.bf16.msra.mxu0 %v1943
    %1988 = vmatpush.bf16.msra.mxu0 %v1939
    %1989 = vmatpush.bf16.msra.mxu0 %v1935
    %1990 = vmatmul.bf16.gmra.mxu0 %v1967
    %v1991 = vpop.f32.mrf.mxu0
    %v1992 = vadd.f32 0.0, %v1991
    %v1993 = vpop.f32.mrf.mxu0
    %1994 = vdwg.mxu0
    %1995 = vmatpush.bf16.msra.mxu0 0
    %1996 = vmatpush.bf16.msra.mxu0 0
    %1997 = vmatpush.bf16.msra.mxu0 0
    %1998 = vmatpush.bf16.msra.mxu0 0
    %1999 = vmatpush.bf16.msra.mxu0 %v1948
    %2000 = vmatpush.bf16.msra.mxu0 %v1944
    %2001 = vmatpush.bf16.msra.mxu0 %v1940
    %2002 = vmatpush.bf16.msra.mxu0 %v1936
    %2003 = vmatmul.bf16.gmra.mxu0 %v1967
    %v2004 = vpop.f32.mrf.mxu0
    %v2005 = vadd.f32 0.0, %v2004
    %v2006 = vpop.f32.mrf.mxu0
    %2007 = vdwg.mxu0
    %2008 = vmatpush.bf16.msra.mxu0 0
    %2009 = vmatpush.bf16.msra.mxu0 0
    %2010 = vmatpush.bf16.msra.mxu0 0
    %2011 = vmatpush.bf16.msra.mxu0 0
    %2012 = vmatpush.bf16.msra.mxu0 %v1949
    %2013 = vmatpush.bf16.msra.mxu0 %v1945
    %2014 = vmatpush.bf16.msra.mxu0 %v1941
    %2015 = vmatpush.bf16.msra.mxu0 %v1937
    %2016 = vmatmul.bf16.gmra.mxu0 %v1967
    %v2017 = vpop.f32.mrf.mxu0
    %v2018 = vadd.f32 0.0, %v2017
    %v2019 = vpop.f32.mrf.mxu0
    %2020 = vdwg.mxu0
    %v2021 = vadd.f32 %v1864, %v1979
    %v2022 = vadd.f32 %v1865, %v1992
    %v2023 = vadd.f32 %v1866, %v2005
    %v2024 = vadd.f32 %v1867, %v2018
    %v2025 = vpack.c.bf16 %v765, %v765
    %s2026 = scalar_lea.vmem %s3, 1024
    %v2027 = vld [vmem:[%s2026] sm:$0xff]
    %v2028 = vld [vmem:[%s2026 + $0x8] sm:$0xff]
    %v2029 = vld [vmem:[%s2026 + $0x10] sm:$0xff]
    %v2030 = vld [vmem:[%s2026 + $0x18] sm:$0xff]
    %v2031 = vld [vmem:[%s2026 + $0x20] sm:$0xff]
    %v2032 = vld [vmem:[%s2026 + $0x28] sm:$0xff]
    %v2033 = vld [vmem:[%s2026 + $0x30] sm:$0xff]
    %v2034 = vld [vmem:[%s2026 + $0x38] sm:$0xff]
    %v2035 = vld [vmem:[%s2026 + $0x40] sm:$0xff]
    %v2036 = vld [vmem:[%s2026 + $0x48] sm:$0xff]
    %v2037 = vld [vmem:[%s2026 + $0x50] sm:$0xff]
    %v2038 = vld [vmem:[%s2026 + $0x58] sm:$0xff]
    %v2039 = vld [vmem:[%s2026 + $0x60] sm:$0xff]
    %v2040 = vld [vmem:[%s2026 + $0x68] sm:$0xff]
    %v2041 = vld [vmem:[%s2026 + $0x70] sm:$0xff]
    %v2042 = vld [vmem:[%s2026 + $0x78] sm:$0xff]
    %v2059 = vunpack.c.l.b16 %v2027
    %v2060 = vunpack.c.h.b16 %v2027
    %v2061 = vunpack.c.l.b16 %v2028
    %v2062 = vunpack.c.h.b16 %v2028
    %v2063 = vunpack.c.l.b16 %v2029
    %v2064 = vunpack.c.h.b16 %v2029
    %v2065 = vunpack.c.l.b16 %v2030
    %v2066 = vunpack.c.h.b16 %v2030
    %v2067 = vunpack.c.l.b16 %v2031
    %v2068 = vunpack.c.h.b16 %v2031
    %v2069 = vunpack.c.l.b16 %v2032
    %v2070 = vunpack.c.h.b16 %v2032
    %v2071 = vunpack.c.l.b16 %v2033
    %v2072 = vunpack.c.h.b16 %v2033
    %v2073 = vunpack.c.l.b16 %v2034
    %v2074 = vunpack.c.h.b16 %v2034
    %v2075 = vunpack.c.l.b16 %v2035
    %v2076 = vunpack.c.h.b16 %v2035
    %v2077 = vunpack.c.l.b16 %v2036
    %v2078 = vunpack.c.h.b16 %v2036
    %v2079 = vunpack.c.l.b16 %v2037
    %v2080 = vunpack.c.h.b16 %v2037
    %v2081 = vunpack.c.l.b16 %v2038
    %v2082 = vunpack.c.h.b16 %v2038
    %v2083 = vunpack.c.l.b16 %v2039
    %v2084 = vunpack.c.h.b16 %v2039
    %v2085 = vunpack.c.l.b16 %v2040
    %v2086 = vunpack.c.h.b16 %v2040
    %v2087 = vunpack.c.l.b16 %v2041
    %v2088 = vunpack.c.h.b16 %v2041
    %v2089 = vunpack.c.l.b16 %v2042
    %v2090 = vunpack.c.h.b16 %v2042
    %v2091 = vpack.c.b16 %v2063, %v2059
    %v2092 = vpack.c.b16 %v2064, %v2060
    %v2093 = vpack.c.b16 %v2065, %v2061
    %v2094 = vpack.c.b16 %v2066, %v2062
    %v2095 = vpack.c.b16 %v2071, %v2067
    %v2096 = vpack.c.b16 %v2072, %v2068
    %v2097 = vpack.c.b16 %v2073, %v2069
    %v2098 = vpack.c.b16 %v2074, %v2070
    %v2099 = vpack.c.b16 %v2079, %v2075
    %v2100 = vpack.c.b16 %v2080, %v2076
    %v2101 = vpack.c.b16 %v2081, %v2077
    %v2102 = vpack.c.b16 %v2082, %v2078
    %v2103 = vpack.c.b16 %v2087, %v2083
    %v2104 = vpack.c.b16 %v2088, %v2084
    %v2105 = vpack.c.b16 %v2089, %v2085
    %v2106 = vpack.c.b16 %v2090, %v2086
    %v2124 = vsel %vm526, %v2025, 0
    %2126 = vmatpush.bf16.msra.mxu0 0
    %2127 = vmatpush.bf16.msra.mxu0 0
    %2128 = vmatpush.bf16.msra.mxu0 0
    %2129 = vmatpush.bf16.msra.mxu0 0
    %2130 = vmatpush.bf16.msra.mxu0 %v2103
    %2131 = vmatpush.bf16.msra.mxu0 %v2099
    %2132 = vmatpush.bf16.msra.mxu0 %v2095
    %2133 = vmatpush.bf16.msra.mxu0 %v2091
    %2134 = vmatmul.bf16.gmra.mxu0 %v2124
    %v2135 = vpop.f32.mrf.mxu0
    %v2136 = vadd.f32 0.0, %v2135
    %v2137 = vpop.f32.mrf.mxu0
    %2138 = vdwg.mxu0
    %2139 = vmatpush.bf16.msra.mxu0 0
    %2140 = vmatpush.bf16.msra.mxu0 0
    %2141 = vmatpush.bf16.msra.mxu0 0
    %2142 = vmatpush.bf16.msra.mxu0 0
    %2143 = vmatpush.bf16.msra.mxu0 %v2104
    %2144 = vmatpush.bf16.msra.mxu0 %v2100
    %2145 = vmatpush.bf16.msra.mxu0 %v2096
    %2146 = vmatpush.bf16.msra.mxu0 %v2092
    %2147 = vmatmul.bf16.gmra.mxu0 %v2124
    %v2148 = vpop.f32.mrf.mxu0
    %v2149 = vadd.f32 0.0, %v2148
    %v2150 = vpop.f32.mrf.mxu0
    %2151 = vdwg.mxu0
    %2152 = vmatpush.bf16.msra.mxu0 0
    %2153 = vmatpush.bf16.msra.mxu0 0
    %2154 = vmatpush.bf16.msra.mxu0 0
    %2155 = vmatpush.bf16.msra.mxu0 0
    %2156 = vmatpush.bf16.msra.mxu0 %v2105
    %2157 = vmatpush.bf16.msra.mxu0 %v2101
    %2158 = vmatpush.bf16.msra.mxu0 %v2097
    %2159 = vmatpush.bf16.msra.mxu0 %v2093
    %2160 = vmatmul.bf16.gmra.mxu0 %v2124
    %v2161 = vpop.f32.mrf.mxu0
    %v2162 = vadd.f32 0.0, %v2161
    %v2163 = vpop.f32.mrf.mxu0
    %2164 = vdwg.mxu0
    %2165 = vmatpush.bf16.msra.mxu0 0
    %2166 = vmatpush.bf16.msra.mxu0 0
    %2167 = vmatpush.bf16.msra.mxu0 0
    %2168 = vmatpush.bf16.msra.mxu0 0
    %2169 = vmatpush.bf16.msra.mxu0 %v2106
    %2170 = vmatpush.bf16.msra.mxu0 %v2102
    %2171 = vmatpush.bf16.msra.mxu0 %v2098
    %2172 = vmatpush.bf16.msra.mxu0 %v2094
    %2173 = vmatmul.bf16.gmra.mxu0 %v2124
    %v2174 = vpop.f32.mrf.mxu0
    %v2175 = vadd.f32 0.0, %v2174
    %v2176 = vpop.f32.mrf.mxu0
    %2177 = vdwg.mxu0
    %v2178 = vadd.f32 %v2021, %v2136
    %v2179 = vadd.f32 %v2022, %v2149
    %v2180 = vadd.f32 %v2023, %v2162
    %v2181 = vadd.f32 %v2024, %v2175
    %s2182 = scalar_lea.vmem %s3, 1152
    %v2183 = vld [vmem:[%s2182] sm:$0xff]
    %v2184 = vld [vmem:[%s2182 + $0x8] sm:$0xff]
    %v2185 = vld [vmem:[%s2182 + $0x10] sm:$0xff]
    %v2186 = vld [vmem:[%s2182 + $0x18] sm:$0xff]
    %v2187 = vld [vmem:[%s2182 + $0x20] sm:$0xff]
    %v2188 = vld [vmem:[%s2182 + $0x28] sm:$0xff]
    %v2189 = vld [vmem:[%s2182 + $0x30] sm:$0xff]
    %v2190 = vld [vmem:[%s2182 + $0x38] sm:$0xff]
    %v2191 = vld [vmem:[%s2182 + $0x40] sm:$0xff]
    %v2192 = vld [vmem:[%s2182 + $0x48] sm:$0xff]
    %v2193 = vld [vmem:[%s2182 + $0x50] sm:$0xff]
    %v2194 = vld [vmem:[%s2182 + $0x58] sm:$0xff]
    %v2195 = vld [vmem:[%s2182 + $0x60] sm:$0xff]
    %v2196 = vld [vmem:[%s2182 + $0x68] sm:$0xff]
    %v2197 = vld [vmem:[%s2182 + $0x70] sm:$0xff]
    %v2198 = vld [vmem:[%s2182 + $0x78] sm:$0xff]
    %v2200 = vrot.slane %v2025, 1
    %v2217 = vunpack.c.l.b16 %v2183
    %v2218 = vunpack.c.h.b16 %v2183
    %v2219 = vunpack.c.l.b16 %v2184
    %v2220 = vunpack.c.h.b16 %v2184
    %v2221 = vunpack.c.l.b16 %v2185
    %v2222 = vunpack.c.h.b16 %v2185
    %v2223 = vunpack.c.l.b16 %v2186
    %v2224 = vunpack.c.h.b16 %v2186
    %v2225 = vunpack.c.l.b16 %v2187
    %v2226 = vunpack.c.h.b16 %v2187
    %v2227 = vunpack.c.l.b16 %v2188
    %v2228 = vunpack.c.h.b16 %v2188
    %v2229 = vunpack.c.l.b16 %v2189
    %v2230 = vunpack.c.h.b16 %v2189
    %v2231 = vunpack.c.l.b16 %v2190
    %v2232 = vunpack.c.h.b16 %v2190
    %v2233 = vunpack.c.l.b16 %v2191
    %v2234 = vunpack.c.h.b16 %v2191
    %v2235 = vunpack.c.l.b16 %v2192
    %v2236 = vunpack.c.h.b16 %v2192
    %v2237 = vunpack.c.l.b16 %v2193
    %v2238 = vunpack.c.h.b16 %v2193
    %v2239 = vunpack.c.l.b16 %v2194
    %v2240 = vunpack.c.h.b16 %v2194
    %v2241 = vunpack.c.l.b16 %v2195
    %v2242 = vunpack.c.h.b16 %v2195
    %v2243 = vunpack.c.l.b16 %v2196
    %v2244 = vunpack.c.h.b16 %v2196
    %v2245 = vunpack.c.l.b16 %v2197
    %v2246 = vunpack.c.h.b16 %v2197
    %v2247 = vunpack.c.l.b16 %v2198
    %v2248 = vunpack.c.h.b16 %v2198
    %v2249 = vpack.c.b16 %v2221, %v2217
    %v2250 = vpack.c.b16 %v2222, %v2218
    %v2251 = vpack.c.b16 %v2223, %v2219
    %v2252 = vpack.c.b16 %v2224, %v2220
    %v2253 = vpack.c.b16 %v2229, %v2225
    %v2254 = vpack.c.b16 %v2230, %v2226
    %v2255 = vpack.c.b16 %v2231, %v2227
    %v2256 = vpack.c.b16 %v2232, %v2228
    %v2257 = vpack.c.b16 %v2237, %v2233
    %v2258 = vpack.c.b16 %v2238, %v2234
    %v2259 = vpack.c.b16 %v2239, %v2235
    %v2260 = vpack.c.b16 %v2240, %v2236
    %v2261 = vpack.c.b16 %v2245, %v2241
    %v2262 = vpack.c.b16 %v2246, %v2242
    %v2263 = vpack.c.b16 %v2247, %v2243
    %v2264 = vpack.c.b16 %v2248, %v2244
    %v2282 = vsel %vm526, %v2200, 0
    %2284 = vmatpush.bf16.msra.mxu0 0
    %2285 = vmatpush.bf16.msra.mxu0 0
    %2286 = vmatpush.bf16.msra.mxu0 0
    %2287 = vmatpush.bf16.msra.mxu0 0
    %2288 = vmatpush.bf16.msra.mxu0 %v2261
    %2289 = vmatpush.bf16.msra.mxu0 %v2257
    %2290 = vmatpush.bf16.msra.mxu0 %v2253
    %2291 = vmatpush.bf16.msra.mxu0 %v2249
    %2292 = vmatmul.bf16.gmra.mxu0 %v2282
    %v2293 = vpop.f32.mrf.mxu0
    %v2294 = vadd.f32 0.0, %v2293
    %v2295 = vpop.f32.mrf.mxu0
    %2296 = vdwg.mxu0
    %2297 = vmatpush.bf16.msra.mxu0 0
    %2298 = vmatpush.bf16.msra.mxu0 0
    %2299 = vmatpush.bf16.msra.mxu0 0
    %2300 = vmatpush.bf16.msra.mxu0 0
    %2301 = vmatpush.bf16.msra.mxu0 %v2262
    %2302 = vmatpush.bf16.msra.mxu0 %v2258
    %2303 = vmatpush.bf16.msra.mxu0 %v2254
    %2304 = vmatpush.bf16.msra.mxu0 %v2250
    %2305 = vmatmul.bf16.gmra.mxu0 %v2282
    %v2306 = vpop.f32.mrf.mxu0
    %v2307 = vadd.f32 0.0, %v2306
    %v2308 = vpop.f32.mrf.mxu0
    %2309 = vdwg.mxu0
    %2310 = vmatpush.bf16.msra.mxu0 0
    %2311 = vmatpush.bf16.msra.mxu0 0
    %2312 = vmatpush.bf16.msra.mxu0 0
    %2313 = vmatpush.bf16.msra.mxu0 0
    %2314 = vmatpush.bf16.msra.mxu0 %v2263
    %2315 = vmatpush.bf16.msra.mxu0 %v2259
    %2316 = vmatpush.bf16.msra.mxu0 %v2255
    %2317 = vmatpush.bf16.msra.mxu0 %v2251
    %2318 = vmatmul.bf16.gmra.mxu0 %v2282
    %v2319 = vpop.f32.mrf.mxu0
    %v2320 = vadd.f32 0.0, %v2319
    %v2321 = vpop.f32.mrf.mxu0
    %2322 = vdwg.mxu0
    %2323 = vmatpush.bf16.msra.mxu0 0
    %2324 = vmatpush.bf16.msra.mxu0 0
    %2325 = vmatpush.bf16.msra.mxu0 0
    %2326 = vmatpush.bf16.msra.mxu0 0
    %2327 = vmatpush.bf16.msra.mxu0 %v2264
    %2328 = vmatpush.bf16.msra.mxu0 %v2260
    %2329 = vmatpush.bf16.msra.mxu0 %v2256
    %2330 = vmatpush.bf16.msra.mxu0 %v2252
    %2331 = vmatmul.bf16.gmra.mxu0 %v2282
    %v2332 = vpop.f32.mrf.mxu0
    %v2333 = vadd.f32 0.0, %v2332
    %v2334 = vpop.f32.mrf.mxu0
    %2335 = vdwg.mxu0
    %v2336 = vadd.f32 %v2178, %v2294
    %v2337 = vadd.f32 %v2179, %v2307
    %v2338 = vadd.f32 %v2180, %v2320
    %v2339 = vadd.f32 %v2181, %v2333
    %s2340 = scalar_lea.vmem %s3, 1280
    %v2341 = vld [vmem:[%s2340] sm:$0xff]
    %v2342 = vld [vmem:[%s2340 + $0x8] sm:$0xff]
    %v2343 = vld [vmem:[%s2340 + $0x10] sm:$0xff]
    %v2344 = vld [vmem:[%s2340 + $0x18] sm:$0xff]
    %v2345 = vld [vmem:[%s2340 + $0x20] sm:$0xff]
    %v2346 = vld [vmem:[%s2340 + $0x28] sm:$0xff]
    %v2347 = vld [vmem:[%s2340 + $0x30] sm:$0xff]
    %v2348 = vld [vmem:[%s2340 + $0x38] sm:$0xff]
    %v2349 = vld [vmem:[%s2340 + $0x40] sm:$0xff]
    %v2350 = vld [vmem:[%s2340 + $0x48] sm:$0xff]
    %v2351 = vld [vmem:[%s2340 + $0x50] sm:$0xff]
    %v2352 = vld [vmem:[%s2340 + $0x58] sm:$0xff]
    %v2353 = vld [vmem:[%s2340 + $0x60] sm:$0xff]
    %v2354 = vld [vmem:[%s2340 + $0x68] sm:$0xff]
    %v2355 = vld [vmem:[%s2340 + $0x70] sm:$0xff]
    %v2356 = vld [vmem:[%s2340 + $0x78] sm:$0xff]
    %v2357 = vrot.slane %v2025, 2
    %v2374 = vunpack.c.l.b16 %v2341
    %v2375 = vunpack.c.h.b16 %v2341
    %v2376 = vunpack.c.l.b16 %v2342
    %v2377 = vunpack.c.h.b16 %v2342
    %v2378 = vunpack.c.l.b16 %v2343
    %v2379 = vunpack.c.h.b16 %v2343
    %v2380 = vunpack.c.l.b16 %v2344
    %v2381 = vunpack.c.h.b16 %v2344
    %v2382 = vunpack.c.l.b16 %v2345
    %v2383 = vunpack.c.h.b16 %v2345
    %v2384 = vunpack.c.l.b16 %v2346
    %v2385 = vunpack.c.h.b16 %v2346
    %v2386 = vunpack.c.l.b16 %v2347
    %v2387 = vunpack.c.h.b16 %v2347
    %v2388 = vunpack.c.l.b16 %v2348
    %v2389 = vunpack.c.h.b16 %v2348
    %v2390 = vunpack.c.l.b16 %v2349
    %v2391 = vunpack.c.h.b16 %v2349
    %v2392 = vunpack.c.l.b16 %v2350
    %v2393 = vunpack.c.h.b16 %v2350
    %v2394 = vunpack.c.l.b16 %v2351
    %v2395 = vunpack.c.h.b16 %v2351
    %v2396 = vunpack.c.l.b16 %v2352
    %v2397 = vunpack.c.h.b16 %v2352
    %v2398 = vunpack.c.l.b16 %v2353
    %v2399 = vunpack.c.h.b16 %v2353
    %v2400 = vunpack.c.l.b16 %v2354
    %v2401 = vunpack.c.h.b16 %v2354
    %v2402 = vunpack.c.l.b16 %v2355
    %v2403 = vunpack.c.h.b16 %v2355
    %v2404 = vunpack.c.l.b16 %v2356
    %v2405 = vunpack.c.h.b16 %v2356
    %v2406 = vpack.c.b16 %v2378, %v2374
    %v2407 = vpack.c.b16 %v2379, %v2375
    %v2408 = vpack.c.b16 %v2380, %v2376
    %v2409 = vpack.c.b16 %v2381, %v2377
    %v2410 = vpack.c.b16 %v2386, %v2382
    %v2411 = vpack.c.b16 %v2387, %v2383
    %v2412 = vpack.c.b16 %v2388, %v2384
    %v2413 = vpack.c.b16 %v2389, %v2385
    %v2414 = vpack.c.b16 %v2394, %v2390
    %v2415 = vpack.c.b16 %v2395, %v2391
    %v2416 = vpack.c.b16 %v2396, %v2392
    %v2417 = vpack.c.b16 %v2397, %v2393
    %v2418 = vpack.c.b16 %v2402, %v2398
    %v2419 = vpack.c.b16 %v2403, %v2399
    %v2420 = vpack.c.b16 %v2404, %v2400
    %v2421 = vpack.c.b16 %v2405, %v2401
    %v2439 = vsel %vm526, %v2357, 0
    %2441 = vmatpush.bf16.msra.mxu0 0
    %2442 = vmatpush.bf16.msra.mxu0 0
    %2443 = vmatpush.bf16.msra.mxu0 0
    %2444 = vmatpush.bf16.msra.mxu0 0
    %2445 = vmatpush.bf16.msra.mxu0 %v2418
    %2446 = vmatpush.bf16.msra.mxu0 %v2414
    %2447 = vmatpush.bf16.msra.mxu0 %v2410
    %2448 = vmatpush.bf16.msra.mxu0 %v2406
    %2449 = vmatmul.bf16.gmra.mxu0 %v2439
    %v2450 = vpop.f32.mrf.mxu0
    %v2451 = vadd.f32 0.0, %v2450
    %v2452 = vpop.f32.mrf.mxu0
    %2453 = vdwg.mxu0
    %2454 = vmatpush.bf16.msra.mxu0 0
    %2455 = vmatpush.bf16.msra.mxu0 0
    %2456 = vmatpush.bf16.msra.mxu0 0
    %2457 = vmatpush.bf16.msra.mxu0 0
    %2458 = vmatpush.bf16.msra.mxu0 %v2419
    %2459 = vmatpush.bf16.msra.mxu0 %v2415
    %2460 = vmatpush.bf16.msra.mxu0 %v2411
    %2461 = vmatpush.bf16.msra.mxu0 %v2407
    %2462 = vmatmul.bf16.gmra.mxu0 %v2439
    %v2463 = vpop.f32.mrf.mxu0
    %v2464 = vadd.f32 0.0, %v2463
    %v2465 = vpop.f32.mrf.mxu0
    %2466 = vdwg.mxu0
    %2467 = vmatpush.bf16.msra.mxu0 0
    %2468 = vmatpush.bf16.msra.mxu0 0
    %2469 = vmatpush.bf16.msra.mxu0 0
    %2470 = vmatpush.bf16.msra.mxu0 0
    %2471 = vmatpush.bf16.msra.mxu0 %v2420
    %2472 = vmatpush.bf16.msra.mxu0 %v2416
    %2473 = vmatpush.bf16.msra.mxu0 %v2412
    %2474 = vmatpush.bf16.msra.mxu0 %v2408
    %2475 = vmatmul.bf16.gmra.mxu0 %v2439
    %v2476 = vpop.f32.mrf.mxu0
    %v2477 = vadd.f32 0.0, %v2476
    %v2478 = vpop.f32.mrf.mxu0
    %2479 = vdwg.mxu0
    %2480 = vmatpush.bf16.msra.mxu0 0
    %2481 = vmatpush.bf16.msra.mxu0 0
    %2482 = vmatpush.bf16.msra.mxu0 0
    %2483 = vmatpush.bf16.msra.mxu0 0
    %2484 = vmatpush.bf16.msra.mxu0 %v2421
    %2485 = vmatpush.bf16.msra.mxu0 %v2417
    %2486 = vmatpush.bf16.msra.mxu0 %v2413
    %2487 = vmatpush.bf16.msra.mxu0 %v2409
    %2488 = vmatmul.bf16.gmra.mxu0 %v2439
    %v2489 = vpop.f32.mrf.mxu0
    %v2490 = vadd.f32 0.0, %v2489
    %v2491 = vpop.f32.mrf.mxu0
    %2492 = vdwg.mxu0
    %v2493 = vadd.f32 %v2336, %v2451
    %v2494 = vadd.f32 %v2337, %v2464
    %v2495 = vadd.f32 %v2338, %v2477
    %v2496 = vadd.f32 %v2339, %v2490
    %s2497 = scalar_lea.vmem %s3, 1408
    %v2498 = vld [vmem:[%s2497] sm:$0xff]
    %v2499 = vld [vmem:[%s2497 + $0x8] sm:$0xff]
    %v2500 = vld [vmem:[%s2497 + $0x10] sm:$0xff]
    %v2501 = vld [vmem:[%s2497 + $0x18] sm:$0xff]
    %v2502 = vld [vmem:[%s2497 + $0x20] sm:$0xff]
    %v2503 = vld [vmem:[%s2497 + $0x28] sm:$0xff]
    %v2504 = vld [vmem:[%s2497 + $0x30] sm:$0xff]
    %v2505 = vld [vmem:[%s2497 + $0x38] sm:$0xff]
    %v2506 = vld [vmem:[%s2497 + $0x40] sm:$0xff]
    %v2507 = vld [vmem:[%s2497 + $0x48] sm:$0xff]
    %v2508 = vld [vmem:[%s2497 + $0x50] sm:$0xff]
    %v2509 = vld [vmem:[%s2497 + $0x58] sm:$0xff]
    %v2510 = vld [vmem:[%s2497 + $0x60] sm:$0xff]
    %v2511 = vld [vmem:[%s2497 + $0x68] sm:$0xff]
    %v2512 = vld [vmem:[%s2497 + $0x70] sm:$0xff]
    %v2513 = vld [vmem:[%s2497 + $0x78] sm:$0xff]
    %v2514 = vrot.slane %v2025, 3
    %v2531 = vunpack.c.l.b16 %v2498
    %v2532 = vunpack.c.h.b16 %v2498
    %v2533 = vunpack.c.l.b16 %v2499
    %v2534 = vunpack.c.h.b16 %v2499
    %v2535 = vunpack.c.l.b16 %v2500
    %v2536 = vunpack.c.h.b16 %v2500
    %v2537 = vunpack.c.l.b16 %v2501
    %v2538 = vunpack.c.h.b16 %v2501
    %v2539 = vunpack.c.l.b16 %v2502
    %v2540 = vunpack.c.h.b16 %v2502
    %v2541 = vunpack.c.l.b16 %v2503
    %v2542 = vunpack.c.h.b16 %v2503
    %v2543 = vunpack.c.l.b16 %v2504
    %v2544 = vunpack.c.h.b16 %v2504
    %v2545 = vunpack.c.l.b16 %v2505
    %v2546 = vunpack.c.h.b16 %v2505
    %v2547 = vunpack.c.l.b16 %v2506
    %v2548 = vunpack.c.h.b16 %v2506
    %v2549 = vunpack.c.l.b16 %v2507
    %v2550 = vunpack.c.h.b16 %v2507
    %v2551 = vunpack.c.l.b16 %v2508
    %v2552 = vunpack.c.h.b16 %v2508
    %v2553 = vunpack.c.l.b16 %v2509
    %v2554 = vunpack.c.h.b16 %v2509
    %v2555 = vunpack.c.l.b16 %v2510
    %v2556 = vunpack.c.h.b16 %v2510
    %v2557 = vunpack.c.l.b16 %v2511
    %v2558 = vunpack.c.h.b16 %v2511
    %v2559 = vunpack.c.l.b16 %v2512
    %v2560 = vunpack.c.h.b16 %v2512
    %v2561 = vunpack.c.l.b16 %v2513
    %v2562 = vunpack.c.h.b16 %v2513
    %v2563 = vpack.c.b16 %v2535, %v2531
    %v2564 = vpack.c.b16 %v2536, %v2532
    %v2565 = vpack.c.b16 %v2537, %v2533
    %v2566 = vpack.c.b16 %v2538, %v2534
    %v2567 = vpack.c.b16 %v2543, %v2539
    %v2568 = vpack.c.b16 %v2544, %v2540
    %v2569 = vpack.c.b16 %v2545, %v2541
    %v2570 = vpack.c.b16 %v2546, %v2542
    %v2571 = vpack.c.b16 %v2551, %v2547
    %v2572 = vpack.c.b16 %v2552, %v2548
    %v2573 = vpack.c.b16 %v2553, %v2549
    %v2574 = vpack.c.b16 %v2554, %v2550
    %v2575 = vpack.c.b16 %v2559, %v2555
    %v2576 = vpack.c.b16 %v2560, %v2556
    %v2577 = vpack.c.b16 %v2561, %v2557
    %v2578 = vpack.c.b16 %v2562, %v2558
    %v2596 = vsel %vm526, %v2514, 0
    %2598 = vmatpush.bf16.msra.mxu0 0
    %2599 = vmatpush.bf16.msra.mxu0 0
    %2600 = vmatpush.bf16.msra.mxu0 0
    %2601 = vmatpush.bf16.msra.mxu0 0
    %2602 = vmatpush.bf16.msra.mxu0 %v2575
    %2603 = vmatpush.bf16.msra.mxu0 %v2571
    %2604 = vmatpush.bf16.msra.mxu0 %v2567
    %2605 = vmatpush.bf16.msra.mxu0 %v2563
    %2606 = vmatmul.bf16.gmra.mxu0 %v2596
    %v2607 = vpop.f32.mrf.mxu0
    %v2608 = vadd.f32 0.0, %v2607
    %v2609 = vpop.f32.mrf.mxu0
    %2610 = vdwg.mxu0
    %2611 = vmatpush.bf16.msra.mxu0 0
    %2612 = vmatpush.bf16.msra.mxu0 0
    %2613 = vmatpush.bf16.msra.mxu0 0
    %2614 = vmatpush.bf16.msra.mxu0 0
    %2615 = vmatpush.bf16.msra.mxu0 %v2576
    %2616 = vmatpush.bf16.msra.mxu0 %v2572
    %2617 = vmatpush.bf16.msra.mxu0 %v2568
    %2618 = vmatpush.bf16.msra.mxu0 %v2564
    %2619 = vmatmul.bf16.gmra.mxu0 %v2596
    %v2620 = vpop.f32.mrf.mxu0
    %v2621 = vadd.f32 0.0, %v2620
    %v2622 = vpop.f32.mrf.mxu0
    %2623 = vdwg.mxu0
    %2624 = vmatpush.bf16.msra.mxu0 0
    %2625 = vmatpush.bf16.msra.mxu0 0
    %2626 = vmatpush.bf16.msra.mxu0 0
    %2627 = vmatpush.bf16.msra.mxu0 0
    %2628 = vmatpush.bf16.msra.mxu0 %v2577
    %2629 = vmatpush.bf16.msra.mxu0 %v2573
    %2630 = vmatpush.bf16.msra.mxu0 %v2569
    %2631 = vmatpush.bf16.msra.mxu0 %v2565
    %2632 = vmatmul.bf16.gmra.mxu0 %v2596
    %v2633 = vpop.f32.mrf.mxu0
    %v2634 = vadd.f32 0.0, %v2633
    %v2635 = vpop.f32.mrf.mxu0
    %2636 = vdwg.mxu0
    %2637 = vmatpush.bf16.msra.mxu0 0
    %2638 = vmatpush.bf16.msra.mxu0 0
    %2639 = vmatpush.bf16.msra.mxu0 0
    %2640 = vmatpush.bf16.msra.mxu0 0
    %2641 = vmatpush.bf16.msra.mxu0 %v2578
    %2642 = vmatpush.bf16.msra.mxu0 %v2574
    %2643 = vmatpush.bf16.msra.mxu0 %v2570
    %2644 = vmatpush.bf16.msra.mxu0 %v2566
    %2645 = vmatmul.bf16.gmra.mxu0 %v2596
    %v2646 = vpop.f32.mrf.mxu0
    %v2647 = vadd.f32 0.0, %v2646
    %v2648 = vpop.f32.mrf.mxu0
    %2649 = vdwg.mxu0
    %v2650 = vadd.f32 %v2493, %v2608
    %v2651 = vadd.f32 %v2494, %v2621
    %v2652 = vadd.f32 %v2495, %v2634
    %v2653 = vadd.f32 %v2496, %v2647
    %v2654 = vpack.c.bf16 %v766, %v766
    %s2655 = scalar_lea.vmem %s3, 1536
    %v2656 = vld [vmem:[%s2655] sm:$0xff]
    %v2657 = vld [vmem:[%s2655 + $0x8] sm:$0xff]
    %v2658 = vld [vmem:[%s2655 + $0x10] sm:$0xff]
    %v2659 = vld [vmem:[%s2655 + $0x18] sm:$0xff]
    %v2660 = vld [vmem:[%s2655 + $0x20] sm:$0xff]
    %v2661 = vld [vmem:[%s2655 + $0x28] sm:$0xff]
    %v2662 = vld [vmem:[%s2655 + $0x30] sm:$0xff]
    %v2663 = vld [vmem:[%s2655 + $0x38] sm:$0xff]
    %v2664 = vld [vmem:[%s2655 + $0x40] sm:$0xff]
    %v2665 = vld [vmem:[%s2655 + $0x48] sm:$0xff]
    %v2666 = vld [vmem:[%s2655 + $0x50] sm:$0xff]
    %v2667 = vld [vmem:[%s2655 + $0x58] sm:$0xff]
    %v2668 = vld [vmem:[%s2655 + $0x60] sm:$0xff]
    %v2669 = vld [vmem:[%s2655 + $0x68] sm:$0xff]
    %v2670 = vld [vmem:[%s2655 + $0x70] sm:$0xff]
    %v2671 = vld [vmem:[%s2655 + $0x78] sm:$0xff]
    %v2688 = vunpack.c.l.b16 %v2656
    %v2689 = vunpack.c.h.b16 %v2656
    %v2690 = vunpack.c.l.b16 %v2657
    %v2691 = vunpack.c.h.b16 %v2657
    %v2692 = vunpack.c.l.b16 %v2658
    %v2693 = vunpack.c.h.b16 %v2658
    %v2694 = vunpack.c.l.b16 %v2659
    %v2695 = vunpack.c.h.b16 %v2659
    %v2696 = vunpack.c.l.b16 %v2660
    %v2697 = vunpack.c.h.b16 %v2660
    %v2698 = vunpack.c.l.b16 %v2661
    %v2699 = vunpack.c.h.b16 %v2661
    %v2700 = vunpack.c.l.b16 %v2662
    %v2701 = vunpack.c.h.b16 %v2662
    %v2702 = vunpack.c.l.b16 %v2663
    %v2703 = vunpack.c.h.b16 %v2663
    %v2704 = vunpack.c.l.b16 %v2664
    %v2705 = vunpack.c.h.b16 %v2664
    %v2706 = vunpack.c.l.b16 %v2665
    %v2707 = vunpack.c.h.b16 %v2665
    %v2708 = vunpack.c.l.b16 %v2666
    %v2709 = vunpack.c.h.b16 %v2666
    %v2710 = vunpack.c.l.b16 %v2667
    %v2711 = vunpack.c.h.b16 %v2667
    %v2712 = vunpack.c.l.b16 %v2668
    %v2713 = vunpack.c.h.b16 %v2668
    %v2714 = vunpack.c.l.b16 %v2669
    %v2715 = vunpack.c.h.b16 %v2669
    %v2716 = vunpack.c.l.b16 %v2670
    %v2717 = vunpack.c.h.b16 %v2670
    %v2718 = vunpack.c.l.b16 %v2671
    %v2719 = vunpack.c.h.b16 %v2671
    %v2720 = vpack.c.b16 %v2692, %v2688
    %v2721 = vpack.c.b16 %v2693, %v2689
    %v2722 = vpack.c.b16 %v2694, %v2690
    %v2723 = vpack.c.b16 %v2695, %v2691
    %v2724 = vpack.c.b16 %v2700, %v2696
    %v2725 = vpack.c.b16 %v2701, %v2697
    %v2726 = vpack.c.b16 %v2702, %v2698
    %v2727 = vpack.c.b16 %v2703, %v2699
    %v2728 = vpack.c.b16 %v2708, %v2704
    %v2729 = vpack.c.b16 %v2709, %v2705
    %v2730 = vpack.c.b16 %v2710, %v2706
    %v2731 = vpack.c.b16 %v2711, %v2707
    %v2732 = vpack.c.b16 %v2716, %v2712
    %v2733 = vpack.c.b16 %v2717, %v2713
    %v2734 = vpack.c.b16 %v2718, %v2714
    %v2735 = vpack.c.b16 %v2719, %v2715
    %v2753 = vsel %vm526, %v2654, 0
    %2755 = vmatpush.bf16.msra.mxu0 0
    %2756 = vmatpush.bf16.msra.mxu0 0
    %2757 = vmatpush.bf16.msra.mxu0 0
    %2758 = vmatpush.bf16.msra.mxu0 0
    %2759 = vmatpush.bf16.msra.mxu0 %v2732
    %2760 = vmatpush.bf16.msra.mxu0 %v2728
    %2761 = vmatpush.bf16.msra.mxu0 %v2724
    %2762 = vmatpush.bf16.msra.mxu0 %v2720
    %2763 = vmatmul.bf16.gmra.mxu0 %v2753
    %v2764 = vpop.f32.mrf.mxu0
    %v2765 = vadd.f32 0.0, %v2764
    %v2766 = vpop.f32.mrf.mxu0
    %2767 = vdwg.mxu0
    %2768 = vmatpush.bf16.msra.mxu0 0
    %2769 = vmatpush.bf16.msra.mxu0 0
    %2770 = vmatpush.bf16.msra.mxu0 0
    %2771 = vmatpush.bf16.msra.mxu0 0
    %2772 = vmatpush.bf16.msra.mxu0 %v2733
    %2773 = vmatpush.bf16.msra.mxu0 %v2729
    %2774 = vmatpush.bf16.msra.mxu0 %v2725
    %2775 = vmatpush.bf16.msra.mxu0 %v2721
    %2776 = vmatmul.bf16.gmra.mxu0 %v2753
    %v2777 = vpop.f32.mrf.mxu0
    %v2778 = vadd.f32 0.0, %v2777
    %v2779 = vpop.f32.mrf.mxu0
    %2780 = vdwg.mxu0
    %2781 = vmatpush.bf16.msra.mxu0 0
    %2782 = vmatpush.bf16.msra.mxu0 0
    %2783 = vmatpush.bf16.msra.mxu0 0
    %2784 = vmatpush.bf16.msra.mxu0 0
    %2785 = vmatpush.bf16.msra.mxu0 %v2734
    %2786 = vmatpush.bf16.msra.mxu0 %v2730
    %2787 = vmatpush.bf16.msra.mxu0 %v2726
    %2788 = vmatpush.bf16.msra.mxu0 %v2722
    %2789 = vmatmul.bf16.gmra.mxu0 %v2753
    %v2790 = vpop.f32.mrf.mxu0
    %v2791 = vadd.f32 0.0, %v2790
    %v2792 = vpop.f32.mrf.mxu0
    %2793 = vdwg.mxu0
    %2794 = vmatpush.bf16.msra.mxu0 0
    %2795 = vmatpush.bf16.msra.mxu0 0
    %2796 = vmatpush.bf16.msra.mxu0 0
    %2797 = vmatpush.bf16.msra.mxu0 0
    %2798 = vmatpush.bf16.msra.mxu0 %v2735
    %2799 = vmatpush.bf16.msra.mxu0 %v2731
    %2800 = vmatpush.bf16.msra.mxu0 %v2727
    %2801 = vmatpush.bf16.msra.mxu0 %v2723
    %2802 = vmatmul.bf16.gmra.mxu0 %v2753
    %v2803 = vpop.f32.mrf.mxu0
    %v2804 = vadd.f32 0.0, %v2803
    %v2805 = vpop.f32.mrf.mxu0
    %2806 = vdwg.mxu0
    %v2807 = vadd.f32 %v2650, %v2765
    %v2808 = vadd.f32 %v2651, %v2778
    %v2809 = vadd.f32 %v2652, %v2791
    %v2810 = vadd.f32 %v2653, %v2804
    %s2811 = scalar_lea.vmem %s3, 1664
    %v2812 = vld [vmem:[%s2811] sm:$0xff]
    %v2813 = vld [vmem:[%s2811 + $0x8] sm:$0xff]
    %v2814 = vld [vmem:[%s2811 + $0x10] sm:$0xff]
    %v2815 = vld [vmem:[%s2811 + $0x18] sm:$0xff]
    %v2816 = vld [vmem:[%s2811 + $0x20] sm:$0xff]
    %v2817 = vld [vmem:[%s2811 + $0x28] sm:$0xff]
    %v2818 = vld [vmem:[%s2811 + $0x30] sm:$0xff]
    %v2819 = vld [vmem:[%s2811 + $0x38] sm:$0xff]
    %v2820 = vld [vmem:[%s2811 + $0x40] sm:$0xff]
    %v2821 = vld [vmem:[%s2811 + $0x48] sm:$0xff]
    %v2822 = vld [vmem:[%s2811 + $0x50] sm:$0xff]
    %v2823 = vld [vmem:[%s2811 + $0x58] sm:$0xff]
    %v2824 = vld [vmem:[%s2811 + $0x60] sm:$0xff]
    %v2825 = vld [vmem:[%s2811 + $0x68] sm:$0xff]
    %v2826 = vld [vmem:[%s2811 + $0x70] sm:$0xff]
    %v2827 = vld [vmem:[%s2811 + $0x78] sm:$0xff]
    %v2829 = vrot.slane %v2654, 1
    %v2846 = vunpack.c.l.b16 %v2812
    %v2847 = vunpack.c.h.b16 %v2812
    %v2848 = vunpack.c.l.b16 %v2813
    %v2849 = vunpack.c.h.b16 %v2813
    %v2850 = vunpack.c.l.b16 %v2814
    %v2851 = vunpack.c.h.b16 %v2814
    %v2852 = vunpack.c.l.b16 %v2815
    %v2853 = vunpack.c.h.b16 %v2815
    %v2854 = vunpack.c.l.b16 %v2816
    %v2855 = vunpack.c.h.b16 %v2816
    %v2856 = vunpack.c.l.b16 %v2817
    %v2857 = vunpack.c.h.b16 %v2817
    %v2858 = vunpack.c.l.b16 %v2818
    %v2859 = vunpack.c.h.b16 %v2818
    %v2860 = vunpack.c.l.b16 %v2819
    %v2861 = vunpack.c.h.b16 %v2819
    %v2862 = vunpack.c.l.b16 %v2820
    %v2863 = vunpack.c.h.b16 %v2820
    %v2864 = vunpack.c.l.b16 %v2821
    %v2865 = vunpack.c.h.b16 %v2821
    %v2866 = vunpack.c.l.b16 %v2822
    %v2867 = vunpack.c.h.b16 %v2822
    %v2868 = vunpack.c.l.b16 %v2823
    %v2869 = vunpack.c.h.b16 %v2823
    %v2870 = vunpack.c.l.b16 %v2824
    %v2871 = vunpack.c.h.b16 %v2824
    %v2872 = vunpack.c.l.b16 %v2825
    %v2873 = vunpack.c.h.b16 %v2825
    %v2874 = vunpack.c.l.b16 %v2826
    %v2875 = vunpack.c.h.b16 %v2826
    %v2876 = vunpack.c.l.b16 %v2827
    %v2877 = vunpack.c.h.b16 %v2827
    %v2878 = vpack.c.b16 %v2850, %v2846
    %v2879 = vpack.c.b16 %v2851, %v2847
    %v2880 = vpack.c.b16 %v2852, %v2848
    %v2881 = vpack.c.b16 %v2853, %v2849
    %v2882 = vpack.c.b16 %v2858, %v2854
    %v2883 = vpack.c.b16 %v2859, %v2855
    %v2884 = vpack.c.b16 %v2860, %v2856
    %v2885 = vpack.c.b16 %v2861, %v2857
    %v2886 = vpack.c.b16 %v2866, %v2862
    %v2887 = vpack.c.b16 %v2867, %v2863
    %v2888 = vpack.c.b16 %v2868, %v2864
    %v2889 = vpack.c.b16 %v2869, %v2865
    %v2890 = vpack.c.b16 %v2874, %v2870
    %v2891 = vpack.c.b16 %v2875, %v2871
    %v2892 = vpack.c.b16 %v2876, %v2872
    %v2893 = vpack.c.b16 %v2877, %v2873
    %v2911 = vsel %vm526, %v2829, 0
    %2913 = vmatpush.bf16.msra.mxu0 0
    %2914 = vmatpush.bf16.msra.mxu0 0
    %2915 = vmatpush.bf16.msra.mxu0 0
    %2916 = vmatpush.bf16.msra.mxu0 0
    %2917 = vmatpush.bf16.msra.mxu0 %v2890
    %2918 = vmatpush.bf16.msra.mxu0 %v2886
    %2919 = vmatpush.bf16.msra.mxu0 %v2882
    %2920 = vmatpush.bf16.msra.mxu0 %v2878
    %2921 = vmatmul.bf16.gmra.mxu0 %v2911
    %v2922 = vpop.f32.mrf.mxu0
    %v2923 = vadd.f32 0.0, %v2922
    %v2924 = vpop.f32.mrf.mxu0
    %2925 = vdwg.mxu0
    %2926 = vmatpush.bf16.msra.mxu0 0
    %2927 = vmatpush.bf16.msra.mxu0 0
    %2928 = vmatpush.bf16.msra.mxu0 0
    %2929 = vmatpush.bf16.msra.mxu0 0
    %2930 = vmatpush.bf16.msra.mxu0 %v2891
    %2931 = vmatpush.bf16.msra.mxu0 %v2887
    %2932 = vmatpush.bf16.msra.mxu0 %v2883
    %2933 = vmatpush.bf16.msra.mxu0 %v2879
    %2934 = vmatmul.bf16.gmra.mxu0 %v2911
    %v2935 = vpop.f32.mrf.mxu0
    %v2936 = vadd.f32 0.0, %v2935
    %v2937 = vpop.f32.mrf.mxu0
    %2938 = vdwg.mxu0
    %2939 = vmatpush.bf16.msra.mxu0 0
    %2940 = vmatpush.bf16.msra.mxu0 0
    %2941 = vmatpush.bf16.msra.mxu0 0
    %2942 = vmatpush.bf16.msra.mxu0 0
    %2943 = vmatpush.bf16.msra.mxu0 %v2892
    %2944 = vmatpush.bf16.msra.mxu0 %v2888
    %2945 = vmatpush.bf16.msra.mxu0 %v2884
    %2946 = vmatpush.bf16.msra.mxu0 %v2880
    %2947 = vmatmul.bf16.gmra.mxu0 %v2911
    %v2948 = vpop.f32.mrf.mxu0
    %v2949 = vadd.f32 0.0, %v2948
    %v2950 = vpop.f32.mrf.mxu0
    %2951 = vdwg.mxu0
    %2952 = vmatpush.bf16.msra.mxu0 0
    %2953 = vmatpush.bf16.msra.mxu0 0
    %2954 = vmatpush.bf16.msra.mxu0 0
    %2955 = vmatpush.bf16.msra.mxu0 0
    %2956 = vmatpush.bf16.msra.mxu0 %v2893
    %2957 = vmatpush.bf16.msra.mxu0 %v2889
    %2958 = vmatpush.bf16.msra.mxu0 %v2885
    %2959 = vmatpush.bf16.msra.mxu0 %v2881
    %2960 = vmatmul.bf16.gmra.mxu0 %v2911
    %v2961 = vpop.f32.mrf.mxu0
    %v2962 = vadd.f32 0.0, %v2961
    %v2963 = vpop.f32.mrf.mxu0
    %2964 = vdwg.mxu0
    %v2965 = vadd.f32 %v2807, %v2923
    %v2966 = vadd.f32 %v2808, %v2936
    %v2967 = vadd.f32 %v2809, %v2949
    %v2968 = vadd.f32 %v2810, %v2962
    %s2969 = scalar_lea.vmem %s3, 1792
    %v2970 = vld [vmem:[%s2969] sm:$0xff]
    %v2971 = vld [vmem:[%s2969 + $0x8] sm:$0xff]
    %v2972 = vld [vmem:[%s2969 + $0x10] sm:$0xff]
    %v2973 = vld [vmem:[%s2969 + $0x18] sm:$0xff]
    %v2974 = vld [vmem:[%s2969 + $0x20] sm:$0xff]
    %v2975 = vld [vmem:[%s2969 + $0x28] sm:$0xff]
    %v2976 = vld [vmem:[%s2969 + $0x30] sm:$0xff]
    %v2977 = vld [vmem:[%s2969 + $0x38] sm:$0xff]
    %v2978 = vld [vmem:[%s2969 + $0x40] sm:$0xff]
    %v2979 = vld [vmem:[%s2969 + $0x48] sm:$0xff]
    %v2980 = vld [vmem:[%s2969 + $0x50] sm:$0xff]
    %v2981 = vld [vmem:[%s2969 + $0x58] sm:$0xff]
    %v2982 = vld [vmem:[%s2969 + $0x60] sm:$0xff]
    %v2983 = vld [vmem:[%s2969 + $0x68] sm:$0xff]
    %v2984 = vld [vmem:[%s2969 + $0x70] sm:$0xff]
    %v2985 = vld [vmem:[%s2969 + $0x78] sm:$0xff]
    %v2986 = vrot.slane %v2654, 2
    %v3003 = vunpack.c.l.b16 %v2970
    %v3004 = vunpack.c.h.b16 %v2970
    %v3005 = vunpack.c.l.b16 %v2971
    %v3006 = vunpack.c.h.b16 %v2971
    %v3007 = vunpack.c.l.b16 %v2972
    %v3008 = vunpack.c.h.b16 %v2972
    %v3009 = vunpack.c.l.b16 %v2973
    %v3010 = vunpack.c.h.b16 %v2973
    %v3011 = vunpack.c.l.b16 %v2974
    %v3012 = vunpack.c.h.b16 %v2974
    %v3013 = vunpack.c.l.b16 %v2975
    %v3014 = vunpack.c.h.b16 %v2975
    %v3015 = vunpack.c.l.b16 %v2976
    %v3016 = vunpack.c.h.b16 %v2976
    %v3017 = vunpack.c.l.b16 %v2977
    %v3018 = vunpack.c.h.b16 %v2977
    %v3019 = vunpack.c.l.b16 %v2978
    %v3020 = vunpack.c.h.b16 %v2978
    %v3021 = vunpack.c.l.b16 %v2979
    %v3022 = vunpack.c.h.b16 %v2979
    %v3023 = vunpack.c.l.b16 %v2980
    %v3024 = vunpack.c.h.b16 %v2980
    %v3025 = vunpack.c.l.b16 %v2981
    %v3026 = vunpack.c.h.b16 %v2981
    %v3027 = vunpack.c.l.b16 %v2982
    %v3028 = vunpack.c.h.b16 %v2982
    %v3029 = vunpack.c.l.b16 %v2983
    %v3030 = vunpack.c.h.b16 %v2983
    %v3031 = vunpack.c.l.b16 %v2984
    %v3032 = vunpack.c.h.b16 %v2984
    %v3033 = vunpack.c.l.b16 %v2985
    %v3034 = vunpack.c.h.b16 %v2985
    %v3035 = vpack.c.b16 %v3007, %v3003
    %v3036 = vpack.c.b16 %v3008, %v3004
    %v3037 = vpack.c.b16 %v3009, %v3005
    %v3038 = vpack.c.b16 %v3010, %v3006
    %v3039 = vpack.c.b16 %v3015, %v3011
    %v3040 = vpack.c.b16 %v3016, %v3012
    %v3041 = vpack.c.b16 %v3017, %v3013
    %v3042 = vpack.c.b16 %v3018, %v3014
    %v3043 = vpack.c.b16 %v3023, %v3019
    %v3044 = vpack.c.b16 %v3024, %v3020
    %v3045 = vpack.c.b16 %v3025, %v3021
    %v3046 = vpack.c.b16 %v3026, %v3022
    %v3047 = vpack.c.b16 %v3031, %v3027
    %v3048 = vpack.c.b16 %v3032, %v3028
    %v3049 = vpack.c.b16 %v3033, %v3029
    %v3050 = vpack.c.b16 %v3034, %v3030
    %v3068 = vsel %vm526, %v2986, 0
    %3070 = vmatpush.bf16.msra.mxu0 0
    %3071 = vmatpush.bf16.msra.mxu0 0
    %3072 = vmatpush.bf16.msra.mxu0 0
    %3073 = vmatpush.bf16.msra.mxu0 0
    %3074 = vmatpush.bf16.msra.mxu0 %v3047
    %3075 = vmatpush.bf16.msra.mxu0 %v3043
    %3076 = vmatpush.bf16.msra.mxu0 %v3039
    %3077 = vmatpush.bf16.msra.mxu0 %v3035
    %3078 = vmatmul.bf16.gmra.mxu0 %v3068
    %v3079 = vpop.f32.mrf.mxu0
    %v3080 = vadd.f32 0.0, %v3079
    %v3081 = vpop.f32.mrf.mxu0
    %3082 = vdwg.mxu0
    %3083 = vmatpush.bf16.msra.mxu0 0
    %3084 = vmatpush.bf16.msra.mxu0 0
    %3085 = vmatpush.bf16.msra.mxu0 0
    %3086 = vmatpush.bf16.msra.mxu0 0
    %3087 = vmatpush.bf16.msra.mxu0 %v3048
    %3088 = vmatpush.bf16.msra.mxu0 %v3044
    %3089 = vmatpush.bf16.msra.mxu0 %v3040
    %3090 = vmatpush.bf16.msra.mxu0 %v3036
    %3091 = vmatmul.bf16.gmra.mxu0 %v3068
    %v3092 = vpop.f32.mrf.mxu0
    %v3093 = vadd.f32 0.0, %v3092
    %v3094 = vpop.f32.mrf.mxu0
    %3095 = vdwg.mxu0
    %3096 = vmatpush.bf16.msra.mxu0 0
    %3097 = vmatpush.bf16.msra.mxu0 0
    %3098 = vmatpush.bf16.msra.mxu0 0
    %3099 = vmatpush.bf16.msra.mxu0 0
    %3100 = vmatpush.bf16.msra.mxu0 %v3049
    %3101 = vmatpush.bf16.msra.mxu0 %v3045
    %3102 = vmatpush.bf16.msra.mxu0 %v3041
    %3103 = vmatpush.bf16.msra.mxu0 %v3037
    %3104 = vmatmul.bf16.gmra.mxu0 %v3068
    %v3105 = vpop.f32.mrf.mxu0
    %v3106 = vadd.f32 0.0, %v3105
    %v3107 = vpop.f32.mrf.mxu0
    %3108 = vdwg.mxu0
    %3109 = vmatpush.bf16.msra.mxu0 0
    %3110 = vmatpush.bf16.msra.mxu0 0
    %3111 = vmatpush.bf16.msra.mxu0 0
    %3112 = vmatpush.bf16.msra.mxu0 0
    %3113 = vmatpush.bf16.msra.mxu0 %v3050
    %3114 = vmatpush.bf16.msra.mxu0 %v3046
    %3115 = vmatpush.bf16.msra.mxu0 %v3042
    %3116 = vmatpush.bf16.msra.mxu0 %v3038
    %3117 = vmatmul.bf16.gmra.mxu0 %v3068
    %v3118 = vpop.f32.mrf.mxu0
    %v3119 = vadd.f32 0.0, %v3118
    %v3120 = vpop.f32.mrf.mxu0
    %3121 = vdwg.mxu0
    %v3122 = vadd.f32 %v2965, %v3080
    %v3123 = vadd.f32 %v2966, %v3093
    %v3124 = vadd.f32 %v2967, %v3106
    %v3125 = vadd.f32 %v2968, %v3119
    %s3126 = scalar_lea.vmem %s3, 1920
    %v3127 = vld [vmem:[%s3126] sm:$0xff]
    %v3128 = vld [vmem:[%s3126 + $0x8] sm:$0xff]
    %v3129 = vld [vmem:[%s3126 + $0x10] sm:$0xff]
    %v3130 = vld [vmem:[%s3126 + $0x18] sm:$0xff]
    %v3131 = vld [vmem:[%s3126 + $0x20] sm:$0xff]
    %v3132 = vld [vmem:[%s3126 + $0x28] sm:$0xff]
    %v3133 = vld [vmem:[%s3126 + $0x30] sm:$0xff]
    %v3134 = vld [vmem:[%s3126 + $0x38] sm:$0xff]
    %v3135 = vld [vmem:[%s3126 + $0x40] sm:$0xff]
    %v3136 = vld [vmem:[%s3126 + $0x48] sm:$0xff]
    %v3137 = vld [vmem:[%s3126 + $0x50] sm:$0xff]
    %v3138 = vld [vmem:[%s3126 + $0x58] sm:$0xff]
    %v3139 = vld [vmem:[%s3126 + $0x60] sm:$0xff]
    %v3140 = vld [vmem:[%s3126 + $0x68] sm:$0xff]
    %v3141 = vld [vmem:[%s3126 + $0x70] sm:$0xff]
    %v3142 = vld [vmem:[%s3126 + $0x78] sm:$0xff]
    %v3143 = vrot.slane %v2654, 3
    %v3160 = vunpack.c.l.b16 %v3127
    %v3161 = vunpack.c.h.b16 %v3127
    %v3162 = vunpack.c.l.b16 %v3128
    %v3163 = vunpack.c.h.b16 %v3128
    %v3164 = vunpack.c.l.b16 %v3129
    %v3165 = vunpack.c.h.b16 %v3129
    %v3166 = vunpack.c.l.b16 %v3130
    %v3167 = vunpack.c.h.b16 %v3130
    %v3168 = vunpack.c.l.b16 %v3131
    %v3169 = vunpack.c.h.b16 %v3131
    %v3170 = vunpack.c.l.b16 %v3132
    %v3171 = vunpack.c.h.b16 %v3132
    %v3172 = vunpack.c.l.b16 %v3133
    %v3173 = vunpack.c.h.b16 %v3133
    %v3174 = vunpack.c.l.b16 %v3134
    %v3175 = vunpack.c.h.b16 %v3134
    %v3176 = vunpack.c.l.b16 %v3135
    %v3177 = vunpack.c.h.b16 %v3135
    %v3178 = vunpack.c.l.b16 %v3136
    %v3179 = vunpack.c.h.b16 %v3136
    %v3180 = vunpack.c.l.b16 %v3137
    %v3181 = vunpack.c.h.b16 %v3137
    %v3182 = vunpack.c.l.b16 %v3138
    %v3183 = vunpack.c.h.b16 %v3138
    %v3184 = vunpack.c.l.b16 %v3139
    %v3185 = vunpack.c.h.b16 %v3139
    %v3186 = vunpack.c.l.b16 %v3140
    %v3187 = vunpack.c.h.b16 %v3140
    %v3188 = vunpack.c.l.b16 %v3141
    %v3189 = vunpack.c.h.b16 %v3141
    %v3190 = vunpack.c.l.b16 %v3142
    %v3191 = vunpack.c.h.b16 %v3142
    %v3192 = vpack.c.b16 %v3164, %v3160
    %v3193 = vpack.c.b16 %v3165, %v3161
    %v3194 = vpack.c.b16 %v3166, %v3162
    %v3195 = vpack.c.b16 %v3167, %v3163
    %v3196 = vpack.c.b16 %v3172, %v3168
    %v3197 = vpack.c.b16 %v3173, %v3169
    %v3198 = vpack.c.b16 %v3174, %v3170
    %v3199 = vpack.c.b16 %v3175, %v3171
    %v3200 = vpack.c.b16 %v3180, %v3176
    %v3201 = vpack.c.b16 %v3181, %v3177
    %v3202 = vpack.c.b16 %v3182, %v3178
    %v3203 = vpack.c.b16 %v3183, %v3179
    %v3204 = vpack.c.b16 %v3188, %v3184
    %v3205 = vpack.c.b16 %v3189, %v3185
    %v3206 = vpack.c.b16 %v3190, %v3186
    %v3207 = vpack.c.b16 %v3191, %v3187
    %v3225 = vsel %vm526, %v3143, 0
    %3227 = vmatpush.bf16.msra.mxu0 0
    %3228 = vmatpush.bf16.msra.mxu0 0
    %3229 = vmatpush.bf16.msra.mxu0 0
    %3230 = vmatpush.bf16.msra.mxu0 0
    %3231 = vmatpush.bf16.msra.mxu0 %v3204
    %3232 = vmatpush.bf16.msra.mxu0 %v3200
    %3233 = vmatpush.bf16.msra.mxu0 %v3196
    %3234 = vmatpush.bf16.msra.mxu0 %v3192
    %3235 = vmatmul.bf16.gmra.mxu0 %v3225
    %v3236 = vpop.f32.mrf.mxu0
    %v3237 = vadd.f32 0.0, %v3236
    %v3238 = vpop.f32.mrf.mxu0
    %3239 = vdwg.mxu0
    %3240 = vmatpush.bf16.msra.mxu0 0
    %3241 = vmatpush.bf16.msra.mxu0 0
    %3242 = vmatpush.bf16.msra.mxu0 0
    %3243 = vmatpush.bf16.msra.mxu0 0
    %3244 = vmatpush.bf16.msra.mxu0 %v3205
    %3245 = vmatpush.bf16.msra.mxu0 %v3201
    %3246 = vmatpush.bf16.msra.mxu0 %v3197
    %3247 = vmatpush.bf16.msra.mxu0 %v3193
    %3248 = vmatmul.bf16.gmra.mxu0 %v3225
    %v3249 = vpop.f32.mrf.mxu0
    %v3250 = vadd.f32 0.0, %v3249
    %v3251 = vpop.f32.mrf.mxu0
    %3252 = vdwg.mxu0
    %3253 = vmatpush.bf16.msra.mxu0 0
    %3254 = vmatpush.bf16.msra.mxu0 0
    %3255 = vmatpush.bf16.msra.mxu0 0
    %3256 = vmatpush.bf16.msra.mxu0 0
    %3257 = vmatpush.bf16.msra.mxu0 %v3206
    %3258 = vmatpush.bf16.msra.mxu0 %v3202
    %3259 = vmatpush.bf16.msra.mxu0 %v3198
    %3260 = vmatpush.bf16.msra.mxu0 %v3194
    %3261 = vmatmul.bf16.gmra.mxu0 %v3225
    %v3262 = vpop.f32.mrf.mxu0
    %v3263 = vadd.f32 0.0, %v3262
    %v3264 = vpop.f32.mrf.mxu0
    %3265 = vdwg.mxu0
    %3266 = vmatpush.bf16.msra.mxu0 0
    %3267 = vmatpush.bf16.msra.mxu0 0
    %3268 = vmatpush.bf16.msra.mxu0 0
    %3269 = vmatpush.bf16.msra.mxu0 0
    %3270 = vmatpush.bf16.msra.mxu0 %v3207
    %3271 = vmatpush.bf16.msra.mxu0 %v3203
    %3272 = vmatpush.bf16.msra.mxu0 %v3199
    %3273 = vmatpush.bf16.msra.mxu0 %v3195
    %3274 = vmatmul.bf16.gmra.mxu0 %v3225
    %v3275 = vpop.f32.mrf.mxu0
    %v3276 = vadd.f32 0.0, %v3275
    %v3277 = vpop.f32.mrf.mxu0
    %3278 = vdwg.mxu0
    %v3279 = vadd.f32 %v3122, %v3237
    %v3280 = vadd.f32 %v3123, %v3250
    %v3281 = vadd.f32 %v3124, %v3263
    %v3282 = vadd.f32 %v3125, %v3276
    %v3283 = vpack.c.bf16 %v767, %v767
    %s3284 = scalar_lea.vmem %s3, 2048
    %v3285 = vld [vmem:[%s3284] sm:$0xff]
    %v3286 = vld [vmem:[%s3284 + $0x8] sm:$0xff]
    %v3287 = vld [vmem:[%s3284 + $0x10] sm:$0xff]
    %v3288 = vld [vmem:[%s3284 + $0x18] sm:$0xff]
    %v3289 = vld [vmem:[%s3284 + $0x20] sm:$0xff]
    %v3290 = vld [vmem:[%s3284 + $0x28] sm:$0xff]
    %v3291 = vld [vmem:[%s3284 + $0x30] sm:$0xff]
    %v3292 = vld [vmem:[%s3284 + $0x38] sm:$0xff]
    %v3293 = vld [vmem:[%s3284 + $0x40] sm:$0xff]
    %v3294 = vld [vmem:[%s3284 + $0x48] sm:$0xff]
    %v3295 = vld [vmem:[%s3284 + $0x50] sm:$0xff]
    %v3296 = vld [vmem:[%s3284 + $0x58] sm:$0xff]
    %v3297 = vld [vmem:[%s3284 + $0x60] sm:$0xff]
    %v3298 = vld [vmem:[%s3284 + $0x68] sm:$0xff]
    %v3299 = vld [vmem:[%s3284 + $0x70] sm:$0xff]
    %v3300 = vld [vmem:[%s3284 + $0x78] sm:$0xff]
    %v3317 = vunpack.c.l.b16 %v3285
    %v3318 = vunpack.c.h.b16 %v3285
    %v3319 = vunpack.c.l.b16 %v3286
    %v3320 = vunpack.c.h.b16 %v3286
    %v3321 = vunpack.c.l.b16 %v3287
    %v3322 = vunpack.c.h.b16 %v3287
    %v3323 = vunpack.c.l.b16 %v3288
    %v3324 = vunpack.c.h.b16 %v3288
    %v3325 = vunpack.c.l.b16 %v3289
    %v3326 = vunpack.c.h.b16 %v3289
    %v3327 = vunpack.c.l.b16 %v3290
    %v3328 = vunpack.c.h.b16 %v3290
    %v3329 = vunpack.c.l.b16 %v3291
    %v3330 = vunpack.c.h.b16 %v3291
    %v3331 = vunpack.c.l.b16 %v3292
    %v3332 = vunpack.c.h.b16 %v3292
    %v3333 = vunpack.c.l.b16 %v3293
    %v3334 = vunpack.c.h.b16 %v3293
    %v3335 = vunpack.c.l.b16 %v3294
    %v3336 = vunpack.c.h.b16 %v3294
    %v3337 = vunpack.c.l.b16 %v3295
    %v3338 = vunpack.c.h.b16 %v3295
    %v3339 = vunpack.c.l.b16 %v3296
    %v3340 = vunpack.c.h.b16 %v3296
    %v3341 = vunpack.c.l.b16 %v3297
    %v3342 = vunpack.c.h.b16 %v3297
    %v3343 = vunpack.c.l.b16 %v3298
    %v3344 = vunpack.c.h.b16 %v3298
    %v3345 = vunpack.c.l.b16 %v3299
    %v3346 = vunpack.c.h.b16 %v3299
    %v3347 = vunpack.c.l.b16 %v3300
    %v3348 = vunpack.c.h.b16 %v3300
    %v3349 = vpack.c.b16 %v3321, %v3317
    %v3350 = vpack.c.b16 %v3322, %v3318
    %v3351 = vpack.c.b16 %v3323, %v3319
    %v3352 = vpack.c.b16 %v3324, %v3320
    %v3353 = vpack.c.b16 %v3329, %v3325
    %v3354 = vpack.c.b16 %v3330, %v3326
    %v3355 = vpack.c.b16 %v3331, %v3327
    %v3356 = vpack.c.b16 %v3332, %v3328
    %v3357 = vpack.c.b16 %v3337, %v3333
    %v3358 = vpack.c.b16 %v3338, %v3334
    %v3359 = vpack.c.b16 %v3339, %v3335
    %v3360 = vpack.c.b16 %v3340, %v3336
    %v3361 = vpack.c.b16 %v3345, %v3341
    %v3362 = vpack.c.b16 %v3346, %v3342
    %v3363 = vpack.c.b16 %v3347, %v3343
    %v3364 = vpack.c.b16 %v3348, %v3344
    %v3382 = vsel %vm526, %v3283, 0
    %3384 = vmatpush.bf16.msra.mxu0 0
    %3385 = vmatpush.bf16.msra.mxu0 0
    %3386 = vmatpush.bf16.msra.mxu0 0
    %3387 = vmatpush.bf16.msra.mxu0 0
    %3388 = vmatpush.bf16.msra.mxu0 %v3361
    %3389 = vmatpush.bf16.msra.mxu0 %v3357
    %3390 = vmatpush.bf16.msra.mxu0 %v3353
    %3391 = vmatpush.bf16.msra.mxu0 %v3349
    %3392 = vmatmul.bf16.gmra.mxu0 %v3382
    %v3393 = vpop.f32.mrf.mxu0
    %v3394 = vadd.f32 0.0, %v3393
    %v3395 = vpop.f32.mrf.mxu0
    %3396 = vdwg.mxu0
    %3397 = vmatpush.bf16.msra.mxu0 0
    %3398 = vmatpush.bf16.msra.mxu0 0
    %3399 = vmatpush.bf16.msra.mxu0 0
    %3400 = vmatpush.bf16.msra.mxu0 0
    %3401 = vmatpush.bf16.msra.mxu0 %v3362
    %3402 = vmatpush.bf16.msra.mxu0 %v3358
    %3403 = vmatpush.bf16.msra.mxu0 %v3354
    %3404 = vmatpush.bf16.msra.mxu0 %v3350
    %3405 = vmatmul.bf16.gmra.mxu0 %v3382
    %v3406 = vpop.f32.mrf.mxu0
    %v3407 = vadd.f32 0.0, %v3406
    %v3408 = vpop.f32.mrf.mxu0
    %3409 = vdwg.mxu0
    %3410 = vmatpush.bf16.msra.mxu0 0
    %3411 = vmatpush.bf16.msra.mxu0 0
    %3412 = vmatpush.bf16.msra.mxu0 0
    %3413 = vmatpush.bf16.msra.mxu0 0
    %3414 = vmatpush.bf16.msra.mxu0 %v3363
    %3415 = vmatpush.bf16.msra.mxu0 %v3359
    %3416 = vmatpush.bf16.msra.mxu0 %v3355
    %3417 = vmatpush.bf16.msra.mxu0 %v3351
    %3418 = vmatmul.bf16.gmra.mxu0 %v3382
    %v3419 = vpop.f32.mrf.mxu0
    %v3420 = vadd.f32 0.0, %v3419
    %v3421 = vpop.f32.mrf.mxu0
    %3422 = vdwg.mxu0
    %3423 = vmatpush.bf16.msra.mxu0 0
    %3424 = vmatpush.bf16.msra.mxu0 0
    %3425 = vmatpush.bf16.msra.mxu0 0
    %3426 = vmatpush.bf16.msra.mxu0 0
    %3427 = vmatpush.bf16.msra.mxu0 %v3364
    %3428 = vmatpush.bf16.msra.mxu0 %v3360
    %3429 = vmatpush.bf16.msra.mxu0 %v3356
    %3430 = vmatpush.bf16.msra.mxu0 %v3352
    %3431 = vmatmul.bf16.gmra.mxu0 %v3382
    %v3432 = vpop.f32.mrf.mxu0
    %v3433 = vadd.f32 0.0, %v3432
    %v3434 = vpop.f32.mrf.mxu0
    %3435 = vdwg.mxu0
    %v3436 = vadd.f32 %v3279, %v3394
    %v3437 = vadd.f32 %v3280, %v3407
    %v3438 = vadd.f32 %v3281, %v3420
    %v3439 = vadd.f32 %v3282, %v3433
    %s3440 = scalar_lea.vmem %s3, 2176
    %v3441 = vld [vmem:[%s3440] sm:$0xff]
    %v3442 = vld [vmem:[%s3440 + $0x8] sm:$0xff]
    %v3443 = vld [vmem:[%s3440 + $0x10] sm:$0xff]
    %v3444 = vld [vmem:[%s3440 + $0x18] sm:$0xff]
    %v3445 = vld [vmem:[%s3440 + $0x20] sm:$0xff]
    %v3446 = vld [vmem:[%s3440 + $0x28] sm:$0xff]
    %v3447 = vld [vmem:[%s3440 + $0x30] sm:$0xff]
    %v3448 = vld [vmem:[%s3440 + $0x38] sm:$0xff]
    %v3449 = vld [vmem:[%s3440 + $0x40] sm:$0xff]
    %v3450 = vld [vmem:[%s3440 + $0x48] sm:$0xff]
    %v3451 = vld [vmem:[%s3440 + $0x50] sm:$0xff]
    %v3452 = vld [vmem:[%s3440 + $0x58] sm:$0xff]
    %v3453 = vld [vmem:[%s3440 + $0x60] sm:$0xff]
    %v3454 = vld [vmem:[%s3440 + $0x68] sm:$0xff]
    %v3455 = vld [vmem:[%s3440 + $0x70] sm:$0xff]
    %v3456 = vld [vmem:[%s3440 + $0x78] sm:$0xff]
    %v3458 = vrot.slane %v3283, 1
    %v3475 = vunpack.c.l.b16 %v3441
    %v3476 = vunpack.c.h.b16 %v3441
    %v3477 = vunpack.c.l.b16 %v3442
    %v3478 = vunpack.c.h.b16 %v3442
    %v3479 = vunpack.c.l.b16 %v3443
    %v3480 = vunpack.c.h.b16 %v3443
    %v3481 = vunpack.c.l.b16 %v3444
    %v3482 = vunpack.c.h.b16 %v3444
    %v3483 = vunpack.c.l.b16 %v3445
    %v3484 = vunpack.c.h.b16 %v3445
    %v3485 = vunpack.c.l.b16 %v3446
    %v3486 = vunpack.c.h.b16 %v3446
    %v3487 = vunpack.c.l.b16 %v3447
    %v3488 = vunpack.c.h.b16 %v3447
    %v3489 = vunpack.c.l.b16 %v3448
    %v3490 = vunpack.c.h.b16 %v3448
    %v3491 = vunpack.c.l.b16 %v3449
    %v3492 = vunpack.c.h.b16 %v3449
    %v3493 = vunpack.c.l.b16 %v3450
    %v3494 = vunpack.c.h.b16 %v3450
    %v3495 = vunpack.c.l.b16 %v3451
    %v3496 = vunpack.c.h.b16 %v3451
    %v3497 = vunpack.c.l.b16 %v3452
    %v3498 = vunpack.c.h.b16 %v3452
    %v3499 = vunpack.c.l.b16 %v3453
    %v3500 = vunpack.c.h.b16 %v3453
    %v3501 = vunpack.c.l.b16 %v3454
    %v3502 = vunpack.c.h.b16 %v3454
    %v3503 = vunpack.c.l.b16 %v3455
    %v3504 = vunpack.c.h.b16 %v3455
    %v3505 = vunpack.c.l.b16 %v3456
    %v3506 = vunpack.c.h.b16 %v3456
    %v3507 = vpack.c.b16 %v3479, %v3475
    %v3508 = vpack.c.b16 %v3480, %v3476
    %v3509 = vpack.c.b16 %v3481, %v3477
    %v3510 = vpack.c.b16 %v3482, %v3478
    %v3511 = vpack.c.b16 %v3487, %v3483
    %v3512 = vpack.c.b16 %v3488, %v3484
    %v3513 = vpack.c.b16 %v3489, %v3485
    %v3514 = vpack.c.b16 %v3490, %v3486
    %v3515 = vpack.c.b16 %v3495, %v3491
    %v3516 = vpack.c.b16 %v3496, %v3492
    %v3517 = vpack.c.b16 %v3497, %v3493
    %v3518 = vpack.c.b16 %v3498, %v3494
    %v3519 = vpack.c.b16 %v3503, %v3499
    %v3520 = vpack.c.b16 %v3504, %v3500
    %v3521 = vpack.c.b16 %v3505, %v3501
    %v3522 = vpack.c.b16 %v3506, %v3502
    %v3540 = vsel %vm526, %v3458, 0
    %3542 = vmatpush.bf16.msra.mxu0 0
    %3543 = vmatpush.bf16.msra.mxu0 0
    %3544 = vmatpush.bf16.msra.mxu0 0
    %3545 = vmatpush.bf16.msra.mxu0 0
    %3546 = vmatpush.bf16.msra.mxu0 %v3519
    %3547 = vmatpush.bf16.msra.mxu0 %v3515
    %3548 = vmatpush.bf16.msra.mxu0 %v3511
    %3549 = vmatpush.bf16.msra.mxu0 %v3507
    %3550 = vmatmul.bf16.gmra.mxu0 %v3540
    %v3551 = vpop.f32.mrf.mxu0
    %v3552 = vadd.f32 0.0, %v3551
    %v3553 = vpop.f32.mrf.mxu0
    %3554 = vdwg.mxu0
    %3555 = vmatpush.bf16.msra.mxu0 0
    %3556 = vmatpush.bf16.msra.mxu0 0
    %3557 = vmatpush.bf16.msra.mxu0 0
    %3558 = vmatpush.bf16.msra.mxu0 0
    %3559 = vmatpush.bf16.msra.mxu0 %v3520
    %3560 = vmatpush.bf16.msra.mxu0 %v3516
    %3561 = vmatpush.bf16.msra.mxu0 %v3512
    %3562 = vmatpush.bf16.msra.mxu0 %v3508
    %3563 = vmatmul.bf16.gmra.mxu0 %v3540
    %v3564 = vpop.f32.mrf.mxu0
    %v3565 = vadd.f32 0.0, %v3564
    %v3566 = vpop.f32.mrf.mxu0
    %3567 = vdwg.mxu0
    %3568 = vmatpush.bf16.msra.mxu0 0
    %3569 = vmatpush.bf16.msra.mxu0 0
    %3570 = vmatpush.bf16.msra.mxu0 0
    %3571 = vmatpush.bf16.msra.mxu0 0
    %3572 = vmatpush.bf16.msra.mxu0 %v3521
    %3573 = vmatpush.bf16.msra.mxu0 %v3517
    %3574 = vmatpush.bf16.msra.mxu0 %v3513
    %3575 = vmatpush.bf16.msra.mxu0 %v3509
    %3576 = vmatmul.bf16.gmra.mxu0 %v3540
    %v3577 = vpop.f32.mrf.mxu0
    %v3578 = vadd.f32 0.0, %v3577
    %v3579 = vpop.f32.mrf.mxu0
    %3580 = vdwg.mxu0
    %3581 = vmatpush.bf16.msra.mxu0 0
    %3582 = vmatpush.bf16.msra.mxu0 0
    %3583 = vmatpush.bf16.msra.mxu0 0
    %3584 = vmatpush.bf16.msra.mxu0 0
    %3585 = vmatpush.bf16.msra.mxu0 %v3522
    %3586 = vmatpush.bf16.msra.mxu0 %v3518
    %3587 = vmatpush.bf16.msra.mxu0 %v3514
    %3588 = vmatpush.bf16.msra.mxu0 %v3510
    %3589 = vmatmul.bf16.gmra.mxu0 %v3540
    %v3590 = vpop.f32.mrf.mxu0
    %v3591 = vadd.f32 0.0, %v3590
    %v3592 = vpop.f32.mrf.mxu0
    %3593 = vdwg.mxu0
    %v3594 = vadd.f32 %v3436, %v3552
    %v3595 = vadd.f32 %v3437, %v3565
    %v3596 = vadd.f32 %v3438, %v3578
    %v3597 = vadd.f32 %v3439, %v3591
    %s3598 = scalar_lea.vmem %s3, 2304
    %v3599 = vld [vmem:[%s3598] sm:$0xff]
    %v3600 = vld [vmem:[%s3598 + $0x8] sm:$0xff]
    %v3601 = vld [vmem:[%s3598 + $0x10] sm:$0xff]
    %v3602 = vld [vmem:[%s3598 + $0x18] sm:$0xff]
    %v3603 = vld [vmem:[%s3598 + $0x20] sm:$0xff]
    %v3604 = vld [vmem:[%s3598 + $0x28] sm:$0xff]
    %v3605 = vld [vmem:[%s3598 + $0x30] sm:$0xff]
    %v3606 = vld [vmem:[%s3598 + $0x38] sm:$0xff]
    %v3607 = vld [vmem:[%s3598 + $0x40] sm:$0xff]
    %v3608 = vld [vmem:[%s3598 + $0x48] sm:$0xff]
    %v3609 = vld [vmem:[%s3598 + $0x50] sm:$0xff]
    %v3610 = vld [vmem:[%s3598 + $0x58] sm:$0xff]
    %v3611 = vld [vmem:[%s3598 + $0x60] sm:$0xff]
    %v3612 = vld [vmem:[%s3598 + $0x68] sm:$0xff]
    %v3613 = vld [vmem:[%s3598 + $0x70] sm:$0xff]
    %v3614 = vld [vmem:[%s3598 + $0x78] sm:$0xff]
    %v3615 = vrot.slane %v3283, 2
    %v3632 = vunpack.c.l.b16 %v3599
    %v3633 = vunpack.c.h.b16 %v3599
    %v3634 = vunpack.c.l.b16 %v3600
    %v3635 = vunpack.c.h.b16 %v3600
    %v3636 = vunpack.c.l.b16 %v3601
    %v3637 = vunpack.c.h.b16 %v3601
    %v3638 = vunpack.c.l.b16 %v3602
    %v3639 = vunpack.c.h.b16 %v3602
    %v3640 = vunpack.c.l.b16 %v3603
    %v3641 = vunpack.c.h.b16 %v3603
    %v3642 = vunpack.c.l.b16 %v3604
    %v3643 = vunpack.c.h.b16 %v3604
    %v3644 = vunpack.c.l.b16 %v3605
    %v3645 = vunpack.c.h.b16 %v3605
    %v3646 = vunpack.c.l.b16 %v3606
    %v3647 = vunpack.c.h.b16 %v3606
    %v3648 = vunpack.c.l.b16 %v3607
    %v3649 = vunpack.c.h.b16 %v3607
    %v3650 = vunpack.c.l.b16 %v3608
    %v3651 = vunpack.c.h.b16 %v3608
    %v3652 = vunpack.c.l.b16 %v3609
    %v3653 = vunpack.c.h.b16 %v3609
    %v3654 = vunpack.c.l.b16 %v3610
    %v3655 = vunpack.c.h.b16 %v3610
    %v3656 = vunpack.c.l.b16 %v3611
    %v3657 = vunpack.c.h.b16 %v3611
    %v3658 = vunpack.c.l.b16 %v3612
    %v3659 = vunpack.c.h.b16 %v3612
    %v3660 = vunpack.c.l.b16 %v3613
    %v3661 = vunpack.c.h.b16 %v3613
    %v3662 = vunpack.c.l.b16 %v3614
    %v3663 = vunpack.c.h.b16 %v3614
    %v3664 = vpack.c.b16 %v3636, %v3632
    %v3665 = vpack.c.b16 %v3637, %v3633
    %v3666 = vpack.c.b16 %v3638, %v3634
    %v3667 = vpack.c.b16 %v3639, %v3635
    %v3668 = vpack.c.b16 %v3644, %v3640
    %v3669 = vpack.c.b16 %v3645, %v3641
    %v3670 = vpack.c.b16 %v3646, %v3642
    %v3671 = vpack.c.b16 %v3647, %v3643
    %v3672 = vpack.c.b16 %v3652, %v3648
    %v3673 = vpack.c.b16 %v3653, %v3649
    %v3674 = vpack.c.b16 %v3654, %v3650
    %v3675 = vpack.c.b16 %v3655, %v3651
    %v3676 = vpack.c.b16 %v3660, %v3656
    %v3677 = vpack.c.b16 %v3661, %v3657
    %v3678 = vpack.c.b16 %v3662, %v3658
    %v3679 = vpack.c.b16 %v3663, %v3659
    %v3697 = vsel %vm526, %v3615, 0
    %3699 = vmatpush.bf16.msra.mxu0 0
    %3700 = vmatpush.bf16.msra.mxu0 0
    %3701 = vmatpush.bf16.msra.mxu0 0
    %3702 = vmatpush.bf16.msra.mxu0 0
    %3703 = vmatpush.bf16.msra.mxu0 %v3676
    %3704 = vmatpush.bf16.msra.mxu0 %v3672
    %3705 = vmatpush.bf16.msra.mxu0 %v3668
    %3706 = vmatpush.bf16.msra.mxu0 %v3664
    %3707 = vmatmul.bf16.gmra.mxu0 %v3697
    %v3708 = vpop.f32.mrf.mxu0
    %v3709 = vadd.f32 0.0, %v3708
    %v3710 = vpop.f32.mrf.mxu0
    %3711 = vdwg.mxu0
    %3712 = vmatpush.bf16.msra.mxu0 0
    %3713 = vmatpush.bf16.msra.mxu0 0
    %3714 = vmatpush.bf16.msra.mxu0 0
    %3715 = vmatpush.bf16.msra.mxu0 0
    %3716 = vmatpush.bf16.msra.mxu0 %v3677
    %3717 = vmatpush.bf16.msra.mxu0 %v3673
    %3718 = vmatpush.bf16.msra.mxu0 %v3669
    %3719 = vmatpush.bf16.msra.mxu0 %v3665
    %3720 = vmatmul.bf16.gmra.mxu0 %v3697
    %v3721 = vpop.f32.mrf.mxu0
    %v3722 = vadd.f32 0.0, %v3721
    %v3723 = vpop.f32.mrf.mxu0
    %3724 = vdwg.mxu0
    %3725 = vmatpush.bf16.msra.mxu0 0
    %3726 = vmatpush.bf16.msra.mxu0 0
    %3727 = vmatpush.bf16.msra.mxu0 0
    %3728 = vmatpush.bf16.msra.mxu0 0
    %3729 = vmatpush.bf16.msra.mxu0 %v3678
    %3730 = vmatpush.bf16.msra.mxu0 %v3674
    %3731 = vmatpush.bf16.msra.mxu0 %v3670
    %3732 = vmatpush.bf16.msra.mxu0 %v3666
    %3733 = vmatmul.bf16.gmra.mxu0 %v3697
    %v3734 = vpop.f32.mrf.mxu0
    %v3735 = vadd.f32 0.0, %v3734
    %v3736 = vpop.f32.mrf.mxu0
    %3737 = vdwg.mxu0
    %3738 = vmatpush.bf16.msra.mxu0 0
    %3739 = vmatpush.bf16.msra.mxu0 0
    %3740 = vmatpush.bf16.msra.mxu0 0
    %3741 = vmatpush.bf16.msra.mxu0 0
    %3742 = vmatpush.bf16.msra.mxu0 %v3679
    %3743 = vmatpush.bf16.msra.mxu0 %v3675
    %3744 = vmatpush.bf16.msra.mxu0 %v3671
    %3745 = vmatpush.bf16.msra.mxu0 %v3667
    %3746 = vmatmul.bf16.gmra.mxu0 %v3697
    %v3747 = vpop.f32.mrf.mxu0
    %v3748 = vadd.f32 0.0, %v3747
    %v3749 = vpop.f32.mrf.mxu0
    %3750 = vdwg.mxu0
    %v3751 = vadd.f32 %v3594, %v3709
    %v3752 = vadd.f32 %v3595, %v3722
    %v3753 = vadd.f32 %v3596, %v3735
    %v3754 = vadd.f32 %v3597, %v3748
    %s3755 = scalar_lea.vmem %s3, 2432
    %v3756 = vld [vmem:[%s3755] sm:$0xff]
    %v3757 = vld [vmem:[%s3755 + $0x8] sm:$0xff]
    %v3758 = vld [vmem:[%s3755 + $0x10] sm:$0xff]
    %v3759 = vld [vmem:[%s3755 + $0x18] sm:$0xff]
    %v3760 = vld [vmem:[%s3755 + $0x20] sm:$0xff]
    %v3761 = vld [vmem:[%s3755 + $0x28] sm:$0xff]
    %v3762 = vld [vmem:[%s3755 + $0x30] sm:$0xff]
    %v3763 = vld [vmem:[%s3755 + $0x38] sm:$0xff]
    %v3764 = vld [vmem:[%s3755 + $0x40] sm:$0xff]
    %v3765 = vld [vmem:[%s3755 + $0x48] sm:$0xff]
    %v3766 = vld [vmem:[%s3755 + $0x50] sm:$0xff]
    %v3767 = vld [vmem:[%s3755 + $0x58] sm:$0xff]
    %v3768 = vld [vmem:[%s3755 + $0x60] sm:$0xff]
    %v3769 = vld [vmem:[%s3755 + $0x68] sm:$0xff]
    %v3770 = vld [vmem:[%s3755 + $0x70] sm:$0xff]
    %v3771 = vld [vmem:[%s3755 + $0x78] sm:$0xff]
    %v3772 = vrot.slane %v3283, 3
    %v3789 = vunpack.c.l.b16 %v3756
    %v3790 = vunpack.c.h.b16 %v3756
    %v3791 = vunpack.c.l.b16 %v3757
    %v3792 = vunpack.c.h.b16 %v3757
    %v3793 = vunpack.c.l.b16 %v3758
    %v3794 = vunpack.c.h.b16 %v3758
    %v3795 = vunpack.c.l.b16 %v3759
    %v3796 = vunpack.c.h.b16 %v3759
    %v3797 = vunpack.c.l.b16 %v3760
    %v3798 = vunpack.c.h.b16 %v3760
    %v3799 = vunpack.c.l.b16 %v3761
    %v3800 = vunpack.c.h.b16 %v3761
    %v3801 = vunpack.c.l.b16 %v3762
    %v3802 = vunpack.c.h.b16 %v3762
    %v3803 = vunpack.c.l.b16 %v3763
    %v3804 = vunpack.c.h.b16 %v3763
    %v3805 = vunpack.c.l.b16 %v3764
    %v3806 = vunpack.c.h.b16 %v3764
    %v3807 = vunpack.c.l.b16 %v3765
    %v3808 = vunpack.c.h.b16 %v3765
    %v3809 = vunpack.c.l.b16 %v3766
    %v3810 = vunpack.c.h.b16 %v3766
    %v3811 = vunpack.c.l.b16 %v3767
    %v3812 = vunpack.c.h.b16 %v3767
    %v3813 = vunpack.c.l.b16 %v3768
    %v3814 = vunpack.c.h.b16 %v3768
    %v3815 = vunpack.c.l.b16 %v3769
    %v3816 = vunpack.c.h.b16 %v3769
    %v3817 = vunpack.c.l.b16 %v3770
    %v3818 = vunpack.c.h.b16 %v3770
    %v3819 = vunpack.c.l.b16 %v3771
    %v3820 = vunpack.c.h.b16 %v3771
    %v3821 = vpack.c.b16 %v3793, %v3789
    %v3822 = vpack.c.b16 %v3794, %v3790
    %v3823 = vpack.c.b16 %v3795, %v3791
    %v3824 = vpack.c.b16 %v3796, %v3792
    %v3825 = vpack.c.b16 %v3801, %v3797
    %v3826 = vpack.c.b16 %v3802, %v3798
    %v3827 = vpack.c.b16 %v3803, %v3799
    %v3828 = vpack.c.b16 %v3804, %v3800
    %v3829 = vpack.c.b16 %v3809, %v3805
    %v3830 = vpack.c.b16 %v3810, %v3806
    %v3831 = vpack.c.b16 %v3811, %v3807
    %v3832 = vpack.c.b16 %v3812, %v3808
    %v3833 = vpack.c.b16 %v3817, %v3813
    %v3834 = vpack.c.b16 %v3818, %v3814
    %v3835 = vpack.c.b16 %v3819, %v3815
    %v3836 = vpack.c.b16 %v3820, %v3816
    %v3854 = vsel %vm526, %v3772, 0
    %3856 = vmatpush.bf16.msra.mxu0 0
    %3857 = vmatpush.bf16.msra.mxu0 0
    %3858 = vmatpush.bf16.msra.mxu0 0
    %3859 = vmatpush.bf16.msra.mxu0 0
    %3860 = vmatpush.bf16.msra.mxu0 %v3833
    %3861 = vmatpush.bf16.msra.mxu0 %v3829
    %3862 = vmatpush.bf16.msra.mxu0 %v3825
    %3863 = vmatpush.bf16.msra.mxu0 %v3821
    %3864 = vmatmul.bf16.gmra.mxu0 %v3854
    %v3865 = vpop.f32.mrf.mxu0
    %v3866 = vadd.f32 0.0, %v3865
    %v3867 = vpop.f32.mrf.mxu0
    %3868 = vdwg.mxu0
    %3869 = vmatpush.bf16.msra.mxu0 0
    %3870 = vmatpush.bf16.msra.mxu0 0
    %3871 = vmatpush.bf16.msra.mxu0 0
    %3872 = vmatpush.bf16.msra.mxu0 0
    %3873 = vmatpush.bf16.msra.mxu0 %v3834
    %3874 = vmatpush.bf16.msra.mxu0 %v3830
    %3875 = vmatpush.bf16.msra.mxu0 %v3826
    %3876 = vmatpush.bf16.msra.mxu0 %v3822
    %3877 = vmatmul.bf16.gmra.mxu0 %v3854
    %v3878 = vpop.f32.mrf.mxu0
    %v3879 = vadd.f32 0.0, %v3878
    %v3880 = vpop.f32.mrf.mxu0
    %3881 = vdwg.mxu0
    %3882 = vmatpush.bf16.msra.mxu0 0
    %3883 = vmatpush.bf16.msra.mxu0 0
    %3884 = vmatpush.bf16.msra.mxu0 0
    %3885 = vmatpush.bf16.msra.mxu0 0
    %3886 = vmatpush.bf16.msra.mxu0 %v3835
    %3887 = vmatpush.bf16.msra.mxu0 %v3831
    %3888 = vmatpush.bf16.msra.mxu0 %v3827
    %3889 = vmatpush.bf16.msra.mxu0 %v3823
    %3890 = vmatmul.bf16.gmra.mxu0 %v3854
    %v3891 = vpop.f32.mrf.mxu0
    %v3892 = vadd.f32 0.0, %v3891
    %v3893 = vpop.f32.mrf.mxu0
    %3894 = vdwg.mxu0
    %3895 = vmatpush.bf16.msra.mxu0 0
    %3896 = vmatpush.bf16.msra.mxu0 0
    %3897 = vmatpush.bf16.msra.mxu0 0
    %3898 = vmatpush.bf16.msra.mxu0 0
    %3899 = vmatpush.bf16.msra.mxu0 %v3836
    %3900 = vmatpush.bf16.msra.mxu0 %v3832
    %3901 = vmatpush.bf16.msra.mxu0 %v3828
    %3902 = vmatpush.bf16.msra.mxu0 %v3824
    %3903 = vmatmul.bf16.gmra.mxu0 %v3854
    %v3904 = vpop.f32.mrf.mxu0
    %v3905 = vadd.f32 0.0, %v3904
    %v3906 = vpop.f32.mrf.mxu0
    %3907 = vdwg.mxu0
    %v3908 = vadd.f32 %v3751, %v3866
    %v3909 = vadd.f32 %v3752, %v3879
    %v3910 = vadd.f32 %v3753, %v3892
    %v3911 = vadd.f32 %v3754, %v3905
    %v3912 = vpack.c.bf16 %v768, %v768
    %s3913 = scalar_lea.vmem %s3, 2560
    %v3914 = vld [vmem:[%s3913] sm:$0xff]
    %v3915 = vld [vmem:[%s3913 + $0x8] sm:$0xff]
    %v3916 = vld [vmem:[%s3913 + $0x10] sm:$0xff]
    %v3917 = vld [vmem:[%s3913 + $0x18] sm:$0xff]
    %v3918 = vld [vmem:[%s3913 + $0x20] sm:$0xff]
    %v3919 = vld [vmem:[%s3913 + $0x28] sm:$0xff]
    %v3920 = vld [vmem:[%s3913 + $0x30] sm:$0xff]
    %v3921 = vld [vmem:[%s3913 + $0x38] sm:$0xff]
    %v3922 = vld [vmem:[%s3913 + $0x40] sm:$0xff]
    %v3923 = vld [vmem:[%s3913 + $0x48] sm:$0xff]
    %v3924 = vld [vmem:[%s3913 + $0x50] sm:$0xff]
    %v3925 = vld [vmem:[%s3913 + $0x58] sm:$0xff]
    %v3926 = vld [vmem:[%s3913 + $0x60] sm:$0xff]
    %v3927 = vld [vmem:[%s3913 + $0x68] sm:$0xff]
    %v3928 = vld [vmem:[%s3913 + $0x70] sm:$0xff]
    %v3929 = vld [vmem:[%s3913 + $0x78] sm:$0xff]
    %v3946 = vunpack.c.l.b16 %v3914
    %v3947 = vunpack.c.h.b16 %v3914
    %v3948 = vunpack.c.l.b16 %v3915
    %v3949 = vunpack.c.h.b16 %v3915
    %v3950 = vunpack.c.l.b16 %v3916
    %v3951 = vunpack.c.h.b16 %v3916
    %v3952 = vunpack.c.l.b16 %v3917
    %v3953 = vunpack.c.h.b16 %v3917
    %v3954 = vunpack.c.l.b16 %v3918
    %v3955 = vunpack.c.h.b16 %v3918
    %v3956 = vunpack.c.l.b16 %v3919
    %v3957 = vunpack.c.h.b16 %v3919
    %v3958 = vunpack.c.l.b16 %v3920
    %v3959 = vunpack.c.h.b16 %v3920
    %v3960 = vunpack.c.l.b16 %v3921
    %v3961 = vunpack.c.h.b16 %v3921
    %v3962 = vunpack.c.l.b16 %v3922
    %v3963 = vunpack.c.h.b16 %v3922
    %v3964 = vunpack.c.l.b16 %v3923
    %v3965 = vunpack.c.h.b16 %v3923
    %v3966 = vunpack.c.l.b16 %v3924
    %v3967 = vunpack.c.h.b16 %v3924
    %v3968 = vunpack.c.l.b16 %v3925
    %v3969 = vunpack.c.h.b16 %v3925
    %v3970 = vunpack.c.l.b16 %v3926
    %v3971 = vunpack.c.h.b16 %v3926
    %v3972 = vunpack.c.l.b16 %v3927
    %v3973 = vunpack.c.h.b16 %v3927
    %v3974 = vunpack.c.l.b16 %v3928
    %v3975 = vunpack.c.h.b16 %v3928
    %v3976 = vunpack.c.l.b16 %v3929
    %v3977 = vunpack.c.h.b16 %v3929
    %v3978 = vpack.c.b16 %v3950, %v3946
    %v3979 = vpack.c.b16 %v3951, %v3947
    %v3980 = vpack.c.b16 %v3952, %v3948
    %v3981 = vpack.c.b16 %v3953, %v3949
    %v3982 = vpack.c.b16 %v3958, %v3954
    %v3983 = vpack.c.b16 %v3959, %v3955
    %v3984 = vpack.c.b16 %v3960, %v3956
    %v3985 = vpack.c.b16 %v3961, %v3957
    %v3986 = vpack.c.b16 %v3966, %v3962
    %v3987 = vpack.c.b16 %v3967, %v3963
    %v3988 = vpack.c.b16 %v3968, %v3964
    %v3989 = vpack.c.b16 %v3969, %v3965
    %v3990 = vpack.c.b16 %v3974, %v3970
    %v3991 = vpack.c.b16 %v3975, %v3971
    %v3992 = vpack.c.b16 %v3976, %v3972
    %v3993 = vpack.c.b16 %v3977, %v3973
    %v4011 = vsel %vm526, %v3912, 0
    %4013 = vmatpush.bf16.msra.mxu0 0
    %4014 = vmatpush.bf16.msra.mxu0 0
    %4015 = vmatpush.bf16.msra.mxu0 0
    %4016 = vmatpush.bf16.msra.mxu0 0
    %4017 = vmatpush.bf16.msra.mxu0 %v3990
    %4018 = vmatpush.bf16.msra.mxu0 %v3986
    %4019 = vmatpush.bf16.msra.mxu0 %v3982
    %4020 = vmatpush.bf16.msra.mxu0 %v3978
    %4021 = vmatmul.bf16.gmra.mxu0 %v4011
    %v4022 = vpop.f32.mrf.mxu0
    %v4023 = vadd.f32 0.0, %v4022
    %v4024 = vpop.f32.mrf.mxu0
    %4025 = vdwg.mxu0
    %4026 = vmatpush.bf16.msra.mxu0 0
    %4027 = vmatpush.bf16.msra.mxu0 0
    %4028 = vmatpush.bf16.msra.mxu0 0
    %4029 = vmatpush.bf16.msra.mxu0 0
    %4030 = vmatpush.bf16.msra.mxu0 %v3991
    %4031 = vmatpush.bf16.msra.mxu0 %v3987
    %4032 = vmatpush.bf16.msra.mxu0 %v3983
    %4033 = vmatpush.bf16.msra.mxu0 %v3979
    %4034 = vmatmul.bf16.gmra.mxu0 %v4011
    %v4035 = vpop.f32.mrf.mxu0
    %v4036 = vadd.f32 0.0, %v4035
    %v4037 = vpop.f32.mrf.mxu0
    %4038 = vdwg.mxu0
    %4039 = vmatpush.bf16.msra.mxu0 0
    %4040 = vmatpush.bf16.msra.mxu0 0
    %4041 = vmatpush.bf16.msra.mxu0 0
    %4042 = vmatpush.bf16.msra.mxu0 0
    %4043 = vmatpush.bf16.msra.mxu0 %v3992
    %4044 = vmatpush.bf16.msra.mxu0 %v3988
    %4045 = vmatpush.bf16.msra.mxu0 %v3984
    %4046 = vmatpush.bf16.msra.mxu0 %v3980
    %4047 = vmatmul.bf16.gmra.mxu0 %v4011
    %v4048 = vpop.f32.mrf.mxu0
    %v4049 = vadd.f32 0.0, %v4048
    %v4050 = vpop.f32.mrf.mxu0
    %4051 = vdwg.mxu0
    %4052 = vmatpush.bf16.msra.mxu0 0
    %4053 = vmatpush.bf16.msra.mxu0 0
    %4054 = vmatpush.bf16.msra.mxu0 0
    %4055 = vmatpush.bf16.msra.mxu0 0
    %4056 = vmatpush.bf16.msra.mxu0 %v3993
    %4057 = vmatpush.bf16.msra.mxu0 %v3989
    %4058 = vmatpush.bf16.msra.mxu0 %v3985
    %4059 = vmatpush.bf16.msra.mxu0 %v3981
    %4060 = vmatmul.bf16.gmra.mxu0 %v4011
    %v4061 = vpop.f32.mrf.mxu0
    %v4062 = vadd.f32 0.0, %v4061
    %v4063 = vpop.f32.mrf.mxu0
    %4064 = vdwg.mxu0
    %v4065 = vadd.f32 %v3908, %v4023
    %v4066 = vadd.f32 %v3909, %v4036
    %v4067 = vadd.f32 %v3910, %v4049
    %v4068 = vadd.f32 %v3911, %v4062
    %s4069 = scalar_lea.vmem %s3, 2688
    %v4070 = vld [vmem:[%s4069] sm:$0xff]
    %v4071 = vld [vmem:[%s4069 + $0x8] sm:$0xff]
    %v4072 = vld [vmem:[%s4069 + $0x10] sm:$0xff]
    %v4073 = vld [vmem:[%s4069 + $0x18] sm:$0xff]
    %v4074 = vld [vmem:[%s4069 + $0x20] sm:$0xff]
    %v4075 = vld [vmem:[%s4069 + $0x28] sm:$0xff]
    %v4076 = vld [vmem:[%s4069 + $0x30] sm:$0xff]
    %v4077 = vld [vmem:[%s4069 + $0x38] sm:$0xff]
    %v4078 = vld [vmem:[%s4069 + $0x40] sm:$0xff]
    %v4079 = vld [vmem:[%s4069 + $0x48] sm:$0xff]
    %v4080 = vld [vmem:[%s4069 + $0x50] sm:$0xff]
    %v4081 = vld [vmem:[%s4069 + $0x58] sm:$0xff]
    %v4082 = vld [vmem:[%s4069 + $0x60] sm:$0xff]
    %v4083 = vld [vmem:[%s4069 + $0x68] sm:$0xff]
    %v4084 = vld [vmem:[%s4069 + $0x70] sm:$0xff]
    %v4085 = vld [vmem:[%s4069 + $0x78] sm:$0xff]
    %v4087 = vrot.slane %v3912, 1
    %v4104 = vunpack.c.l.b16 %v4070
    %v4105 = vunpack.c.h.b16 %v4070
    %v4106 = vunpack.c.l.b16 %v4071
    %v4107 = vunpack.c.h.b16 %v4071
    %v4108 = vunpack.c.l.b16 %v4072
    %v4109 = vunpack.c.h.b16 %v4072
    %v4110 = vunpack.c.l.b16 %v4073
    %v4111 = vunpack.c.h.b16 %v4073
    %v4112 = vunpack.c.l.b16 %v4074
    %v4113 = vunpack.c.h.b16 %v4074
    %v4114 = vunpack.c.l.b16 %v4075
    %v4115 = vunpack.c.h.b16 %v4075
    %v4116 = vunpack.c.l.b16 %v4076
    %v4117 = vunpack.c.h.b16 %v4076
    %v4118 = vunpack.c.l.b16 %v4077
    %v4119 = vunpack.c.h.b16 %v4077
    %v4120 = vunpack.c.l.b16 %v4078
    %v4121 = vunpack.c.h.b16 %v4078
    %v4122 = vunpack.c.l.b16 %v4079
    %v4123 = vunpack.c.h.b16 %v4079
    %v4124 = vunpack.c.l.b16 %v4080
    %v4125 = vunpack.c.h.b16 %v4080
    %v4126 = vunpack.c.l.b16 %v4081
    %v4127 = vunpack.c.h.b16 %v4081
    %v4128 = vunpack.c.l.b16 %v4082
    %v4129 = vunpack.c.h.b16 %v4082
    %v4130 = vunpack.c.l.b16 %v4083
    %v4131 = vunpack.c.h.b16 %v4083
    %v4132 = vunpack.c.l.b16 %v4084
    %v4133 = vunpack.c.h.b16 %v4084
    %v4134 = vunpack.c.l.b16 %v4085
    %v4135 = vunpack.c.h.b16 %v4085
    %v4136 = vpack.c.b16 %v4108, %v4104
    %v4137 = vpack.c.b16 %v4109, %v4105
    %v4138 = vpack.c.b16 %v4110, %v4106
    %v4139 = vpack.c.b16 %v4111, %v4107
    %v4140 = vpack.c.b16 %v4116, %v4112
    %v4141 = vpack.c.b16 %v4117, %v4113
    %v4142 = vpack.c.b16 %v4118, %v4114
    %v4143 = vpack.c.b16 %v4119, %v4115
    %v4144 = vpack.c.b16 %v4124, %v4120
    %v4145 = vpack.c.b16 %v4125, %v4121
    %v4146 = vpack.c.b16 %v4126, %v4122
    %v4147 = vpack.c.b16 %v4127, %v4123
    %v4148 = vpack.c.b16 %v4132, %v4128
    %v4149 = vpack.c.b16 %v4133, %v4129
    %v4150 = vpack.c.b16 %v4134, %v4130
    %v4151 = vpack.c.b16 %v4135, %v4131
    %v4169 = vsel %vm526, %v4087, 0
    %4171 = vmatpush.bf16.msra.mxu0 0
    %4172 = vmatpush.bf16.msra.mxu0 0
    %4173 = vmatpush.bf16.msra.mxu0 0
    %4174 = vmatpush.bf16.msra.mxu0 0
    %4175 = vmatpush.bf16.msra.mxu0 %v4148
    %4176 = vmatpush.bf16.msra.mxu0 %v4144
    %4177 = vmatpush.bf16.msra.mxu0 %v4140
    %4178 = vmatpush.bf16.msra.mxu0 %v4136
    %4179 = vmatmul.bf16.gmra.mxu0 %v4169
    %v4180 = vpop.f32.mrf.mxu0
    %v4181 = vadd.f32 0.0, %v4180
    %v4182 = vpop.f32.mrf.mxu0
    %4183 = vdwg.mxu0
    %4184 = vmatpush.bf16.msra.mxu0 0
    %4185 = vmatpush.bf16.msra.mxu0 0
    %4186 = vmatpush.bf16.msra.mxu0 0
    %4187 = vmatpush.bf16.msra.mxu0 0
    %4188 = vmatpush.bf16.msra.mxu0 %v4149
    %4189 = vmatpush.bf16.msra.mxu0 %v4145
    %4190 = vmatpush.bf16.msra.mxu0 %v4141
    %4191 = vmatpush.bf16.msra.mxu0 %v4137
    %4192 = vmatmul.bf16.gmra.mxu0 %v4169
    %v4193 = vpop.f32.mrf.mxu0
    %v4194 = vadd.f32 0.0, %v4193
    %v4195 = vpop.f32.mrf.mxu0
    %4196 = vdwg.mxu0
    %4197 = vmatpush.bf16.msra.mxu0 0
    %4198 = vmatpush.bf16.msra.mxu0 0
    %4199 = vmatpush.bf16.msra.mxu0 0
    %4200 = vmatpush.bf16.msra.mxu0 0
    %4201 = vmatpush.bf16.msra.mxu0 %v4150
    %4202 = vmatpush.bf16.msra.mxu0 %v4146
    %4203 = vmatpush.bf16.msra.mxu0 %v4142
    %4204 = vmatpush.bf16.msra.mxu0 %v4138
    %4205 = vmatmul.bf16.gmra.mxu0 %v4169
    %v4206 = vpop.f32.mrf.mxu0
    %v4207 = vadd.f32 0.0, %v4206
    %v4208 = vpop.f32.mrf.mxu0
    %4209 = vdwg.mxu0
    %4210 = vmatpush.bf16.msra.mxu0 0
    %4211 = vmatpush.bf16.msra.mxu0 0
    %4212 = vmatpush.bf16.msra.mxu0 0
    %4213 = vmatpush.bf16.msra.mxu0 0
    %4214 = vmatpush.bf16.msra.mxu0 %v4151
    %4215 = vmatpush.bf16.msra.mxu0 %v4147
    %4216 = vmatpush.bf16.msra.mxu0 %v4143
    %4217 = vmatpush.bf16.msra.mxu0 %v4139
    %4218 = vmatmul.bf16.gmra.mxu0 %v4169
    %v4219 = vpop.f32.mrf.mxu0
    %v4220 = vadd.f32 0.0, %v4219
    %v4221 = vpop.f32.mrf.mxu0
    %4222 = vdwg.mxu0
    %v4223 = vadd.f32 %v4065, %v4181
    %v4224 = vadd.f32 %v4066, %v4194
    %v4225 = vadd.f32 %v4067, %v4207
    %v4226 = vadd.f32 %v4068, %v4220
    %s4227 = scalar_lea.vmem %s3, 2816
    %v4228 = vld [vmem:[%s4227] sm:$0xff]
    %v4229 = vld [vmem:[%s4227 + $0x8] sm:$0xff]
    %v4230 = vld [vmem:[%s4227 + $0x10] sm:$0xff]
    %v4231 = vld [vmem:[%s4227 + $0x18] sm:$0xff]
    %v4232 = vld [vmem:[%s4227 + $0x20] sm:$0xff]
    %v4233 = vld [vmem:[%s4227 + $0x28] sm:$0xff]
    %v4234 = vld [vmem:[%s4227 + $0x30] sm:$0xff]
    %v4235 = vld [vmem:[%s4227 + $0x38] sm:$0xff]
    %v4236 = vld [vmem:[%s4227 + $0x40] sm:$0xff]
    %v4237 = vld [vmem:[%s4227 + $0x48] sm:$0xff]
    %v4238 = vld [vmem:[%s4227 + $0x50] sm:$0xff]
    %v4239 = vld [vmem:[%s4227 + $0x58] sm:$0xff]
    %v4240 = vld [vmem:[%s4227 + $0x60] sm:$0xff]
    %v4241 = vld [vmem:[%s4227 + $0x68] sm:$0xff]
    %v4242 = vld [vmem:[%s4227 + $0x70] sm:$0xff]
    %v4243 = vld [vmem:[%s4227 + $0x78] sm:$0xff]
    %v4244 = vrot.slane %v3912, 2
    %v4261 = vunpack.c.l.b16 %v4228
    %v4262 = vunpack.c.h.b16 %v4228
    %v4263 = vunpack.c.l.b16 %v4229
    %v4264 = vunpack.c.h.b16 %v4229
    %v4265 = vunpack.c.l.b16 %v4230
    %v4266 = vunpack.c.h.b16 %v4230
    %v4267 = vunpack.c.l.b16 %v4231
    %v4268 = vunpack.c.h.b16 %v4231
    %v4269 = vunpack.c.l.b16 %v4232
    %v4270 = vunpack.c.h.b16 %v4232
    %v4271 = vunpack.c.l.b16 %v4233
    %v4272 = vunpack.c.h.b16 %v4233
    %v4273 = vunpack.c.l.b16 %v4234
    %v4274 = vunpack.c.h.b16 %v4234
    %v4275 = vunpack.c.l.b16 %v4235
    %v4276 = vunpack.c.h.b16 %v4235
    %v4277 = vunpack.c.l.b16 %v4236
    %v4278 = vunpack.c.h.b16 %v4236
    %v4279 = vunpack.c.l.b16 %v4237
    %v4280 = vunpack.c.h.b16 %v4237
    %v4281 = vunpack.c.l.b16 %v4238
    %v4282 = vunpack.c.h.b16 %v4238
    %v4283 = vunpack.c.l.b16 %v4239
    %v4284 = vunpack.c.h.b16 %v4239
    %v4285 = vunpack.c.l.b16 %v4240
    %v4286 = vunpack.c.h.b16 %v4240
    %v4287 = vunpack.c.l.b16 %v4241
    %v4288 = vunpack.c.h.b16 %v4241
    %v4289 = vunpack.c.l.b16 %v4242
    %v4290 = vunpack.c.h.b16 %v4242
    %v4291 = vunpack.c.l.b16 %v4243
    %v4292 = vunpack.c.h.b16 %v4243
    %v4293 = vpack.c.b16 %v4265, %v4261
    %v4294 = vpack.c.b16 %v4266, %v4262
    %v4295 = vpack.c.b16 %v4267, %v4263
    %v4296 = vpack.c.b16 %v4268, %v4264
    %v4297 = vpack.c.b16 %v4273, %v4269
    %v4298 = vpack.c.b16 %v4274, %v4270
    %v4299 = vpack.c.b16 %v4275, %v4271
    %v4300 = vpack.c.b16 %v4276, %v4272
    %v4301 = vpack.c.b16 %v4281, %v4277
    %v4302 = vpack.c.b16 %v4282, %v4278
    %v4303 = vpack.c.b16 %v4283, %v4279
    %v4304 = vpack.c.b16 %v4284, %v4280
    %v4305 = vpack.c.b16 %v4289, %v4285
    %v4306 = vpack.c.b16 %v4290, %v4286
    %v4307 = vpack.c.b16 %v4291, %v4287
    %v4308 = vpack.c.b16 %v4292, %v4288
    %v4326 = vsel %vm526, %v4244, 0
    %4328 = vmatpush.bf16.msra.mxu0 0
    %4329 = vmatpush.bf16.msra.mxu0 0
    %4330 = vmatpush.bf16.msra.mxu0 0
    %4331 = vmatpush.bf16.msra.mxu0 0
    %4332 = vmatpush.bf16.msra.mxu0 %v4305
    %4333 = vmatpush.bf16.msra.mxu0 %v4301
    %4334 = vmatpush.bf16.msra.mxu0 %v4297
    %4335 = vmatpush.bf16.msra.mxu0 %v4293
    %4336 = vmatmul.bf16.gmra.mxu0 %v4326
    %v4337 = vpop.f32.mrf.mxu0
    %v4338 = vadd.f32 0.0, %v4337
    %v4339 = vpop.f32.mrf.mxu0
    %4340 = vdwg.mxu0
    %4341 = vmatpush.bf16.msra.mxu0 0
    %4342 = vmatpush.bf16.msra.mxu0 0
    %4343 = vmatpush.bf16.msra.mxu0 0
    %4344 = vmatpush.bf16.msra.mxu0 0
    %4345 = vmatpush.bf16.msra.mxu0 %v4306
    %4346 = vmatpush.bf16.msra.mxu0 %v4302
    %4347 = vmatpush.bf16.msra.mxu0 %v4298
    %4348 = vmatpush.bf16.msra.mxu0 %v4294
    %4349 = vmatmul.bf16.gmra.mxu0 %v4326
    %v4350 = vpop.f32.mrf.mxu0
    %v4351 = vadd.f32 0.0, %v4350
    %v4352 = vpop.f32.mrf.mxu0
    %4353 = vdwg.mxu0
    %4354 = vmatpush.bf16.msra.mxu0 0
    %4355 = vmatpush.bf16.msra.mxu0 0
    %4356 = vmatpush.bf16.msra.mxu0 0
    %4357 = vmatpush.bf16.msra.mxu0 0
    %4358 = vmatpush.bf16.msra.mxu0 %v4307
    %4359 = vmatpush.bf16.msra.mxu0 %v4303
    %4360 = vmatpush.bf16.msra.mxu0 %v4299
    %4361 = vmatpush.bf16.msra.mxu0 %v4295
    %4362 = vmatmul.bf16.gmra.mxu0 %v4326
    %v4363 = vpop.f32.mrf.mxu0
    %v4364 = vadd.f32 0.0, %v4363
    %v4365 = vpop.f32.mrf.mxu0
    %4366 = vdwg.mxu0
    %4367 = vmatpush.bf16.msra.mxu0 0
    %4368 = vmatpush.bf16.msra.mxu0 0
    %4369 = vmatpush.bf16.msra.mxu0 0
    %4370 = vmatpush.bf16.msra.mxu0 0
    %4371 = vmatpush.bf16.msra.mxu0 %v4308
    %4372 = vmatpush.bf16.msra.mxu0 %v4304
    %4373 = vmatpush.bf16.msra.mxu0 %v4300
    %4374 = vmatpush.bf16.msra.mxu0 %v4296
    %4375 = vmatmul.bf16.gmra.mxu0 %v4326
    %v4376 = vpop.f32.mrf.mxu0
    %v4377 = vadd.f32 0.0, %v4376
    %v4378 = vpop.f32.mrf.mxu0
    %4379 = vdwg.mxu0
    %v4380 = vadd.f32 %v4223, %v4338
    %v4381 = vadd.f32 %v4224, %v4351
    %v4382 = vadd.f32 %v4225, %v4364
    %v4383 = vadd.f32 %v4226, %v4377
    %s4384 = scalar_lea.vmem %s3, 2944
    %v4385 = vld [vmem:[%s4384] sm:$0xff]
    %v4386 = vld [vmem:[%s4384 + $0x8] sm:$0xff]
    %v4387 = vld [vmem:[%s4384 + $0x10] sm:$0xff]
    %v4388 = vld [vmem:[%s4384 + $0x18] sm:$0xff]
    %v4389 = vld [vmem:[%s4384 + $0x20] sm:$0xff]
    %v4390 = vld [vmem:[%s4384 + $0x28] sm:$0xff]
    %v4391 = vld [vmem:[%s4384 + $0x30] sm:$0xff]
    %v4392 = vld [vmem:[%s4384 + $0x38] sm:$0xff]
    %v4393 = vld [vmem:[%s4384 + $0x40] sm:$0xff]
    %v4394 = vld [vmem:[%s4384 + $0x48] sm:$0xff]
    %v4395 = vld [vmem:[%s4384 + $0x50] sm:$0xff]
    %v4396 = vld [vmem:[%s4384 + $0x58] sm:$0xff]
    %v4397 = vld [vmem:[%s4384 + $0x60] sm:$0xff]
    %v4398 = vld [vmem:[%s4384 + $0x68] sm:$0xff]
    %v4399 = vld [vmem:[%s4384 + $0x70] sm:$0xff]
    %v4400 = vld [vmem:[%s4384 + $0x78] sm:$0xff]
    %v4401 = vrot.slane %v3912, 3
    %v4418 = vunpack.c.l.b16 %v4385
    %v4419 = vunpack.c.h.b16 %v4385
    %v4420 = vunpack.c.l.b16 %v4386
    %v4421 = vunpack.c.h.b16 %v4386
    %v4422 = vunpack.c.l.b16 %v4387
    %v4423 = vunpack.c.h.b16 %v4387
    %v4424 = vunpack.c.l.b16 %v4388
    %v4425 = vunpack.c.h.b16 %v4388
    %v4426 = vunpack.c.l.b16 %v4389
    %v4427 = vunpack.c.h.b16 %v4389
    %v4428 = vunpack.c.l.b16 %v4390
    %v4429 = vunpack.c.h.b16 %v4390
    %v4430 = vunpack.c.l.b16 %v4391
    %v4431 = vunpack.c.h.b16 %v4391
    %v4432 = vunpack.c.l.b16 %v4392
    %v4433 = vunpack.c.h.b16 %v4392
    %v4434 = vunpack.c.l.b16 %v4393
    %v4435 = vunpack.c.h.b16 %v4393
    %v4436 = vunpack.c.l.b16 %v4394
    %v4437 = vunpack.c.h.b16 %v4394
    %v4438 = vunpack.c.l.b16 %v4395
    %v4439 = vunpack.c.h.b16 %v4395
    %v4440 = vunpack.c.l.b16 %v4396
    %v4441 = vunpack.c.h.b16 %v4396
    %v4442 = vunpack.c.l.b16 %v4397
    %v4443 = vunpack.c.h.b16 %v4397
    %v4444 = vunpack.c.l.b16 %v4398
    %v4445 = vunpack.c.h.b16 %v4398
    %v4446 = vunpack.c.l.b16 %v4399
    %v4447 = vunpack.c.h.b16 %v4399
    %v4448 = vunpack.c.l.b16 %v4400
    %v4449 = vunpack.c.h.b16 %v4400
    %v4450 = vpack.c.b16 %v4422, %v4418
    %v4451 = vpack.c.b16 %v4423, %v4419
    %v4452 = vpack.c.b16 %v4424, %v4420
    %v4453 = vpack.c.b16 %v4425, %v4421
    %v4454 = vpack.c.b16 %v4430, %v4426
    %v4455 = vpack.c.b16 %v4431, %v4427
    %v4456 = vpack.c.b16 %v4432, %v4428
    %v4457 = vpack.c.b16 %v4433, %v4429
    %v4458 = vpack.c.b16 %v4438, %v4434
    %v4459 = vpack.c.b16 %v4439, %v4435
    %v4460 = vpack.c.b16 %v4440, %v4436
    %v4461 = vpack.c.b16 %v4441, %v4437
    %v4462 = vpack.c.b16 %v4446, %v4442
    %v4463 = vpack.c.b16 %v4447, %v4443
    %v4464 = vpack.c.b16 %v4448, %v4444
    %v4465 = vpack.c.b16 %v4449, %v4445
    %v4483 = vsel %vm526, %v4401, 0
    %4485 = vmatpush.bf16.msra.mxu0 0
    %4486 = vmatpush.bf16.msra.mxu0 0
    %4487 = vmatpush.bf16.msra.mxu0 0
    %4488 = vmatpush.bf16.msra.mxu0 0
    %4489 = vmatpush.bf16.msra.mxu0 %v4462
    %4490 = vmatpush.bf16.msra.mxu0 %v4458
    %4491 = vmatpush.bf16.msra.mxu0 %v4454
    %4492 = vmatpush.bf16.msra.mxu0 %v4450
    %4493 = vmatmul.bf16.gmra.mxu0 %v4483
    %v4494 = vpop.f32.mrf.mxu0
    %v4495 = vadd.f32 0.0, %v4494
    %v4496 = vpop.f32.mrf.mxu0
    %4497 = vdwg.mxu0
    %4498 = vmatpush.bf16.msra.mxu0 0
    %4499 = vmatpush.bf16.msra.mxu0 0
    %4500 = vmatpush.bf16.msra.mxu0 0
    %4501 = vmatpush.bf16.msra.mxu0 0
    %4502 = vmatpush.bf16.msra.mxu0 %v4463
    %4503 = vmatpush.bf16.msra.mxu0 %v4459
    %4504 = vmatpush.bf16.msra.mxu0 %v4455
    %4505 = vmatpush.bf16.msra.mxu0 %v4451
    %4506 = vmatmul.bf16.gmra.mxu0 %v4483
    %v4507 = vpop.f32.mrf.mxu0
    %v4508 = vadd.f32 0.0, %v4507
    %v4509 = vpop.f32.mrf.mxu0
    %4510 = vdwg.mxu0
    %4511 = vmatpush.bf16.msra.mxu0 0
    %4512 = vmatpush.bf16.msra.mxu0 0
    %4513 = vmatpush.bf16.msra.mxu0 0
    %4514 = vmatpush.bf16.msra.mxu0 0
    %4515 = vmatpush.bf16.msra.mxu0 %v4464
    %4516 = vmatpush.bf16.msra.mxu0 %v4460
    %4517 = vmatpush.bf16.msra.mxu0 %v4456
    %4518 = vmatpush.bf16.msra.mxu0 %v4452
    %4519 = vmatmul.bf16.gmra.mxu0 %v4483
    %v4520 = vpop.f32.mrf.mxu0
    %v4521 = vadd.f32 0.0, %v4520
    %v4522 = vpop.f32.mrf.mxu0
    %4523 = vdwg.mxu0
    %4524 = vmatpush.bf16.msra.mxu0 0
    %4525 = vmatpush.bf16.msra.mxu0 0
    %4526 = vmatpush.bf16.msra.mxu0 0
    %4527 = vmatpush.bf16.msra.mxu0 0
    %4528 = vmatpush.bf16.msra.mxu0 %v4465
    %4529 = vmatpush.bf16.msra.mxu0 %v4461
    %4530 = vmatpush.bf16.msra.mxu0 %v4457
    %4531 = vmatpush.bf16.msra.mxu0 %v4453
    %4532 = vmatmul.bf16.gmra.mxu0 %v4483
    %v4533 = vpop.f32.mrf.mxu0
    %v4534 = vadd.f32 0.0, %v4533
    %v4535 = vpop.f32.mrf.mxu0
    %4536 = vdwg.mxu0
    %v4537 = vadd.f32 %v4380, %v4495
    %v4538 = vadd.f32 %v4381, %v4508
    %v4539 = vadd.f32 %v4382, %v4521
    %v4540 = vadd.f32 %v4383, %v4534
    %v4541 = vpack.c.bf16 %v769, %v769
    %s4542 = scalar_lea.vmem %s3, 3072
    %v4543 = vld [vmem:[%s4542] sm:$0xff]
    %v4544 = vld [vmem:[%s4542 + $0x8] sm:$0xff]
    %v4545 = vld [vmem:[%s4542 + $0x10] sm:$0xff]
    %v4546 = vld [vmem:[%s4542 + $0x18] sm:$0xff]
    %v4547 = vld [vmem:[%s4542 + $0x20] sm:$0xff]
    %v4548 = vld [vmem:[%s4542 + $0x28] sm:$0xff]
    %v4549 = vld [vmem:[%s4542 + $0x30] sm:$0xff]
    %v4550 = vld [vmem:[%s4542 + $0x38] sm:$0xff]
    %v4551 = vld [vmem:[%s4542 + $0x40] sm:$0xff]
    %v4552 = vld [vmem:[%s4542 + $0x48] sm:$0xff]
    %v4553 = vld [vmem:[%s4542 + $0x50] sm:$0xff]
    %v4554 = vld [vmem:[%s4542 + $0x58] sm:$0xff]
    %v4555 = vld [vmem:[%s4542 + $0x60] sm:$0xff]
    %v4556 = vld [vmem:[%s4542 + $0x68] sm:$0xff]
    %v4557 = vld [vmem:[%s4542 + $0x70] sm:$0xff]
    %v4558 = vld [vmem:[%s4542 + $0x78] sm:$0xff]
    %v4575 = vunpack.c.l.b16 %v4543
    %v4576 = vunpack.c.h.b16 %v4543
    %v4577 = vunpack.c.l.b16 %v4544
    %v4578 = vunpack.c.h.b16 %v4544
    %v4579 = vunpack.c.l.b16 %v4545
    %v4580 = vunpack.c.h.b16 %v4545
    %v4581 = vunpack.c.l.b16 %v4546
    %v4582 = vunpack.c.h.b16 %v4546
    %v4583 = vunpack.c.l.b16 %v4547
    %v4584 = vunpack.c.h.b16 %v4547
    %v4585 = vunpack.c.l.b16 %v4548
    %v4586 = vunpack.c.h.b16 %v4548
    %v4587 = vunpack.c.l.b16 %v4549
    %v4588 = vunpack.c.h.b16 %v4549
    %v4589 = vunpack.c.l.b16 %v4550
    %v4590 = vunpack.c.h.b16 %v4550
    %v4591 = vunpack.c.l.b16 %v4551
    %v4592 = vunpack.c.h.b16 %v4551
    %v4593 = vunpack.c.l.b16 %v4552
    %v4594 = vunpack.c.h.b16 %v4552
    %v4595 = vunpack.c.l.b16 %v4553
    %v4596 = vunpack.c.h.b16 %v4553
    %v4597 = vunpack.c.l.b16 %v4554
    %v4598 = vunpack.c.h.b16 %v4554
    %v4599 = vunpack.c.l.b16 %v4555
    %v4600 = vunpack.c.h.b16 %v4555
    %v4601 = vunpack.c.l.b16 %v4556
    %v4602 = vunpack.c.h.b16 %v4556
    %v4603 = vunpack.c.l.b16 %v4557
    %v4604 = vunpack.c.h.b16 %v4557
    %v4605 = vunpack.c.l.b16 %v4558
    %v4606 = vunpack.c.h.b16 %v4558
    %v4607 = vpack.c.b16 %v4579, %v4575
    %v4608 = vpack.c.b16 %v4580, %v4576
    %v4609 = vpack.c.b16 %v4581, %v4577
    %v4610 = vpack.c.b16 %v4582, %v4578
    %v4611 = vpack.c.b16 %v4587, %v4583
    %v4612 = vpack.c.b16 %v4588, %v4584
    %v4613 = vpack.c.b16 %v4589, %v4585
    %v4614 = vpack.c.b16 %v4590, %v4586
    %v4615 = vpack.c.b16 %v4595, %v4591
    %v4616 = vpack.c.b16 %v4596, %v4592
    %v4617 = vpack.c.b16 %v4597, %v4593
    %v4618 = vpack.c.b16 %v4598, %v4594
    %v4619 = vpack.c.b16 %v4603, %v4599
    %v4620 = vpack.c.b16 %v4604, %v4600
    %v4621 = vpack.c.b16 %v4605, %v4601
    %v4622 = vpack.c.b16 %v4606, %v4602
    %v4640 = vsel %vm526, %v4541, 0
    %4642 = vmatpush.bf16.msra.mxu0 0
    %4643 = vmatpush.bf16.msra.mxu0 0
    %4644 = vmatpush.bf16.msra.mxu0 0
    %4645 = vmatpush.bf16.msra.mxu0 0
    %4646 = vmatpush.bf16.msra.mxu0 %v4619
    %4647 = vmatpush.bf16.msra.mxu0 %v4615
    %4648 = vmatpush.bf16.msra.mxu0 %v4611
    %4649 = vmatpush.bf16.msra.mxu0 %v4607
    %4650 = vmatmul.bf16.gmra.mxu0 %v4640
    %v4651 = vpop.f32.mrf.mxu0
    %v4652 = vadd.f32 0.0, %v4651
    %v4653 = vpop.f32.mrf.mxu0
    %4654 = vdwg.mxu0
    %4655 = vmatpush.bf16.msra.mxu0 0
    %4656 = vmatpush.bf16.msra.mxu0 0
    %4657 = vmatpush.bf16.msra.mxu0 0
    %4658 = vmatpush.bf16.msra.mxu0 0
    %4659 = vmatpush.bf16.msra.mxu0 %v4620
    %4660 = vmatpush.bf16.msra.mxu0 %v4616
    %4661 = vmatpush.bf16.msra.mxu0 %v4612
    %4662 = vmatpush.bf16.msra.mxu0 %v4608
    %4663 = vmatmul.bf16.gmra.mxu0 %v4640
    %v4664 = vpop.f32.mrf.mxu0
    %v4665 = vadd.f32 0.0, %v4664
    %v4666 = vpop.f32.mrf.mxu0
    %4667 = vdwg.mxu0
    %4668 = vmatpush.bf16.msra.mxu0 0
    %4669 = vmatpush.bf16.msra.mxu0 0
    %4670 = vmatpush.bf16.msra.mxu0 0
    %4671 = vmatpush.bf16.msra.mxu0 0
    %4672 = vmatpush.bf16.msra.mxu0 %v4621
    %4673 = vmatpush.bf16.msra.mxu0 %v4617
    %4674 = vmatpush.bf16.msra.mxu0 %v4613
    %4675 = vmatpush.bf16.msra.mxu0 %v4609
    %4676 = vmatmul.bf16.gmra.mxu0 %v4640
    %v4677 = vpop.f32.mrf.mxu0
    %v4678 = vadd.f32 0.0, %v4677
    %v4679 = vpop.f32.mrf.mxu0
    %4680 = vdwg.mxu0
    %4681 = vmatpush.bf16.msra.mxu0 0
    %4682 = vmatpush.bf16.msra.mxu0 0
    %4683 = vmatpush.bf16.msra.mxu0 0
    %4684 = vmatpush.bf16.msra.mxu0 0
    %4685 = vmatpush.bf16.msra.mxu0 %v4622
    %4686 = vmatpush.bf16.msra.mxu0 %v4618
    %4687 = vmatpush.bf16.msra.mxu0 %v4614
    %4688 = vmatpush.bf16.msra.mxu0 %v4610
    %4689 = vmatmul.bf16.gmra.mxu0 %v4640
    %v4690 = vpop.f32.mrf.mxu0
    %v4691 = vadd.f32 0.0, %v4690
    %v4692 = vpop.f32.mrf.mxu0
    %4693 = vdwg.mxu0
    %v4694 = vadd.f32 %v4537, %v4652
    %v4695 = vadd.f32 %v4538, %v4665
    %v4696 = vadd.f32 %v4539, %v4678
    %v4697 = vadd.f32 %v4540, %v4691
    %s4698 = scalar_lea.vmem %s3, 3200
    %v4699 = vld [vmem:[%s4698] sm:$0xff]
    %v4700 = vld [vmem:[%s4698 + $0x8] sm:$0xff]
    %v4701 = vld [vmem:[%s4698 + $0x10] sm:$0xff]
    %v4702 = vld [vmem:[%s4698 + $0x18] sm:$0xff]
    %v4703 = vld [vmem:[%s4698 + $0x20] sm:$0xff]
    %v4704 = vld [vmem:[%s4698 + $0x28] sm:$0xff]
    %v4705 = vld [vmem:[%s4698 + $0x30] sm:$0xff]
    %v4706 = vld [vmem:[%s4698 + $0x38] sm:$0xff]
    %v4707 = vld [vmem:[%s4698 + $0x40] sm:$0xff]
    %v4708 = vld [vmem:[%s4698 + $0x48] sm:$0xff]
    %v4709 = vld [vmem:[%s4698 + $0x50] sm:$0xff]
    %v4710 = vld [vmem:[%s4698 + $0x58] sm:$0xff]
    %v4711 = vld [vmem:[%s4698 + $0x60] sm:$0xff]
    %v4712 = vld [vmem:[%s4698 + $0x68] sm:$0xff]
    %v4713 = vld [vmem:[%s4698 + $0x70] sm:$0xff]
    %v4714 = vld [vmem:[%s4698 + $0x78] sm:$0xff]
    %v4716 = vrot.slane %v4541, 1
    %v4733 = vunpack.c.l.b16 %v4699
    %v4734 = vunpack.c.h.b16 %v4699
    %v4735 = vunpack.c.l.b16 %v4700
    %v4736 = vunpack.c.h.b16 %v4700
    %v4737 = vunpack.c.l.b16 %v4701
    %v4738 = vunpack.c.h.b16 %v4701
    %v4739 = vunpack.c.l.b16 %v4702
    %v4740 = vunpack.c.h.b16 %v4702
    %v4741 = vunpack.c.l.b16 %v4703
    %v4742 = vunpack.c.h.b16 %v4703
    %v4743 = vunpack.c.l.b16 %v4704
    %v4744 = vunpack.c.h.b16 %v4704
    %v4745 = vunpack.c.l.b16 %v4705
    %v4746 = vunpack.c.h.b16 %v4705
    %v4747 = vunpack.c.l.b16 %v4706
    %v4748 = vunpack.c.h.b16 %v4706
    %v4749 = vunpack.c.l.b16 %v4707
    %v4750 = vunpack.c.h.b16 %v4707
    %v4751 = vunpack.c.l.b16 %v4708
    %v4752 = vunpack.c.h.b16 %v4708
    %v4753 = vunpack.c.l.b16 %v4709
    %v4754 = vunpack.c.h.b16 %v4709
    %v4755 = vunpack.c.l.b16 %v4710
    %v4756 = vunpack.c.h.b16 %v4710
    %v4757 = vunpack.c.l.b16 %v4711
    %v4758 = vunpack.c.h.b16 %v4711
    %v4759 = vunpack.c.l.b16 %v4712
    %v4760 = vunpack.c.h.b16 %v4712
    %v4761 = vunpack.c.l.b16 %v4713
    %v4762 = vunpack.c.h.b16 %v4713
    %v4763 = vunpack.c.l.b16 %v4714
    %v4764 = vunpack.c.h.b16 %v4714
    %v4765 = vpack.c.b16 %v4737, %v4733
    %v4766 = vpack.c.b16 %v4738, %v4734
    %v4767 = vpack.c.b16 %v4739, %v4735
    %v4768 = vpack.c.b16 %v4740, %v4736
    %v4769 = vpack.c.b16 %v4745, %v4741
    %v4770 = vpack.c.b16 %v4746, %v4742
    %v4771 = vpack.c.b16 %v4747, %v4743
    %v4772 = vpack.c.b16 %v4748, %v4744
    %v4773 = vpack.c.b16 %v4753, %v4749
    %v4774 = vpack.c.b16 %v4754, %v4750
    %v4775 = vpack.c.b16 %v4755, %v4751
    %v4776 = vpack.c.b16 %v4756, %v4752
    %v4777 = vpack.c.b16 %v4761, %v4757
    %v4778 = vpack.c.b16 %v4762, %v4758
    %v4779 = vpack.c.b16 %v4763, %v4759
    %v4780 = vpack.c.b16 %v4764, %v4760
    %v4798 = vsel %vm526, %v4716, 0
    %4800 = vmatpush.bf16.msra.mxu0 0
    %4801 = vmatpush.bf16.msra.mxu0 0
    %4802 = vmatpush.bf16.msra.mxu0 0
    %4803 = vmatpush.bf16.msra.mxu0 0
    %4804 = vmatpush.bf16.msra.mxu0 %v4777
    %4805 = vmatpush.bf16.msra.mxu0 %v4773
    %4806 = vmatpush.bf16.msra.mxu0 %v4769
    %4807 = vmatpush.bf16.msra.mxu0 %v4765
    %4808 = vmatmul.bf16.gmra.mxu0 %v4798
    %v4809 = vpop.f32.mrf.mxu0
    %v4810 = vadd.f32 0.0, %v4809
    %v4811 = vpop.f32.mrf.mxu0
    %4812 = vdwg.mxu0
    %4813 = vmatpush.bf16.msra.mxu0 0
    %4814 = vmatpush.bf16.msra.mxu0 0
    %4815 = vmatpush.bf16.msra.mxu0 0
    %4816 = vmatpush.bf16.msra.mxu0 0
    %4817 = vmatpush.bf16.msra.mxu0 %v4778
    %4818 = vmatpush.bf16.msra.mxu0 %v4774
    %4819 = vmatpush.bf16.msra.mxu0 %v4770
    %4820 = vmatpush.bf16.msra.mxu0 %v4766
    %4821 = vmatmul.bf16.gmra.mxu0 %v4798
    %v4822 = vpop.f32.mrf.mxu0
    %v4823 = vadd.f32 0.0, %v4822
    %v4824 = vpop.f32.mrf.mxu0
    %4825 = vdwg.mxu0
    %4826 = vmatpush.bf16.msra.mxu0 0
    %4827 = vmatpush.bf16.msra.mxu0 0
    %4828 = vmatpush.bf16.msra.mxu0 0
    %4829 = vmatpush.bf16.msra.mxu0 0
    %4830 = vmatpush.bf16.msra.mxu0 %v4779
    %4831 = vmatpush.bf16.msra.mxu0 %v4775
    %4832 = vmatpush.bf16.msra.mxu0 %v4771
    %4833 = vmatpush.bf16.msra.mxu0 %v4767
    %4834 = vmatmul.bf16.gmra.mxu0 %v4798
    %v4835 = vpop.f32.mrf.mxu0
    %v4836 = vadd.f32 0.0, %v4835
    %v4837 = vpop.f32.mrf.mxu0
    %4838 = vdwg.mxu0
    %4839 = vmatpush.bf16.msra.mxu0 0
    %4840 = vmatpush.bf16.msra.mxu0 0
    %4841 = vmatpush.bf16.msra.mxu0 0
    %4842 = vmatpush.bf16.msra.mxu0 0
    %4843 = vmatpush.bf16.msra.mxu0 %v4780
    %4844 = vmatpush.bf16.msra.mxu0 %v4776
    %4845 = vmatpush.bf16.msra.mxu0 %v4772
    %4846 = vmatpush.bf16.msra.mxu0 %v4768
    %4847 = vmatmul.bf16.gmra.mxu0 %v4798
    %v4848 = vpop.f32.mrf.mxu0
    %v4849 = vadd.f32 0.0, %v4848
    %v4850 = vpop.f32.mrf.mxu0
    %4851 = vdwg.mxu0
    %v4852 = vadd.f32 %v4694, %v4810
    %v4853 = vadd.f32 %v4695, %v4823
    %v4854 = vadd.f32 %v4696, %v4836
    %v4855 = vadd.f32 %v4697, %v4849
    %s4856 = scalar_lea.vmem %s3, 3328
    %v4857 = vld [vmem:[%s4856] sm:$0xff]
    %v4858 = vld [vmem:[%s4856 + $0x8] sm:$0xff]
    %v4859 = vld [vmem:[%s4856 + $0x10] sm:$0xff]
    %v4860 = vld [vmem:[%s4856 + $0x18] sm:$0xff]
    %v4861 = vld [vmem:[%s4856 + $0x20] sm:$0xff]
    %v4862 = vld [vmem:[%s4856 + $0x28] sm:$0xff]
    %v4863 = vld [vmem:[%s4856 + $0x30] sm:$0xff]
    %v4864 = vld [vmem:[%s4856 + $0x38] sm:$0xff]
    %v4865 = vld [vmem:[%s4856 + $0x40] sm:$0xff]
    %v4866 = vld [vmem:[%s4856 + $0x48] sm:$0xff]
    %v4867 = vld [vmem:[%s4856 + $0x50] sm:$0xff]
    %v4868 = vld [vmem:[%s4856 + $0x58] sm:$0xff]
    %v4869 = vld [vmem:[%s4856 + $0x60] sm:$0xff]
    %v4870 = vld [vmem:[%s4856 + $0x68] sm:$0xff]
    %v4871 = vld [vmem:[%s4856 + $0x70] sm:$0xff]
    %v4872 = vld [vmem:[%s4856 + $0x78] sm:$0xff]
    %v4873 = vrot.slane %v4541, 2
    %v4890 = vunpack.c.l.b16 %v4857
    %v4891 = vunpack.c.h.b16 %v4857
    %v4892 = vunpack.c.l.b16 %v4858
    %v4893 = vunpack.c.h.b16 %v4858
    %v4894 = vunpack.c.l.b16 %v4859
    %v4895 = vunpack.c.h.b16 %v4859
    %v4896 = vunpack.c.l.b16 %v4860
    %v4897 = vunpack.c.h.b16 %v4860
    %v4898 = vunpack.c.l.b16 %v4861
    %v4899 = vunpack.c.h.b16 %v4861
    %v4900 = vunpack.c.l.b16 %v4862
    %v4901 = vunpack.c.h.b16 %v4862
    %v4902 = vunpack.c.l.b16 %v4863
    %v4903 = vunpack.c.h.b16 %v4863
    %v4904 = vunpack.c.l.b16 %v4864
    %v4905 = vunpack.c.h.b16 %v4864
    %v4906 = vunpack.c.l.b16 %v4865
    %v4907 = vunpack.c.h.b16 %v4865
    %v4908 = vunpack.c.l.b16 %v4866
    %v4909 = vunpack.c.h.b16 %v4866
    %v4910 = vunpack.c.l.b16 %v4867
    %v4911 = vunpack.c.h.b16 %v4867
    %v4912 = vunpack.c.l.b16 %v4868
    %v4913 = vunpack.c.h.b16 %v4868
    %v4914 = vunpack.c.l.b16 %v4869
    %v4915 = vunpack.c.h.b16 %v4869
    %v4916 = vunpack.c.l.b16 %v4870
    %v4917 = vunpack.c.h.b16 %v4870
    %v4918 = vunpack.c.l.b16 %v4871
    %v4919 = vunpack.c.h.b16 %v4871
    %v4920 = vunpack.c.l.b16 %v4872
    %v4921 = vunpack.c.h.b16 %v4872
    %v4922 = vpack.c.b16 %v4894, %v4890
    %v4923 = vpack.c.b16 %v4895, %v4891
    %v4924 = vpack.c.b16 %v4896, %v4892
    %v4925 = vpack.c.b16 %v4897, %v4893
    %v4926 = vpack.c.b16 %v4902, %v4898
    %v4927 = vpack.c.b16 %v4903, %v4899
    %v4928 = vpack.c.b16 %v4904, %v4900
    %v4929 = vpack.c.b16 %v4905, %v4901
    %v4930 = vpack.c.b16 %v4910, %v4906
    %v4931 = vpack.c.b16 %v4911, %v4907
    %v4932 = vpack.c.b16 %v4912, %v4908
    %v4933 = vpack.c.b16 %v4913, %v4909
    %v4934 = vpack.c.b16 %v4918, %v4914
    %v4935 = vpack.c.b16 %v4919, %v4915
    %v4936 = vpack.c.b16 %v4920, %v4916
    %v4937 = vpack.c.b16 %v4921, %v4917
    %v4955 = vsel %vm526, %v4873, 0
    %4957 = vmatpush.bf16.msra.mxu0 0
    %4958 = vmatpush.bf16.msra.mxu0 0
    %4959 = vmatpush.bf16.msra.mxu0 0
    %4960 = vmatpush.bf16.msra.mxu0 0
    %4961 = vmatpush.bf16.msra.mxu0 %v4934
    %4962 = vmatpush.bf16.msra.mxu0 %v4930
    %4963 = vmatpush.bf16.msra.mxu0 %v4926
    %4964 = vmatpush.bf16.msra.mxu0 %v4922
    %4965 = vmatmul.bf16.gmra.mxu0 %v4955
    %v4966 = vpop.f32.mrf.mxu0
    %v4967 = vadd.f32 0.0, %v4966
    %v4968 = vpop.f32.mrf.mxu0
    %4969 = vdwg.mxu0
    %4970 = vmatpush.bf16.msra.mxu0 0
    %4971 = vmatpush.bf16.msra.mxu0 0
    %4972 = vmatpush.bf16.msra.mxu0 0
    %4973 = vmatpush.bf16.msra.mxu0 0
    %4974 = vmatpush.bf16.msra.mxu0 %v4935
    %4975 = vmatpush.bf16.msra.mxu0 %v4931
    %4976 = vmatpush.bf16.msra.mxu0 %v4927
    %4977 = vmatpush.bf16.msra.mxu0 %v4923
    %4978 = vmatmul.bf16.gmra.mxu0 %v4955
    %v4979 = vpop.f32.mrf.mxu0
    %v4980 = vadd.f32 0.0, %v4979
    %v4981 = vpop.f32.mrf.mxu0
    %4982 = vdwg.mxu0
    %4983 = vmatpush.bf16.msra.mxu0 0
    %4984 = vmatpush.bf16.msra.mxu0 0
    %4985 = vmatpush.bf16.msra.mxu0 0
    %4986 = vmatpush.bf16.msra.mxu0 0
    %4987 = vmatpush.bf16.msra.mxu0 %v4936
    %4988 = vmatpush.bf16.msra.mxu0 %v4932
    %4989 = vmatpush.bf16.msra.mxu0 %v4928
    %4990 = vmatpush.bf16.msra.mxu0 %v4924
    %4991 = vmatmul.bf16.gmra.mxu0 %v4955
    %v4992 = vpop.f32.mrf.mxu0
    %v4993 = vadd.f32 0.0, %v4992
    %v4994 = vpop.f32.mrf.mxu0
    %4995 = vdwg.mxu0
    %4996 = vmatpush.bf16.msra.mxu0 0
    %4997 = vmatpush.bf16.msra.mxu0 0
    %4998 = vmatpush.bf16.msra.mxu0 0
    %4999 = vmatpush.bf16.msra.mxu0 0
    %5000 = vmatpush.bf16.msra.mxu0 %v4937
    %5001 = vmatpush.bf16.msra.mxu0 %v4933
    %5002 = vmatpush.bf16.msra.mxu0 %v4929
    %5003 = vmatpush.bf16.msra.mxu0 %v4925
    %5004 = vmatmul.bf16.gmra.mxu0 %v4955
    %v5005 = vpop.f32.mrf.mxu0
    %v5006 = vadd.f32 0.0, %v5005
    %v5007 = vpop.f32.mrf.mxu0
    %5008 = vdwg.mxu0
    %v5009 = vadd.f32 %v4852, %v4967
    %v5010 = vadd.f32 %v4853, %v4980
    %v5011 = vadd.f32 %v4854, %v4993
    %v5012 = vadd.f32 %v4855, %v5006
    %s5013 = scalar_lea.vmem %s3, 3456
    %v5014 = vld [vmem:[%s5013] sm:$0xff]
    %v5015 = vld [vmem:[%s5013 + $0x8] sm:$0xff]
    %v5016 = vld [vmem:[%s5013 + $0x10] sm:$0xff]
    %v5017 = vld [vmem:[%s5013 + $0x18] sm:$0xff]
    %v5018 = vld [vmem:[%s5013 + $0x20] sm:$0xff]
    %v5019 = vld [vmem:[%s5013 + $0x28] sm:$0xff]
    %v5020 = vld [vmem:[%s5013 + $0x30] sm:$0xff]
    %v5021 = vld [vmem:[%s5013 + $0x38] sm:$0xff]
    %v5022 = vld [vmem:[%s5013 + $0x40] sm:$0xff]
    %v5023 = vld [vmem:[%s5013 + $0x48] sm:$0xff]
    %v5024 = vld [vmem:[%s5013 + $0x50] sm:$0xff]
    %v5025 = vld [vmem:[%s5013 + $0x58] sm:$0xff]
    %v5026 = vld [vmem:[%s5013 + $0x60] sm:$0xff]
    %v5027 = vld [vmem:[%s5013 + $0x68] sm:$0xff]
    %v5028 = vld [vmem:[%s5013 + $0x70] sm:$0xff]
    %v5029 = vld [vmem:[%s5013 + $0x78] sm:$0xff]
    %v5030 = vrot.slane %v4541, 3
    %v5047 = vunpack.c.l.b16 %v5014
    %v5048 = vunpack.c.h.b16 %v5014
    %v5049 = vunpack.c.l.b16 %v5015
    %v5050 = vunpack.c.h.b16 %v5015
    %v5051 = vunpack.c.l.b16 %v5016
    %v5052 = vunpack.c.h.b16 %v5016
    %v5053 = vunpack.c.l.b16 %v5017
    %v5054 = vunpack.c.h.b16 %v5017
    %v5055 = vunpack.c.l.b16 %v5018
    %v5056 = vunpack.c.h.b16 %v5018
    %v5057 = vunpack.c.l.b16 %v5019
    %v5058 = vunpack.c.h.b16 %v5019
    %v5059 = vunpack.c.l.b16 %v5020
    %v5060 = vunpack.c.h.b16 %v5020
    %v5061 = vunpack.c.l.b16 %v5021
    %v5062 = vunpack.c.h.b16 %v5021
    %v5063 = vunpack.c.l.b16 %v5022
    %v5064 = vunpack.c.h.b16 %v5022
    %v5065 = vunpack.c.l.b16 %v5023
    %v5066 = vunpack.c.h.b16 %v5023
    %v5067 = vunpack.c.l.b16 %v5024
    %v5068 = vunpack.c.h.b16 %v5024
    %v5069 = vunpack.c.l.b16 %v5025
    %v5070 = vunpack.c.h.b16 %v5025
    %v5071 = vunpack.c.l.b16 %v5026
    %v5072 = vunpack.c.h.b16 %v5026
    %v5073 = vunpack.c.l.b16 %v5027
    %v5074 = vunpack.c.h.b16 %v5027
    %v5075 = vunpack.c.l.b16 %v5028
    %v5076 = vunpack.c.h.b16 %v5028
    %v5077 = vunpack.c.l.b16 %v5029
    %v5078 = vunpack.c.h.b16 %v5029
    %v5079 = vpack.c.b16 %v5051, %v5047
    %v5080 = vpack.c.b16 %v5052, %v5048
    %v5081 = vpack.c.b16 %v5053, %v5049
    %v5082 = vpack.c.b16 %v5054, %v5050
    %v5083 = vpack.c.b16 %v5059, %v5055
    %v5084 = vpack.c.b16 %v5060, %v5056
    %v5085 = vpack.c.b16 %v5061, %v5057
    %v5086 = vpack.c.b16 %v5062, %v5058
    %v5087 = vpack.c.b16 %v5067, %v5063
    %v5088 = vpack.c.b16 %v5068, %v5064
    %v5089 = vpack.c.b16 %v5069, %v5065
    %v5090 = vpack.c.b16 %v5070, %v5066
    %v5091 = vpack.c.b16 %v5075, %v5071
    %v5092 = vpack.c.b16 %v5076, %v5072
    %v5093 = vpack.c.b16 %v5077, %v5073
    %v5094 = vpack.c.b16 %v5078, %v5074
    %v5112 = vsel %vm526, %v5030, 0
    %5114 = vmatpush.bf16.msra.mxu0 0
    %5115 = vmatpush.bf16.msra.mxu0 0
    %5116 = vmatpush.bf16.msra.mxu0 0
    %5117 = vmatpush.bf16.msra.mxu0 0
    %5118 = vmatpush.bf16.msra.mxu0 %v5091
    %5119 = vmatpush.bf16.msra.mxu0 %v5087
    %5120 = vmatpush.bf16.msra.mxu0 %v5083
    %5121 = vmatpush.bf16.msra.mxu0 %v5079
    %5122 = vmatmul.bf16.gmra.mxu0 %v5112
    %v5123 = vpop.f32.mrf.mxu0
    %v5124 = vadd.f32 0.0, %v5123
    %v5125 = vpop.f32.mrf.mxu0
    %5126 = vdwg.mxu0
    %5127 = vmatpush.bf16.msra.mxu0 0
    %5128 = vmatpush.bf16.msra.mxu0 0
    %5129 = vmatpush.bf16.msra.mxu0 0
    %5130 = vmatpush.bf16.msra.mxu0 0
    %5131 = vmatpush.bf16.msra.mxu0 %v5092
    %5132 = vmatpush.bf16.msra.mxu0 %v5088
    %5133 = vmatpush.bf16.msra.mxu0 %v5084
    %5134 = vmatpush.bf16.msra.mxu0 %v5080
    %5135 = vmatmul.bf16.gmra.mxu0 %v5112
    %v5136 = vpop.f32.mrf.mxu0
    %v5137 = vadd.f32 0.0, %v5136
    %v5138 = vpop.f32.mrf.mxu0
    %5139 = vdwg.mxu0
    %5140 = vmatpush.bf16.msra.mxu0 0
    %5141 = vmatpush.bf16.msra.mxu0 0
    %5142 = vmatpush.bf16.msra.mxu0 0
    %5143 = vmatpush.bf16.msra.mxu0 0
    %5144 = vmatpush.bf16.msra.mxu0 %v5093
    %5145 = vmatpush.bf16.msra.mxu0 %v5089
    %5146 = vmatpush.bf16.msra.mxu0 %v5085
    %5147 = vmatpush.bf16.msra.mxu0 %v5081
    %5148 = vmatmul.bf16.gmra.mxu0 %v5112
    %v5149 = vpop.f32.mrf.mxu0
    %v5150 = vadd.f32 0.0, %v5149
    %v5151 = vpop.f32.mrf.mxu0
    %5152 = vdwg.mxu0
    %5153 = vmatpush.bf16.msra.mxu0 0
    %5154 = vmatpush.bf16.msra.mxu0 0
    %5155 = vmatpush.bf16.msra.mxu0 0
    %5156 = vmatpush.bf16.msra.mxu0 0
    %5157 = vmatpush.bf16.msra.mxu0 %v5094
    %5158 = vmatpush.bf16.msra.mxu0 %v5090
    %5159 = vmatpush.bf16.msra.mxu0 %v5086
    %5160 = vmatpush.bf16.msra.mxu0 %v5082
    %5161 = vmatmul.bf16.gmra.mxu0 %v5112
    %v5162 = vpop.f32.mrf.mxu0
    %v5163 = vadd.f32 0.0, %v5162
    %v5164 = vpop.f32.mrf.mxu0
    %5165 = vdwg.mxu0
    %v5166 = vadd.f32 %v5009, %v5124
    %v5167 = vadd.f32 %v5010, %v5137
    %v5168 = vadd.f32 %v5011, %v5150
    %v5169 = vadd.f32 %v5012, %v5163
    %v5170 = vpack.c.bf16 %v770, %v770
    %s5171 = scalar_lea.vmem %s3, 3584
    %v5172 = vld [vmem:[%s5171] sm:$0xff]
    %v5173 = vld [vmem:[%s5171 + $0x8] sm:$0xff]
    %v5174 = vld [vmem:[%s5171 + $0x10] sm:$0xff]
    %v5175 = vld [vmem:[%s5171 + $0x18] sm:$0xff]
    %v5176 = vld [vmem:[%s5171 + $0x20] sm:$0xff]
    %v5177 = vld [vmem:[%s5171 + $0x28] sm:$0xff]
    %v5178 = vld [vmem:[%s5171 + $0x30] sm:$0xff]
    %v5179 = vld [vmem:[%s5171 + $0x38] sm:$0xff]
    %v5180 = vld [vmem:[%s5171 + $0x40] sm:$0xff]
    %v5181 = vld [vmem:[%s5171 + $0x48] sm:$0xff]
    %v5182 = vld [vmem:[%s5171 + $0x50] sm:$0xff]
    %v5183 = vld [vmem:[%s5171 + $0x58] sm:$0xff]
    %v5184 = vld [vmem:[%s5171 + $0x60] sm:$0xff]
    %v5185 = vld [vmem:[%s5171 + $0x68] sm:$0xff]
    %v5186 = vld [vmem:[%s5171 + $0x70] sm:$0xff]
    %v5187 = vld [vmem:[%s5171 + $0x78] sm:$0xff]
    %v5204 = vunpack.c.l.b16 %v5172
    %v5205 = vunpack.c.h.b16 %v5172
    %v5206 = vunpack.c.l.b16 %v5173
    %v5207 = vunpack.c.h.b16 %v5173
    %v5208 = vunpack.c.l.b16 %v5174
    %v5209 = vunpack.c.h.b16 %v5174
    %v5210 = vunpack.c.l.b16 %v5175
    %v5211 = vunpack.c.h.b16 %v5175
    %v5212 = vunpack.c.l.b16 %v5176
    %v5213 = vunpack.c.h.b16 %v5176
    %v5214 = vunpack.c.l.b16 %v5177
    %v5215 = vunpack.c.h.b16 %v5177
    %v5216 = vunpack.c.l.b16 %v5178
    %v5217 = vunpack.c.h.b16 %v5178
    %v5218 = vunpack.c.l.b16 %v5179
    %v5219 = vunpack.c.h.b16 %v5179
    %v5220 = vunpack.c.l.b16 %v5180
    %v5221 = vunpack.c.h.b16 %v5180
    %v5222 = vunpack.c.l.b16 %v5181
    %v5223 = vunpack.c.h.b16 %v5181
    %v5224 = vunpack.c.l.b16 %v5182
    %v5225 = vunpack.c.h.b16 %v5182
    %v5226 = vunpack.c.l.b16 %v5183
    %v5227 = vunpack.c.h.b16 %v5183
    %v5228 = vunpack.c.l.b16 %v5184
    %v5229 = vunpack.c.h.b16 %v5184
    %v5230 = vunpack.c.l.b16 %v5185
    %v5231 = vunpack.c.h.b16 %v5185
    %v5232 = vunpack.c.l.b16 %v5186
    %v5233 = vunpack.c.h.b16 %v5186
    %v5234 = vunpack.c.l.b16 %v5187
    %v5235 = vunpack.c.h.b16 %v5187
    %v5236 = vpack.c.b16 %v5208, %v5204
    %v5237 = vpack.c.b16 %v5209, %v5205
    %v5238 = vpack.c.b16 %v5210, %v5206
    %v5239 = vpack.c.b16 %v5211, %v5207
    %v5240 = vpack.c.b16 %v5216, %v5212
    %v5241 = vpack.c.b16 %v5217, %v5213
    %v5242 = vpack.c.b16 %v5218, %v5214
    %v5243 = vpack.c.b16 %v5219, %v5215
    %v5244 = vpack.c.b16 %v5224, %v5220
    %v5245 = vpack.c.b16 %v5225, %v5221
    %v5246 = vpack.c.b16 %v5226, %v5222
    %v5247 = vpack.c.b16 %v5227, %v5223
    %v5248 = vpack.c.b16 %v5232, %v5228
    %v5249 = vpack.c.b16 %v5233, %v5229
    %v5250 = vpack.c.b16 %v5234, %v5230
    %v5251 = vpack.c.b16 %v5235, %v5231
    %v5269 = vsel %vm526, %v5170, 0
    %5271 = vmatpush.bf16.msra.mxu0 0
    %5272 = vmatpush.bf16.msra.mxu0 0
    %5273 = vmatpush.bf16.msra.mxu0 0
    %5274 = vmatpush.bf16.msra.mxu0 0
    %5275 = vmatpush.bf16.msra.mxu0 %v5248
    %5276 = vmatpush.bf16.msra.mxu0 %v5244
    %5277 = vmatpush.bf16.msra.mxu0 %v5240
    %5278 = vmatpush.bf16.msra.mxu0 %v5236
    %5279 = vmatmul.bf16.gmra.mxu0 %v5269
    %v5280 = vpop.f32.mrf.mxu0
    %v5281 = vadd.f32 0.0, %v5280
    %v5282 = vpop.f32.mrf.mxu0
    %5283 = vdwg.mxu0
    %5284 = vmatpush.bf16.msra.mxu0 0
    %5285 = vmatpush.bf16.msra.mxu0 0
    %5286 = vmatpush.bf16.msra.mxu0 0
    %5287 = vmatpush.bf16.msra.mxu0 0
    %5288 = vmatpush.bf16.msra.mxu0 %v5249
    %5289 = vmatpush.bf16.msra.mxu0 %v5245
    %5290 = vmatpush.bf16.msra.mxu0 %v5241
    %5291 = vmatpush.bf16.msra.mxu0 %v5237
    %5292 = vmatmul.bf16.gmra.mxu0 %v5269
    %v5293 = vpop.f32.mrf.mxu0
    %v5294 = vadd.f32 0.0, %v5293
    %v5295 = vpop.f32.mrf.mxu0
    %5296 = vdwg.mxu0
    %5297 = vmatpush.bf16.msra.mxu0 0
    %5298 = vmatpush.bf16.msra.mxu0 0
    %5299 = vmatpush.bf16.msra.mxu0 0
    %5300 = vmatpush.bf16.msra.mxu0 0
    %5301 = vmatpush.bf16.msra.mxu0 %v5250
    %5302 = vmatpush.bf16.msra.mxu0 %v5246
    %5303 = vmatpush.bf16.msra.mxu0 %v5242
    %5304 = vmatpush.bf16.msra.mxu0 %v5238
    %5305 = vmatmul.bf16.gmra.mxu0 %v5269
    %v5306 = vpop.f32.mrf.mxu0
    %v5307 = vadd.f32 0.0, %v5306
    %v5308 = vpop.f32.mrf.mxu0
    %5309 = vdwg.mxu0
    %5310 = vmatpush.bf16.msra.mxu0 0
    %5311 = vmatpush.bf16.msra.mxu0 0
    %5312 = vmatpush.bf16.msra.mxu0 0
    %5313 = vmatpush.bf16.msra.mxu0 0
    %5314 = vmatpush.bf16.msra.mxu0 %v5251
    %5315 = vmatpush.bf16.msra.mxu0 %v5247
    %5316 = vmatpush.bf16.msra.mxu0 %v5243
    %5317 = vmatpush.bf16.msra.mxu0 %v5239
    %5318 = vmatmul.bf16.gmra.mxu0 %v5269
    %v5319 = vpop.f32.mrf.mxu0
    %v5320 = vadd.f32 0.0, %v5319
    %v5321 = vpop.f32.mrf.mxu0
    %5322 = vdwg.mxu0
    %v5323 = vadd.f32 %v5166, %v5281
    %v5324 = vadd.f32 %v5167, %v5294
    %v5325 = vadd.f32 %v5168, %v5307
    %v5326 = vadd.f32 %v5169, %v5320
    %s5327 = scalar_lea.vmem %s3, 3712
    %v5328 = vld [vmem:[%s5327] sm:$0xff]
    %v5329 = vld [vmem:[%s5327 + $0x8] sm:$0xff]
    %v5330 = vld [vmem:[%s5327 + $0x10] sm:$0xff]
    %v5331 = vld [vmem:[%s5327 + $0x18] sm:$0xff]
    %v5332 = vld [vmem:[%s5327 + $0x20] sm:$0xff]
    %v5333 = vld [vmem:[%s5327 + $0x28] sm:$0xff]
    %v5334 = vld [vmem:[%s5327 + $0x30] sm:$0xff]
    %v5335 = vld [vmem:[%s5327 + $0x38] sm:$0xff]
    %v5336 = vld [vmem:[%s5327 + $0x40] sm:$0xff]
    %v5337 = vld [vmem:[%s5327 + $0x48] sm:$0xff]
    %v5338 = vld [vmem:[%s5327 + $0x50] sm:$0xff]
    %v5339 = vld [vmem:[%s5327 + $0x58] sm:$0xff]
    %v5340 = vld [vmem:[%s5327 + $0x60] sm:$0xff]
    %v5341 = vld [vmem:[%s5327 + $0x68] sm:$0xff]
    %v5342 = vld [vmem:[%s5327 + $0x70] sm:$0xff]
    %v5343 = vld [vmem:[%s5327 + $0x78] sm:$0xff]
    %v5345 = vrot.slane %v5170, 1
    %v5362 = vunpack.c.l.b16 %v5328
    %v5363 = vunpack.c.h.b16 %v5328
    %v5364 = vunpack.c.l.b16 %v5329
    %v5365 = vunpack.c.h.b16 %v5329
    %v5366 = vunpack.c.l.b16 %v5330
    %v5367 = vunpack.c.h.b16 %v5330
    %v5368 = vunpack.c.l.b16 %v5331
    %v5369 = vunpack.c.h.b16 %v5331
    %v5370 = vunpack.c.l.b16 %v5332
    %v5371 = vunpack.c.h.b16 %v5332
    %v5372 = vunpack.c.l.b16 %v5333
    %v5373 = vunpack.c.h.b16 %v5333
    %v5374 = vunpack.c.l.b16 %v5334
    %v5375 = vunpack.c.h.b16 %v5334
    %v5376 = vunpack.c.l.b16 %v5335
    %v5377 = vunpack.c.h.b16 %v5335
    %v5378 = vunpack.c.l.b16 %v5336
    %v5379 = vunpack.c.h.b16 %v5336
    %v5380 = vunpack.c.l.b16 %v5337
    %v5381 = vunpack.c.h.b16 %v5337
    %v5382 = vunpack.c.l.b16 %v5338
    %v5383 = vunpack.c.h.b16 %v5338
    %v5384 = vunpack.c.l.b16 %v5339
    %v5385 = vunpack.c.h.b16 %v5339
    %v5386 = vunpack.c.l.b16 %v5340
    %v5387 = vunpack.c.h.b16 %v5340
    %v5388 = vunpack.c.l.b16 %v5341
    %v5389 = vunpack.c.h.b16 %v5341
    %v5390 = vunpack.c.l.b16 %v5342
    %v5391 = vunpack.c.h.b16 %v5342
    %v5392 = vunpack.c.l.b16 %v5343
    %v5393 = vunpack.c.h.b16 %v5343
    %v5394 = vpack.c.b16 %v5366, %v5362
    %v5395 = vpack.c.b16 %v5367, %v5363
    %v5396 = vpack.c.b16 %v5368, %v5364
    %v5397 = vpack.c.b16 %v5369, %v5365
    %v5398 = vpack.c.b16 %v5374, %v5370
    %v5399 = vpack.c.b16 %v5375, %v5371
    %v5400 = vpack.c.b16 %v5376, %v5372
    %v5401 = vpack.c.b16 %v5377, %v5373
    %v5402 = vpack.c.b16 %v5382, %v5378
    %v5403 = vpack.c.b16 %v5383, %v5379
    %v5404 = vpack.c.b16 %v5384, %v5380
    %v5405 = vpack.c.b16 %v5385, %v5381
    %v5406 = vpack.c.b16 %v5390, %v5386
    %v5407 = vpack.c.b16 %v5391, %v5387
    %v5408 = vpack.c.b16 %v5392, %v5388
    %v5409 = vpack.c.b16 %v5393, %v5389
    %v5427 = vsel %vm526, %v5345, 0
    %5429 = vmatpush.bf16.msra.mxu0 0
    %5430 = vmatpush.bf16.msra.mxu0 0
    %5431 = vmatpush.bf16.msra.mxu0 0
    %5432 = vmatpush.bf16.msra.mxu0 0
    %5433 = vmatpush.bf16.msra.mxu0 %v5406
    %5434 = vmatpush.bf16.msra.mxu0 %v5402
    %5435 = vmatpush.bf16.msra.mxu0 %v5398
    %5436 = vmatpush.bf16.msra.mxu0 %v5394
    %5437 = vmatmul.bf16.gmra.mxu0 %v5427
    %v5438 = vpop.f32.mrf.mxu0
    %v5439 = vadd.f32 0.0, %v5438
    %v5440 = vpop.f32.mrf.mxu0
    %5441 = vdwg.mxu0
    %5442 = vmatpush.bf16.msra.mxu0 0
    %5443 = vmatpush.bf16.msra.mxu0 0
    %5444 = vmatpush.bf16.msra.mxu0 0
    %5445 = vmatpush.bf16.msra.mxu0 0
    %5446 = vmatpush.bf16.msra.mxu0 %v5407
    %5447 = vmatpush.bf16.msra.mxu0 %v5403
    %5448 = vmatpush.bf16.msra.mxu0 %v5399
    %5449 = vmatpush.bf16.msra.mxu0 %v5395
    %5450 = vmatmul.bf16.gmra.mxu0 %v5427
    %v5451 = vpop.f32.mrf.mxu0
    %v5452 = vadd.f32 0.0, %v5451
    %v5453 = vpop.f32.mrf.mxu0
    %5454 = vdwg.mxu0
    %5455 = vmatpush.bf16.msra.mxu0 0
    %5456 = vmatpush.bf16.msra.mxu0 0
    %5457 = vmatpush.bf16.msra.mxu0 0
    %5458 = vmatpush.bf16.msra.mxu0 0
    %5459 = vmatpush.bf16.msra.mxu0 %v5408
    %5460 = vmatpush.bf16.msra.mxu0 %v5404
    %5461 = vmatpush.bf16.msra.mxu0 %v5400
    %5462 = vmatpush.bf16.msra.mxu0 %v5396
    %5463 = vmatmul.bf16.gmra.mxu0 %v5427
    %v5464 = vpop.f32.mrf.mxu0
    %v5465 = vadd.f32 0.0, %v5464
    %v5466 = vpop.f32.mrf.mxu0
    %5467 = vdwg.mxu0
    %5468 = vmatpush.bf16.msra.mxu0 0
    %5469 = vmatpush.bf16.msra.mxu0 0
    %5470 = vmatpush.bf16.msra.mxu0 0
    %5471 = vmatpush.bf16.msra.mxu0 0
    %5472 = vmatpush.bf16.msra.mxu0 %v5409
    %5473 = vmatpush.bf16.msra.mxu0 %v5405
    %5474 = vmatpush.bf16.msra.mxu0 %v5401
    %5475 = vmatpush.bf16.msra.mxu0 %v5397
    %5476 = vmatmul.bf16.gmra.mxu0 %v5427
    %v5477 = vpop.f32.mrf.mxu0
    %v5478 = vadd.f32 0.0, %v5477
    %v5479 = vpop.f32.mrf.mxu0
    %5480 = vdwg.mxu0
    %v5481 = vadd.f32 %v5323, %v5439
    %v5482 = vadd.f32 %v5324, %v5452
    %v5483 = vadd.f32 %v5325, %v5465
    %v5484 = vadd.f32 %v5326, %v5478
    %s5485 = scalar_lea.vmem %s3, 3840
    %v5486 = vld [vmem:[%s5485] sm:$0xff]
    %v5487 = vld [vmem:[%s5485 + $0x8] sm:$0xff]
    %v5488 = vld [vmem:[%s5485 + $0x10] sm:$0xff]
    %v5489 = vld [vmem:[%s5485 + $0x18] sm:$0xff]
    %v5490 = vld [vmem:[%s5485 + $0x20] sm:$0xff]
    %v5491 = vld [vmem:[%s5485 + $0x28] sm:$0xff]
    %v5492 = vld [vmem:[%s5485 + $0x30] sm:$0xff]
    %v5493 = vld [vmem:[%s5485 + $0x38] sm:$0xff]
    %v5494 = vld [vmem:[%s5485 + $0x40] sm:$0xff]
    %v5495 = vld [vmem:[%s5485 + $0x48] sm:$0xff]
    %v5496 = vld [vmem:[%s5485 + $0x50] sm:$0xff]
    %v5497 = vld [vmem:[%s5485 + $0x58] sm:$0xff]
    %v5498 = vld [vmem:[%s5485 + $0x60] sm:$0xff]
    %v5499 = vld [vmem:[%s5485 + $0x68] sm:$0xff]
    %v5500 = vld [vmem:[%s5485 + $0x70] sm:$0xff]
    %v5501 = vld [vmem:[%s5485 + $0x78] sm:$0xff]
    %v5502 = vrot.slane %v5170, 2
    %v5519 = vunpack.c.l.b16 %v5486
    %v5520 = vunpack.c.h.b16 %v5486
    %v5521 = vunpack.c.l.b16 %v5487
    %v5522 = vunpack.c.h.b16 %v5487
    %v5523 = vunpack.c.l.b16 %v5488
    %v5524 = vunpack.c.h.b16 %v5488
    %v5525 = vunpack.c.l.b16 %v5489
    %v5526 = vunpack.c.h.b16 %v5489
    %v5527 = vunpack.c.l.b16 %v5490
    %v5528 = vunpack.c.h.b16 %v5490
    %v5529 = vunpack.c.l.b16 %v5491
    %v5530 = vunpack.c.h.b16 %v5491
    %v5531 = vunpack.c.l.b16 %v5492
    %v5532 = vunpack.c.h.b16 %v5492
    %v5533 = vunpack.c.l.b16 %v5493
    %v5534 = vunpack.c.h.b16 %v5493
    %v5535 = vunpack.c.l.b16 %v5494
    %v5536 = vunpack.c.h.b16 %v5494
    %v5537 = vunpack.c.l.b16 %v5495
    %v5538 = vunpack.c.h.b16 %v5495
    %v5539 = vunpack.c.l.b16 %v5496
    %v5540 = vunpack.c.h.b16 %v5496
    %v5541 = vunpack.c.l.b16 %v5497
    %v5542 = vunpack.c.h.b16 %v5497
    %v5543 = vunpack.c.l.b16 %v5498
    %v5544 = vunpack.c.h.b16 %v5498
    %v5545 = vunpack.c.l.b16 %v5499
    %v5546 = vunpack.c.h.b16 %v5499
    %v5547 = vunpack.c.l.b16 %v5500
    %v5548 = vunpack.c.h.b16 %v5500
    %v5549 = vunpack.c.l.b16 %v5501
    %v5550 = vunpack.c.h.b16 %v5501
    %v5551 = vpack.c.b16 %v5523, %v5519
    %v5552 = vpack.c.b16 %v5524, %v5520
    %v5553 = vpack.c.b16 %v5525, %v5521
    %v5554 = vpack.c.b16 %v5526, %v5522
    %v5555 = vpack.c.b16 %v5531, %v5527
    %v5556 = vpack.c.b16 %v5532, %v5528
    %v5557 = vpack.c.b16 %v5533, %v5529
    %v5558 = vpack.c.b16 %v5534, %v5530
    %v5559 = vpack.c.b16 %v5539, %v5535
    %v5560 = vpack.c.b16 %v5540, %v5536
    %v5561 = vpack.c.b16 %v5541, %v5537
    %v5562 = vpack.c.b16 %v5542, %v5538
    %v5563 = vpack.c.b16 %v5547, %v5543
    %v5564 = vpack.c.b16 %v5548, %v5544
    %v5565 = vpack.c.b16 %v5549, %v5545
    %v5566 = vpack.c.b16 %v5550, %v5546
    %v5584 = vsel %vm526, %v5502, 0
    %5586 = vmatpush.bf16.msra.mxu0 0
    %5587 = vmatpush.bf16.msra.mxu0 0
    %5588 = vmatpush.bf16.msra.mxu0 0
    %5589 = vmatpush.bf16.msra.mxu0 0
    %5590 = vmatpush.bf16.msra.mxu0 %v5563
    %5591 = vmatpush.bf16.msra.mxu0 %v5559
    %5592 = vmatpush.bf16.msra.mxu0 %v5555
    %5593 = vmatpush.bf16.msra.mxu0 %v5551
    %5594 = vmatmul.bf16.gmra.mxu0 %v5584
    %v5595 = vpop.f32.mrf.mxu0
    %v5596 = vadd.f32 0.0, %v5595
    %v5597 = vpop.f32.mrf.mxu0
    %5598 = vdwg.mxu0
    %5599 = vmatpush.bf16.msra.mxu0 0
    %5600 = vmatpush.bf16.msra.mxu0 0
    %5601 = vmatpush.bf16.msra.mxu0 0
    %5602 = vmatpush.bf16.msra.mxu0 0
    %5603 = vmatpush.bf16.msra.mxu0 %v5564
    %5604 = vmatpush.bf16.msra.mxu0 %v5560
    %5605 = vmatpush.bf16.msra.mxu0 %v5556
    %5606 = vmatpush.bf16.msra.mxu0 %v5552
    %5607 = vmatmul.bf16.gmra.mxu0 %v5584
    %v5608 = vpop.f32.mrf.mxu0
    %v5609 = vadd.f32 0.0, %v5608
    %v5610 = vpop.f32.mrf.mxu0
    %5611 = vdwg.mxu0
    %5612 = vmatpush.bf16.msra.mxu0 0
    %5613 = vmatpush.bf16.msra.mxu0 0
    %5614 = vmatpush.bf16.msra.mxu0 0
    %5615 = vmatpush.bf16.msra.mxu0 0
    %5616 = vmatpush.bf16.msra.mxu0 %v5565
    %5617 = vmatpush.bf16.msra.mxu0 %v5561
    %5618 = vmatpush.bf16.msra.mxu0 %v5557
    %5619 = vmatpush.bf16.msra.mxu0 %v5553
    %5620 = vmatmul.bf16.gmra.mxu0 %v5584
    %v5621 = vpop.f32.mrf.mxu0
    %v5622 = vadd.f32 0.0, %v5621
    %v5623 = vpop.f32.mrf.mxu0
    %5624 = vdwg.mxu0
    %5625 = vmatpush.bf16.msra.mxu0 0
    %5626 = vmatpush.bf16.msra.mxu0 0
    %5627 = vmatpush.bf16.msra.mxu0 0
    %5628 = vmatpush.bf16.msra.mxu0 0
    %5629 = vmatpush.bf16.msra.mxu0 %v5566
    %5630 = vmatpush.bf16.msra.mxu0 %v5562
    %5631 = vmatpush.bf16.msra.mxu0 %v5558
    %5632 = vmatpush.bf16.msra.mxu0 %v5554
    %5633 = vmatmul.bf16.gmra.mxu0 %v5584
    %v5634 = vpop.f32.mrf.mxu0
    %v5635 = vadd.f32 0.0, %v5634
    %v5636 = vpop.f32.mrf.mxu0
    %5637 = vdwg.mxu0
    %v5638 = vadd.f32 %v5481, %v5596
    %v5639 = vadd.f32 %v5482, %v5609
    %v5640 = vadd.f32 %v5483, %v5622
    %v5641 = vadd.f32 %v5484, %v5635
    %s5642 = scalar_lea.vmem %s3, 3968
    %v5643 = vld [vmem:[%s5642] sm:$0xff]
    %v5644 = vld [vmem:[%s5642 + $0x8] sm:$0xff]
    %v5645 = vld [vmem:[%s5642 + $0x10] sm:$0xff]
    %v5646 = vld [vmem:[%s5642 + $0x18] sm:$0xff]
    %v5647 = vld [vmem:[%s5642 + $0x20] sm:$0xff]
    %v5648 = vld [vmem:[%s5642 + $0x28] sm:$0xff]
    %v5649 = vld [vmem:[%s5642 + $0x30] sm:$0xff]
    %v5650 = vld [vmem:[%s5642 + $0x38] sm:$0xff]
    %v5651 = vld [vmem:[%s5642 + $0x40] sm:$0xff]
    %v5652 = vld [vmem:[%s5642 + $0x48] sm:$0xff]
    %v5653 = vld [vmem:[%s5642 + $0x50] sm:$0xff]
    %v5654 = vld [vmem:[%s5642 + $0x58] sm:$0xff]
    %v5655 = vld [vmem:[%s5642 + $0x60] sm:$0xff]
    %v5656 = vld [vmem:[%s5642 + $0x68] sm:$0xff]
    %v5657 = vld [vmem:[%s5642 + $0x70] sm:$0xff]
    %v5658 = vld [vmem:[%s5642 + $0x78] sm:$0xff]
    %v5659 = vrot.slane %v5170, 3
    %v5676 = vunpack.c.l.b16 %v5643
    %v5677 = vunpack.c.h.b16 %v5643
    %v5678 = vunpack.c.l.b16 %v5644
    %v5679 = vunpack.c.h.b16 %v5644
    %v5680 = vunpack.c.l.b16 %v5645
    %v5681 = vunpack.c.h.b16 %v5645
    %v5682 = vunpack.c.l.b16 %v5646
    %v5683 = vunpack.c.h.b16 %v5646
    %v5684 = vunpack.c.l.b16 %v5647
    %v5685 = vunpack.c.h.b16 %v5647
    %v5686 = vunpack.c.l.b16 %v5648
    %v5687 = vunpack.c.h.b16 %v5648
    %v5688 = vunpack.c.l.b16 %v5649
    %v5689 = vunpack.c.h.b16 %v5649
    %v5690 = vunpack.c.l.b16 %v5650
    %v5691 = vunpack.c.h.b16 %v5650
    %v5692 = vunpack.c.l.b16 %v5651
    %v5693 = vunpack.c.h.b16 %v5651
    %v5694 = vunpack.c.l.b16 %v5652
    %v5695 = vunpack.c.h.b16 %v5652
    %v5696 = vunpack.c.l.b16 %v5653
    %v5697 = vunpack.c.h.b16 %v5653
    %v5698 = vunpack.c.l.b16 %v5654
    %v5699 = vunpack.c.h.b16 %v5654
    %v5700 = vunpack.c.l.b16 %v5655
    %v5701 = vunpack.c.h.b16 %v5655
    %v5702 = vunpack.c.l.b16 %v5656
    %v5703 = vunpack.c.h.b16 %v5656
    %v5704 = vunpack.c.l.b16 %v5657
    %v5705 = vunpack.c.h.b16 %v5657
    %v5706 = vunpack.c.l.b16 %v5658
    %v5707 = vunpack.c.h.b16 %v5658
    %v5708 = vpack.c.b16 %v5680, %v5676
    %v5709 = vpack.c.b16 %v5681, %v5677
    %v5710 = vpack.c.b16 %v5682, %v5678
    %v5711 = vpack.c.b16 %v5683, %v5679
    %v5712 = vpack.c.b16 %v5688, %v5684
    %v5713 = vpack.c.b16 %v5689, %v5685
    %v5714 = vpack.c.b16 %v5690, %v5686
    %v5715 = vpack.c.b16 %v5691, %v5687
    %v5716 = vpack.c.b16 %v5696, %v5692
    %v5717 = vpack.c.b16 %v5697, %v5693
    %v5718 = vpack.c.b16 %v5698, %v5694
    %v5719 = vpack.c.b16 %v5699, %v5695
    %v5720 = vpack.c.b16 %v5704, %v5700
    %v5721 = vpack.c.b16 %v5705, %v5701
    %v5722 = vpack.c.b16 %v5706, %v5702
    %v5723 = vpack.c.b16 %v5707, %v5703
    %v5741 = vsel %vm526, %v5659, 0
    %5743 = vmatpush.bf16.msra.mxu0 0
    %5744 = vmatpush.bf16.msra.mxu0 0
    %5745 = vmatpush.bf16.msra.mxu0 0
    %5746 = vmatpush.bf16.msra.mxu0 0
    %5747 = vmatpush.bf16.msra.mxu0 %v5720
    %5748 = vmatpush.bf16.msra.mxu0 %v5716
    %5749 = vmatpush.bf16.msra.mxu0 %v5712
    %5750 = vmatpush.bf16.msra.mxu0 %v5708
    %5751 = vmatmul.bf16.gmra.mxu0 %v5741
    %v5752 = vpop.f32.mrf.mxu0
    %v5753 = vadd.f32 0.0, %v5752
    %v5754 = vpop.f32.mrf.mxu0
    %5755 = vdwg.mxu0
    %5756 = vmatpush.bf16.msra.mxu0 0
    %5757 = vmatpush.bf16.msra.mxu0 0
    %5758 = vmatpush.bf16.msra.mxu0 0
    %5759 = vmatpush.bf16.msra.mxu0 0
    %5760 = vmatpush.bf16.msra.mxu0 %v5721
    %5761 = vmatpush.bf16.msra.mxu0 %v5717
    %5762 = vmatpush.bf16.msra.mxu0 %v5713
    %5763 = vmatpush.bf16.msra.mxu0 %v5709
    %5764 = vmatmul.bf16.gmra.mxu0 %v5741
    %v5765 = vpop.f32.mrf.mxu0
    %v5766 = vadd.f32 0.0, %v5765
    %v5767 = vpop.f32.mrf.mxu0
    %5768 = vdwg.mxu0
    %5769 = vmatpush.bf16.msra.mxu0 0
    %5770 = vmatpush.bf16.msra.mxu0 0
    %5771 = vmatpush.bf16.msra.mxu0 0
    %5772 = vmatpush.bf16.msra.mxu0 0
    %5773 = vmatpush.bf16.msra.mxu0 %v5722
    %5774 = vmatpush.bf16.msra.mxu0 %v5718
    %5775 = vmatpush.bf16.msra.mxu0 %v5714
    %5776 = vmatpush.bf16.msra.mxu0 %v5710
    %5777 = vmatmul.bf16.gmra.mxu0 %v5741
    %v5778 = vpop.f32.mrf.mxu0
    %v5779 = vadd.f32 0.0, %v5778
    %v5780 = vpop.f32.mrf.mxu0
    %5781 = vdwg.mxu0
    %5782 = vmatpush.bf16.msra.mxu0 0
    %5783 = vmatpush.bf16.msra.mxu0 0
    %5784 = vmatpush.bf16.msra.mxu0 0
    %5785 = vmatpush.bf16.msra.mxu0 0
    %5786 = vmatpush.bf16.msra.mxu0 %v5723
    %5787 = vmatpush.bf16.msra.mxu0 %v5719
    %5788 = vmatpush.bf16.msra.mxu0 %v5715
    %5789 = vmatpush.bf16.msra.mxu0 %v5711
    %5790 = vmatmul.bf16.gmra.mxu0 %v5741
    %v5791 = vpop.f32.mrf.mxu0
    %v5792 = vadd.f32 0.0, %v5791
    %v5793 = vpop.f32.mrf.mxu0
    %5794 = vdwg.mxu0
    %v5795 = vadd.f32 %v5638, %v5753
    %v5796 = vadd.f32 %v5639, %v5766
    %v5797 = vadd.f32 %v5640, %v5779
    %v5798 = vadd.f32 %v5641, %v5792
    %v5799 = vpack.c.bf16 %v771, %v771
    %s5800 = scalar_lea.vmem %s3, 4096
    %v5801 = vld [vmem:[%s5800] sm:$0xff]
    %v5802 = vld [vmem:[%s5800 + $0x8] sm:$0xff]
    %v5803 = vld [vmem:[%s5800 + $0x10] sm:$0xff]
    %v5804 = vld [vmem:[%s5800 + $0x18] sm:$0xff]
    %v5805 = vld [vmem:[%s5800 + $0x20] sm:$0xff]
    %v5806 = vld [vmem:[%s5800 + $0x28] sm:$0xff]
    %v5807 = vld [vmem:[%s5800 + $0x30] sm:$0xff]
    %v5808 = vld [vmem:[%s5800 + $0x38] sm:$0xff]
    %v5809 = vld [vmem:[%s5800 + $0x40] sm:$0xff]
    %v5810 = vld [vmem:[%s5800 + $0x48] sm:$0xff]
    %v5811 = vld [vmem:[%s5800 + $0x50] sm:$0xff]
    %v5812 = vld [vmem:[%s5800 + $0x58] sm:$0xff]
    %v5813 = vld [vmem:[%s5800 + $0x60] sm:$0xff]
    %v5814 = vld [vmem:[%s5800 + $0x68] sm:$0xff]
    %v5815 = vld [vmem:[%s5800 + $0x70] sm:$0xff]
    %v5816 = vld [vmem:[%s5800 + $0x78] sm:$0xff]
    %v5833 = vunpack.c.l.b16 %v5801
    %v5834 = vunpack.c.h.b16 %v5801
    %v5835 = vunpack.c.l.b16 %v5802
    %v5836 = vunpack.c.h.b16 %v5802
    %v5837 = vunpack.c.l.b16 %v5803
    %v5838 = vunpack.c.h.b16 %v5803
    %v5839 = vunpack.c.l.b16 %v5804
    %v5840 = vunpack.c.h.b16 %v5804
    %v5841 = vunpack.c.l.b16 %v5805
    %v5842 = vunpack.c.h.b16 %v5805
    %v5843 = vunpack.c.l.b16 %v5806
    %v5844 = vunpack.c.h.b16 %v5806
    %v5845 = vunpack.c.l.b16 %v5807
    %v5846 = vunpack.c.h.b16 %v5807
    %v5847 = vunpack.c.l.b16 %v5808
    %v5848 = vunpack.c.h.b16 %v5808
    %v5849 = vunpack.c.l.b16 %v5809
    %v5850 = vunpack.c.h.b16 %v5809
    %v5851 = vunpack.c.l.b16 %v5810
    %v5852 = vunpack.c.h.b16 %v5810
    %v5853 = vunpack.c.l.b16 %v5811
    %v5854 = vunpack.c.h.b16 %v5811
    %v5855 = vunpack.c.l.b16 %v5812
    %v5856 = vunpack.c.h.b16 %v5812
    %v5857 = vunpack.c.l.b16 %v5813
    %v5858 = vunpack.c.h.b16 %v5813
    %v5859 = vunpack.c.l.b16 %v5814
    %v5860 = vunpack.c.h.b16 %v5814
    %v5861 = vunpack.c.l.b16 %v5815
    %v5862 = vunpack.c.h.b16 %v5815
    %v5863 = vunpack.c.l.b16 %v5816
    %v5864 = vunpack.c.h.b16 %v5816
    %v5865 = vpack.c.b16 %v5837, %v5833
    %v5866 = vpack.c.b16 %v5838, %v5834
    %v5867 = vpack.c.b16 %v5839, %v5835
    %v5868 = vpack.c.b16 %v5840, %v5836
    %v5869 = vpack.c.b16 %v5845, %v5841
    %v5870 = vpack.c.b16 %v5846, %v5842
    %v5871 = vpack.c.b16 %v5847, %v5843
    %v5872 = vpack.c.b16 %v5848, %v5844
    %v5873 = vpack.c.b16 %v5853, %v5849
    %v5874 = vpack.c.b16 %v5854, %v5850
    %v5875 = vpack.c.b16 %v5855, %v5851
    %v5876 = vpack.c.b16 %v5856, %v5852
    %v5877 = vpack.c.b16 %v5861, %v5857
    %v5878 = vpack.c.b16 %v5862, %v5858
    %v5879 = vpack.c.b16 %v5863, %v5859
    %v5880 = vpack.c.b16 %v5864, %v5860
    %v5898 = vsel %vm526, %v5799, 0
    %5900 = vmatpush.bf16.msra.mxu0 0
    %5901 = vmatpush.bf16.msra.mxu0 0
    %5902 = vmatpush.bf16.msra.mxu0 0
    %5903 = vmatpush.bf16.msra.mxu0 0
    %5904 = vmatpush.bf16.msra.mxu0 %v5877
    %5905 = vmatpush.bf16.msra.mxu0 %v5873
    %5906 = vmatpush.bf16.msra.mxu0 %v5869
    %5907 = vmatpush.bf16.msra.mxu0 %v5865
    %5908 = vmatmul.bf16.gmra.mxu0 %v5898
    %v5909 = vpop.f32.mrf.mxu0
    %v5910 = vadd.f32 0.0, %v5909
    %v5911 = vpop.f32.mrf.mxu0
    %5912 = vdwg.mxu0
    %5913 = vmatpush.bf16.msra.mxu0 0
    %5914 = vmatpush.bf16.msra.mxu0 0
    %5915 = vmatpush.bf16.msra.mxu0 0
    %5916 = vmatpush.bf16.msra.mxu0 0
    %5917 = vmatpush.bf16.msra.mxu0 %v5878
    %5918 = vmatpush.bf16.msra.mxu0 %v5874
    %5919 = vmatpush.bf16.msra.mxu0 %v5870
    %5920 = vmatpush.bf16.msra.mxu0 %v5866
    %5921 = vmatmul.bf16.gmra.mxu0 %v5898
    %v5922 = vpop.f32.mrf.mxu0
    %v5923 = vadd.f32 0.0, %v5922
    %v5924 = vpop.f32.mrf.mxu0
    %5925 = vdwg.mxu0
    %5926 = vmatpush.bf16.msra.mxu0 0
    %5927 = vmatpush.bf16.msra.mxu0 0
    %5928 = vmatpush.bf16.msra.mxu0 0
    %5929 = vmatpush.bf16.msra.mxu0 0
    %5930 = vmatpush.bf16.msra.mxu0 %v5879
    %5931 = vmatpush.bf16.msra.mxu0 %v5875
    %5932 = vmatpush.bf16.msra.mxu0 %v5871
    %5933 = vmatpush.bf16.msra.mxu0 %v5867
    %5934 = vmatmul.bf16.gmra.mxu0 %v5898
    %v5935 = vpop.f32.mrf.mxu0
    %v5936 = vadd.f32 0.0, %v5935
    %v5937 = vpop.f32.mrf.mxu0
    %5938 = vdwg.mxu0
    %5939 = vmatpush.bf16.msra.mxu0 0
    %5940 = vmatpush.bf16.msra.mxu0 0
    %5941 = vmatpush.bf16.msra.mxu0 0
    %5942 = vmatpush.bf16.msra.mxu0 0
    %5943 = vmatpush.bf16.msra.mxu0 %v5880
    %5944 = vmatpush.bf16.msra.mxu0 %v5876
    %5945 = vmatpush.bf16.msra.mxu0 %v5872
    %5946 = vmatpush.bf16.msra.mxu0 %v5868
    %5947 = vmatmul.bf16.gmra.mxu0 %v5898
    %v5948 = vpop.f32.mrf.mxu0
    %v5949 = vadd.f32 0.0, %v5948
    %v5950 = vpop.f32.mrf.mxu0
    %5951 = vdwg.mxu0
    %v5952 = vadd.f32 %v5795, %v5910
    %v5953 = vadd.f32 %v5796, %v5923
    %v5954 = vadd.f32 %v5797, %v5936
    %v5955 = vadd.f32 %v5798, %v5949
    %s5956 = scalar_lea.vmem %s3, 4224
    %v5957 = vld [vmem:[%s5956] sm:$0xff]
    %v5958 = vld [vmem:[%s5956 + $0x8] sm:$0xff]
    %v5959 = vld [vmem:[%s5956 + $0x10] sm:$0xff]
    %v5960 = vld [vmem:[%s5956 + $0x18] sm:$0xff]
    %v5961 = vld [vmem:[%s5956 + $0x20] sm:$0xff]
    %v5962 = vld [vmem:[%s5956 + $0x28] sm:$0xff]
    %v5963 = vld [vmem:[%s5956 + $0x30] sm:$0xff]
    %v5964 = vld [vmem:[%s5956 + $0x38] sm:$0xff]
    %v5965 = vld [vmem:[%s5956 + $0x40] sm:$0xff]
    %v5966 = vld [vmem:[%s5956 + $0x48] sm:$0xff]
    %v5967 = vld [vmem:[%s5956 + $0x50] sm:$0xff]
    %v5968 = vld [vmem:[%s5956 + $0x58] sm:$0xff]
    %v5969 = vld [vmem:[%s5956 + $0x60] sm:$0xff]
    %v5970 = vld [vmem:[%s5956 + $0x68] sm:$0xff]
    %v5971 = vld [vmem:[%s5956 + $0x70] sm:$0xff]
    %v5972 = vld [vmem:[%s5956 + $0x78] sm:$0xff]
    %v5974 = vrot.slane %v5799, 1
    %v5991 = vunpack.c.l.b16 %v5957
    %v5992 = vunpack.c.h.b16 %v5957
    %v5993 = vunpack.c.l.b16 %v5958
    %v5994 = vunpack.c.h.b16 %v5958
    %v5995 = vunpack.c.l.b16 %v5959
    %v5996 = vunpack.c.h.b16 %v5959
    %v5997 = vunpack.c.l.b16 %v5960
    %v5998 = vunpack.c.h.b16 %v5960
    %v5999 = vunpack.c.l.b16 %v5961
    %v6000 = vunpack.c.h.b16 %v5961
    %v6001 = vunpack.c.l.b16 %v5962
    %v6002 = vunpack.c.h.b16 %v5962
    %v6003 = vunpack.c.l.b16 %v5963
    %v6004 = vunpack.c.h.b16 %v5963
    %v6005 = vunpack.c.l.b16 %v5964
    %v6006 = vunpack.c.h.b16 %v5964
    %v6007 = vunpack.c.l.b16 %v5965
    %v6008 = vunpack.c.h.b16 %v5965
    %v6009 = vunpack.c.l.b16 %v5966
    %v6010 = vunpack.c.h.b16 %v5966
    %v6011 = vunpack.c.l.b16 %v5967
    %v6012 = vunpack.c.h.b16 %v5967
    %v6013 = vunpack.c.l.b16 %v5968
    %v6014 = vunpack.c.h.b16 %v5968
    %v6015 = vunpack.c.l.b16 %v5969
    %v6016 = vunpack.c.h.b16 %v5969
    %v6017 = vunpack.c.l.b16 %v5970
    %v6018 = vunpack.c.h.b16 %v5970
    %v6019 = vunpack.c.l.b16 %v5971
    %v6020 = vunpack.c.h.b16 %v5971
    %v6021 = vunpack.c.l.b16 %v5972
    %v6022 = vunpack.c.h.b16 %v5972
    %v6023 = vpack.c.b16 %v5995, %v5991
    %v6024 = vpack.c.b16 %v5996, %v5992
    %v6025 = vpack.c.b16 %v5997, %v5993
    %v6026 = vpack.c.b16 %v5998, %v5994
    %v6027 = vpack.c.b16 %v6003, %v5999
    %v6028 = vpack.c.b16 %v6004, %v6000
    %v6029 = vpack.c.b16 %v6005, %v6001
    %v6030 = vpack.c.b16 %v6006, %v6002
    %v6031 = vpack.c.b16 %v6011, %v6007
    %v6032 = vpack.c.b16 %v6012, %v6008
    %v6033 = vpack.c.b16 %v6013, %v6009
    %v6034 = vpack.c.b16 %v6014, %v6010
    %v6035 = vpack.c.b16 %v6019, %v6015
    %v6036 = vpack.c.b16 %v6020, %v6016
    %v6037 = vpack.c.b16 %v6021, %v6017
    %v6038 = vpack.c.b16 %v6022, %v6018
    %v6056 = vsel %vm526, %v5974, 0
    %6058 = vmatpush.bf16.msra.mxu0 0
    %6059 = vmatpush.bf16.msra.mxu0 0
    %6060 = vmatpush.bf16.msra.mxu0 0
    %6061 = vmatpush.bf16.msra.mxu0 0
    %6062 = vmatpush.bf16.msra.mxu0 %v6035
    %6063 = vmatpush.bf16.msra.mxu0 %v6031
    %6064 = vmatpush.bf16.msra.mxu0 %v6027
    %6065 = vmatpush.bf16.msra.mxu0 %v6023
    %6066 = vmatmul.bf16.gmra.mxu0 %v6056
    %v6067 = vpop.f32.mrf.mxu0
    %v6068 = vadd.f32 0.0, %v6067
    %v6069 = vpop.f32.mrf.mxu0
    %6070 = vdwg.mxu0
    %6071 = vmatpush.bf16.msra.mxu0 0
    %6072 = vmatpush.bf16.msra.mxu0 0
    %6073 = vmatpush.bf16.msra.mxu0 0
    %6074 = vmatpush.bf16.msra.mxu0 0
    %6075 = vmatpush.bf16.msra.mxu0 %v6036
    %6076 = vmatpush.bf16.msra.mxu0 %v6032
    %6077 = vmatpush.bf16.msra.mxu0 %v6028
    %6078 = vmatpush.bf16.msra.mxu0 %v6024
    %6079 = vmatmul.bf16.gmra.mxu0 %v6056
    %v6080 = vpop.f32.mrf.mxu0
    %v6081 = vadd.f32 0.0, %v6080
    %v6082 = vpop.f32.mrf.mxu0
    %6083 = vdwg.mxu0
    %6084 = vmatpush.bf16.msra.mxu0 0
    %6085 = vmatpush.bf16.msra.mxu0 0
    %6086 = vmatpush.bf16.msra.mxu0 0
    %6087 = vmatpush.bf16.msra.mxu0 0
    %6088 = vmatpush.bf16.msra.mxu0 %v6037
    %6089 = vmatpush.bf16.msra.mxu0 %v6033
    %6090 = vmatpush.bf16.msra.mxu0 %v6029
    %6091 = vmatpush.bf16.msra.mxu0 %v6025
    %6092 = vmatmul.bf16.gmra.mxu0 %v6056
    %v6093 = vpop.f32.mrf.mxu0
    %v6094 = vadd.f32 0.0, %v6093
    %v6095 = vpop.f32.mrf.mxu0
    %6096 = vdwg.mxu0
    %6097 = vmatpush.bf16.msra.mxu0 0
    %6098 = vmatpush.bf16.msra.mxu0 0
    %6099 = vmatpush.bf16.msra.mxu0 0
    %6100 = vmatpush.bf16.msra.mxu0 0
    %6101 = vmatpush.bf16.msra.mxu0 %v6038
    %6102 = vmatpush.bf16.msra.mxu0 %v6034
    %6103 = vmatpush.bf16.msra.mxu0 %v6030
    %6104 = vmatpush.bf16.msra.mxu0 %v6026
    %6105 = vmatmul.bf16.gmra.mxu0 %v6056
    %v6106 = vpop.f32.mrf.mxu0
    %v6107 = vadd.f32 0.0, %v6106
    %v6108 = vpop.f32.mrf.mxu0
    %6109 = vdwg.mxu0
    %v6110 = vadd.f32 %v5952, %v6068
    %v6111 = vadd.f32 %v5953, %v6081
    %v6112 = vadd.f32 %v5954, %v6094
    %v6113 = vadd.f32 %v5955, %v6107
    %s6114 = scalar_lea.vmem %s3, 4352
    %v6115 = vld [vmem:[%s6114] sm:$0xff]
    %v6116 = vld [vmem:[%s6114 + $0x8] sm:$0xff]
    %v6117 = vld [vmem:[%s6114 + $0x10] sm:$0xff]
    %v6118 = vld [vmem:[%s6114 + $0x18] sm:$0xff]
    %v6119 = vld [vmem:[%s6114 + $0x20] sm:$0xff]
    %v6120 = vld [vmem:[%s6114 + $0x28] sm:$0xff]
    %v6121 = vld [vmem:[%s6114 + $0x30] sm:$0xff]
    %v6122 = vld [vmem:[%s6114 + $0x38] sm:$0xff]
    %v6123 = vld [vmem:[%s6114 + $0x40] sm:$0xff]
    %v6124 = vld [vmem:[%s6114 + $0x48] sm:$0xff]
    %v6125 = vld [vmem:[%s6114 + $0x50] sm:$0xff]
    %v6126 = vld [vmem:[%s6114 + $0x58] sm:$0xff]
    %v6127 = vld [vmem:[%s6114 + $0x60] sm:$0xff]
    %v6128 = vld [vmem:[%s6114 + $0x68] sm:$0xff]
    %v6129 = vld [vmem:[%s6114 + $0x70] sm:$0xff]
    %v6130 = vld [vmem:[%s6114 + $0x78] sm:$0xff]
    %v6131 = vrot.slane %v5799, 2
    %v6148 = vunpack.c.l.b16 %v6115
    %v6149 = vunpack.c.h.b16 %v6115
    %v6150 = vunpack.c.l.b16 %v6116
    %v6151 = vunpack.c.h.b16 %v6116
    %v6152 = vunpack.c.l.b16 %v6117
    %v6153 = vunpack.c.h.b16 %v6117
    %v6154 = vunpack.c.l.b16 %v6118
    %v6155 = vunpack.c.h.b16 %v6118
    %v6156 = vunpack.c.l.b16 %v6119
    %v6157 = vunpack.c.h.b16 %v6119
    %v6158 = vunpack.c.l.b16 %v6120
    %v6159 = vunpack.c.h.b16 %v6120
    %v6160 = vunpack.c.l.b16 %v6121
    %v6161 = vunpack.c.h.b16 %v6121
    %v6162 = vunpack.c.l.b16 %v6122
    %v6163 = vunpack.c.h.b16 %v6122
    %v6164 = vunpack.c.l.b16 %v6123
    %v6165 = vunpack.c.h.b16 %v6123
    %v6166 = vunpack.c.l.b16 %v6124
    %v6167 = vunpack.c.h.b16 %v6124
    %v6168 = vunpack.c.l.b16 %v6125
    %v6169 = vunpack.c.h.b16 %v6125
    %v6170 = vunpack.c.l.b16 %v6126
    %v6171 = vunpack.c.h.b16 %v6126
    %v6172 = vunpack.c.l.b16 %v6127
    %v6173 = vunpack.c.h.b16 %v6127
    %v6174 = vunpack.c.l.b16 %v6128
    %v6175 = vunpack.c.h.b16 %v6128
    %v6176 = vunpack.c.l.b16 %v6129
    %v6177 = vunpack.c.h.b16 %v6129
    %v6178 = vunpack.c.l.b16 %v6130
    %v6179 = vunpack.c.h.b16 %v6130
    %v6180 = vpack.c.b16 %v6152, %v6148
    %v6181 = vpack.c.b16 %v6153, %v6149
    %v6182 = vpack.c.b16 %v6154, %v6150
    %v6183 = vpack.c.b16 %v6155, %v6151
    %v6184 = vpack.c.b16 %v6160, %v6156
    %v6185 = vpack.c.b16 %v6161, %v6157
    %v6186 = vpack.c.b16 %v6162, %v6158
    %v6187 = vpack.c.b16 %v6163, %v6159
    %v6188 = vpack.c.b16 %v6168, %v6164
    %v6189 = vpack.c.b16 %v6169, %v6165
    %v6190 = vpack.c.b16 %v6170, %v6166
    %v6191 = vpack.c.b16 %v6171, %v6167
    %v6192 = vpack.c.b16 %v6176, %v6172
    %v6193 = vpack.c.b16 %v6177, %v6173
    %v6194 = vpack.c.b16 %v6178, %v6174
    %v6195 = vpack.c.b16 %v6179, %v6175
    %v6213 = vsel %vm526, %v6131, 0
    %6215 = vmatpush.bf16.msra.mxu0 0
    %6216 = vmatpush.bf16.msra.mxu0 0
    %6217 = vmatpush.bf16.msra.mxu0 0
    %6218 = vmatpush.bf16.msra.mxu0 0
    %6219 = vmatpush.bf16.msra.mxu0 %v6192
    %6220 = vmatpush.bf16.msra.mxu0 %v6188
    %6221 = vmatpush.bf16.msra.mxu0 %v6184
    %6222 = vmatpush.bf16.msra.mxu0 %v6180
    %6223 = vmatmul.bf16.gmra.mxu0 %v6213
    %v6224 = vpop.f32.mrf.mxu0
    %v6225 = vadd.f32 0.0, %v6224
    %v6226 = vpop.f32.mrf.mxu0
    %6227 = vdwg.mxu0
    %6228 = vmatpush.bf16.msra.mxu0 0
    %6229 = vmatpush.bf16.msra.mxu0 0
    %6230 = vmatpush.bf16.msra.mxu0 0
    %6231 = vmatpush.bf16.msra.mxu0 0
    %6232 = vmatpush.bf16.msra.mxu0 %v6193
    %6233 = vmatpush.bf16.msra.mxu0 %v6189
    %6234 = vmatpush.bf16.msra.mxu0 %v6185
    %6235 = vmatpush.bf16.msra.mxu0 %v6181
    %6236 = vmatmul.bf16.gmra.mxu0 %v6213
    %v6237 = vpop.f32.mrf.mxu0
    %v6238 = vadd.f32 0.0, %v6237
    %v6239 = vpop.f32.mrf.mxu0
    %6240 = vdwg.mxu0
    %6241 = vmatpush.bf16.msra.mxu0 0
    %6242 = vmatpush.bf16.msra.mxu0 0
    %6243 = vmatpush.bf16.msra.mxu0 0
    %6244 = vmatpush.bf16.msra.mxu0 0
    %6245 = vmatpush.bf16.msra.mxu0 %v6194
    %6246 = vmatpush.bf16.msra.mxu0 %v6190
    %6247 = vmatpush.bf16.msra.mxu0 %v6186
    %6248 = vmatpush.bf16.msra.mxu0 %v6182
    %6249 = vmatmul.bf16.gmra.mxu0 %v6213
    %v6250 = vpop.f32.mrf.mxu0
    %v6251 = vadd.f32 0.0, %v6250
    %v6252 = vpop.f32.mrf.mxu0
    %6253 = vdwg.mxu0
    %6254 = vmatpush.bf16.msra.mxu0 0
    %6255 = vmatpush.bf16.msra.mxu0 0
    %6256 = vmatpush.bf16.msra.mxu0 0
    %6257 = vmatpush.bf16.msra.mxu0 0
    %6258 = vmatpush.bf16.msra.mxu0 %v6195
    %6259 = vmatpush.bf16.msra.mxu0 %v6191
    %6260 = vmatpush.bf16.msra.mxu0 %v6187
    %6261 = vmatpush.bf16.msra.mxu0 %v6183
    %6262 = vmatmul.bf16.gmra.mxu0 %v6213
    %v6263 = vpop.f32.mrf.mxu0
    %v6264 = vadd.f32 0.0, %v6263
    %v6265 = vpop.f32.mrf.mxu0
    %6266 = vdwg.mxu0
    %v6267 = vadd.f32 %v6110, %v6225
    %v6268 = vadd.f32 %v6111, %v6238
    %v6269 = vadd.f32 %v6112, %v6251
    %v6270 = vadd.f32 %v6113, %v6264
    %s6271 = scalar_lea.vmem %s3, 4480
    %v6272 = vld [vmem:[%s6271] sm:$0xff]
    %v6273 = vld [vmem:[%s6271 + $0x8] sm:$0xff]
    %v6274 = vld [vmem:[%s6271 + $0x10] sm:$0xff]
    %v6275 = vld [vmem:[%s6271 + $0x18] sm:$0xff]
    %v6276 = vld [vmem:[%s6271 + $0x20] sm:$0xff]
    %v6277 = vld [vmem:[%s6271 + $0x28] sm:$0xff]
    %v6278 = vld [vmem:[%s6271 + $0x30] sm:$0xff]
    %v6279 = vld [vmem:[%s6271 + $0x38] sm:$0xff]
    %v6280 = vld [vmem:[%s6271 + $0x40] sm:$0xff]
    %v6281 = vld [vmem:[%s6271 + $0x48] sm:$0xff]
    %v6282 = vld [vmem:[%s6271 + $0x50] sm:$0xff]
    %v6283 = vld [vmem:[%s6271 + $0x58] sm:$0xff]
    %v6284 = vld [vmem:[%s6271 + $0x60] sm:$0xff]
    %v6285 = vld [vmem:[%s6271 + $0x68] sm:$0xff]
    %v6286 = vld [vmem:[%s6271 + $0x70] sm:$0xff]
    %v6287 = vld [vmem:[%s6271 + $0x78] sm:$0xff]
    %v6288 = vrot.slane %v5799, 3
    %v6305 = vunpack.c.l.b16 %v6272
    %v6306 = vunpack.c.h.b16 %v6272
    %v6307 = vunpack.c.l.b16 %v6273
    %v6308 = vunpack.c.h.b16 %v6273
    %v6309 = vunpack.c.l.b16 %v6274
    %v6310 = vunpack.c.h.b16 %v6274
    %v6311 = vunpack.c.l.b16 %v6275
    %v6312 = vunpack.c.h.b16 %v6275
    %v6313 = vunpack.c.l.b16 %v6276
    %v6314 = vunpack.c.h.b16 %v6276
    %v6315 = vunpack.c.l.b16 %v6277
    %v6316 = vunpack.c.h.b16 %v6277
    %v6317 = vunpack.c.l.b16 %v6278
    %v6318 = vunpack.c.h.b16 %v6278
    %v6319 = vunpack.c.l.b16 %v6279
    %v6320 = vunpack.c.h.b16 %v6279
    %v6321 = vunpack.c.l.b16 %v6280
    %v6322 = vunpack.c.h.b16 %v6280
    %v6323 = vunpack.c.l.b16 %v6281
    %v6324 = vunpack.c.h.b16 %v6281
    %v6325 = vunpack.c.l.b16 %v6282
    %v6326 = vunpack.c.h.b16 %v6282
    %v6327 = vunpack.c.l.b16 %v6283
    %v6328 = vunpack.c.h.b16 %v6283
    %v6329 = vunpack.c.l.b16 %v6284
    %v6330 = vunpack.c.h.b16 %v6284
    %v6331 = vunpack.c.l.b16 %v6285
    %v6332 = vunpack.c.h.b16 %v6285
    %v6333 = vunpack.c.l.b16 %v6286
    %v6334 = vunpack.c.h.b16 %v6286
    %v6335 = vunpack.c.l.b16 %v6287
    %v6336 = vunpack.c.h.b16 %v6287
    %v6337 = vpack.c.b16 %v6309, %v6305
    %v6338 = vpack.c.b16 %v6310, %v6306
    %v6339 = vpack.c.b16 %v6311, %v6307
    %v6340 = vpack.c.b16 %v6312, %v6308
    %v6341 = vpack.c.b16 %v6317, %v6313
    %v6342 = vpack.c.b16 %v6318, %v6314
    %v6343 = vpack.c.b16 %v6319, %v6315
    %v6344 = vpack.c.b16 %v6320, %v6316
    %v6345 = vpack.c.b16 %v6325, %v6321
    %v6346 = vpack.c.b16 %v6326, %v6322
    %v6347 = vpack.c.b16 %v6327, %v6323
    %v6348 = vpack.c.b16 %v6328, %v6324
    %v6349 = vpack.c.b16 %v6333, %v6329
    %v6350 = vpack.c.b16 %v6334, %v6330
    %v6351 = vpack.c.b16 %v6335, %v6331
    %v6352 = vpack.c.b16 %v6336, %v6332
    %v6370 = vsel %vm526, %v6288, 0
    %6372 = vmatpush.bf16.msra.mxu0 0
    %6373 = vmatpush.bf16.msra.mxu0 0
    %6374 = vmatpush.bf16.msra.mxu0 0
    %6375 = vmatpush.bf16.msra.mxu0 0
    %6376 = vmatpush.bf16.msra.mxu0 %v6349
    %6377 = vmatpush.bf16.msra.mxu0 %v6345
    %6378 = vmatpush.bf16.msra.mxu0 %v6341
    %6379 = vmatpush.bf16.msra.mxu0 %v6337
    %6380 = vmatmul.bf16.gmra.mxu0 %v6370
    %v6381 = vpop.f32.mrf.mxu0
    %v6382 = vadd.f32 0.0, %v6381
    %v6383 = vpop.f32.mrf.mxu0
    %6384 = vdwg.mxu0
    %6385 = vmatpush.bf16.msra.mxu0 0
    %6386 = vmatpush.bf16.msra.mxu0 0
    %6387 = vmatpush.bf16.msra.mxu0 0
    %6388 = vmatpush.bf16.msra.mxu0 0
    %6389 = vmatpush.bf16.msra.mxu0 %v6350
    %6390 = vmatpush.bf16.msra.mxu0 %v6346
    %6391 = vmatpush.bf16.msra.mxu0 %v6342
    %6392 = vmatpush.bf16.msra.mxu0 %v6338
    %6393 = vmatmul.bf16.gmra.mxu0 %v6370
    %v6394 = vpop.f32.mrf.mxu0
    %v6395 = vadd.f32 0.0, %v6394
    %v6396 = vpop.f32.mrf.mxu0
    %6397 = vdwg.mxu0
    %6398 = vmatpush.bf16.msra.mxu0 0
    %6399 = vmatpush.bf16.msra.mxu0 0
    %6400 = vmatpush.bf16.msra.mxu0 0
    %6401 = vmatpush.bf16.msra.mxu0 0
    %6402 = vmatpush.bf16.msra.mxu0 %v6351
    %6403 = vmatpush.bf16.msra.mxu0 %v6347
    %6404 = vmatpush.bf16.msra.mxu0 %v6343
    %6405 = vmatpush.bf16.msra.mxu0 %v6339
    %6406 = vmatmul.bf16.gmra.mxu0 %v6370
    %v6407 = vpop.f32.mrf.mxu0
    %v6408 = vadd.f32 0.0, %v6407
    %v6409 = vpop.f32.mrf.mxu0
    %6410 = vdwg.mxu0
    %6411 = vmatpush.bf16.msra.mxu0 0
    %6412 = vmatpush.bf16.msra.mxu0 0
    %6413 = vmatpush.bf16.msra.mxu0 0
    %6414 = vmatpush.bf16.msra.mxu0 0
    %6415 = vmatpush.bf16.msra.mxu0 %v6352
    %6416 = vmatpush.bf16.msra.mxu0 %v6348
    %6417 = vmatpush.bf16.msra.mxu0 %v6344
    %6418 = vmatpush.bf16.msra.mxu0 %v6340
    %6419 = vmatmul.bf16.gmra.mxu0 %v6370
    %v6420 = vpop.f32.mrf.mxu0
    %v6421 = vadd.f32 0.0, %v6420
    %v6422 = vpop.f32.mrf.mxu0
    %6423 = vdwg.mxu0
    %v6424 = vadd.f32 %v6267, %v6382
    %v6425 = vadd.f32 %v6268, %v6395
    %v6426 = vadd.f32 %v6269, %v6408
    %v6427 = vadd.f32 %v6270, %v6421
    %v6428 = vpack.c.bf16 %v772, %v772
    %s6429 = scalar_lea.vmem %s3, 4608
    %v6430 = vld [vmem:[%s6429] sm:$0xff]
    %v6431 = vld [vmem:[%s6429 + $0x8] sm:$0xff]
    %v6432 = vld [vmem:[%s6429 + $0x10] sm:$0xff]
    %v6433 = vld [vmem:[%s6429 + $0x18] sm:$0xff]
    %v6434 = vld [vmem:[%s6429 + $0x20] sm:$0xff]
    %v6435 = vld [vmem:[%s6429 + $0x28] sm:$0xff]
    %v6436 = vld [vmem:[%s6429 + $0x30] sm:$0xff]
    %v6437 = vld [vmem:[%s6429 + $0x38] sm:$0xff]
    %v6438 = vld [vmem:[%s6429 + $0x40] sm:$0xff]
    %v6439 = vld [vmem:[%s6429 + $0x48] sm:$0xff]
    %v6440 = vld [vmem:[%s6429 + $0x50] sm:$0xff]
    %v6441 = vld [vmem:[%s6429 + $0x58] sm:$0xff]
    %v6442 = vld [vmem:[%s6429 + $0x60] sm:$0xff]
    %v6443 = vld [vmem:[%s6429 + $0x68] sm:$0xff]
    %v6444 = vld [vmem:[%s6429 + $0x70] sm:$0xff]
    %v6445 = vld [vmem:[%s6429 + $0x78] sm:$0xff]
    %v6462 = vunpack.c.l.b16 %v6430
    %v6463 = vunpack.c.h.b16 %v6430
    %v6464 = vunpack.c.l.b16 %v6431
    %v6465 = vunpack.c.h.b16 %v6431
    %v6466 = vunpack.c.l.b16 %v6432
    %v6467 = vunpack.c.h.b16 %v6432
    %v6468 = vunpack.c.l.b16 %v6433
    %v6469 = vunpack.c.h.b16 %v6433
    %v6470 = vunpack.c.l.b16 %v6434
    %v6471 = vunpack.c.h.b16 %v6434
    %v6472 = vunpack.c.l.b16 %v6435
    %v6473 = vunpack.c.h.b16 %v6435
    %v6474 = vunpack.c.l.b16 %v6436
    %v6475 = vunpack.c.h.b16 %v6436
    %v6476 = vunpack.c.l.b16 %v6437
    %v6477 = vunpack.c.h.b16 %v6437
    %v6478 = vunpack.c.l.b16 %v6438
    %v6479 = vunpack.c.h.b16 %v6438
    %v6480 = vunpack.c.l.b16 %v6439
    %v6481 = vunpack.c.h.b16 %v6439
    %v6482 = vunpack.c.l.b16 %v6440
    %v6483 = vunpack.c.h.b16 %v6440
    %v6484 = vunpack.c.l.b16 %v6441
    %v6485 = vunpack.c.h.b16 %v6441
    %v6486 = vunpack.c.l.b16 %v6442
    %v6487 = vunpack.c.h.b16 %v6442
    %v6488 = vunpack.c.l.b16 %v6443
    %v6489 = vunpack.c.h.b16 %v6443
    %v6490 = vunpack.c.l.b16 %v6444
    %v6491 = vunpack.c.h.b16 %v6444
    %v6492 = vunpack.c.l.b16 %v6445
    %v6493 = vunpack.c.h.b16 %v6445
    %v6494 = vpack.c.b16 %v6466, %v6462
    %v6495 = vpack.c.b16 %v6467, %v6463
    %v6496 = vpack.c.b16 %v6468, %v6464
    %v6497 = vpack.c.b16 %v6469, %v6465
    %v6498 = vpack.c.b16 %v6474, %v6470
    %v6499 = vpack.c.b16 %v6475, %v6471
    %v6500 = vpack.c.b16 %v6476, %v6472
    %v6501 = vpack.c.b16 %v6477, %v6473
    %v6502 = vpack.c.b16 %v6482, %v6478
    %v6503 = vpack.c.b16 %v6483, %v6479
    %v6504 = vpack.c.b16 %v6484, %v6480
    %v6505 = vpack.c.b16 %v6485, %v6481
    %v6506 = vpack.c.b16 %v6490, %v6486
    %v6507 = vpack.c.b16 %v6491, %v6487
    %v6508 = vpack.c.b16 %v6492, %v6488
    %v6509 = vpack.c.b16 %v6493, %v6489
    %v6527 = vsel %vm526, %v6428, 0
    %6529 = vmatpush.bf16.msra.mxu0 0
    %6530 = vmatpush.bf16.msra.mxu0 0
    %6531 = vmatpush.bf16.msra.mxu0 0
    %6532 = vmatpush.bf16.msra.mxu0 0
    %6533 = vmatpush.bf16.msra.mxu0 %v6506
    %6534 = vmatpush.bf16.msra.mxu0 %v6502
    %6535 = vmatpush.bf16.msra.mxu0 %v6498
    %6536 = vmatpush.bf16.msra.mxu0 %v6494
    %6537 = vmatmul.bf16.gmra.mxu0 %v6527
    %v6538 = vpop.f32.mrf.mxu0
    %v6539 = vadd.f32 0.0, %v6538
    %v6540 = vpop.f32.mrf.mxu0
    %6541 = vdwg.mxu0
    %6542 = vmatpush.bf16.msra.mxu0 0
    %6543 = vmatpush.bf16.msra.mxu0 0
    %6544 = vmatpush.bf16.msra.mxu0 0
    %6545 = vmatpush.bf16.msra.mxu0 0
    %6546 = vmatpush.bf16.msra.mxu0 %v6507
    %6547 = vmatpush.bf16.msra.mxu0 %v6503
    %6548 = vmatpush.bf16.msra.mxu0 %v6499
    %6549 = vmatpush.bf16.msra.mxu0 %v6495
    %6550 = vmatmul.bf16.gmra.mxu0 %v6527
    %v6551 = vpop.f32.mrf.mxu0
    %v6552 = vadd.f32 0.0, %v6551
    %v6553 = vpop.f32.mrf.mxu0
    %6554 = vdwg.mxu0
    %6555 = vmatpush.bf16.msra.mxu0 0
    %6556 = vmatpush.bf16.msra.mxu0 0
    %6557 = vmatpush.bf16.msra.mxu0 0
    %6558 = vmatpush.bf16.msra.mxu0 0
    %6559 = vmatpush.bf16.msra.mxu0 %v6508
    %6560 = vmatpush.bf16.msra.mxu0 %v6504
    %6561 = vmatpush.bf16.msra.mxu0 %v6500
    %6562 = vmatpush.bf16.msra.mxu0 %v6496
    %6563 = vmatmul.bf16.gmra.mxu0 %v6527
    %v6564 = vpop.f32.mrf.mxu0
    %v6565 = vadd.f32 0.0, %v6564
    %v6566 = vpop.f32.mrf.mxu0
    %6567 = vdwg.mxu0
    %6568 = vmatpush.bf16.msra.mxu0 0
    %6569 = vmatpush.bf16.msra.mxu0 0
    %6570 = vmatpush.bf16.msra.mxu0 0
    %6571 = vmatpush.bf16.msra.mxu0 0
    %6572 = vmatpush.bf16.msra.mxu0 %v6509
    %6573 = vmatpush.bf16.msra.mxu0 %v6505
    %6574 = vmatpush.bf16.msra.mxu0 %v6501
    %6575 = vmatpush.bf16.msra.mxu0 %v6497
    %6576 = vmatmul.bf16.gmra.mxu0 %v6527
    %v6577 = vpop.f32.mrf.mxu0
    %v6578 = vadd.f32 0.0, %v6577
    %v6579 = vpop.f32.mrf.mxu0
    %6580 = vdwg.mxu0
    %v6581 = vadd.f32 %v6424, %v6539
    %v6582 = vadd.f32 %v6425, %v6552
    %v6583 = vadd.f32 %v6426, %v6565
    %v6584 = vadd.f32 %v6427, %v6578
    %s6585 = scalar_lea.vmem %s3, 4736
    %v6586 = vld [vmem:[%s6585] sm:$0xff]
    %v6587 = vld [vmem:[%s6585 + $0x8] sm:$0xff]
    %v6588 = vld [vmem:[%s6585 + $0x10] sm:$0xff]
    %v6589 = vld [vmem:[%s6585 + $0x18] sm:$0xff]
    %v6590 = vld [vmem:[%s6585 + $0x20] sm:$0xff]
    %v6591 = vld [vmem:[%s6585 + $0x28] sm:$0xff]
    %v6592 = vld [vmem:[%s6585 + $0x30] sm:$0xff]
    %v6593 = vld [vmem:[%s6585 + $0x38] sm:$0xff]
    %v6594 = vld [vmem:[%s6585 + $0x40] sm:$0xff]
    %v6595 = vld [vmem:[%s6585 + $0x48] sm:$0xff]
    %v6596 = vld [vmem:[%s6585 + $0x50] sm:$0xff]
    %v6597 = vld [vmem:[%s6585 + $0x58] sm:$0xff]
    %v6598 = vld [vmem:[%s6585 + $0x60] sm:$0xff]
    %v6599 = vld [vmem:[%s6585 + $0x68] sm:$0xff]
    %v6600 = vld [vmem:[%s6585 + $0x70] sm:$0xff]
    %v6601 = vld [vmem:[%s6585 + $0x78] sm:$0xff]
    %v6603 = vrot.slane %v6428, 1
    %v6620 = vunpack.c.l.b16 %v6586
    %v6621 = vunpack.c.h.b16 %v6586
    %v6622 = vunpack.c.l.b16 %v6587
    %v6623 = vunpack.c.h.b16 %v6587
    %v6624 = vunpack.c.l.b16 %v6588
    %v6625 = vunpack.c.h.b16 %v6588
    %v6626 = vunpack.c.l.b16 %v6589
    %v6627 = vunpack.c.h.b16 %v6589
    %v6628 = vunpack.c.l.b16 %v6590
    %v6629 = vunpack.c.h.b16 %v6590
    %v6630 = vunpack.c.l.b16 %v6591
    %v6631 = vunpack.c.h.b16 %v6591
    %v6632 = vunpack.c.l.b16 %v6592
    %v6633 = vunpack.c.h.b16 %v6592
    %v6634 = vunpack.c.l.b16 %v6593
    %v6635 = vunpack.c.h.b16 %v6593
    %v6636 = vunpack.c.l.b16 %v6594
    %v6637 = vunpack.c.h.b16 %v6594
    %v6638 = vunpack.c.l.b16 %v6595
    %v6639 = vunpack.c.h.b16 %v6595
    %v6640 = vunpack.c.l.b16 %v6596
    %v6641 = vunpack.c.h.b16 %v6596
    %v6642 = vunpack.c.l.b16 %v6597
    %v6643 = vunpack.c.h.b16 %v6597
    %v6644 = vunpack.c.l.b16 %v6598
    %v6645 = vunpack.c.h.b16 %v6598
    %v6646 = vunpack.c.l.b16 %v6599
    %v6647 = vunpack.c.h.b16 %v6599
    %v6648 = vunpack.c.l.b16 %v6600
    %v6649 = vunpack.c.h.b16 %v6600
    %v6650 = vunpack.c.l.b16 %v6601
    %v6651 = vunpack.c.h.b16 %v6601
    %v6652 = vpack.c.b16 %v6624, %v6620
    %v6653 = vpack.c.b16 %v6625, %v6621
    %v6654 = vpack.c.b16 %v6626, %v6622
    %v6655 = vpack.c.b16 %v6627, %v6623
    %v6656 = vpack.c.b16 %v6632, %v6628
    %v6657 = vpack.c.b16 %v6633, %v6629
    %v6658 = vpack.c.b16 %v6634, %v6630
    %v6659 = vpack.c.b16 %v6635, %v6631
    %v6660 = vpack.c.b16 %v6640, %v6636
    %v6661 = vpack.c.b16 %v6641, %v6637
    %v6662 = vpack.c.b16 %v6642, %v6638
    %v6663 = vpack.c.b16 %v6643, %v6639
    %v6664 = vpack.c.b16 %v6648, %v6644
    %v6665 = vpack.c.b16 %v6649, %v6645
    %v6666 = vpack.c.b16 %v6650, %v6646
    %v6667 = vpack.c.b16 %v6651, %v6647
    %v6685 = vsel %vm526, %v6603, 0
    %6687 = vmatpush.bf16.msra.mxu0 0
    %6688 = vmatpush.bf16.msra.mxu0 0
    %6689 = vmatpush.bf16.msra.mxu0 0
    %6690 = vmatpush.bf16.msra.mxu0 0
    %6691 = vmatpush.bf16.msra.mxu0 %v6664
    %6692 = vmatpush.bf16.msra.mxu0 %v6660
    %6693 = vmatpush.bf16.msra.mxu0 %v6656
    %6694 = vmatpush.bf16.msra.mxu0 %v6652
    %6695 = vmatmul.bf16.gmra.mxu0 %v6685
    %v6696 = vpop.f32.mrf.mxu0
    %v6697 = vadd.f32 0.0, %v6696
    %v6698 = vpop.f32.mrf.mxu0
    %6699 = vdwg.mxu0
    %6700 = vmatpush.bf16.msra.mxu0 0
    %6701 = vmatpush.bf16.msra.mxu0 0
    %6702 = vmatpush.bf16.msra.mxu0 0
    %6703 = vmatpush.bf16.msra.mxu0 0
    %6704 = vmatpush.bf16.msra.mxu0 %v6665
    %6705 = vmatpush.bf16.msra.mxu0 %v6661
    %6706 = vmatpush.bf16.msra.mxu0 %v6657
    %6707 = vmatpush.bf16.msra.mxu0 %v6653
    %6708 = vmatmul.bf16.gmra.mxu0 %v6685
    %v6709 = vpop.f32.mrf.mxu0
    %v6710 = vadd.f32 0.0, %v6709
    %v6711 = vpop.f32.mrf.mxu0
    %6712 = vdwg.mxu0
    %6713 = vmatpush.bf16.msra.mxu0 0
    %6714 = vmatpush.bf16.msra.mxu0 0
    %6715 = vmatpush.bf16.msra.mxu0 0
    %6716 = vmatpush.bf16.msra.mxu0 0
    %6717 = vmatpush.bf16.msra.mxu0 %v6666
    %6718 = vmatpush.bf16.msra.mxu0 %v6662
    %6719 = vmatpush.bf16.msra.mxu0 %v6658
    %6720 = vmatpush.bf16.msra.mxu0 %v6654
    %6721 = vmatmul.bf16.gmra.mxu0 %v6685
    %v6722 = vpop.f32.mrf.mxu0
    %v6723 = vadd.f32 0.0, %v6722
    %v6724 = vpop.f32.mrf.mxu0
    %6725 = vdwg.mxu0
    %6726 = vmatpush.bf16.msra.mxu0 0
    %6727 = vmatpush.bf16.msra.mxu0 0
    %6728 = vmatpush.bf16.msra.mxu0 0
    %6729 = vmatpush.bf16.msra.mxu0 0
    %6730 = vmatpush.bf16.msra.mxu0 %v6667
    %6731 = vmatpush.bf16.msra.mxu0 %v6663
    %6732 = vmatpush.bf16.msra.mxu0 %v6659
    %6733 = vmatpush.bf16.msra.mxu0 %v6655
    %6734 = vmatmul.bf16.gmra.mxu0 %v6685
    %v6735 = vpop.f32.mrf.mxu0
    %v6736 = vadd.f32 0.0, %v6735
    %v6737 = vpop.f32.mrf.mxu0
    %6738 = vdwg.mxu0
    %v6739 = vadd.f32 %v6581, %v6697
    %v6740 = vadd.f32 %v6582, %v6710
    %v6741 = vadd.f32 %v6583, %v6723
    %v6742 = vadd.f32 %v6584, %v6736
    %s6743 = scalar_lea.vmem %s3, 4864
    %v6744 = vld [vmem:[%s6743] sm:$0xff]
    %v6745 = vld [vmem:[%s6743 + $0x8] sm:$0xff]
    %v6746 = vld [vmem:[%s6743 + $0x10] sm:$0xff]
    %v6747 = vld [vmem:[%s6743 + $0x18] sm:$0xff]
    %v6748 = vld [vmem:[%s6743 + $0x20] sm:$0xff]
    %v6749 = vld [vmem:[%s6743 + $0x28] sm:$0xff]
    %v6750 = vld [vmem:[%s6743 + $0x30] sm:$0xff]
    %v6751 = vld [vmem:[%s6743 + $0x38] sm:$0xff]
    %v6752 = vld [vmem:[%s6743 + $0x40] sm:$0xff]
    %v6753 = vld [vmem:[%s6743 + $0x48] sm:$0xff]
    %v6754 = vld [vmem:[%s6743 + $0x50] sm:$0xff]
    %v6755 = vld [vmem:[%s6743 + $0x58] sm:$0xff]
    %v6756 = vld [vmem:[%s6743 + $0x60] sm:$0xff]
    %v6757 = vld [vmem:[%s6743 + $0x68] sm:$0xff]
    %v6758 = vld [vmem:[%s6743 + $0x70] sm:$0xff]
    %v6759 = vld [vmem:[%s6743 + $0x78] sm:$0xff]
    %v6760 = vrot.slane %v6428, 2
    %v6777 = vunpack.c.l.b16 %v6744
    %v6778 = vunpack.c.h.b16 %v6744
    %v6779 = vunpack.c.l.b16 %v6745
    %v6780 = vunpack.c.h.b16 %v6745
    %v6781 = vunpack.c.l.b16 %v6746
    %v6782 = vunpack.c.h.b16 %v6746
    %v6783 = vunpack.c.l.b16 %v6747
    %v6784 = vunpack.c.h.b16 %v6747
    %v6785 = vunpack.c.l.b16 %v6748
    %v6786 = vunpack.c.h.b16 %v6748
    %v6787 = vunpack.c.l.b16 %v6749
    %v6788 = vunpack.c.h.b16 %v6749
    %v6789 = vunpack.c.l.b16 %v6750
    %v6790 = vunpack.c.h.b16 %v6750
    %v6791 = vunpack.c.l.b16 %v6751
    %v6792 = vunpack.c.h.b16 %v6751
    %v6793 = vunpack.c.l.b16 %v6752
    %v6794 = vunpack.c.h.b16 %v6752
    %v6795 = vunpack.c.l.b16 %v6753
    %v6796 = vunpack.c.h.b16 %v6753
    %v6797 = vunpack.c.l.b16 %v6754
    %v6798 = vunpack.c.h.b16 %v6754
    %v6799 = vunpack.c.l.b16 %v6755
    %v6800 = vunpack.c.h.b16 %v6755
    %v6801 = vunpack.c.l.b16 %v6756
    %v6802 = vunpack.c.h.b16 %v6756
    %v6803 = vunpack.c.l.b16 %v6757
    %v6804 = vunpack.c.h.b16 %v6757
    %v6805 = vunpack.c.l.b16 %v6758
    %v6806 = vunpack.c.h.b16 %v6758
    %v6807 = vunpack.c.l.b16 %v6759
    %v6808 = vunpack.c.h.b16 %v6759
    %v6809 = vpack.c.b16 %v6781, %v6777
    %v6810 = vpack.c.b16 %v6782, %v6778
    %v6811 = vpack.c.b16 %v6783, %v6779
    %v6812 = vpack.c.b16 %v6784, %v6780
    %v6813 = vpack.c.b16 %v6789, %v6785
    %v6814 = vpack.c.b16 %v6790, %v6786
    %v6815 = vpack.c.b16 %v6791, %v6787
    %v6816 = vpack.c.b16 %v6792, %v6788
    %v6817 = vpack.c.b16 %v6797, %v6793
    %v6818 = vpack.c.b16 %v6798, %v6794
    %v6819 = vpack.c.b16 %v6799, %v6795
    %v6820 = vpack.c.b16 %v6800, %v6796
    %v6821 = vpack.c.b16 %v6805, %v6801
    %v6822 = vpack.c.b16 %v6806, %v6802
    %v6823 = vpack.c.b16 %v6807, %v6803
    %v6824 = vpack.c.b16 %v6808, %v6804
    %v6842 = vsel %vm526, %v6760, 0
    %6844 = vmatpush.bf16.msra.mxu0 0
    %6845 = vmatpush.bf16.msra.mxu0 0
    %6846 = vmatpush.bf16.msra.mxu0 0
    %6847 = vmatpush.bf16.msra.mxu0 0
    %6848 = vmatpush.bf16.msra.mxu0 %v6821
    %6849 = vmatpush.bf16.msra.mxu0 %v6817
    %6850 = vmatpush.bf16.msra.mxu0 %v6813
    %6851 = vmatpush.bf16.msra.mxu0 %v6809
    %6852 = vmatmul.bf16.gmra.mxu0 %v6842
    %v6853 = vpop.f32.mrf.mxu0
    %v6854 = vadd.f32 0.0, %v6853
    %v6855 = vpop.f32.mrf.mxu0
    %6856 = vdwg.mxu0
    %6857 = vmatpush.bf16.msra.mxu0 0
    %6858 = vmatpush.bf16.msra.mxu0 0
    %6859 = vmatpush.bf16.msra.mxu0 0
    %6860 = vmatpush.bf16.msra.mxu0 0
    %6861 = vmatpush.bf16.msra.mxu0 %v6822
    %6862 = vmatpush.bf16.msra.mxu0 %v6818
    %6863 = vmatpush.bf16.msra.mxu0 %v6814
    %6864 = vmatpush.bf16.msra.mxu0 %v6810
    %6865 = vmatmul.bf16.gmra.mxu0 %v6842
    %v6866 = vpop.f32.mrf.mxu0
    %v6867 = vadd.f32 0.0, %v6866
    %v6868 = vpop.f32.mrf.mxu0
    %6869 = vdwg.mxu0
    %6870 = vmatpush.bf16.msra.mxu0 0
    %6871 = vmatpush.bf16.msra.mxu0 0
    %6872 = vmatpush.bf16.msra.mxu0 0
    %6873 = vmatpush.bf16.msra.mxu0 0
    %6874 = vmatpush.bf16.msra.mxu0 %v6823
    %6875 = vmatpush.bf16.msra.mxu0 %v6819
    %6876 = vmatpush.bf16.msra.mxu0 %v6815
    %6877 = vmatpush.bf16.msra.mxu0 %v6811
    %6878 = vmatmul.bf16.gmra.mxu0 %v6842
    %v6879 = vpop.f32.mrf.mxu0
    %v6880 = vadd.f32 0.0, %v6879
    %v6881 = vpop.f32.mrf.mxu0
    %6882 = vdwg.mxu0
    %6883 = vmatpush.bf16.msra.mxu0 0
    %6884 = vmatpush.bf16.msra.mxu0 0
    %6885 = vmatpush.bf16.msra.mxu0 0
    %6886 = vmatpush.bf16.msra.mxu0 0
    %6887 = vmatpush.bf16.msra.mxu0 %v6824
    %6888 = vmatpush.bf16.msra.mxu0 %v6820
    %6889 = vmatpush.bf16.msra.mxu0 %v6816
    %6890 = vmatpush.bf16.msra.mxu0 %v6812
    %6891 = vmatmul.bf16.gmra.mxu0 %v6842
    %v6892 = vpop.f32.mrf.mxu0
    %v6893 = vadd.f32 0.0, %v6892
    %v6894 = vpop.f32.mrf.mxu0
    %6895 = vdwg.mxu0
    %v6896 = vadd.f32 %v6739, %v6854
    %v6897 = vadd.f32 %v6740, %v6867
    %v6898 = vadd.f32 %v6741, %v6880
    %v6899 = vadd.f32 %v6742, %v6893
    %s6900 = scalar_lea.vmem %s3, 4992
    %v6901 = vld [vmem:[%s6900] sm:$0xff]
    %v6902 = vld [vmem:[%s6900 + $0x8] sm:$0xff]
    %v6903 = vld [vmem:[%s6900 + $0x10] sm:$0xff]
    %v6904 = vld [vmem:[%s6900 + $0x18] sm:$0xff]
    %v6905 = vld [vmem:[%s6900 + $0x20] sm:$0xff]
    %v6906 = vld [vmem:[%s6900 + $0x28] sm:$0xff]
    %v6907 = vld [vmem:[%s6900 + $0x30] sm:$0xff]
    %v6908 = vld [vmem:[%s6900 + $0x38] sm:$0xff]
    %v6909 = vld [vmem:[%s6900 + $0x40] sm:$0xff]
    %v6910 = vld [vmem:[%s6900 + $0x48] sm:$0xff]
    %v6911 = vld [vmem:[%s6900 + $0x50] sm:$0xff]
    %v6912 = vld [vmem:[%s6900 + $0x58] sm:$0xff]
    %v6913 = vld [vmem:[%s6900 + $0x60] sm:$0xff]
    %v6914 = vld [vmem:[%s6900 + $0x68] sm:$0xff]
    %v6915 = vld [vmem:[%s6900 + $0x70] sm:$0xff]
    %v6916 = vld [vmem:[%s6900 + $0x78] sm:$0xff]
    %v6917 = vrot.slane %v6428, 3
    %v6934 = vunpack.c.l.b16 %v6901
    %v6935 = vunpack.c.h.b16 %v6901
    %v6936 = vunpack.c.l.b16 %v6902
    %v6937 = vunpack.c.h.b16 %v6902
    %v6938 = vunpack.c.l.b16 %v6903
    %v6939 = vunpack.c.h.b16 %v6903
    %v6940 = vunpack.c.l.b16 %v6904
    %v6941 = vunpack.c.h.b16 %v6904
    %v6942 = vunpack.c.l.b16 %v6905
    %v6943 = vunpack.c.h.b16 %v6905
    %v6944 = vunpack.c.l.b16 %v6906
    %v6945 = vunpack.c.h.b16 %v6906
    %v6946 = vunpack.c.l.b16 %v6907
    %v6947 = vunpack.c.h.b16 %v6907
    %v6948 = vunpack.c.l.b16 %v6908
    %v6949 = vunpack.c.h.b16 %v6908
    %v6950 = vunpack.c.l.b16 %v6909
    %v6951 = vunpack.c.h.b16 %v6909
    %v6952 = vunpack.c.l.b16 %v6910
    %v6953 = vunpack.c.h.b16 %v6910
    %v6954 = vunpack.c.l.b16 %v6911
    %v6955 = vunpack.c.h.b16 %v6911
    %v6956 = vunpack.c.l.b16 %v6912
    %v6957 = vunpack.c.h.b16 %v6912
    %v6958 = vunpack.c.l.b16 %v6913
    %v6959 = vunpack.c.h.b16 %v6913
    %v6960 = vunpack.c.l.b16 %v6914
    %v6961 = vunpack.c.h.b16 %v6914
    %v6962 = vunpack.c.l.b16 %v6915
    %v6963 = vunpack.c.h.b16 %v6915
    %v6964 = vunpack.c.l.b16 %v6916
    %v6965 = vunpack.c.h.b16 %v6916
    %v6966 = vpack.c.b16 %v6938, %v6934
    %v6967 = vpack.c.b16 %v6939, %v6935
    %v6968 = vpack.c.b16 %v6940, %v6936
    %v6969 = vpack.c.b16 %v6941, %v6937
    %v6970 = vpack.c.b16 %v6946, %v6942
    %v6971 = vpack.c.b16 %v6947, %v6943
    %v6972 = vpack.c.b16 %v6948, %v6944
    %v6973 = vpack.c.b16 %v6949, %v6945
    %v6974 = vpack.c.b16 %v6954, %v6950
    %v6975 = vpack.c.b16 %v6955, %v6951
    %v6976 = vpack.c.b16 %v6956, %v6952
    %v6977 = vpack.c.b16 %v6957, %v6953
    %v6978 = vpack.c.b16 %v6962, %v6958
    %v6979 = vpack.c.b16 %v6963, %v6959
    %v6980 = vpack.c.b16 %v6964, %v6960
    %v6981 = vpack.c.b16 %v6965, %v6961
    %v6999 = vsel %vm526, %v6917, 0
    %7001 = vmatpush.bf16.msra.mxu0 0
    %7002 = vmatpush.bf16.msra.mxu0 0
    %7003 = vmatpush.bf16.msra.mxu0 0
    %7004 = vmatpush.bf16.msra.mxu0 0
    %7005 = vmatpush.bf16.msra.mxu0 %v6978
    %7006 = vmatpush.bf16.msra.mxu0 %v6974
    %7007 = vmatpush.bf16.msra.mxu0 %v6970
    %7008 = vmatpush.bf16.msra.mxu0 %v6966
    %7009 = vmatmul.bf16.gmra.mxu0 %v6999
    %v7010 = vpop.f32.mrf.mxu0
    %v7011 = vadd.f32 0.0, %v7010
    %v7012 = vpop.f32.mrf.mxu0
    %7013 = vdwg.mxu0
    %7014 = vmatpush.bf16.msra.mxu0 0
    %7015 = vmatpush.bf16.msra.mxu0 0
    %7016 = vmatpush.bf16.msra.mxu0 0
    %7017 = vmatpush.bf16.msra.mxu0 0
    %7018 = vmatpush.bf16.msra.mxu0 %v6979
    %7019 = vmatpush.bf16.msra.mxu0 %v6975
    %7020 = vmatpush.bf16.msra.mxu0 %v6971
    %7021 = vmatpush.bf16.msra.mxu0 %v6967
    %7022 = vmatmul.bf16.gmra.mxu0 %v6999
    %v7023 = vpop.f32.mrf.mxu0
    %v7024 = vadd.f32 0.0, %v7023
    %v7025 = vpop.f32.mrf.mxu0
    %7026 = vdwg.mxu0
    %7027 = vmatpush.bf16.msra.mxu0 0
    %7028 = vmatpush.bf16.msra.mxu0 0
    %7029 = vmatpush.bf16.msra.mxu0 0
    %7030 = vmatpush.bf16.msra.mxu0 0
    %7031 = vmatpush.bf16.msra.mxu0 %v6980
    %7032 = vmatpush.bf16.msra.mxu0 %v6976
    %7033 = vmatpush.bf16.msra.mxu0 %v6972
    %7034 = vmatpush.bf16.msra.mxu0 %v6968
    %7035 = vmatmul.bf16.gmra.mxu0 %v6999
    %v7036 = vpop.f32.mrf.mxu0
    %v7037 = vadd.f32 0.0, %v7036
    %v7038 = vpop.f32.mrf.mxu0
    %7039 = vdwg.mxu0
    %7040 = vmatpush.bf16.msra.mxu0 0
    %7041 = vmatpush.bf16.msra.mxu0 0
    %7042 = vmatpush.bf16.msra.mxu0 0
    %7043 = vmatpush.bf16.msra.mxu0 0
    %7044 = vmatpush.bf16.msra.mxu0 %v6981
    %7045 = vmatpush.bf16.msra.mxu0 %v6977
    %7046 = vmatpush.bf16.msra.mxu0 %v6973
    %7047 = vmatpush.bf16.msra.mxu0 %v6969
    %7048 = vmatmul.bf16.gmra.mxu0 %v6999
    %v7049 = vpop.f32.mrf.mxu0
    %v7050 = vadd.f32 0.0, %v7049
    %v7051 = vpop.f32.mrf.mxu0
    %7052 = vdwg.mxu0
    %v7053 = vadd.f32 %v6896, %v7011
    %v7054 = vadd.f32 %v6897, %v7024
    %v7055 = vadd.f32 %v6898, %v7037
    %v7056 = vadd.f32 %v6899, %v7050
    %v7057 = vpack.c.bf16 %v773, %v773
    %s7058 = scalar_lea.vmem %s3, 5120
    %v7059 = vld [vmem:[%s7058] sm:$0xff]
    %v7060 = vld [vmem:[%s7058 + $0x8] sm:$0xff]
    %v7061 = vld [vmem:[%s7058 + $0x10] sm:$0xff]
    %v7062 = vld [vmem:[%s7058 + $0x18] sm:$0xff]
    %v7063 = vld [vmem:[%s7058 + $0x20] sm:$0xff]
    %v7064 = vld [vmem:[%s7058 + $0x28] sm:$0xff]
    %v7065 = vld [vmem:[%s7058 + $0x30] sm:$0xff]
    %v7066 = vld [vmem:[%s7058 + $0x38] sm:$0xff]
    %v7067 = vld [vmem:[%s7058 + $0x40] sm:$0xff]
    %v7068 = vld [vmem:[%s7058 + $0x48] sm:$0xff]
    %v7069 = vld [vmem:[%s7058 + $0x50] sm:$0xff]
    %v7070 = vld [vmem:[%s7058 + $0x58] sm:$0xff]
    %v7071 = vld [vmem:[%s7058 + $0x60] sm:$0xff]
    %v7072 = vld [vmem:[%s7058 + $0x68] sm:$0xff]
    %v7073 = vld [vmem:[%s7058 + $0x70] sm:$0xff]
    %v7074 = vld [vmem:[%s7058 + $0x78] sm:$0xff]
    %v7091 = vunpack.c.l.b16 %v7059
    %v7092 = vunpack.c.h.b16 %v7059
    %v7093 = vunpack.c.l.b16 %v7060
    %v7094 = vunpack.c.h.b16 %v7060
    %v7095 = vunpack.c.l.b16 %v7061
    %v7096 = vunpack.c.h.b16 %v7061
    %v7097 = vunpack.c.l.b16 %v7062
    %v7098 = vunpack.c.h.b16 %v7062
    %v7099 = vunpack.c.l.b16 %v7063
    %v7100 = vunpack.c.h.b16 %v7063
    %v7101 = vunpack.c.l.b16 %v7064
    %v7102 = vunpack.c.h.b16 %v7064
    %v7103 = vunpack.c.l.b16 %v7065
    %v7104 = vunpack.c.h.b16 %v7065
    %v7105 = vunpack.c.l.b16 %v7066
    %v7106 = vunpack.c.h.b16 %v7066
    %v7107 = vunpack.c.l.b16 %v7067
    %v7108 = vunpack.c.h.b16 %v7067
    %v7109 = vunpack.c.l.b16 %v7068
    %v7110 = vunpack.c.h.b16 %v7068
    %v7111 = vunpack.c.l.b16 %v7069
    %v7112 = vunpack.c.h.b16 %v7069
    %v7113 = vunpack.c.l.b16 %v7070
    %v7114 = vunpack.c.h.b16 %v7070
    %v7115 = vunpack.c.l.b16 %v7071
    %v7116 = vunpack.c.h.b16 %v7071
    %v7117 = vunpack.c.l.b16 %v7072
    %v7118 = vunpack.c.h.b16 %v7072
    %v7119 = vunpack.c.l.b16 %v7073
    %v7120 = vunpack.c.h.b16 %v7073
    %v7121 = vunpack.c.l.b16 %v7074
    %v7122 = vunpack.c.h.b16 %v7074
    %v7123 = vpack.c.b16 %v7095, %v7091
    %v7124 = vpack.c.b16 %v7096, %v7092
    %v7125 = vpack.c.b16 %v7097, %v7093
    %v7126 = vpack.c.b16 %v7098, %v7094
    %v7127 = vpack.c.b16 %v7103, %v7099
    %v7128 = vpack.c.b16 %v7104, %v7100
    %v7129 = vpack.c.b16 %v7105, %v7101
    %v7130 = vpack.c.b16 %v7106, %v7102
    %v7131 = vpack.c.b16 %v7111, %v7107
    %v7132 = vpack.c.b16 %v7112, %v7108
    %v7133 = vpack.c.b16 %v7113, %v7109
    %v7134 = vpack.c.b16 %v7114, %v7110
    %v7135 = vpack.c.b16 %v7119, %v7115
    %v7136 = vpack.c.b16 %v7120, %v7116
    %v7137 = vpack.c.b16 %v7121, %v7117
    %v7138 = vpack.c.b16 %v7122, %v7118
    %v7156 = vsel %vm526, %v7057, 0
    %7158 = vmatpush.bf16.msra.mxu0 0
    %7159 = vmatpush.bf16.msra.mxu0 0
    %7160 = vmatpush.bf16.msra.mxu0 0
    %7161 = vmatpush.bf16.msra.mxu0 0
    %7162 = vmatpush.bf16.msra.mxu0 %v7135
    %7163 = vmatpush.bf16.msra.mxu0 %v7131
    %7164 = vmatpush.bf16.msra.mxu0 %v7127
    %7165 = vmatpush.bf16.msra.mxu0 %v7123
    %7166 = vmatmul.bf16.gmra.mxu0 %v7156
    %v7167 = vpop.f32.mrf.mxu0
    %v7168 = vadd.f32 0.0, %v7167
    %v7169 = vpop.f32.mrf.mxu0
    %7170 = vdwg.mxu0
    %7171 = vmatpush.bf16.msra.mxu0 0
    %7172 = vmatpush.bf16.msra.mxu0 0
    %7173 = vmatpush.bf16.msra.mxu0 0
    %7174 = vmatpush.bf16.msra.mxu0 0
    %7175 = vmatpush.bf16.msra.mxu0 %v7136
    %7176 = vmatpush.bf16.msra.mxu0 %v7132
    %7177 = vmatpush.bf16.msra.mxu0 %v7128
    %7178 = vmatpush.bf16.msra.mxu0 %v7124
    %7179 = vmatmul.bf16.gmra.mxu0 %v7156
    %v7180 = vpop.f32.mrf.mxu0
    %v7181 = vadd.f32 0.0, %v7180
    %v7182 = vpop.f32.mrf.mxu0
    %7183 = vdwg.mxu0
    %7184 = vmatpush.bf16.msra.mxu0 0
    %7185 = vmatpush.bf16.msra.mxu0 0
    %7186 = vmatpush.bf16.msra.mxu0 0
    %7187 = vmatpush.bf16.msra.mxu0 0
    %7188 = vmatpush.bf16.msra.mxu0 %v7137
    %7189 = vmatpush.bf16.msra.mxu0 %v7133
    %7190 = vmatpush.bf16.msra.mxu0 %v7129
    %7191 = vmatpush.bf16.msra.mxu0 %v7125
    %7192 = vmatmul.bf16.gmra.mxu0 %v7156
    %v7193 = vpop.f32.mrf.mxu0
    %v7194 = vadd.f32 0.0, %v7193
    %v7195 = vpop.f32.mrf.mxu0
    %7196 = vdwg.mxu0
    %7197 = vmatpush.bf16.msra.mxu0 0
    %7198 = vmatpush.bf16.msra.mxu0 0
    %7199 = vmatpush.bf16.msra.mxu0 0
    %7200 = vmatpush.bf16.msra.mxu0 0
    %7201 = vmatpush.bf16.msra.mxu0 %v7138
    %7202 = vmatpush.bf16.msra.mxu0 %v7134
    %7203 = vmatpush.bf16.msra.mxu0 %v7130
    %7204 = vmatpush.bf16.msra.mxu0 %v7126
    %7205 = vmatmul.bf16.gmra.mxu0 %v7156
    %v7206 = vpop.f32.mrf.mxu0
    %v7207 = vadd.f32 0.0, %v7206
    %v7208 = vpop.f32.mrf.mxu0
    %7209 = vdwg.mxu0
    %v7210 = vadd.f32 %v7053, %v7168
    %v7211 = vadd.f32 %v7054, %v7181
    %v7212 = vadd.f32 %v7055, %v7194
    %v7213 = vadd.f32 %v7056, %v7207
    %s7214 = scalar_lea.vmem %s3, 5248
    %v7215 = vld [vmem:[%s7214] sm:$0xff]
    %v7216 = vld [vmem:[%s7214 + $0x8] sm:$0xff]
    %v7217 = vld [vmem:[%s7214 + $0x10] sm:$0xff]
    %v7218 = vld [vmem:[%s7214 + $0x18] sm:$0xff]
    %v7219 = vld [vmem:[%s7214 + $0x20] sm:$0xff]
    %v7220 = vld [vmem:[%s7214 + $0x28] sm:$0xff]
    %v7221 = vld [vmem:[%s7214 + $0x30] sm:$0xff]
    %v7222 = vld [vmem:[%s7214 + $0x38] sm:$0xff]
    %v7223 = vld [vmem:[%s7214 + $0x40] sm:$0xff]
    %v7224 = vld [vmem:[%s7214 + $0x48] sm:$0xff]
    %v7225 = vld [vmem:[%s7214 + $0x50] sm:$0xff]
    %v7226 = vld [vmem:[%s7214 + $0x58] sm:$0xff]
    %v7227 = vld [vmem:[%s7214 + $0x60] sm:$0xff]
    %v7228 = vld [vmem:[%s7214 + $0x68] sm:$0xff]
    %v7229 = vld [vmem:[%s7214 + $0x70] sm:$0xff]
    %v7230 = vld [vmem:[%s7214 + $0x78] sm:$0xff]
    %v7232 = vrot.slane %v7057, 1
    %v7249 = vunpack.c.l.b16 %v7215
    %v7250 = vunpack.c.h.b16 %v7215
    %v7251 = vunpack.c.l.b16 %v7216
    %v7252 = vunpack.c.h.b16 %v7216
    %v7253 = vunpack.c.l.b16 %v7217
    %v7254 = vunpack.c.h.b16 %v7217
    %v7255 = vunpack.c.l.b16 %v7218
    %v7256 = vunpack.c.h.b16 %v7218
    %v7257 = vunpack.c.l.b16 %v7219
    %v7258 = vunpack.c.h.b16 %v7219
    %v7259 = vunpack.c.l.b16 %v7220
    %v7260 = vunpack.c.h.b16 %v7220
    %v7261 = vunpack.c.l.b16 %v7221
    %v7262 = vunpack.c.h.b16 %v7221
    %v7263 = vunpack.c.l.b16 %v7222
    %v7264 = vunpack.c.h.b16 %v7222
    %v7265 = vunpack.c.l.b16 %v7223
    %v7266 = vunpack.c.h.b16 %v7223
    %v7267 = vunpack.c.l.b16 %v7224
    %v7268 = vunpack.c.h.b16 %v7224
    %v7269 = vunpack.c.l.b16 %v7225
    %v7270 = vunpack.c.h.b16 %v7225
    %v7271 = vunpack.c.l.b16 %v7226
    %v7272 = vunpack.c.h.b16 %v7226
    %v7273 = vunpack.c.l.b16 %v7227
    %v7274 = vunpack.c.h.b16 %v7227
    %v7275 = vunpack.c.l.b16 %v7228
    %v7276 = vunpack.c.h.b16 %v7228
    %v7277 = vunpack.c.l.b16 %v7229
    %v7278 = vunpack.c.h.b16 %v7229
    %v7279 = vunpack.c.l.b16 %v7230
    %v7280 = vunpack.c.h.b16 %v7230
    %v7281 = vpack.c.b16 %v7253, %v7249
    %v7282 = vpack.c.b16 %v7254, %v7250
    %v7283 = vpack.c.b16 %v7255, %v7251
    %v7284 = vpack.c.b16 %v7256, %v7252
    %v7285 = vpack.c.b16 %v7261, %v7257
    %v7286 = vpack.c.b16 %v7262, %v7258
    %v7287 = vpack.c.b16 %v7263, %v7259
    %v7288 = vpack.c.b16 %v7264, %v7260
    %v7289 = vpack.c.b16 %v7269, %v7265
    %v7290 = vpack.c.b16 %v7270, %v7266
    %v7291 = vpack.c.b16 %v7271, %v7267
    %v7292 = vpack.c.b16 %v7272, %v7268
    %v7293 = vpack.c.b16 %v7277, %v7273
    %v7294 = vpack.c.b16 %v7278, %v7274
    %v7295 = vpack.c.b16 %v7279, %v7275
    %v7296 = vpack.c.b16 %v7280, %v7276
    %v7314 = vsel %vm526, %v7232, 0
    %7316 = vmatpush.bf16.msra.mxu0 0
    %7317 = vmatpush.bf16.msra.mxu0 0
    %7318 = vmatpush.bf16.msra.mxu0 0
    %7319 = vmatpush.bf16.msra.mxu0 0
    %7320 = vmatpush.bf16.msra.mxu0 %v7293
    %7321 = vmatpush.bf16.msra.mxu0 %v7289
    %7322 = vmatpush.bf16.msra.mxu0 %v7285
    %7323 = vmatpush.bf16.msra.mxu0 %v7281
    %7324 = vmatmul.bf16.gmra.mxu0 %v7314
    %v7325 = vpop.f32.mrf.mxu0
    %v7326 = vadd.f32 0.0, %v7325
    %v7327 = vpop.f32.mrf.mxu0
    %7328 = vdwg.mxu0
    %7329 = vmatpush.bf16.msra.mxu0 0
    %7330 = vmatpush.bf16.msra.mxu0 0
    %7331 = vmatpush.bf16.msra.mxu0 0
    %7332 = vmatpush.bf16.msra.mxu0 0
    %7333 = vmatpush.bf16.msra.mxu0 %v7294
    %7334 = vmatpush.bf16.msra.mxu0 %v7290
    %7335 = vmatpush.bf16.msra.mxu0 %v7286
    %7336 = vmatpush.bf16.msra.mxu0 %v7282
    %7337 = vmatmul.bf16.gmra.mxu0 %v7314
    %v7338 = vpop.f32.mrf.mxu0
    %v7339 = vadd.f32 0.0, %v7338
    %v7340 = vpop.f32.mrf.mxu0
    %7341 = vdwg.mxu0
    %7342 = vmatpush.bf16.msra.mxu0 0
    %7343 = vmatpush.bf16.msra.mxu0 0
    %7344 = vmatpush.bf16.msra.mxu0 0
    %7345 = vmatpush.bf16.msra.mxu0 0
    %7346 = vmatpush.bf16.msra.mxu0 %v7295
    %7347 = vmatpush.bf16.msra.mxu0 %v7291
    %7348 = vmatpush.bf16.msra.mxu0 %v7287
    %7349 = vmatpush.bf16.msra.mxu0 %v7283
    %7350 = vmatmul.bf16.gmra.mxu0 %v7314
    %v7351 = vpop.f32.mrf.mxu0
    %v7352 = vadd.f32 0.0, %v7351
    %v7353 = vpop.f32.mrf.mxu0
    %7354 = vdwg.mxu0
    %7355 = vmatpush.bf16.msra.mxu0 0
    %7356 = vmatpush.bf16.msra.mxu0 0
    %7357 = vmatpush.bf16.msra.mxu0 0
    %7358 = vmatpush.bf16.msra.mxu0 0
    %7359 = vmatpush.bf16.msra.mxu0 %v7296
    %7360 = vmatpush.bf16.msra.mxu0 %v7292
    %7361 = vmatpush.bf16.msra.mxu0 %v7288
    %7362 = vmatpush.bf16.msra.mxu0 %v7284
    %7363 = vmatmul.bf16.gmra.mxu0 %v7314
    %v7364 = vpop.f32.mrf.mxu0
    %v7365 = vadd.f32 0.0, %v7364
    %v7366 = vpop.f32.mrf.mxu0
    %7367 = vdwg.mxu0
    %v7368 = vadd.f32 %v7210, %v7326
    %v7369 = vadd.f32 %v7211, %v7339
    %v7370 = vadd.f32 %v7212, %v7352
    %v7371 = vadd.f32 %v7213, %v7365
    %s7372 = scalar_lea.vmem %s3, 5376
    %v7373 = vld [vmem:[%s7372] sm:$0xff]
    %v7374 = vld [vmem:[%s7372 + $0x8] sm:$0xff]
    %v7375 = vld [vmem:[%s7372 + $0x10] sm:$0xff]
    %v7376 = vld [vmem:[%s7372 + $0x18] sm:$0xff]
    %v7377 = vld [vmem:[%s7372 + $0x20] sm:$0xff]
    %v7378 = vld [vmem:[%s7372 + $0x28] sm:$0xff]
    %v7379 = vld [vmem:[%s7372 + $0x30] sm:$0xff]
    %v7380 = vld [vmem:[%s7372 + $0x38] sm:$0xff]
    %v7381 = vld [vmem:[%s7372 + $0x40] sm:$0xff]
    %v7382 = vld [vmem:[%s7372 + $0x48] sm:$0xff]
    %v7383 = vld [vmem:[%s7372 + $0x50] sm:$0xff]
    %v7384 = vld [vmem:[%s7372 + $0x58] sm:$0xff]
    %v7385 = vld [vmem:[%s7372 + $0x60] sm:$0xff]
    %v7386 = vld [vmem:[%s7372 + $0x68] sm:$0xff]
    %v7387 = vld [vmem:[%s7372 + $0x70] sm:$0xff]
    %v7388 = vld [vmem:[%s7372 + $0x78] sm:$0xff]
    %v7389 = vrot.slane %v7057, 2
    %v7406 = vunpack.c.l.b16 %v7373
    %v7407 = vunpack.c.h.b16 %v7373
    %v7408 = vunpack.c.l.b16 %v7374
    %v7409 = vunpack.c.h.b16 %v7374
    %v7410 = vunpack.c.l.b16 %v7375
    %v7411 = vunpack.c.h.b16 %v7375
    %v7412 = vunpack.c.l.b16 %v7376
    %v7413 = vunpack.c.h.b16 %v7376
    %v7414 = vunpack.c.l.b16 %v7377
    %v7415 = vunpack.c.h.b16 %v7377
    %v7416 = vunpack.c.l.b16 %v7378
    %v7417 = vunpack.c.h.b16 %v7378
    %v7418 = vunpack.c.l.b16 %v7379
    %v7419 = vunpack.c.h.b16 %v7379
    %v7420 = vunpack.c.l.b16 %v7380
    %v7421 = vunpack.c.h.b16 %v7380
    %v7422 = vunpack.c.l.b16 %v7381
    %v7423 = vunpack.c.h.b16 %v7381
    %v7424 = vunpack.c.l.b16 %v7382
    %v7425 = vunpack.c.h.b16 %v7382
    %v7426 = vunpack.c.l.b16 %v7383
    %v7427 = vunpack.c.h.b16 %v7383
    %v7428 = vunpack.c.l.b16 %v7384
    %v7429 = vunpack.c.h.b16 %v7384
    %v7430 = vunpack.c.l.b16 %v7385
    %v7431 = vunpack.c.h.b16 %v7385
    %v7432 = vunpack.c.l.b16 %v7386
    %v7433 = vunpack.c.h.b16 %v7386
    %v7434 = vunpack.c.l.b16 %v7387
    %v7435 = vunpack.c.h.b16 %v7387
    %v7436 = vunpack.c.l.b16 %v7388
    %v7437 = vunpack.c.h.b16 %v7388
    %v7438 = vpack.c.b16 %v7410, %v7406
    %v7439 = vpack.c.b16 %v7411, %v7407
    %v7440 = vpack.c.b16 %v7412, %v7408
    %v7441 = vpack.c.b16 %v7413, %v7409
    %v7442 = vpack.c.b16 %v7418, %v7414
    %v7443 = vpack.c.b16 %v7419, %v7415
    %v7444 = vpack.c.b16 %v7420, %v7416
    %v7445 = vpack.c.b16 %v7421, %v7417
    %v7446 = vpack.c.b16 %v7426, %v7422
    %v7447 = vpack.c.b16 %v7427, %v7423
    %v7448 = vpack.c.b16 %v7428, %v7424
    %v7449 = vpack.c.b16 %v7429, %v7425
    %v7450 = vpack.c.b16 %v7434, %v7430
    %v7451 = vpack.c.b16 %v7435, %v7431
    %v7452 = vpack.c.b16 %v7436, %v7432
    %v7453 = vpack.c.b16 %v7437, %v7433
    %v7471 = vsel %vm526, %v7389, 0
    %7473 = vmatpush.bf16.msra.mxu0 0
    %7474 = vmatpush.bf16.msra.mxu0 0
    %7475 = vmatpush.bf16.msra.mxu0 0
    %7476 = vmatpush.bf16.msra.mxu0 0
    %7477 = vmatpush.bf16.msra.mxu0 %v7450
    %7478 = vmatpush.bf16.msra.mxu0 %v7446
    %7479 = vmatpush.bf16.msra.mxu0 %v7442
    %7480 = vmatpush.bf16.msra.mxu0 %v7438
    %7481 = vmatmul.bf16.gmra.mxu0 %v7471
    %v7482 = vpop.f32.mrf.mxu0
    %v7483 = vadd.f32 0.0, %v7482
    %v7484 = vpop.f32.mrf.mxu0
    %7485 = vdwg.mxu0
    %7486 = vmatpush.bf16.msra.mxu0 0
    %7487 = vmatpush.bf16.msra.mxu0 0
    %7488 = vmatpush.bf16.msra.mxu0 0
    %7489 = vmatpush.bf16.msra.mxu0 0
    %7490 = vmatpush.bf16.msra.mxu0 %v7451
    %7491 = vmatpush.bf16.msra.mxu0 %v7447
    %7492 = vmatpush.bf16.msra.mxu0 %v7443
    %7493 = vmatpush.bf16.msra.mxu0 %v7439
    %7494 = vmatmul.bf16.gmra.mxu0 %v7471
    %v7495 = vpop.f32.mrf.mxu0
    %v7496 = vadd.f32 0.0, %v7495
    %v7497 = vpop.f32.mrf.mxu0
    %7498 = vdwg.mxu0
    %7499 = vmatpush.bf16.msra.mxu0 0
    %7500 = vmatpush.bf16.msra.mxu0 0
    %7501 = vmatpush.bf16.msra.mxu0 0
    %7502 = vmatpush.bf16.msra.mxu0 0
    %7503 = vmatpush.bf16.msra.mxu0 %v7452
    %7504 = vmatpush.bf16.msra.mxu0 %v7448
    %7505 = vmatpush.bf16.msra.mxu0 %v7444
    %7506 = vmatpush.bf16.msra.mxu0 %v7440
    %7507 = vmatmul.bf16.gmra.mxu0 %v7471
    %v7508 = vpop.f32.mrf.mxu0
    %v7509 = vadd.f32 0.0, %v7508
    %v7510 = vpop.f32.mrf.mxu0
    %7511 = vdwg.mxu0
    %7512 = vmatpush.bf16.msra.mxu0 0
    %7513 = vmatpush.bf16.msra.mxu0 0
    %7514 = vmatpush.bf16.msra.mxu0 0
    %7515 = vmatpush.bf16.msra.mxu0 0
    %7516 = vmatpush.bf16.msra.mxu0 %v7453
    %7517 = vmatpush.bf16.msra.mxu0 %v7449
    %7518 = vmatpush.bf16.msra.mxu0 %v7445
    %7519 = vmatpush.bf16.msra.mxu0 %v7441
    %7520 = vmatmul.bf16.gmra.mxu0 %v7471
    %v7521 = vpop.f32.mrf.mxu0
    %v7522 = vadd.f32 0.0, %v7521
    %v7523 = vpop.f32.mrf.mxu0
    %7524 = vdwg.mxu0
    %v7525 = vadd.f32 %v7368, %v7483
    %v7526 = vadd.f32 %v7369, %v7496
    %v7527 = vadd.f32 %v7370, %v7509
    %v7528 = vadd.f32 %v7371, %v7522
    %s7529 = scalar_lea.vmem %s3, 5504
    %v7530 = vld [vmem:[%s7529] sm:$0xff]
    %v7531 = vld [vmem:[%s7529 + $0x8] sm:$0xff]
    %v7532 = vld [vmem:[%s7529 + $0x10] sm:$0xff]
    %v7533 = vld [vmem:[%s7529 + $0x18] sm:$0xff]
    %v7534 = vld [vmem:[%s7529 + $0x20] sm:$0xff]
    %v7535 = vld [vmem:[%s7529 + $0x28] sm:$0xff]
    %v7536 = vld [vmem:[%s7529 + $0x30] sm:$0xff]
    %v7537 = vld [vmem:[%s7529 + $0x38] sm:$0xff]
    %v7538 = vld [vmem:[%s7529 + $0x40] sm:$0xff]
    %v7539 = vld [vmem:[%s7529 + $0x48] sm:$0xff]
    %v7540 = vld [vmem:[%s7529 + $0x50] sm:$0xff]
    %v7541 = vld [vmem:[%s7529 + $0x58] sm:$0xff]
    %v7542 = vld [vmem:[%s7529 + $0x60] sm:$0xff]
    %v7543 = vld [vmem:[%s7529 + $0x68] sm:$0xff]
    %v7544 = vld [vmem:[%s7529 + $0x70] sm:$0xff]
    %v7545 = vld [vmem:[%s7529 + $0x78] sm:$0xff]
    %v7546 = vrot.slane %v7057, 3
    %v7563 = vunpack.c.l.b16 %v7530
    %v7564 = vunpack.c.h.b16 %v7530
    %v7565 = vunpack.c.l.b16 %v7531
    %v7566 = vunpack.c.h.b16 %v7531
    %v7567 = vunpack.c.l.b16 %v7532
    %v7568 = vunpack.c.h.b16 %v7532
    %v7569 = vunpack.c.l.b16 %v7533
    %v7570 = vunpack.c.h.b16 %v7533
    %v7571 = vunpack.c.l.b16 %v7534
    %v7572 = vunpack.c.h.b16 %v7534
    %v7573 = vunpack.c.l.b16 %v7535
    %v7574 = vunpack.c.h.b16 %v7535
    %v7575 = vunpack.c.l.b16 %v7536
    %v7576 = vunpack.c.h.b16 %v7536
    %v7577 = vunpack.c.l.b16 %v7537
    %v7578 = vunpack.c.h.b16 %v7537
    %v7579 = vunpack.c.l.b16 %v7538
    %v7580 = vunpack.c.h.b16 %v7538
    %v7581 = vunpack.c.l.b16 %v7539
    %v7582 = vunpack.c.h.b16 %v7539
    %v7583 = vunpack.c.l.b16 %v7540
    %v7584 = vunpack.c.h.b16 %v7540
    %v7585 = vunpack.c.l.b16 %v7541
    %v7586 = vunpack.c.h.b16 %v7541
    %v7587 = vunpack.c.l.b16 %v7542
    %v7588 = vunpack.c.h.b16 %v7542
    %v7589 = vunpack.c.l.b16 %v7543
    %v7590 = vunpack.c.h.b16 %v7543
    %v7591 = vunpack.c.l.b16 %v7544
    %v7592 = vunpack.c.h.b16 %v7544
    %v7593 = vunpack.c.l.b16 %v7545
    %v7594 = vunpack.c.h.b16 %v7545
    %v7595 = vpack.c.b16 %v7567, %v7563
    %v7596 = vpack.c.b16 %v7568, %v7564
    %v7597 = vpack.c.b16 %v7569, %v7565
    %v7598 = vpack.c.b16 %v7570, %v7566
    %v7599 = vpack.c.b16 %v7575, %v7571
    %v7600 = vpack.c.b16 %v7576, %v7572
    %v7601 = vpack.c.b16 %v7577, %v7573
    %v7602 = vpack.c.b16 %v7578, %v7574
    %v7603 = vpack.c.b16 %v7583, %v7579
    %v7604 = vpack.c.b16 %v7584, %v7580
    %v7605 = vpack.c.b16 %v7585, %v7581
    %v7606 = vpack.c.b16 %v7586, %v7582
    %v7607 = vpack.c.b16 %v7591, %v7587
    %v7608 = vpack.c.b16 %v7592, %v7588
    %v7609 = vpack.c.b16 %v7593, %v7589
    %v7610 = vpack.c.b16 %v7594, %v7590
    %v7628 = vsel %vm526, %v7546, 0
    %7630 = vmatpush.bf16.msra.mxu0 0
    %7631 = vmatpush.bf16.msra.mxu0 0
    %7632 = vmatpush.bf16.msra.mxu0 0
    %7633 = vmatpush.bf16.msra.mxu0 0
    %7634 = vmatpush.bf16.msra.mxu0 %v7607
    %7635 = vmatpush.bf16.msra.mxu0 %v7603
    %7636 = vmatpush.bf16.msra.mxu0 %v7599
    %7637 = vmatpush.bf16.msra.mxu0 %v7595
    %7638 = vmatmul.bf16.gmra.mxu0 %v7628
    %v7639 = vpop.f32.mrf.mxu0
    %v7640 = vadd.f32 0.0, %v7639
    %v7641 = vpop.f32.mrf.mxu0
    %7642 = vdwg.mxu0
    %7643 = vmatpush.bf16.msra.mxu0 0
    %7644 = vmatpush.bf16.msra.mxu0 0
    %7645 = vmatpush.bf16.msra.mxu0 0
    %7646 = vmatpush.bf16.msra.mxu0 0
    %7647 = vmatpush.bf16.msra.mxu0 %v7608
    %7648 = vmatpush.bf16.msra.mxu0 %v7604
    %7649 = vmatpush.bf16.msra.mxu0 %v7600
    %7650 = vmatpush.bf16.msra.mxu0 %v7596
    %7651 = vmatmul.bf16.gmra.mxu0 %v7628
    %v7652 = vpop.f32.mrf.mxu0
    %v7653 = vadd.f32 0.0, %v7652
    %v7654 = vpop.f32.mrf.mxu0
    %7655 = vdwg.mxu0
    %7656 = vmatpush.bf16.msra.mxu0 0
    %7657 = vmatpush.bf16.msra.mxu0 0
    %7658 = vmatpush.bf16.msra.mxu0 0
    %7659 = vmatpush.bf16.msra.mxu0 0
    %7660 = vmatpush.bf16.msra.mxu0 %v7609
    %7661 = vmatpush.bf16.msra.mxu0 %v7605
    %7662 = vmatpush.bf16.msra.mxu0 %v7601
    %7663 = vmatpush.bf16.msra.mxu0 %v7597
    %7664 = vmatmul.bf16.gmra.mxu0 %v7628
    %v7665 = vpop.f32.mrf.mxu0
    %v7666 = vadd.f32 0.0, %v7665
    %v7667 = vpop.f32.mrf.mxu0
    %7668 = vdwg.mxu0
    %7669 = vmatpush.bf16.msra.mxu0 0
    %7670 = vmatpush.bf16.msra.mxu0 0
    %7671 = vmatpush.bf16.msra.mxu0 0
    %7672 = vmatpush.bf16.msra.mxu0 0
    %7673 = vmatpush.bf16.msra.mxu0 %v7610
    %7674 = vmatpush.bf16.msra.mxu0 %v7606
    %7675 = vmatpush.bf16.msra.mxu0 %v7602
    %7676 = vmatpush.bf16.msra.mxu0 %v7598
    %7677 = vmatmul.bf16.gmra.mxu0 %v7628
    %v7678 = vpop.f32.mrf.mxu0
    %v7679 = vadd.f32 0.0, %v7678
    %v7680 = vpop.f32.mrf.mxu0
    %7681 = vdwg.mxu0
    %v7682 = vadd.f32 %v7525, %v7640
    %v7683 = vadd.f32 %v7526, %v7653
    %v7684 = vadd.f32 %v7527, %v7666
    %v7685 = vadd.f32 %v7528, %v7679
    %v7686 = vpack.c.bf16 %v774, %v774
    %s7687 = scalar_lea.vmem %s3, 5632
    %v7688 = vld [vmem:[%s7687] sm:$0xff]
    %v7689 = vld [vmem:[%s7687 + $0x8] sm:$0xff]
    %v7690 = vld [vmem:[%s7687 + $0x10] sm:$0xff]
    %v7691 = vld [vmem:[%s7687 + $0x18] sm:$0xff]
    %v7692 = vld [vmem:[%s7687 + $0x20] sm:$0xff]
    %v7693 = vld [vmem:[%s7687 + $0x28] sm:$0xff]
    %v7694 = vld [vmem:[%s7687 + $0x30] sm:$0xff]
    %v7695 = vld [vmem:[%s7687 + $0x38] sm:$0xff]
    %v7696 = vld [vmem:[%s7687 + $0x40] sm:$0xff]
    %v7697 = vld [vmem:[%s7687 + $0x48] sm:$0xff]
    %v7698 = vld [vmem:[%s7687 + $0x50] sm:$0xff]
    %v7699 = vld [vmem:[%s7687 + $0x58] sm:$0xff]
    %v7700 = vld [vmem:[%s7687 + $0x60] sm:$0xff]
    %v7701 = vld [vmem:[%s7687 + $0x68] sm:$0xff]
    %v7702 = vld [vmem:[%s7687 + $0x70] sm:$0xff]
    %v7703 = vld [vmem:[%s7687 + $0x78] sm:$0xff]
    %v7720 = vunpack.c.l.b16 %v7688
    %v7721 = vunpack.c.h.b16 %v7688
    %v7722 = vunpack.c.l.b16 %v7689
    %v7723 = vunpack.c.h.b16 %v7689
    %v7724 = vunpack.c.l.b16 %v7690
    %v7725 = vunpack.c.h.b16 %v7690
    %v7726 = vunpack.c.l.b16 %v7691
    %v7727 = vunpack.c.h.b16 %v7691
    %v7728 = vunpack.c.l.b16 %v7692
    %v7729 = vunpack.c.h.b16 %v7692
    %v7730 = vunpack.c.l.b16 %v7693
    %v7731 = vunpack.c.h.b16 %v7693
    %v7732 = vunpack.c.l.b16 %v7694
    %v7733 = vunpack.c.h.b16 %v7694
    %v7734 = vunpack.c.l.b16 %v7695
    %v7735 = vunpack.c.h.b16 %v7695
    %v7736 = vunpack.c.l.b16 %v7696
    %v7737 = vunpack.c.h.b16 %v7696
    %v7738 = vunpack.c.l.b16 %v7697
    %v7739 = vunpack.c.h.b16 %v7697
    %v7740 = vunpack.c.l.b16 %v7698
    %v7741 = vunpack.c.h.b16 %v7698
    %v7742 = vunpack.c.l.b16 %v7699
    %v7743 = vunpack.c.h.b16 %v7699
    %v7744 = vunpack.c.l.b16 %v7700
    %v7745 = vunpack.c.h.b16 %v7700
    %v7746 = vunpack.c.l.b16 %v7701
    %v7747 = vunpack.c.h.b16 %v7701
    %v7748 = vunpack.c.l.b16 %v7702
    %v7749 = vunpack.c.h.b16 %v7702
    %v7750 = vunpack.c.l.b16 %v7703
    %v7751 = vunpack.c.h.b16 %v7703
    %v7752 = vpack.c.b16 %v7724, %v7720
    %v7753 = vpack.c.b16 %v7725, %v7721
    %v7754 = vpack.c.b16 %v7726, %v7722
    %v7755 = vpack.c.b16 %v7727, %v7723
    %v7756 = vpack.c.b16 %v7732, %v7728
    %v7757 = vpack.c.b16 %v7733, %v7729
    %v7758 = vpack.c.b16 %v7734, %v7730
    %v7759 = vpack.c.b16 %v7735, %v7731
    %v7760 = vpack.c.b16 %v7740, %v7736
    %v7761 = vpack.c.b16 %v7741, %v7737
    %v7762 = vpack.c.b16 %v7742, %v7738
    %v7763 = vpack.c.b16 %v7743, %v7739
    %v7764 = vpack.c.b16 %v7748, %v7744
    %v7765 = vpack.c.b16 %v7749, %v7745
    %v7766 = vpack.c.b16 %v7750, %v7746
    %v7767 = vpack.c.b16 %v7751, %v7747
    %v7785 = vsel %vm526, %v7686, 0
    %7787 = vmatpush.bf16.msra.mxu0 0
    %7788 = vmatpush.bf16.msra.mxu0 0
    %7789 = vmatpush.bf16.msra.mxu0 0
    %7790 = vmatpush.bf16.msra.mxu0 0
    %7791 = vmatpush.bf16.msra.mxu0 %v7764
    %7792 = vmatpush.bf16.msra.mxu0 %v7760
    %7793 = vmatpush.bf16.msra.mxu0 %v7756
    %7794 = vmatpush.bf16.msra.mxu0 %v7752
    %7795 = vmatmul.bf16.gmra.mxu0 %v7785
    %v7796 = vpop.f32.mrf.mxu0
    %v7797 = vadd.f32 0.0, %v7796
    %v7798 = vpop.f32.mrf.mxu0
    %7799 = vdwg.mxu0
    %7800 = vmatpush.bf16.msra.mxu0 0
    %7801 = vmatpush.bf16.msra.mxu0 0
    %7802 = vmatpush.bf16.msra.mxu0 0
    %7803 = vmatpush.bf16.msra.mxu0 0
    %7804 = vmatpush.bf16.msra.mxu0 %v7765
    %7805 = vmatpush.bf16.msra.mxu0 %v7761
    %7806 = vmatpush.bf16.msra.mxu0 %v7757
    %7807 = vmatpush.bf16.msra.mxu0 %v7753
    %7808 = vmatmul.bf16.gmra.mxu0 %v7785
    %v7809 = vpop.f32.mrf.mxu0
    %v7810 = vadd.f32 0.0, %v7809
    %v7811 = vpop.f32.mrf.mxu0
    %7812 = vdwg.mxu0
    %7813 = vmatpush.bf16.msra.mxu0 0
    %7814 = vmatpush.bf16.msra.mxu0 0
    %7815 = vmatpush.bf16.msra.mxu0 0
    %7816 = vmatpush.bf16.msra.mxu0 0
    %7817 = vmatpush.bf16.msra.mxu0 %v7766
    %7818 = vmatpush.bf16.msra.mxu0 %v7762
    %7819 = vmatpush.bf16.msra.mxu0 %v7758
    %7820 = vmatpush.bf16.msra.mxu0 %v7754
    %7821 = vmatmul.bf16.gmra.mxu0 %v7785
    %v7822 = vpop.f32.mrf.mxu0
    %v7823 = vadd.f32 0.0, %v7822
    %v7824 = vpop.f32.mrf.mxu0
    %7825 = vdwg.mxu0
    %7826 = vmatpush.bf16.msra.mxu0 0
    %7827 = vmatpush.bf16.msra.mxu0 0
    %7828 = vmatpush.bf16.msra.mxu0 0
    %7829 = vmatpush.bf16.msra.mxu0 0
    %7830 = vmatpush.bf16.msra.mxu0 %v7767
    %7831 = vmatpush.bf16.msra.mxu0 %v7763
    %7832 = vmatpush.bf16.msra.mxu0 %v7759
    %7833 = vmatpush.bf16.msra.mxu0 %v7755
    %7834 = vmatmul.bf16.gmra.mxu0 %v7785
    %v7835 = vpop.f32.mrf.mxu0
    %v7836 = vadd.f32 0.0, %v7835
    %v7837 = vpop.f32.mrf.mxu0
    %7838 = vdwg.mxu0
    %v7839 = vadd.f32 %v7682, %v7797
    %v7840 = vadd.f32 %v7683, %v7810
    %v7841 = vadd.f32 %v7684, %v7823
    %v7842 = vadd.f32 %v7685, %v7836
    %s7843 = scalar_lea.vmem %s3, 5760
    %v7844 = vld [vmem:[%s7843] sm:$0xff]
    %v7845 = vld [vmem:[%s7843 + $0x8] sm:$0xff]
    %v7846 = vld [vmem:[%s7843 + $0x10] sm:$0xff]
    %v7847 = vld [vmem:[%s7843 + $0x18] sm:$0xff]
    %v7848 = vld [vmem:[%s7843 + $0x20] sm:$0xff]
    %v7849 = vld [vmem:[%s7843 + $0x28] sm:$0xff]
    %v7850 = vld [vmem:[%s7843 + $0x30] sm:$0xff]
    %v7851 = vld [vmem:[%s7843 + $0x38] sm:$0xff]
    %v7852 = vld [vmem:[%s7843 + $0x40] sm:$0xff]
    %v7853 = vld [vmem:[%s7843 + $0x48] sm:$0xff]
    %v7854 = vld [vmem:[%s7843 + $0x50] sm:$0xff]
    %v7855 = vld [vmem:[%s7843 + $0x58] sm:$0xff]
    %v7856 = vld [vmem:[%s7843 + $0x60] sm:$0xff]
    %v7857 = vld [vmem:[%s7843 + $0x68] sm:$0xff]
    %v7858 = vld [vmem:[%s7843 + $0x70] sm:$0xff]
    %v7859 = vld [vmem:[%s7843 + $0x78] sm:$0xff]
    %v7861 = vrot.slane %v7686, 1
    %v7878 = vunpack.c.l.b16 %v7844
    %v7879 = vunpack.c.h.b16 %v7844
    %v7880 = vunpack.c.l.b16 %v7845
    %v7881 = vunpack.c.h.b16 %v7845
    %v7882 = vunpack.c.l.b16 %v7846
    %v7883 = vunpack.c.h.b16 %v7846
    %v7884 = vunpack.c.l.b16 %v7847
    %v7885 = vunpack.c.h.b16 %v7847
    %v7886 = vunpack.c.l.b16 %v7848
    %v7887 = vunpack.c.h.b16 %v7848
    %v7888 = vunpack.c.l.b16 %v7849
    %v7889 = vunpack.c.h.b16 %v7849
    %v7890 = vunpack.c.l.b16 %v7850
    %v7891 = vunpack.c.h.b16 %v7850
    %v7892 = vunpack.c.l.b16 %v7851
    %v7893 = vunpack.c.h.b16 %v7851
    %v7894 = vunpack.c.l.b16 %v7852
    %v7895 = vunpack.c.h.b16 %v7852
    %v7896 = vunpack.c.l.b16 %v7853
    %v7897 = vunpack.c.h.b16 %v7853
    %v7898 = vunpack.c.l.b16 %v7854
    %v7899 = vunpack.c.h.b16 %v7854
    %v7900 = vunpack.c.l.b16 %v7855
    %v7901 = vunpack.c.h.b16 %v7855
    %v7902 = vunpack.c.l.b16 %v7856
    %v7903 = vunpack.c.h.b16 %v7856
    %v7904 = vunpack.c.l.b16 %v7857
    %v7905 = vunpack.c.h.b16 %v7857
    %v7906 = vunpack.c.l.b16 %v7858
    %v7907 = vunpack.c.h.b16 %v7858
    %v7908 = vunpack.c.l.b16 %v7859
    %v7909 = vunpack.c.h.b16 %v7859
    %v7910 = vpack.c.b16 %v7882, %v7878
    %v7911 = vpack.c.b16 %v7883, %v7879
    %v7912 = vpack.c.b16 %v7884, %v7880
    %v7913 = vpack.c.b16 %v7885, %v7881
    %v7914 = vpack.c.b16 %v7890, %v7886
    %v7915 = vpack.c.b16 %v7891, %v7887
    %v7916 = vpack.c.b16 %v7892, %v7888
    %v7917 = vpack.c.b16 %v7893, %v7889
    %v7918 = vpack.c.b16 %v7898, %v7894
    %v7919 = vpack.c.b16 %v7899, %v7895
    %v7920 = vpack.c.b16 %v7900, %v7896
    %v7921 = vpack.c.b16 %v7901, %v7897
    %v7922 = vpack.c.b16 %v7906, %v7902
    %v7923 = vpack.c.b16 %v7907, %v7903
    %v7924 = vpack.c.b16 %v7908, %v7904
    %v7925 = vpack.c.b16 %v7909, %v7905
    %v7943 = vsel %vm526, %v7861, 0
    %7945 = vmatpush.bf16.msra.mxu0 0
    %7946 = vmatpush.bf16.msra.mxu0 0
    %7947 = vmatpush.bf16.msra.mxu0 0
    %7948 = vmatpush.bf16.msra.mxu0 0
    %7949 = vmatpush.bf16.msra.mxu0 %v7922
    %7950 = vmatpush.bf16.msra.mxu0 %v7918
    %7951 = vmatpush.bf16.msra.mxu0 %v7914
    %7952 = vmatpush.bf16.msra.mxu0 %v7910
    %7953 = vmatmul.bf16.gmra.mxu0 %v7943
    %v7954 = vpop.f32.mrf.mxu0
    %v7955 = vadd.f32 0.0, %v7954
    %v7956 = vpop.f32.mrf.mxu0
    %7957 = vdwg.mxu0
    %7958 = vmatpush.bf16.msra.mxu0 0
    %7959 = vmatpush.bf16.msra.mxu0 0
    %7960 = vmatpush.bf16.msra.mxu0 0
    %7961 = vmatpush.bf16.msra.mxu0 0
    %7962 = vmatpush.bf16.msra.mxu0 %v7923
    %7963 = vmatpush.bf16.msra.mxu0 %v7919
    %7964 = vmatpush.bf16.msra.mxu0 %v7915
    %7965 = vmatpush.bf16.msra.mxu0 %v7911
    %7966 = vmatmul.bf16.gmra.mxu0 %v7943
    %v7967 = vpop.f32.mrf.mxu0
    %v7968 = vadd.f32 0.0, %v7967
    %v7969 = vpop.f32.mrf.mxu0
    %7970 = vdwg.mxu0
    %7971 = vmatpush.bf16.msra.mxu0 0
    %7972 = vmatpush.bf16.msra.mxu0 0
    %7973 = vmatpush.bf16.msra.mxu0 0
    %7974 = vmatpush.bf16.msra.mxu0 0
    %7975 = vmatpush.bf16.msra.mxu0 %v7924
    %7976 = vmatpush.bf16.msra.mxu0 %v7920
    %7977 = vmatpush.bf16.msra.mxu0 %v7916
    %7978 = vmatpush.bf16.msra.mxu0 %v7912
    %7979 = vmatmul.bf16.gmra.mxu0 %v7943
    %v7980 = vpop.f32.mrf.mxu0
    %v7981 = vadd.f32 0.0, %v7980
    %v7982 = vpop.f32.mrf.mxu0
    %7983 = vdwg.mxu0
    %7984 = vmatpush.bf16.msra.mxu0 0
    %7985 = vmatpush.bf16.msra.mxu0 0
    %7986 = vmatpush.bf16.msra.mxu0 0
    %7987 = vmatpush.bf16.msra.mxu0 0
    %7988 = vmatpush.bf16.msra.mxu0 %v7925
    %7989 = vmatpush.bf16.msra.mxu0 %v7921
    %7990 = vmatpush.bf16.msra.mxu0 %v7917
    %7991 = vmatpush.bf16.msra.mxu0 %v7913
    %7992 = vmatmul.bf16.gmra.mxu0 %v7943
    %v7993 = vpop.f32.mrf.mxu0
    %v7994 = vadd.f32 0.0, %v7993
    %v7995 = vpop.f32.mrf.mxu0
    %7996 = vdwg.mxu0
    %v7997 = vadd.f32 %v7839, %v7955
    %v7998 = vadd.f32 %v7840, %v7968
    %v7999 = vadd.f32 %v7841, %v7981
    %v8000 = vadd.f32 %v7842, %v7994
    %s8001 = scalar_lea.vmem %s3, 5888
    %v8002 = vld [vmem:[%s8001] sm:$0xff]
    %v8003 = vld [vmem:[%s8001 + $0x8] sm:$0xff]
    %v8004 = vld [vmem:[%s8001 + $0x10] sm:$0xff]
    %v8005 = vld [vmem:[%s8001 + $0x18] sm:$0xff]
    %v8006 = vld [vmem:[%s8001 + $0x20] sm:$0xff]
    %v8007 = vld [vmem:[%s8001 + $0x28] sm:$0xff]
    %v8008 = vld [vmem:[%s8001 + $0x30] sm:$0xff]
    %v8009 = vld [vmem:[%s8001 + $0x38] sm:$0xff]
    %v8010 = vld [vmem:[%s8001 + $0x40] sm:$0xff]
    %v8011 = vld [vmem:[%s8001 + $0x48] sm:$0xff]
    %v8012 = vld [vmem:[%s8001 + $0x50] sm:$0xff]
    %v8013 = vld [vmem:[%s8001 + $0x58] sm:$0xff]
    %v8014 = vld [vmem:[%s8001 + $0x60] sm:$0xff]
    %v8015 = vld [vmem:[%s8001 + $0x68] sm:$0xff]
    %v8016 = vld [vmem:[%s8001 + $0x70] sm:$0xff]
    %v8017 = vld [vmem:[%s8001 + $0x78] sm:$0xff]
    %v8018 = vrot.slane %v7686, 2
    %v8035 = vunpack.c.l.b16 %v8002
    %v8036 = vunpack.c.h.b16 %v8002
    %v8037 = vunpack.c.l.b16 %v8003
    %v8038 = vunpack.c.h.b16 %v8003
    %v8039 = vunpack.c.l.b16 %v8004
    %v8040 = vunpack.c.h.b16 %v8004
    %v8041 = vunpack.c.l.b16 %v8005
    %v8042 = vunpack.c.h.b16 %v8005
    %v8043 = vunpack.c.l.b16 %v8006
    %v8044 = vunpack.c.h.b16 %v8006
    %v8045 = vunpack.c.l.b16 %v8007
    %v8046 = vunpack.c.h.b16 %v8007
    %v8047 = vunpack.c.l.b16 %v8008
    %v8048 = vunpack.c.h.b16 %v8008
    %v8049 = vunpack.c.l.b16 %v8009
    %v8050 = vunpack.c.h.b16 %v8009
    %v8051 = vunpack.c.l.b16 %v8010
    %v8052 = vunpack.c.h.b16 %v8010
    %v8053 = vunpack.c.l.b16 %v8011
    %v8054 = vunpack.c.h.b16 %v8011
    %v8055 = vunpack.c.l.b16 %v8012
    %v8056 = vunpack.c.h.b16 %v8012
    %v8057 = vunpack.c.l.b16 %v8013
    %v8058 = vunpack.c.h.b16 %v8013
    %v8059 = vunpack.c.l.b16 %v8014
    %v8060 = vunpack.c.h.b16 %v8014
    %v8061 = vunpack.c.l.b16 %v8015
    %v8062 = vunpack.c.h.b16 %v8015
    %v8063 = vunpack.c.l.b16 %v8016
    %v8064 = vunpack.c.h.b16 %v8016
    %v8065 = vunpack.c.l.b16 %v8017
    %v8066 = vunpack.c.h.b16 %v8017
    %v8067 = vpack.c.b16 %v8039, %v8035
    %v8068 = vpack.c.b16 %v8040, %v8036
    %v8069 = vpack.c.b16 %v8041, %v8037
    %v8070 = vpack.c.b16 %v8042, %v8038
    %v8071 = vpack.c.b16 %v8047, %v8043
    %v8072 = vpack.c.b16 %v8048, %v8044
    %v8073 = vpack.c.b16 %v8049, %v8045
    %v8074 = vpack.c.b16 %v8050, %v8046
    %v8075 = vpack.c.b16 %v8055, %v8051
    %v8076 = vpack.c.b16 %v8056, %v8052
    %v8077 = vpack.c.b16 %v8057, %v8053
    %v8078 = vpack.c.b16 %v8058, %v8054
    %v8079 = vpack.c.b16 %v8063, %v8059
    %v8080 = vpack.c.b16 %v8064, %v8060
    %v8081 = vpack.c.b16 %v8065, %v8061
    %v8082 = vpack.c.b16 %v8066, %v8062
    %v8100 = vsel %vm526, %v8018, 0
    %8102 = vmatpush.bf16.msra.mxu0 0
    %8103 = vmatpush.bf16.msra.mxu0 0
    %8104 = vmatpush.bf16.msra.mxu0 0
    %8105 = vmatpush.bf16.msra.mxu0 0
    %8106 = vmatpush.bf16.msra.mxu0 %v8079
    %8107 = vmatpush.bf16.msra.mxu0 %v8075
    %8108 = vmatpush.bf16.msra.mxu0 %v8071
    %8109 = vmatpush.bf16.msra.mxu0 %v8067
    %8110 = vmatmul.bf16.gmra.mxu0 %v8100
    %v8111 = vpop.f32.mrf.mxu0
    %v8112 = vadd.f32 0.0, %v8111
    %v8113 = vpop.f32.mrf.mxu0
    %8114 = vdwg.mxu0
    %8115 = vmatpush.bf16.msra.mxu0 0
    %8116 = vmatpush.bf16.msra.mxu0 0
    %8117 = vmatpush.bf16.msra.mxu0 0
    %8118 = vmatpush.bf16.msra.mxu0 0
    %8119 = vmatpush.bf16.msra.mxu0 %v8080
    %8120 = vmatpush.bf16.msra.mxu0 %v8076
    %8121 = vmatpush.bf16.msra.mxu0 %v8072
    %8122 = vmatpush.bf16.msra.mxu0 %v8068
    %8123 = vmatmul.bf16.gmra.mxu0 %v8100
    %v8124 = vpop.f32.mrf.mxu0
    %v8125 = vadd.f32 0.0, %v8124
    %v8126 = vpop.f32.mrf.mxu0
    %8127 = vdwg.mxu0
    %8128 = vmatpush.bf16.msra.mxu0 0
    %8129 = vmatpush.bf16.msra.mxu0 0
    %8130 = vmatpush.bf16.msra.mxu0 0
    %8131 = vmatpush.bf16.msra.mxu0 0
    %8132 = vmatpush.bf16.msra.mxu0 %v8081
    %8133 = vmatpush.bf16.msra.mxu0 %v8077
    %8134 = vmatpush.bf16.msra.mxu0 %v8073
    %8135 = vmatpush.bf16.msra.mxu0 %v8069
    %8136 = vmatmul.bf16.gmra.mxu0 %v8100
    %v8137 = vpop.f32.mrf.mxu0
    %v8138 = vadd.f32 0.0, %v8137
    %v8139 = vpop.f32.mrf.mxu0
    %8140 = vdwg.mxu0
    %8141 = vmatpush.bf16.msra.mxu0 0
    %8142 = vmatpush.bf16.msra.mxu0 0
    %8143 = vmatpush.bf16.msra.mxu0 0
    %8144 = vmatpush.bf16.msra.mxu0 0
    %8145 = vmatpush.bf16.msra.mxu0 %v8082
    %8146 = vmatpush.bf16.msra.mxu0 %v8078
    %8147 = vmatpush.bf16.msra.mxu0 %v8074
    %8148 = vmatpush.bf16.msra.mxu0 %v8070
    %8149 = vmatmul.bf16.gmra.mxu0 %v8100
    %v8150 = vpop.f32.mrf.mxu0
    %v8151 = vadd.f32 0.0, %v8150
    %v8152 = vpop.f32.mrf.mxu0
    %8153 = vdwg.mxu0
    %v8154 = vadd.f32 %v7997, %v8112
    %v8155 = vadd.f32 %v7998, %v8125
    %v8156 = vadd.f32 %v7999, %v8138
    %v8157 = vadd.f32 %v8000, %v8151
    %s8158 = scalar_lea.vmem %s3, 6016
    %v8159 = vld [vmem:[%s8158] sm:$0xff]
    %v8160 = vld [vmem:[%s8158 + $0x8] sm:$0xff]
    %v8161 = vld [vmem:[%s8158 + $0x10] sm:$0xff]
    %v8162 = vld [vmem:[%s8158 + $0x18] sm:$0xff]
    %v8163 = vld [vmem:[%s8158 + $0x20] sm:$0xff]
    %v8164 = vld [vmem:[%s8158 + $0x28] sm:$0xff]
    %v8165 = vld [vmem:[%s8158 + $0x30] sm:$0xff]
    %v8166 = vld [vmem:[%s8158 + $0x38] sm:$0xff]
    %v8167 = vld [vmem:[%s8158 + $0x40] sm:$0xff]
    %v8168 = vld [vmem:[%s8158 + $0x48] sm:$0xff]
    %v8169 = vld [vmem:[%s8158 + $0x50] sm:$0xff]
    %v8170 = vld [vmem:[%s8158 + $0x58] sm:$0xff]
    %v8171 = vld [vmem:[%s8158 + $0x60] sm:$0xff]
    %v8172 = vld [vmem:[%s8158 + $0x68] sm:$0xff]
    %v8173 = vld [vmem:[%s8158 + $0x70] sm:$0xff]
    %v8174 = vld [vmem:[%s8158 + $0x78] sm:$0xff]
    %v8175 = vrot.slane %v7686, 3
    %v8192 = vunpack.c.l.b16 %v8159
    %v8193 = vunpack.c.h.b16 %v8159
    %v8194 = vunpack.c.l.b16 %v8160
    %v8195 = vunpack.c.h.b16 %v8160
    %v8196 = vunpack.c.l.b16 %v8161
    %v8197 = vunpack.c.h.b16 %v8161
    %v8198 = vunpack.c.l.b16 %v8162
    %v8199 = vunpack.c.h.b16 %v8162
    %v8200 = vunpack.c.l.b16 %v8163
    %v8201 = vunpack.c.h.b16 %v8163
    %v8202 = vunpack.c.l.b16 %v8164
    %v8203 = vunpack.c.h.b16 %v8164
    %v8204 = vunpack.c.l.b16 %v8165
    %v8205 = vunpack.c.h.b16 %v8165
    %v8206 = vunpack.c.l.b16 %v8166
    %v8207 = vunpack.c.h.b16 %v8166
    %v8208 = vunpack.c.l.b16 %v8167
    %v8209 = vunpack.c.h.b16 %v8167
    %v8210 = vunpack.c.l.b16 %v8168
    %v8211 = vunpack.c.h.b16 %v8168
    %v8212 = vunpack.c.l.b16 %v8169
    %v8213 = vunpack.c.h.b16 %v8169
    %v8214 = vunpack.c.l.b16 %v8170
    %v8215 = vunpack.c.h.b16 %v8170
    %v8216 = vunpack.c.l.b16 %v8171
    %v8217 = vunpack.c.h.b16 %v8171
    %v8218 = vunpack.c.l.b16 %v8172
    %v8219 = vunpack.c.h.b16 %v8172
    %v8220 = vunpack.c.l.b16 %v8173
    %v8221 = vunpack.c.h.b16 %v8173
    %v8222 = vunpack.c.l.b16 %v8174
    %v8223 = vunpack.c.h.b16 %v8174
    %v8224 = vpack.c.b16 %v8196, %v8192
    %v8225 = vpack.c.b16 %v8197, %v8193
    %v8226 = vpack.c.b16 %v8198, %v8194
    %v8227 = vpack.c.b16 %v8199, %v8195
    %v8228 = vpack.c.b16 %v8204, %v8200
    %v8229 = vpack.c.b16 %v8205, %v8201
    %v8230 = vpack.c.b16 %v8206, %v8202
    %v8231 = vpack.c.b16 %v8207, %v8203
    %v8232 = vpack.c.b16 %v8212, %v8208
    %v8233 = vpack.c.b16 %v8213, %v8209
    %v8234 = vpack.c.b16 %v8214, %v8210
    %v8235 = vpack.c.b16 %v8215, %v8211
    %v8236 = vpack.c.b16 %v8220, %v8216
    %v8237 = vpack.c.b16 %v8221, %v8217
    %v8238 = vpack.c.b16 %v8222, %v8218
    %v8239 = vpack.c.b16 %v8223, %v8219
    %v8257 = vsel %vm526, %v8175, 0
    %8259 = vmatpush.bf16.msra.mxu0 0
    %8260 = vmatpush.bf16.msra.mxu0 0
    %8261 = vmatpush.bf16.msra.mxu0 0
    %8262 = vmatpush.bf16.msra.mxu0 0
    %8263 = vmatpush.bf16.msra.mxu0 %v8236
    %8264 = vmatpush.bf16.msra.mxu0 %v8232
    %8265 = vmatpush.bf16.msra.mxu0 %v8228
    %8266 = vmatpush.bf16.msra.mxu0 %v8224
    %8267 = vmatmul.bf16.gmra.mxu0 %v8257
    %v8268 = vpop.f32.mrf.mxu0
    %v8269 = vadd.f32 0.0, %v8268
    %v8270 = vpop.f32.mrf.mxu0
    %8271 = vdwg.mxu0
    %8272 = vmatpush.bf16.msra.mxu0 0
    %8273 = vmatpush.bf16.msra.mxu0 0
    %8274 = vmatpush.bf16.msra.mxu0 0
    %8275 = vmatpush.bf16.msra.mxu0 0
    %8276 = vmatpush.bf16.msra.mxu0 %v8237
    %8277 = vmatpush.bf16.msra.mxu0 %v8233
    %8278 = vmatpush.bf16.msra.mxu0 %v8229
    %8279 = vmatpush.bf16.msra.mxu0 %v8225
    %8280 = vmatmul.bf16.gmra.mxu0 %v8257
    %v8281 = vpop.f32.mrf.mxu0
    %v8282 = vadd.f32 0.0, %v8281
    %v8283 = vpop.f32.mrf.mxu0
    %8284 = vdwg.mxu0
    %8285 = vmatpush.bf16.msra.mxu0 0
    %8286 = vmatpush.bf16.msra.mxu0 0
    %8287 = vmatpush.bf16.msra.mxu0 0
    %8288 = vmatpush.bf16.msra.mxu0 0
    %8289 = vmatpush.bf16.msra.mxu0 %v8238
    %8290 = vmatpush.bf16.msra.mxu0 %v8234
    %8291 = vmatpush.bf16.msra.mxu0 %v8230
    %8292 = vmatpush.bf16.msra.mxu0 %v8226
    %8293 = vmatmul.bf16.gmra.mxu0 %v8257
    %v8294 = vpop.f32.mrf.mxu0
    %v8295 = vadd.f32 0.0, %v8294
    %v8296 = vpop.f32.mrf.mxu0
    %8297 = vdwg.mxu0
    %8298 = vmatpush.bf16.msra.mxu0 0
    %8299 = vmatpush.bf16.msra.mxu0 0
    %8300 = vmatpush.bf16.msra.mxu0 0
    %8301 = vmatpush.bf16.msra.mxu0 0
    %8302 = vmatpush.bf16.msra.mxu0 %v8239
    %8303 = vmatpush.bf16.msra.mxu0 %v8235
    %8304 = vmatpush.bf16.msra.mxu0 %v8231
    %8305 = vmatpush.bf16.msra.mxu0 %v8227
    %8306 = vmatmul.bf16.gmra.mxu0 %v8257
    %v8307 = vpop.f32.mrf.mxu0
    %v8308 = vadd.f32 0.0, %v8307
    %v8309 = vpop.f32.mrf.mxu0
    %8310 = vdwg.mxu0
    %v8311 = vadd.f32 %v8154, %v8269
    %v8312 = vadd.f32 %v8155, %v8282
    %v8313 = vadd.f32 %v8156, %v8295
    %v8314 = vadd.f32 %v8157, %v8308
    %v8315 = vpack.c.bf16 %v775, %v775
    %s8316 = scalar_lea.vmem %s3, 6144
    %v8317 = vld [vmem:[%s8316] sm:$0xff]
    %v8318 = vld [vmem:[%s8316 + $0x8] sm:$0xff]
    %v8319 = vld [vmem:[%s8316 + $0x10] sm:$0xff]
    %v8320 = vld [vmem:[%s8316 + $0x18] sm:$0xff]
    %v8321 = vld [vmem:[%s8316 + $0x20] sm:$0xff]
    %v8322 = vld [vmem:[%s8316 + $0x28] sm:$0xff]
    %v8323 = vld [vmem:[%s8316 + $0x30] sm:$0xff]
    %v8324 = vld [vmem:[%s8316 + $0x38] sm:$0xff]
    %v8325 = vld [vmem:[%s8316 + $0x40] sm:$0xff]
    %v8326 = vld [vmem:[%s8316 + $0x48] sm:$0xff]
    %v8327 = vld [vmem:[%s8316 + $0x50] sm:$0xff]
    %v8328 = vld [vmem:[%s8316 + $0x58] sm:$0xff]
    %v8329 = vld [vmem:[%s8316 + $0x60] sm:$0xff]
    %v8330 = vld [vmem:[%s8316 + $0x68] sm:$0xff]
    %v8331 = vld [vmem:[%s8316 + $0x70] sm:$0xff]
    %v8332 = vld [vmem:[%s8316 + $0x78] sm:$0xff]
    %v8349 = vunpack.c.l.b16 %v8317
    %v8350 = vunpack.c.h.b16 %v8317
    %v8351 = vunpack.c.l.b16 %v8318
    %v8352 = vunpack.c.h.b16 %v8318
    %v8353 = vunpack.c.l.b16 %v8319
    %v8354 = vunpack.c.h.b16 %v8319
    %v8355 = vunpack.c.l.b16 %v8320
    %v8356 = vunpack.c.h.b16 %v8320
    %v8357 = vunpack.c.l.b16 %v8321
    %v8358 = vunpack.c.h.b16 %v8321
    %v8359 = vunpack.c.l.b16 %v8322
    %v8360 = vunpack.c.h.b16 %v8322
    %v8361 = vunpack.c.l.b16 %v8323
    %v8362 = vunpack.c.h.b16 %v8323
    %v8363 = vunpack.c.l.b16 %v8324
    %v8364 = vunpack.c.h.b16 %v8324
    %v8365 = vunpack.c.l.b16 %v8325
    %v8366 = vunpack.c.h.b16 %v8325
    %v8367 = vunpack.c.l.b16 %v8326
    %v8368 = vunpack.c.h.b16 %v8326
    %v8369 = vunpack.c.l.b16 %v8327
    %v8370 = vunpack.c.h.b16 %v8327
    %v8371 = vunpack.c.l.b16 %v8328
    %v8372 = vunpack.c.h.b16 %v8328
    %v8373 = vunpack.c.l.b16 %v8329
    %v8374 = vunpack.c.h.b16 %v8329
    %v8375 = vunpack.c.l.b16 %v8330
    %v8376 = vunpack.c.h.b16 %v8330
    %v8377 = vunpack.c.l.b16 %v8331
    %v8378 = vunpack.c.h.b16 %v8331
    %v8379 = vunpack.c.l.b16 %v8332
    %v8380 = vunpack.c.h.b16 %v8332
    %v8381 = vpack.c.b16 %v8353, %v8349
    %v8382 = vpack.c.b16 %v8354, %v8350
    %v8383 = vpack.c.b16 %v8355, %v8351
    %v8384 = vpack.c.b16 %v8356, %v8352
    %v8385 = vpack.c.b16 %v8361, %v8357
    %v8386 = vpack.c.b16 %v8362, %v8358
    %v8387 = vpack.c.b16 %v8363, %v8359
    %v8388 = vpack.c.b16 %v8364, %v8360
    %v8389 = vpack.c.b16 %v8369, %v8365
    %v8390 = vpack.c.b16 %v8370, %v8366
    %v8391 = vpack.c.b16 %v8371, %v8367
    %v8392 = vpack.c.b16 %v8372, %v8368
    %v8393 = vpack.c.b16 %v8377, %v8373
    %v8394 = vpack.c.b16 %v8378, %v8374
    %v8395 = vpack.c.b16 %v8379, %v8375
    %v8396 = vpack.c.b16 %v8380, %v8376
    %v8414 = vsel %vm526, %v8315, 0
    %8416 = vmatpush.bf16.msra.mxu0 0
    %8417 = vmatpush.bf16.msra.mxu0 0
    %8418 = vmatpush.bf16.msra.mxu0 0
    %8419 = vmatpush.bf16.msra.mxu0 0
    %8420 = vmatpush.bf16.msra.mxu0 %v8393
    %8421 = vmatpush.bf16.msra.mxu0 %v8389
    %8422 = vmatpush.bf16.msra.mxu0 %v8385
    %8423 = vmatpush.bf16.msra.mxu0 %v8381
    %8424 = vmatmul.bf16.gmra.mxu0 %v8414
    %v8425 = vpop.f32.mrf.mxu0
    %v8426 = vadd.f32 0.0, %v8425
    %v8427 = vpop.f32.mrf.mxu0
    %8428 = vdwg.mxu0
    %8429 = vmatpush.bf16.msra.mxu0 0
    %8430 = vmatpush.bf16.msra.mxu0 0
    %8431 = vmatpush.bf16.msra.mxu0 0
    %8432 = vmatpush.bf16.msra.mxu0 0
    %8433 = vmatpush.bf16.msra.mxu0 %v8394
    %8434 = vmatpush.bf16.msra.mxu0 %v8390
    %8435 = vmatpush.bf16.msra.mxu0 %v8386
    %8436 = vmatpush.bf16.msra.mxu0 %v8382
    %8437 = vmatmul.bf16.gmra.mxu0 %v8414
    %v8438 = vpop.f32.mrf.mxu0
    %v8439 = vadd.f32 0.0, %v8438
    %v8440 = vpop.f32.mrf.mxu0
    %8441 = vdwg.mxu0
    %8442 = vmatpush.bf16.msra.mxu0 0
    %8443 = vmatpush.bf16.msra.mxu0 0
    %8444 = vmatpush.bf16.msra.mxu0 0
    %8445 = vmatpush.bf16.msra.mxu0 0
    %8446 = vmatpush.bf16.msra.mxu0 %v8395
    %8447 = vmatpush.bf16.msra.mxu0 %v8391
    %8448 = vmatpush.bf16.msra.mxu0 %v8387
    %8449 = vmatpush.bf16.msra.mxu0 %v8383
    %8450 = vmatmul.bf16.gmra.mxu0 %v8414
    %v8451 = vpop.f32.mrf.mxu0
    %v8452 = vadd.f32 0.0, %v8451
    %v8453 = vpop.f32.mrf.mxu0
    %8454 = vdwg.mxu0
    %8455 = vmatpush.bf16.msra.mxu0 0
    %8456 = vmatpush.bf16.msra.mxu0 0
    %8457 = vmatpush.bf16.msra.mxu0 0
    %8458 = vmatpush.bf16.msra.mxu0 0
    %8459 = vmatpush.bf16.msra.mxu0 %v8396
    %8460 = vmatpush.bf16.msra.mxu0 %v8392
    %8461 = vmatpush.bf16.msra.mxu0 %v8388
    %8462 = vmatpush.bf16.msra.mxu0 %v8384
    %8463 = vmatmul.bf16.gmra.mxu0 %v8414
    %v8464 = vpop.f32.mrf.mxu0
    %v8465 = vadd.f32 0.0, %v8464
    %v8466 = vpop.f32.mrf.mxu0
    %8467 = vdwg.mxu0
    %v8468 = vadd.f32 %v8311, %v8426
    %v8469 = vadd.f32 %v8312, %v8439
    %v8470 = vadd.f32 %v8313, %v8452
    %v8471 = vadd.f32 %v8314, %v8465
    %v8472 = vld [vmem:[%s4] sm:$0xf]
    %v8474 = vperm.slane %v8472, 0
    %v8475 = vperm.slane %v8472, 1
    %v8476 = vperm.slane %v8472, 2
    %v8477 = vperm.slane %v8472, 3
    %v8482 = vadd.f32 %v8468, %v8474
    %v8483 = vadd.f32 %v8469, %v8475
    %v8484 = vadd.f32 %v8470, %v8476
    %v8485 = vadd.f32 %v8471, %v8477
    %v8486 = vmax.f32 %v8482, 0.0
    %v8487 = vmax.f32 %v8483, 0.0
    %v8488 = vmax.f32 %v8484, 0.0
    %v8489 = vmax.f32 %v8485, 0.0
    %v8490 = vpack.c.bf16 %v8486, %v8486
    %v8491 = vpack.c.bf16 %v8487, %v8487
    %v8492 = vpack.c.bf16 %v8488, %v8488
    %v8493 = vpack.c.bf16 %v8489, %v8489
    %v8494 = vld [vmem:[%s5] sm:$0xf]
    %v8495 = vld [vmem:[%s5 + $0x4] sm:$0xf]
    %v8496 = vld [vmem:[%s5 + $0x8] sm:$0xf]
    %v8497 = vld [vmem:[%s5 + $0xc] sm:$0xf]
    %v8498 = vld [vmem:[%s5 + $0x10] sm:$0xf]
    %v8499 = vld [vmem:[%s5 + $0x14] sm:$0xf]
    %v8500 = vld [vmem:[%s5 + $0x18] sm:$0xf]
    %v8501 = vld [vmem:[%s5 + $0x1c] sm:$0xf]
    %v8502 = vld [vmem:[%s5 + $0x20] sm:$0xf]
    %v8503 = vld [vmem:[%s5 + $0x24] sm:$0xf]
    %v8504 = vld [vmem:[%s5 + $0x28] sm:$0xf]
    %v8505 = vld [vmem:[%s5 + $0x2c] sm:$0xf]
    %v8506 = vld [vmem:[%s5 + $0x30] sm:$0xf]
    %v8507 = vld [vmem:[%s5 + $0x34] sm:$0xf]
    %v8508 = vld [vmem:[%s5 + $0x38] sm:$0xf]
    %v8509 = vld [vmem:[%s5 + $0x3c] sm:$0xf]
    %v8510 = vld [vmem:[%s5 + $0x40] sm:$0xf]
    %v8511 = vld [vmem:[%s5 + $0x44] sm:$0xf]
    %v8512 = vld [vmem:[%s5 + $0x48] sm:$0xf]
    %v8513 = vld [vmem:[%s5 + $0x4c] sm:$0xf]
    %v8514 = vld [vmem:[%s5 + $0x50] sm:$0xf]
    %v8515 = vld [vmem:[%s5 + $0x54] sm:$0xf]
    %v8516 = vld [vmem:[%s5 + $0x58] sm:$0xf]
    %v8517 = vld [vmem:[%s5 + $0x5c] sm:$0xf]
    %v8518 = vld [vmem:[%s5 + $0x60] sm:$0xf]
    %v8519 = vld [vmem:[%s5 + $0x64] sm:$0xf]
    %v8520 = vld [vmem:[%s5 + $0x68] sm:$0xf]
    %v8521 = vld [vmem:[%s5 + $0x6c] sm:$0xf]
    %v8522 = vld [vmem:[%s5 + $0x70] sm:$0xf]
    %v8523 = vld [vmem:[%s5 + $0x74] sm:$0xf]
    %v8524 = vld [vmem:[%s5 + $0x78] sm:$0xf]
    %v8525 = vld [vmem:[%s5 + $0x7c] sm:$0xf]
    %v8526 = vld [vmem:[%s5 + $0x80] sm:$0xf]
    %v8527 = vld [vmem:[%s5 + $0x84] sm:$0xf]
    %v8528 = vld [vmem:[%s5 + $0x88] sm:$0xf]
    %v8529 = vld [vmem:[%s5 + $0x8c] sm:$0xf]
    %v8530 = vld [vmem:[%s5 + $0x90] sm:$0xf]
    %v8531 = vld [vmem:[%s5 + $0x94] sm:$0xf]
    %v8532 = vld [vmem:[%s5 + $0x98] sm:$0xf]
    %v8533 = vld [vmem:[%s5 + $0x9c] sm:$0xf]
    %v8534 = vld [vmem:[%s5 + $0xa0] sm:$0xf]
    %v8535 = vld [vmem:[%s5 + $0xa4] sm:$0xf]
    %v8536 = vld [vmem:[%s5 + $0xa8] sm:$0xf]
    %v8537 = vld [vmem:[%s5 + $0xac] sm:$0xf]
    %v8538 = vld [vmem:[%s5 + $0xb0] sm:$0xf]
    %v8539 = vld [vmem:[%s5 + $0xb4] sm:$0xf]
    %v8540 = vld [vmem:[%s5 + $0xb8] sm:$0xf]
    %v8541 = vld [vmem:[%s5 + $0xbc] sm:$0xf]
    %v8542 = vld [vmem:[%s5 + $0xc0] sm:$0xf]
    %v8543 = vld [vmem:[%s5 + $0xc4] sm:$0xf]
    %v8544 = vld [vmem:[%s5 + $0xc8] sm:$0xf]
    %v8545 = vld [vmem:[%s5 + $0xcc] sm:$0xf]
    %v8546 = vld [vmem:[%s5 + $0xd0] sm:$0xf]
    %v8547 = vld [vmem:[%s5 + $0xd4] sm:$0xf]
    %v8548 = vld [vmem:[%s5 + $0xd8] sm:$0xf]
    %v8549 = vld [vmem:[%s5 + $0xdc] sm:$0xf]
    %v8550 = vld [vmem:[%s5 + $0xe0] sm:$0xf]
    %v8551 = vld [vmem:[%s5 + $0xe4] sm:$0xf]
    %v8552 = vld [vmem:[%s5 + $0xe8] sm:$0xf]
    %v8553 = vld [vmem:[%s5 + $0xec] sm:$0xf]
    %v8554 = vld [vmem:[%s5 + $0xf0] sm:$0xf]
    %v8555 = vld [vmem:[%s5 + $0xf4] sm:$0xf]
    %v8556 = vld [vmem:[%s5 + $0xf8] sm:$0xf]
    %v8557 = vld [vmem:[%s5 + $0xfc] sm:$0xf]
    %v8558 = vld [vmem:[%s6] sm:$0x1]
    %v8560 = vperm.slane %v8558, 0
    %v8626 = vunpack.c.l.b16 %v8494
    %v8627 = vunpack.c.l.b16 %v8495
    %v8628 = vunpack.c.l.b16 %v8496
    %v8629 = vunpack.c.l.b16 %v8497
    %v8630 = vunpack.c.l.b16 %v8498
    %v8631 = vunpack.c.l.b16 %v8499
    %v8632 = vunpack.c.l.b16 %v8500
    %v8633 = vunpack.c.l.b16 %v8501
    %v8634 = vunpack.c.l.b16 %v8502
    %v8635 = vunpack.c.l.b16 %v8503
    %v8636 = vunpack.c.l.b16 %v8504
    %v8637 = vunpack.c.l.b16 %v8505
    %v8638 = vunpack.c.l.b16 %v8506
    %v8639 = vunpack.c.l.b16 %v8507
    %v8640 = vunpack.c.l.b16 %v8508
    %v8641 = vunpack.c.l.b16 %v8509
    %v8642 = vunpack.c.l.b16 %v8510
    %v8643 = vunpack.c.l.b16 %v8511
    %v8644 = vunpack.c.l.b16 %v8512
    %v8645 = vunpack.c.l.b16 %v8513
    %v8646 = vunpack.c.l.b16 %v8514
    %v8647 = vunpack.c.l.b16 %v8515
    %v8648 = vunpack.c.l.b16 %v8516
    %v8649 = vunpack.c.l.b16 %v8517
    %v8650 = vunpack.c.l.b16 %v8518
    %v8651 = vunpack.c.l.b16 %v8519
    %v8652 = vunpack.c.l.b16 %v8520
    %v8653 = vunpack.c.l.b16 %v8521
    %v8654 = vunpack.c.l.b16 %v8522
    %v8655 = vunpack.c.l.b16 %v8523
    %v8656 = vunpack.c.l.b16 %v8524
    %v8657 = vunpack.c.l.b16 %v8525
    %v8658 = vunpack.c.l.b16 %v8526
    %v8659 = vunpack.c.l.b16 %v8527
    %v8660 = vunpack.c.l.b16 %v8528
    %v8661 = vunpack.c.l.b16 %v8529
    %v8662 = vunpack.c.l.b16 %v8530
    %v8663 = vunpack.c.l.b16 %v8531
    %v8664 = vunpack.c.l.b16 %v8532
    %v8665 = vunpack.c.l.b16 %v8533
    %v8666 = vunpack.c.l.b16 %v8534
    %v8667 = vunpack.c.l.b16 %v8535
    %v8668 = vunpack.c.l.b16 %v8536
    %v8669 = vunpack.c.l.b16 %v8537
    %v8670 = vunpack.c.l.b16 %v8538
    %v8671 = vunpack.c.l.b16 %v8539
    %v8672 = vunpack.c.l.b16 %v8540
    %v8673 = vunpack.c.l.b16 %v8541
    %v8674 = vunpack.c.l.b16 %v8542
    %v8675 = vunpack.c.l.b16 %v8543
    %v8676 = vunpack.c.l.b16 %v8544
    %v8677 = vunpack.c.l.b16 %v8545
    %v8678 = vunpack.c.l.b16 %v8546
    %v8679 = vunpack.c.l.b16 %v8547
    %v8680 = vunpack.c.l.b16 %v8548
    %v8681 = vunpack.c.l.b16 %v8549
    %v8682 = vunpack.c.l.b16 %v8550
    %v8683 = vunpack.c.l.b16 %v8551
    %v8684 = vunpack.c.l.b16 %v8552
    %v8685 = vunpack.c.l.b16 %v8553
    %v8686 = vunpack.c.l.b16 %v8554
    %v8687 = vunpack.c.l.b16 %v8555
    %v8688 = vunpack.c.l.b16 %v8556
    %v8689 = vunpack.c.l.b16 %v8557
    %v8690 = vpack.c.b16 %v8627, %v8626
    %v8691 = vpack.c.b16 %v8629, %v8628
    %v8692 = vpack.c.b16 %v8631, %v8630
    %v8693 = vpack.c.b16 %v8633, %v8632
    %v8694 = vpack.c.b16 %v8635, %v8634
    %v8695 = vpack.c.b16 %v8637, %v8636
    %v8696 = vpack.c.b16 %v8639, %v8638
    %v8697 = vpack.c.b16 %v8641, %v8640
    %v8698 = vpack.c.b16 %v8643, %v8642
    %v8699 = vpack.c.b16 %v8645, %v8644
    %v8700 = vpack.c.b16 %v8647, %v8646
    %v8701 = vpack.c.b16 %v8649, %v8648
    %v8702 = vpack.c.b16 %v8651, %v8650
    %v8703 = vpack.c.b16 %v8653, %v8652
    %v8704 = vpack.c.b16 %v8655, %v8654
    %v8705 = vpack.c.b16 %v8657, %v8656
    %v8706 = vpack.c.b16 %v8659, %v8658
    %v8707 = vpack.c.b16 %v8661, %v8660
    %v8708 = vpack.c.b16 %v8663, %v8662
    %v8709 = vpack.c.b16 %v8665, %v8664
    %v8710 = vpack.c.b16 %v8667, %v8666
    %v8711 = vpack.c.b16 %v8669, %v8668
    %v8712 = vpack.c.b16 %v8671, %v8670
    %v8713 = vpack.c.b16 %v8673, %v8672
    %v8714 = vpack.c.b16 %v8675, %v8674
    %v8715 = vpack.c.b16 %v8677, %v8676
    %v8716 = vpack.c.b16 %v8679, %v8678
    %v8717 = vpack.c.b16 %v8681, %v8680
    %v8718 = vpack.c.b16 %v8683, %v8682
    %v8719 = vpack.c.b16 %v8685, %v8684
    %v8720 = vpack.c.b16 %v8687, %v8686
    %v8721 = vpack.c.b16 %v8689, %v8688
    %8754 = vmatpush.bf16.msra.mxu0 %v8697
    %8755 = vmatpush.bf16.msra.mxu0 %v8696
    %8756 = vmatpush.bf16.msra.mxu0 %v8695
    %8757 = vmatpush.bf16.msra.mxu0 %v8694
    %8758 = vmatpush.bf16.msra.mxu0 %v8693
    %8759 = vmatpush.bf16.msra.mxu0 %v8692
    %8760 = vmatpush.bf16.msra.mxu0 %v8691
    %8761 = vmatpush.bf16.msra.mxu0 %v8690
    %8762 = vmatmul.bf16.gmra.mxu0 %v8490
    %v8763 = vpop.f32.mrf.mxu0
    %v8764 = vadd.f32 %v8560, %v8763
    %v8765 = vpop.f32.mrf.mxu0
    %8766 = vdwg.mxu0
    %8767 = vmatpush.bf16.msra.mxu0 %v8705
    %8768 = vmatpush.bf16.msra.mxu0 %v8704
    %8769 = vmatpush.bf16.msra.mxu0 %v8703
    %8770 = vmatpush.bf16.msra.mxu0 %v8702
    %8771 = vmatpush.bf16.msra.mxu0 %v8701
    %8772 = vmatpush.bf16.msra.mxu0 %v8700
    %8773 = vmatpush.bf16.msra.mxu0 %v8699
    %8774 = vmatpush.bf16.msra.mxu0 %v8698
    %8775 = vmatmul.bf16.gmra.mxu0 %v8491
    %v8776 = vpop.f32.mrf.mxu0
    %v8777 = vadd.f32 %v8764, %v8776
    %v8778 = vpop.f32.mrf.mxu0
    %8779 = vdwg.mxu0
    %8780 = vmatpush.bf16.msra.mxu0 %v8713
    %8781 = vmatpush.bf16.msra.mxu0 %v8712
    %8782 = vmatpush.bf16.msra.mxu0 %v8711
    %8783 = vmatpush.bf16.msra.mxu0 %v8710
    %8784 = vmatpush.bf16.msra.mxu0 %v8709
    %8785 = vmatpush.bf16.msra.mxu0 %v8708
    %8786 = vmatpush.bf16.msra.mxu0 %v8707
    %8787 = vmatpush.bf16.msra.mxu0 %v8706
    %8788 = vmatmul.bf16.gmra.mxu0 %v8492
    %v8789 = vpop.f32.mrf.mxu0
    %v8790 = vadd.f32 %v8777, %v8789
    %v8791 = vpop.f32.mrf.mxu0
    %8792 = vdwg.mxu0
    %8793 = vmatpush.bf16.msra.mxu0 %v8721
    %8794 = vmatpush.bf16.msra.mxu0 %v8720
    %8795 = vmatpush.bf16.msra.mxu0 %v8719
    %8796 = vmatpush.bf16.msra.mxu0 %v8718
    %8797 = vmatpush.bf16.msra.mxu0 %v8717
    %8798 = vmatpush.bf16.msra.mxu0 %v8716
    %8799 = vmatpush.bf16.msra.mxu0 %v8715
    %8800 = vmatpush.bf16.msra.mxu0 %v8714
    %8801 = vmatmul.bf16.gmra.mxu0 %v8493
    %v8802 = vpop.f32.mrf.mxu0
    %v8803 = vadd.f32 %v8790, %v8802
    %v8804 = vpop.f32.mrf.mxu0
    %8805 = vdwg.mxu0
    %8806 = vst [vmem:[#allocation2] sm:$0x3] %v8803
    // Predicated region
    $region30: #{dqn_forward.5} parent=1 // pred_check
      _
    $region31: #{dqn_forward.5} parent=1 // pred_check_branch
      %8808 = sbr.rel (0) target = $region33
    $region32: #{dqn_forward.5} parent=1 // pred_region
      %8810 = vsyncadd [#allocation3], 0
      %s8812 = sshll.u32 [#allocation2], 4
      %s8813 = int_to_ptr.vmem [resolvable:$true] %s8812
      %s8814 = sshll.u32 %s7, 4
      %s8815 = int_to_ptr.hbm [resolvable:$true] %s8814
      %8817 = dma.vmem_to_hbm [thread:$0]  %s8813, 32, %s8815, [#allocation3]
    $region33: #{dqn_forward.5} parent=1 // pred_fallthru
      _
    // Predicated region
    $region34: #{dqn_forward.5} parent=1 // pred_check
      _
    $region35: #{dqn_forward.5} parent=1 // pred_check_branch
      %8819 = sbr.rel (0) target = $region37
    $region36: #{dqn_forward.5} parent=1 // pred_region
      %8821 = dma.done [#allocation3], 32
    $region37: #{dqn_forward.5} parent=1 // pred_fallthru
      _
    %8822 = vsyncpa [#allocation3], 1

</llo_original>
